<compile_context>
chip_gen: v7x
topology: tpu7x:2x2x1
jax: 0.10.0
libtpu: 0.0.40
codegen_flags: <defaults>
</compile_context>

<pallas_src>
import numpy as np
import jax
import jax.numpy as jnp
from jax.experimental import pallas as pl
from jax.experimental.pallas import tpu as pltpu  # noqa: F401  (TPU backend)

# ---- model hyper-parameters (small, consistent with the module) -------------
B        = 2      # batch
T_TRG    = 8      # target sequence length
T_SRC    = 10     # source sequence length
HID      = 32     # hid_dim
N_HEADS  = 4
HEAD_DIM = HID // N_HEADS
PF       = 64     # pf_dim
N_LAYERS = 2
OUT_DIM  = 40     # output_dim (target vocab size)
MAX_LEN  = 100
EPS      = 1e-5   # nn.LayerNorm default
BT       = B * T_TRG
BS       = B * T_SRC


def _layer_norm(v, g, b):
    mu = jnp.mean(v, axis=-1, keepdims=True)
    var = jnp.mean((v - mu) ** 2, axis=-1, keepdims=True)
    return (v - mu) * jax.lax.rsqrt(var + EPS) * g + b


# -----------------------------------------------------------------------------
# Single fused kernel: embedding -> N_LAYERS x (self-attn, cross-attn, FFN) ->
# fc_out.  Everything lives in VMEM; no grid (kernel body runs once).
# -----------------------------------------------------------------------------
def fused_decoder_kernel(ids_ref, pos_ref, tok_ref, enc_ref,
                         tmask_ref, smask_ref,
                         sa_wqkv_ref, sa_bqkv_ref, sa_wo_ref, sa_bo_ref,
                         ca_wq_ref, ca_bq_ref, ca_wkv_ref, ca_bkv_ref,
                         ca_wo_ref, ca_bo_ref,
                         ln_w_ref, ln_b_ref,
                         ffw1_ref, ffb1_ref, ffw2_ref, ffb2_ref,
                         fc_w_ref, fc_b_ref,
                         out_ref, attn_ref):
    f32 = jnp.float32
    inv_scale = f32(1.0 / np.sqrt(HEAD_DIM))

    # --- embedding: one-hot token gather on the MXU + positional add ---------
    ids = ids_ref[...]                                            # (BT, 1) i32
    onehot = (ids == jax.lax.broadcasted_iota(jnp.int32, (BT, OUT_DIM), 1)
              ).astype(f32)
    tok = jnp.dot(onehot, tok_ref[...], preferred_element_type=f32)
    pos = jnp.concatenate([pos_ref[...]] * B, axis=0)             # (BT, HID)
    x = tok * f32(np.sqrt(HID)) + pos                             # (BT, HID)

    enc = enc_ref[...]                                            # (BS, HID)

    # additive mask biases, computed once (replaces per-head selects);
    # exp(e - 1e10 - max) underflows to exactly 0, matching masked_fill.
    tbias = (tmask_ref[...] - 1.0) * f32(1e10)                    # (B, Tq, Tq)
    sbias = (smask_ref[...] - 1.0) * f32(1e10)                    # (B, 1, Tk)

    def softmax(e):
        e = e - jnp.max(e, axis=-1, keepdims=True)
        p = jnp.exp(e)
        return p * pl.reciprocal(jnp.sum(p, axis=-1, keepdims=True),
                                 approx=False)

    def attention(q, k, v, bias, t_q, t_kv, write_attn):
        # q: (B*t_q, HID), k/v: (B*t_kv, HID); static per-batch / per-head loop.
        outs = []
        for b in range(B):
            qb = q[b * t_q:(b + 1) * t_q]
            kb = k[b * t_kv:(b + 1) * t_kv]
            vb = v[b * t_kv:(b + 1) * t_kv]
            bb = bias[b]
            heads = []
            for h in range(N_HEADS):
                lo, hi = h * HEAD_DIM, (h + 1) * HEAD_DIM
                e = jnp.dot(qb[:, lo:hi], kb[:, lo:hi].T,
                            preferred_element_type=f32) * inv_scale + bb
                p = softmax(e)
                if write_attn:
                    attn_ref[b, h] = p
                heads.append(jnp.dot(p, vb[:, lo:hi],
                                     preferred_element_type=f32))
            outs.append(jnp.concatenate(heads, axis=-1))          # (t_q, HID)
        return jnp.concatenate(outs, axis=0)                      # (B*t_q, HID)

    for l in range(N_LAYERS):                                     # static unroll
        lnw = ln_w_ref[l]                                         # (3, HID)
        lnb = ln_b_ref[l]

        # --- self attention: fused QKV projection -> single Wo matmul --------
        qkv = (jnp.dot(x, sa_wqkv_ref[l], preferred_element_type=f32)
               + sa_bqkv_ref[l])                                  # (BT, 3*HID)
        ctx = attention(qkv[:, 0:HID], qkv[:, HID:2 * HID], qkv[:, 2 * HID:],
                        tbias, T_TRG, T_TRG, False)
        sa = (jnp.dot(ctx, sa_wo_ref[l], preferred_element_type=f32)
              + sa_bo_ref[l])
        x = _layer_norm(x + sa, lnw[0:1], lnb[0:1])

        # --- encoder (cross) attention: fused K|V projection of encoder ------
        q = jnp.dot(x, ca_wq_ref[l], preferred_element_type=f32) + ca_bq_ref[l]
        kv = (jnp.dot(enc, ca_wkv_ref[l], preferred_element_type=f32)
              + ca_bkv_ref[l])                                    # (BS, 2*HID)
        ctx = attention(q, kv[:, 0:HID], kv[:, HID:], sbias,
                        T_TRG, T_SRC, l == N_LAYERS - 1)
        ca = (jnp.dot(ctx, ca_wo_ref[l], preferred_element_type=f32)
              + ca_bo_ref[l])
        x = _layer_norm(x + ca, lnw[1:2], lnb[1:2])

        # --- position-wise feedforward ----------------------------------------
        h1 = jnp.maximum(jnp.dot(x, ffw1_ref[l], preferred_element_type=f32)
                         + ffb1_ref[l], 0.0)
        ff = jnp.dot(h1, ffw2_ref[l], preferred_element_type=f32) + ffb2_ref[l]
        x = _layer_norm(x + ff, lnw[2:3], lnb[2:3])

    # --- final projection fc_out ----------------------------------------------
    out_ref[...] = (jnp.dot(x, fc_w_ref[...], preferred_element_type=f32)
                    + fc_b_ref[...])


@jax.jit
def decoder_forward(trg_ids, enc_src, trg_mask, src_mask, kp):
    ids = trg_ids.reshape(BT, 1).astype(jnp.int32)
    enc_flat = enc_src.reshape(BS, HID)
    out_flat, attn = pl.pallas_call(
        fused_decoder_kernel,
        out_shape=(jax.ShapeDtypeStruct((BT, OUT_DIM), jnp.float32),
                   jax.ShapeDtypeStruct((B, N_HEADS, T_TRG, T_SRC), jnp.float32)),
    )(ids, kp["pos_emb"], kp["tok_emb"], enc_flat, trg_mask, src_mask,
      kp["sa_wqkv"], kp["sa_bqkv"], kp["sa_wo"], kp["sa_bo"],
      kp["ca_wq"], kp["ca_bq"], kp["ca_wkv"], kp["ca_bkv"],
      kp["ca_wo"], kp["ca_bo"],
      kp["ln_w"], kp["ln_b"],
      kp["ffw1"], kp["ffb1"], kp["ffw2"], kp["ffb2"],
      kp["fc_w"], kp["fc_b"])
    return out_flat.reshape(B, T_TRG, OUT_DIM), attn


# -----------------------------------------------------------------------------
# One-time repacking of nn.Linear-style params into the fused kernel layout.
# attn_w / attn_b order per layer: [sa_q, sa_k, sa_v, sa_o, ca_q, ca_k, ca_v, ca_o]
# -----------------------------------------------------------------------------
def pack_params(params):
    def stack(fn):
        return jnp.stack([fn(lp) for lp in params["layers"]], axis=0)

    return {
        "tok_emb": params["tok_emb"],
        "pos_emb": params["pos_emb"][:T_TRG],
        "fc_w": params["fc_w"],
        "fc_b": params["fc_b"],
        "sa_wqkv": stack(lambda lp: jnp.concatenate(
            [lp["attn_w"][0], lp["attn_w"][1], lp["attn_w"][2]], axis=1)),
        "sa_bqkv": stack(lambda lp: jnp.concatenate(
            [lp["attn_b"][0], lp["attn_b"][1], lp["attn_b"][2]], axis=0)[None, :]),
        "sa_wo": stack(lambda lp: lp["attn_w"][3]),
        "sa_bo": stack(lambda lp: lp["attn_b"][3][None, :]),
        "ca_wq": stack(lambda lp: lp["attn_w"][4]),
        "ca_bq": stack(lambda lp: lp["attn_b"][4][None, :]),
        "ca_wkv": stack(lambda lp: jnp.concatenate(
            [lp["attn_w"][5], lp["attn_w"][6]], axis=1)),
        "ca_bkv": stack(lambda lp: jnp.concatenate(
            [lp["attn_b"][5], lp["attn_b"][6]], axis=0)[None, :]),
        "ca_wo": stack(lambda lp: lp["attn_w"][7]),
        "ca_bo": stack(lambda lp: lp["attn_b"][7][None, :]),
        "ln_w": stack(lambda lp: lp["ln_w"]),
        "ln_b": stack(lambda lp: lp["ln_b"]),
        "ffw1": stack(lambda lp: lp["ffw1"]),
        "ffb1": stack(lambda lp: lp["ffb1"]),
        "ffw2": stack(lambda lp: lp["ffw2"]),
        "ffb2": stack(lambda lp: lp["ffb2"]),
    }


# -----------------------------------------------------------------------------
# Pure-JAX reference (mirrors the PyTorch forward with dropout=identity)
# -----------------------------------------------------------------------------
def _ref_mha(q_in, kv_in, mask, Wq, bq, Wk, bk, Wv, bv, Wo, bo):
    Bq, Tq, _ = q_in.shape
    Tk = kv_in.shape[1]
    Q = (q_in @ Wq + bq).reshape(Bq, Tq, N_HEADS, HEAD_DIM).transpose(0, 2, 1, 3)
    K = (kv_in @ Wk + bk).reshape(Bq, Tk, N_HEADS, HEAD_DIM).transpose(0, 2, 1, 3)
    V = (kv_in @ Wv + bv).reshape(Bq, Tk, N_HEADS, HEAD_DIM).transpose(0, 2, 1, 3)
    e = jnp.einsum("bhqd,bhkd->bhqk", Q, K) / np.sqrt(HEAD_DIM)
    e = jnp.where(mask[:, None] == 0.0, -1e10, e)
    p = jax.nn.softmax(e, axis=-1)
    o = jnp.einsum("bhqk,bhkd->bhqd", p, V).transpose(0, 2, 1, 3).reshape(Bq, Tq, HID)
    return o @ Wo + bo, p


def reference_forward(trg_ids, enc_src, trg_mask, src_mask, params):
    pos = jnp.broadcast_to(jnp.arange(T_TRG)[None, :], (B, T_TRG))
    x = (params["tok_emb"][trg_ids] * jnp.sqrt(jnp.float32(HID))
         + params["pos_emb"][pos])
    attention = None
    for lp in params["layers"]:
        aw, ab = lp["attn_w"], lp["attn_b"]
        sa, _ = _ref_mha(x, x, trg_mask, aw[0], ab[0], aw[1], ab[1],
                         aw[2], ab[2], aw[3], ab[3])
        x = _layer_norm(x + sa, lp["ln_w"][0], lp["ln_b"][0])
        ca, attention = _ref_mha(x, enc_src, src_mask, aw[4], ab[4], aw[5], ab[5],
                                 aw[6], ab[6], aw[7], ab[7])
        x = _layer_norm(x + ca, lp["ln_w"][1], lp["ln_b"][1])
        ff = jnp.maximum(x @ lp["ffw1"] + lp["ffb1"][0], 0.0) @ lp["ffw2"] + lp["ffb2"][0]
        x = _layer_norm(x + ff, lp["ln_w"][2], lp["ln_b"][2])
    out = x @ params["fc_w"] + params["fc_b"][0]
    return out, attention


# -----------------------------------------------------------------------------
def init_params(key):
    def nrm(k, shape, s=0.05):
        return (s * jax.random.normal(k, shape)).astype(jnp.float32)

    keys = jax.random.split(key, 4 + N_LAYERS)
    params = {
        "tok_emb": nrm(keys[0], (OUT_DIM, HID), 0.5),
        "pos_emb": nrm(keys[1], (MAX_LEN, HID), 0.5),
        "fc_w": nrm(keys[2], (HID, OUT_DIM)),
        "fc_b": nrm(keys[3], (1, OUT_DIM)),
        "layers": [],
    }
    for l in range(N_LAYERS):
        lk = jax.random.split(keys[4 + l], 8)
        params["layers"].append({
            "attn_w": nrm(lk[0], (8, HID, HID)),
            "attn_b": nrm(lk[1], (8, HID)),
            "ln_w": (1.0 + nrm(lk[2], (3, HID), 0.1)).astype(jnp.float32),
            "ln_b": nrm(lk[3], (3, HID), 0.1),
            "ffw1": nrm(lk[4], (HID, PF)),
            "ffb1": nrm(lk[5], (1, PF)),
            "ffw2": nrm(lk[6], (PF, HID)),
            "ffb2": nrm(lk[7], (1, HID)),
        })
    return params


if __name__ == "__main__":
    key = jax.random.PRNGKey(0)
    k_tok, k_enc, k_par = jax.random.split(key, 3)

    trg_ids = jax.random.randint(k_tok, (B, T_TRG), 0, OUT_DIM, dtype=jnp.int32)
    enc_src = jax.random.normal(k_enc, (B, T_SRC, HID), dtype=jnp.float32)

    # causal target mask (B, T_trg, T_trg); source padding mask (B, 1, T_src)
    trg_mask = jnp.broadcast_to(jnp.tril(jnp.ones((T_TRG, T_TRG), jnp.float32)),
                                (B, T_TRG, T_TRG))
    src_mask = jnp.ones((B, 1, T_SRC), jnp.float32).at[1, 0, 7:].set(0.0)

    params = init_params(k_par)
    kparams = pack_params(params)

    out, attn = decoder_forward(trg_ids, enc_src, trg_mask, src_mask, kparams)
    out = jax.block_until_ready(out)
    attn = jax.block_until_ready(attn)

    ref_out, ref_attn = reference_forward(trg_ids, enc_src, trg_mask, src_mask, params)
    np.testing.assert_allclose(np.asarray(out), np.asarray(ref_out),
                               rtol=1e-4, atol=1e-4)
    np.testing.assert_allclose(np.asarray(attn), np.asarray(ref_attn),
                               rtol=1e-4, atol=1e-4)
    assert out.shape == (B, T_TRG, OUT_DIM)
    assert attn.shape == (B, N_HEADS, T_TRG, T_SRC)
    print("KERNEL_OK")
</pallas_src>

<mosaic_0001>
module attributes {stable_mosaic.version = 11 : i64} {
  func.func @fused_decoder_kernel(%arg0: memref<16x1xi32, #tpu.memory_space<vmem>>, %arg1: memref<8x32xf32, #tpu.memory_space<vmem>>, %arg2: memref<40x32xf32, #tpu.memory_space<vmem>>, %arg3: memref<20x32xf32, #tpu.memory_space<vmem>>, %arg4: memref<2x8x8xf32, #tpu.memory_space<vmem>>, %arg5: memref<2x1x10xf32, #tpu.memory_space<vmem>>, %arg6: memref<2x32x96xf32, #tpu.memory_space<vmem>>, %arg7: memref<2x1x96xf32, #tpu.memory_space<vmem>>, %arg8: memref<2x32x32xf32, #tpu.memory_space<vmem>>, %arg9: memref<2x1x32xf32, #tpu.memory_space<vmem>>, %arg10: memref<2x32x32xf32, #tpu.memory_space<vmem>>, %arg11: memref<2x1x32xf32, #tpu.memory_space<vmem>>, %arg12: memref<2x32x64xf32, #tpu.memory_space<vmem>>, %arg13: memref<2x1x64xf32, #tpu.memory_space<vmem>>, %arg14: memref<2x32x32xf32, #tpu.memory_space<vmem>>, %arg15: memref<2x1x32xf32, #tpu.memory_space<vmem>>, %arg16: memref<2x3x32xf32, #tpu.memory_space<vmem>>, %arg17: memref<2x3x32xf32, #tpu.memory_space<vmem>>, %arg18: memref<2x32x64xf32, #tpu.memory_space<vmem>>, %arg19: memref<2x1x64xf32, #tpu.memory_space<vmem>>, %arg20: memref<2x64x32xf32, #tpu.memory_space<vmem>>, %arg21: memref<2x1x32xf32, #tpu.memory_space<vmem>>, %arg22: memref<32x40xf32, #tpu.memory_space<vmem>>, %arg23: memref<1x40xf32, #tpu.memory_space<vmem>>, %arg24: memref<16x40xf32, #tpu.memory_space<vmem>>, %arg25: memref<2x4x8x10xf32, #tpu.memory_space<vmem>>) attributes {dimension_semantics = [], scalar_prefetch = 0 : i64, scratch_operands = 0 : i64, tpu.core_type = #tpu.core_type<tc>} {
    %c0 = arith.constant 0 : index
    %c0_0 = arith.constant 0 : index
    %0 = vector.load %arg0[%c0, %c0_0] : memref<16x1xi32, #tpu.memory_space<vmem>>, vector<16x1xi32>
    %1 = tpu.iota {dimensions = array<i32: 1>} : vector<16x40xi32>
    %2 = vector.broadcast %0 : vector<16x1xi32> to vector<16x40xi32>
    %3 = arith.cmpi eq, %2, %1 : vector<16x40xi32>
    %4 = arith.extui %3 : vector<16x40xi1> to vector<16x40xi32>
    %5 = arith.sitofp %4 : vector<16x40xi32> to vector<16x40xf32>
    %c0_1 = arith.constant 0 : index
    %c0_2 = arith.constant 0 : index
    %6 = vector.load %arg2[%c0_1, %c0_2] : memref<40x32xf32, #tpu.memory_space<vmem>>, vector<40x32xf32>
    %cst = arith.constant dense<0.000000e+00> : vector<16x32xf32>
    %7 = tpu.matmul %5, %6, %cst {dimension_numbers = #tpu.dot_dimension_numbers<[1], [0], [0], [1], [0, 0, 1, 1], [], []>} : vector<16x40xf32>, vector<40x32xf32>, vector<16x32xf32> -> vector<16x32xf32>
    %c0_3 = arith.constant 0 : index
    %c0_4 = arith.constant 0 : index
    %8 = vector.load %arg1[%c0_3, %c0_4] : memref<8x32xf32, #tpu.memory_space<vmem>>, vector<8x32xf32>
    %9 = tpu.concatenate %8, %8 in 0 : vector<8x32xf32>, vector<8x32xf32> -> vector<16x32xf32>
    %cst_5 = arith.constant 5.65685415 : f32
    %10 = vector.broadcast %cst_5 : f32 to vector<16x32xf32>
    %11 = arith.mulf %7, %10 : vector<16x32xf32>
    %12 = arith.addf %11, %9 : vector<16x32xf32>
    %c0_6 = arith.constant 0 : index
    %c0_7 = arith.constant 0 : index
    %13 = vector.load %arg3[%c0_6, %c0_7] : memref<20x32xf32, #tpu.memory_space<vmem>>, vector<20x32xf32>
    %c0_8 = arith.constant 0 : index
    %c0_9 = arith.constant 0 : index
    %c0_10 = arith.constant 0 : index
    %14 = vector.load %arg4[%c0_8, %c0_9, %c0_10] : memref<2x8x8xf32, #tpu.memory_space<vmem>>, vector<2x8x8xf32>
    %cst_11 = arith.constant 1.000000e+00 : f32
    %15 = vector.broadcast %cst_11 : f32 to vector<2x8x8xf32>
    %16 = arith.subf %14, %15 : vector<2x8x8xf32>
    %cst_12 = arith.constant 1.000000e+10 : f32
    %17 = vector.broadcast %cst_12 : f32 to vector<2x8x8xf32>
    %18 = arith.mulf %16, %17 : vector<2x8x8xf32>
    %c0_13 = arith.constant 0 : index
    %c0_14 = arith.constant 0 : index
    %c0_15 = arith.constant 0 : index
    %19 = vector.load %arg5[%c0_13, %c0_14, %c0_15] : memref<2x1x10xf32, #tpu.memory_space<vmem>>, vector<2x1x10xf32>
    %cst_16 = arith.constant 1.000000e+00 : f32
    %20 = vector.broadcast %cst_16 : f32 to vector<2x1x10xf32>
    %21 = arith.subf %19, %20 : vector<2x1x10xf32>
    %cst_17 = arith.constant 1.000000e+10 : f32
    %22 = vector.broadcast %cst_17 : f32 to vector<2x1x10xf32>
    %23 = arith.mulf %21, %22 : vector<2x1x10xf32>
    %c0_18 = arith.constant 0 : index
    %c0_19 = arith.constant 0 : index
    %c0_20 = arith.constant 0 : index
    %24 = vector.load %arg16[%c0_18, %c0_19, %c0_20] : memref<2x3x32xf32, #tpu.memory_space<vmem>>, vector<1x3x32xf32>
    %25 = vector.shape_cast %24 : vector<1x3x32xf32> to vector<3x32xf32>
    %c0_21 = arith.constant 0 : index
    %c0_22 = arith.constant 0 : index
    %c0_23 = arith.constant 0 : index
    %26 = vector.load %arg17[%c0_21, %c0_22, %c0_23] : memref<2x3x32xf32, #tpu.memory_space<vmem>>, vector<1x3x32xf32>
    %27 = vector.shape_cast %26 : vector<1x3x32xf32> to vector<3x32xf32>
    %c0_24 = arith.constant 0 : index
    %c0_25 = arith.constant 0 : index
    %c0_26 = arith.constant 0 : index
    %28 = vector.load %arg6[%c0_24, %c0_25, %c0_26] : memref<2x32x96xf32, #tpu.memory_space<vmem>>, vector<1x32x96xf32>
    %29 = vector.shape_cast %28 : vector<1x32x96xf32> to vector<32x96xf32>
    %cst_27 = arith.constant dense<0.000000e+00> : vector<16x96xf32>
    %30 = tpu.matmul %12, %29, %cst_27 {dimension_numbers = #tpu.dot_dimension_numbers<[1], [0], [0], [1], [0, 0, 1, 1], [], []>} : vector<16x32xf32>, vector<32x96xf32>, vector<16x96xf32> -> vector<16x96xf32>
    %c0_28 = arith.constant 0 : index
    %c0_29 = arith.constant 0 : index
    %c0_30 = arith.constant 0 : index
    %31 = vector.load %arg7[%c0_28, %c0_29, %c0_30] : memref<2x1x96xf32, #tpu.memory_space<vmem>>, vector<1x1x96xf32>
    %32 = vector.shape_cast %31 : vector<1x1x96xf32> to vector<1x96xf32>
    %33 = vector.broadcast %32 : vector<1x96xf32> to vector<16x96xf32>
    %34 = arith.addf %30, %33 : vector<16x96xf32>
    %35 = vector.extract_strided_slice %34 {offsets = [0, 0], sizes = [16, 32], strides = [1, 1]} : vector<16x96xf32> to vector<16x32xf32>
    %36 = vector.extract_strided_slice %34 {offsets = [0, 32], sizes = [16, 32], strides = [1, 1]} : vector<16x96xf32> to vector<16x32xf32>
    %37 = vector.extract_strided_slice %34 {offsets = [0, 64], sizes = [16, 32], strides = [1, 1]} : vector<16x96xf32> to vector<16x32xf32>
    %38 = vector.extract_strided_slice %35 {offsets = [0, 0], sizes = [8, 32], strides = [1, 1]} : vector<16x32xf32> to vector<8x32xf32>
    %39 = vector.extract_strided_slice %36 {offsets = [0, 0], sizes = [8, 32], strides = [1, 1]} : vector<16x32xf32> to vector<8x32xf32>
    %40 = vector.extract_strided_slice %37 {offsets = [0, 0], sizes = [8, 32], strides = [1, 1]} : vector<16x32xf32> to vector<8x32xf32>
    %41 = vector.extract_strided_slice %18 {offsets = [0, 0, 0], sizes = [1, 8, 8], strides = [1, 1, 1]} : vector<2x8x8xf32> to vector<1x8x8xf32>
    %42 = vector.shape_cast %41 : vector<1x8x8xf32> to vector<8x8xf32>
    %43 = vector.extract_strided_slice %38 {offsets = [0, 0], sizes = [8, 8], strides = [1, 1]} : vector<8x32xf32> to vector<8x8xf32>
    %44 = vector.extract_strided_slice %39 {offsets = [0, 0], sizes = [8, 8], strides = [1, 1]} : vector<8x32xf32> to vector<8x8xf32>
    %45 = tpu.transpose %44, [1, 0] : vector<8x8xf32> -> vector<8x8xf32>
    %cst_31 = arith.constant dense<0.000000e+00> : vector<8x8xf32>
    %46 = tpu.matmul %43, %45, %cst_31 {dimension_numbers = #tpu.dot_dimension_numbers<[1], [0], [0], [1], [0, 0, 1, 1], [], []>} : vector<8x8xf32>, vector<8x8xf32>, vector<8x8xf32> -> vector<8x8xf32>
    %cst_32 = arith.constant 0.353553385 : f32
    %47 = vector.broadcast %cst_32 : f32 to vector<8x8xf32>
    %48 = arith.mulf %46, %47 : vector<8x8xf32>
    %49 = arith.addf %48, %42 : vector<8x8xf32>
    %cst_33 = arith.constant dense<0xFF800000> : vector<8xf32>
    %50 = vector.multi_reduction <maximumf>, %49, %cst_33 [1] : vector<8x8xf32> to vector<8xf32>
    %51 = vector.shape_cast %50 : vector<8xf32> to vector<8x1xf32>
    %52 = vector.broadcast %51 : vector<8x1xf32> to vector<8x8xf32>
    %53 = arith.subf %49, %52 : vector<8x8xf32>
    %54 = math.exp %53 : vector<8x8xf32>
    %cst_34 = arith.constant dense<0.000000e+00> : vector<8xf32>
    %55 = vector.multi_reduction <add>, %54, %cst_34 [1] : vector<8x8xf32> to vector<8xf32>
    %56 = vector.shape_cast %55 : vector<8xf32> to vector<8x1xf32>
    %57 = tpu.reciprocal %56 : vector<8x1xf32> -> vector<8x1xf32>
    %58 = vector.broadcast %57 : vector<8x1xf32> to vector<8x8xf32>
    %59 = arith.mulf %54, %58 : vector<8x8xf32>
    %60 = vector.extract_strided_slice %40 {offsets = [0, 0], sizes = [8, 8], strides = [1, 1]} : vector<8x32xf32> to vector<8x8xf32>
    %cst_35 = arith.constant dense<0.000000e+00> : vector<8x8xf32>
    %61 = tpu.matmul %59, %60, %cst_35 {dimension_numbers = #tpu.dot_dimension_numbers<[1], [0], [0], [1], [0, 0, 1, 1], [], []>} : vector<8x8xf32>, vector<8x8xf32>, vector<8x8xf32> -> vector<8x8xf32>
    %62 = vector.extract_strided_slice %38 {offsets = [0, 8], sizes = [8, 8], strides = [1, 1]} : vector<8x32xf32> to vector<8x8xf32>
    %63 = vector.extract_strided_slice %39 {offsets = [0, 8], sizes = [8, 8], strides = [1, 1]} : vector<8x32xf32> to vector<8x8xf32>
    %64 = tpu.transpose %63, [1, 0] : vector<8x8xf32> -> vector<8x8xf32>
    %cst_36 = arith.constant dense<0.000000e+00> : vector<8x8xf32>
    %65 = tpu.matmul %62, %64, %cst_36 {dimension_numbers = #tpu.dot_dimension_numbers<[1], [0], [0], [1], [0, 0, 1, 1], [], []>} : vector<8x8xf32>, vector<8x8xf32>, vector<8x8xf32> -> vector<8x8xf32>
    %cst_37 = arith.constant 0.353553385 : f32
    %66 = vector.broadcast %cst_37 : f32 to vector<8x8xf32>
    %67 = arith.mulf %65, %66 : vector<8x8xf32>
    %68 = arith.addf %67, %42 : vector<8x8xf32>
    %cst_38 = arith.constant dense<0xFF800000> : vector<8xf32>
    %69 = vector.multi_reduction <maximumf>, %68, %cst_38 [1] : vector<8x8xf32> to vector<8xf32>
    %70 = vector.shape_cast %69 : vector<8xf32> to vector<8x1xf32>
    %71 = vector.broadcast %70 : vector<8x1xf32> to vector<8x8xf32>
    %72 = arith.subf %68, %71 : vector<8x8xf32>
    %73 = math.exp %72 : vector<8x8xf32>
    %cst_39 = arith.constant dense<0.000000e+00> : vector<8xf32>
    %74 = vector.multi_reduction <add>, %73, %cst_39 [1] : vector<8x8xf32> to vector<8xf32>
    %75 = vector.shape_cast %74 : vector<8xf32> to vector<8x1xf32>
    %76 = tpu.reciprocal %75 : vector<8x1xf32> -> vector<8x1xf32>
    %77 = vector.broadcast %76 : vector<8x1xf32> to vector<8x8xf32>
    %78 = arith.mulf %73, %77 : vector<8x8xf32>
    %79 = vector.extract_strided_slice %40 {offsets = [0, 8], sizes = [8, 8], strides = [1, 1]} : vector<8x32xf32> to vector<8x8xf32>
    %cst_40 = arith.constant dense<0.000000e+00> : vector<8x8xf32>
    %80 = tpu.matmul %78, %79, %cst_40 {dimension_numbers = #tpu.dot_dimension_numbers<[1], [0], [0], [1], [0, 0, 1, 1], [], []>} : vector<8x8xf32>, vector<8x8xf32>, vector<8x8xf32> -> vector<8x8xf32>
    %81 = vector.extract_strided_slice %38 {offsets = [0, 16], sizes = [8, 8], strides = [1, 1]} : vector<8x32xf32> to vector<8x8xf32>
    %82 = vector.extract_strided_slice %39 {offsets = [0, 16], sizes = [8, 8], strides = [1, 1]} : vector<8x32xf32> to vector<8x8xf32>
    %83 = tpu.transpose %82, [1, 0] : vector<8x8xf32> -> vector<8x8xf32>
    %cst_41 = arith.constant dense<0.000000e+00> : vector<8x8xf32>
    %84 = tpu.matmul %81, %83, %cst_41 {dimension_numbers = #tpu.dot_dimension_numbers<[1], [0], [0], [1], [0, 0, 1, 1], [], []>} : vector<8x8xf32>, vector<8x8xf32>, vector<8x8xf32> -> vector<8x8xf32>
    %cst_42 = arith.constant 0.353553385 : f32
    %85 = vector.broadcast %cst_42 : f32 to vector<8x8xf32>
    %86 = arith.mulf %84, %85 : vector<8x8xf32>
    %87 = arith.addf %86, %42 : vector<8x8xf32>
    %cst_43 = arith.constant dense<0xFF800000> : vector<8xf32>
    %88 = vector.multi_reduction <maximumf>, %87, %cst_43 [1] : vector<8x8xf32> to vector<8xf32>
    %89 = vector.shape_cast %88 : vector<8xf32> to vector<8x1xf32>
    %90 = vector.broadcast %89 : vector<8x1xf32> to vector<8x8xf32>
    %91 = arith.subf %87, %90 : vector<8x8xf32>
    %92 = math.exp %91 : vector<8x8xf32>
    %cst_44 = arith.constant dense<0.000000e+00> : vector<8xf32>
    %93 = vector.multi_reduction <add>, %92, %cst_44 [1] : vector<8x8xf32> to vector<8xf32>
    %94 = vector.shape_cast %93 : vector<8xf32> to vector<8x1xf32>
    %95 = tpu.reciprocal %94 : vector<8x1xf32> -> vector<8x1xf32>
    %96 = vector.broadcast %95 : vector<8x1xf32> to vector<8x8xf32>
    %97 = arith.mulf %92, %96 : vector<8x8xf32>
    %98 = vector.extract_strided_slice %40 {offsets = [0, 16], sizes = [8, 8], strides = [1, 1]} : vector<8x32xf32> to vector<8x8xf32>
    %cst_45 = arith.constant dense<0.000000e+00> : vector<8x8xf32>
    %99 = tpu.matmul %97, %98, %cst_45 {dimension_numbers = #tpu.dot_dimension_numbers<[1], [0], [0], [1], [0, 0, 1, 1], [], []>} : vector<8x8xf32>, vector<8x8xf32>, vector<8x8xf32> -> vector<8x8xf32>
    %100 = vector.extract_strided_slice %38 {offsets = [0, 24], sizes = [8, 8], strides = [1, 1]} : vector<8x32xf32> to vector<8x8xf32>
    %101 = vector.extract_strided_slice %39 {offsets = [0, 24], sizes = [8, 8], strides = [1, 1]} : vector<8x32xf32> to vector<8x8xf32>
    %102 = tpu.transpose %101, [1, 0] : vector<8x8xf32> -> vector<8x8xf32>
    %cst_46 = arith.constant dense<0.000000e+00> : vector<8x8xf32>
    %103 = tpu.matmul %100, %102, %cst_46 {dimension_numbers = #tpu.dot_dimension_numbers<[1], [0], [0], [1], [0, 0, 1, 1], [], []>} : vector<8x8xf32>, vector<8x8xf32>, vector<8x8xf32> -> vector<8x8xf32>
    %cst_47 = arith.constant 0.353553385 : f32
    %104 = vector.broadcast %cst_47 : f32 to vector<8x8xf32>
    %105 = arith.mulf %103, %104 : vector<8x8xf32>
    %106 = arith.addf %105, %42 : vector<8x8xf32>
    %cst_48 = arith.constant dense<0xFF800000> : vector<8xf32>
    %107 = vector.multi_reduction <maximumf>, %106, %cst_48 [1] : vector<8x8xf32> to vector<8xf32>
    %108 = vector.shape_cast %107 : vector<8xf32> to vector<8x1xf32>
    %109 = vector.broadcast %108 : vector<8x1xf32> to vector<8x8xf32>
    %110 = arith.subf %106, %109 : vector<8x8xf32>
    %111 = math.exp %110 : vector<8x8xf32>
    %cst_49 = arith.constant dense<0.000000e+00> : vector<8xf32>
    %112 = vector.multi_reduction <add>, %111, %cst_49 [1] : vector<8x8xf32> to vector<8xf32>
    %113 = vector.shape_cast %112 : vector<8xf32> to vector<8x1xf32>
    %114 = tpu.reciprocal %113 : vector<8x1xf32> -> vector<8x1xf32>
    %115 = vector.broadcast %114 : vector<8x1xf32> to vector<8x8xf32>
    %116 = arith.mulf %111, %115 : vector<8x8xf32>
    %117 = vector.extract_strided_slice %40 {offsets = [0, 24], sizes = [8, 8], strides = [1, 1]} : vector<8x32xf32> to vector<8x8xf32>
    %cst_50 = arith.constant dense<0.000000e+00> : vector<8x8xf32>
    %118 = tpu.matmul %116, %117, %cst_50 {dimension_numbers = #tpu.dot_dimension_numbers<[1], [0], [0], [1], [0, 0, 1, 1], [], []>} : vector<8x8xf32>, vector<8x8xf32>, vector<8x8xf32> -> vector<8x8xf32>
    %119 = tpu.concatenate %61, %80, %99, %118 in 1 : vector<8x8xf32>, vector<8x8xf32>, vector<8x8xf32>, vector<8x8xf32> -> vector<8x32xf32>
    %120 = vector.extract_strided_slice %35 {offsets = [8, 0], sizes = [8, 32], strides = [1, 1]} : vector<16x32xf32> to vector<8x32xf32>
    %121 = vector.extract_strided_slice %36 {offsets = [8, 0], sizes = [8, 32], strides = [1, 1]} : vector<16x32xf32> to vector<8x32xf32>
    %122 = vector.extract_strided_slice %37 {offsets = [8, 0], sizes = [8, 32], strides = [1, 1]} : vector<16x32xf32> to vector<8x32xf32>
    %123 = vector.extract_strided_slice %18 {offsets = [1, 0, 0], sizes = [1, 8, 8], strides = [1, 1, 1]} : vector<2x8x8xf32> to vector<1x8x8xf32>
    %124 = vector.shape_cast %123 : vector<1x8x8xf32> to vector<8x8xf32>
    %125 = vector.extract_strided_slice %120 {offsets = [0, 0], sizes = [8, 8], strides = [1, 1]} : vector<8x32xf32> to vector<8x8xf32>
    %126 = vector.extract_strided_slice %121 {offsets = [0, 0], sizes = [8, 8], strides = [1, 1]} : vector<8x32xf32> to vector<8x8xf32>
    %127 = tpu.transpose %126, [1, 0] : vector<8x8xf32> -> vector<8x8xf32>
    %cst_51 = arith.constant dense<0.000000e+00> : vector<8x8xf32>
    %128 = tpu.matmul %125, %127, %cst_51 {dimension_numbers = #tpu.dot_dimension_numbers<[1], [0], [0], [1], [0, 0, 1, 1], [], []>} : vector<8x8xf32>, vector<8x8xf32>, vector<8x8xf32> -> vector<8x8xf32>
    %cst_52 = arith.constant 0.353553385 : f32
    %129 = vector.broadcast %cst_52 : f32 to vector<8x8xf32>
    %130 = arith.mulf %128, %129 : vector<8x8xf32>
    %131 = arith.addf %130, %124 : vector<8x8xf32>
    %cst_53 = arith.constant dense<0xFF800000> : vector<8xf32>
    %132 = vector.multi_reduction <maximumf>, %131, %cst_53 [1] : vector<8x8xf32> to vector<8xf32>
    %133 = vector.shape_cast %132 : vector<8xf32> to vector<8x1xf32>
    %134 = vector.broadcast %133 : vector<8x1xf32> to vector<8x8xf32>
    %135 = arith.subf %131, %134 : vector<8x8xf32>
    %136 = math.exp %135 : vector<8x8xf32>
    %cst_54 = arith.constant dense<0.000000e+00> : vector<8xf32>
    %137 = vector.multi_reduction <add>, %136, %cst_54 [1] : vector<8x8xf32> to vector<8xf32>
    %138 = vector.shape_cast %137 : vector<8xf32> to vector<8x1xf32>
    %139 = tpu.reciprocal %138 : vector<8x1xf32> -> vector<8x1xf32>
    %140 = vector.broadcast %139 : vector<8x1xf32> to vector<8x8xf32>
    %141 = arith.mulf %136, %140 : vector<8x8xf32>
    %142 = vector.extract_strided_slice %122 {offsets = [0, 0], sizes = [8, 8], strides = [1, 1]} : vector<8x32xf32> to vector<8x8xf32>
    %cst_55 = arith.constant dense<0.000000e+00> : vector<8x8xf32>
    %143 = tpu.matmul %141, %142, %cst_55 {dimension_numbers = #tpu.dot_dimension_numbers<[1], [0], [0], [1], [0, 0, 1, 1], [], []>} : vector<8x8xf32>, vector<8x8xf32>, vector<8x8xf32> -> vector<8x8xf32>
    %144 = vector.extract_strided_slice %120 {offsets = [0, 8], sizes = [8, 8], strides = [1, 1]} : vector<8x32xf32> to vector<8x8xf32>
    %145 = vector.extract_strided_slice %121 {offsets = [0, 8], sizes = [8, 8], strides = [1, 1]} : vector<8x32xf32> to vector<8x8xf32>
    %146 = tpu.transpose %145, [1, 0] : vector<8x8xf32> -> vector<8x8xf32>
    %cst_56 = arith.constant dense<0.000000e+00> : vector<8x8xf32>
    %147 = tpu.matmul %144, %146, %cst_56 {dimension_numbers = #tpu.dot_dimension_numbers<[1], [0], [0], [1], [0, 0, 1, 1], [], []>} : vector<8x8xf32>, vector<8x8xf32>, vector<8x8xf32> -> vector<8x8xf32>
    %cst_57 = arith.constant 0.353553385 : f32
    %148 = vector.broadcast %cst_57 : f32 to vector<8x8xf32>
    %149 = arith.mulf %147, %148 : vector<8x8xf32>
    %150 = arith.addf %149, %124 : vector<8x8xf32>
    %cst_58 = arith.constant dense<0xFF800000> : vector<8xf32>
    %151 = vector.multi_reduction <maximumf>, %150, %cst_58 [1] : vector<8x8xf32> to vector<8xf32>
    %152 = vector.shape_cast %151 : vector<8xf32> to vector<8x1xf32>
    %153 = vector.broadcast %152 : vector<8x1xf32> to vector<8x8xf32>
    %154 = arith.subf %150, %153 : vector<8x8xf32>
    %155 = math.exp %154 : vector<8x8xf32>
    %cst_59 = arith.constant dense<0.000000e+00> : vector<8xf32>
    %156 = vector.multi_reduction <add>, %155, %cst_59 [1] : vector<8x8xf32> to vector<8xf32>
    %157 = vector.shape_cast %156 : vector<8xf32> to vector<8x1xf32>
    %158 = tpu.reciprocal %157 : vector<8x1xf32> -> vector<8x1xf32>
    %159 = vector.broadcast %158 : vector<8x1xf32> to vector<8x8xf32>
    %160 = arith.mulf %155, %159 : vector<8x8xf32>
    %161 = vector.extract_strided_slice %122 {offsets = [0, 8], sizes = [8, 8], strides = [1, 1]} : vector<8x32xf32> to vector<8x8xf32>
    %cst_60 = arith.constant dense<0.000000e+00> : vector<8x8xf32>
    %162 = tpu.matmul %160, %161, %cst_60 {dimension_numbers = #tpu.dot_dimension_numbers<[1], [0], [0], [1], [0, 0, 1, 1], [], []>} : vector<8x8xf32>, vector<8x8xf32>, vector<8x8xf32> -> vector<8x8xf32>
    %163 = vector.extract_strided_slice %120 {offsets = [0, 16], sizes = [8, 8], strides = [1, 1]} : vector<8x32xf32> to vector<8x8xf32>
    %164 = vector.extract_strided_slice %121 {offsets = [0, 16], sizes = [8, 8], strides = [1, 1]} : vector<8x32xf32> to vector<8x8xf32>
    %165 = tpu.transpose %164, [1, 0] : vector<8x8xf32> -> vector<8x8xf32>
    %cst_61 = arith.constant dense<0.000000e+00> : vector<8x8xf32>
    %166 = tpu.matmul %163, %165, %cst_61 {dimension_numbers = #tpu.dot_dimension_numbers<[1], [0], [0], [1], [0, 0, 1, 1], [], []>} : vector<8x8xf32>, vector<8x8xf32>, vector<8x8xf32> -> vector<8x8xf32>
    %cst_62 = arith.constant 0.353553385 : f32
    %167 = vector.broadcast %cst_62 : f32 to vector<8x8xf32>
    %168 = arith.mulf %166, %167 : vector<8x8xf32>
    %169 = arith.addf %168, %124 : vector<8x8xf32>
    %cst_63 = arith.constant dense<0xFF800000> : vector<8xf32>
    %170 = vector.multi_reduction <maximumf>, %169, %cst_63 [1] : vector<8x8xf32> to vector<8xf32>
    %171 = vector.shape_cast %170 : vector<8xf32> to vector<8x1xf32>
    %172 = vector.broadcast %171 : vector<8x1xf32> to vector<8x8xf32>
    %173 = arith.subf %169, %172 : vector<8x8xf32>
    %174 = math.exp %173 : vector<8x8xf32>
    %cst_64 = arith.constant dense<0.000000e+00> : vector<8xf32>
    %175 = vector.multi_reduction <add>, %174, %cst_64 [1] : vector<8x8xf32> to vector<8xf32>
    %176 = vector.shape_cast %175 : vector<8xf32> to vector<8x1xf32>
    %177 = tpu.reciprocal %176 : vector<8x1xf32> -> vector<8x1xf32>
    %178 = vector.broadcast %177 : vector<8x1xf32> to vector<8x8xf32>
    %179 = arith.mulf %174, %178 : vector<8x8xf32>
    %180 = vector.extract_strided_slice %122 {offsets = [0, 16], sizes = [8, 8], strides = [1, 1]} : vector<8x32xf32> to vector<8x8xf32>
    %cst_65 = arith.constant dense<0.000000e+00> : vector<8x8xf32>
    %181 = tpu.matmul %179, %180, %cst_65 {dimension_numbers = #tpu.dot_dimension_numbers<[1], [0], [0], [1], [0, 0, 1, 1], [], []>} : vector<8x8xf32>, vector<8x8xf32>, vector<8x8xf32> -> vector<8x8xf32>
    %182 = vector.extract_strided_slice %120 {offsets = [0, 24], sizes = [8, 8], strides = [1, 1]} : vector<8x32xf32> to vector<8x8xf32>
    %183 = vector.extract_strided_slice %121 {offsets = [0, 24], sizes = [8, 8], strides = [1, 1]} : vector<8x32xf32> to vector<8x8xf32>
    %184 = tpu.transpose %183, [1, 0] : vector<8x8xf32> -> vector<8x8xf32>
    %cst_66 = arith.constant dense<0.000000e+00> : vector<8x8xf32>
    %185 = tpu.matmul %182, %184, %cst_66 {dimension_numbers = #tpu.dot_dimension_numbers<[1], [0], [0], [1], [0, 0, 1, 1], [], []>} : vector<8x8xf32>, vector<8x8xf32>, vector<8x8xf32> -> vector<8x8xf32>
    %cst_67 = arith.constant 0.353553385 : f32
    %186 = vector.broadcast %cst_67 : f32 to vector<8x8xf32>
    %187 = arith.mulf %185, %186 : vector<8x8xf32>
    %188 = arith.addf %187, %124 : vector<8x8xf32>
    %cst_68 = arith.constant dense<0xFF800000> : vector<8xf32>
    %189 = vector.multi_reduction <maximumf>, %188, %cst_68 [1] : vector<8x8xf32> to vector<8xf32>
    %190 = vector.shape_cast %189 : vector<8xf32> to vector<8x1xf32>
    %191 = vector.broadcast %190 : vector<8x1xf32> to vector<8x8xf32>
    %192 = arith.subf %188, %191 : vector<8x8xf32>
    %193 = math.exp %192 : vector<8x8xf32>
    %cst_69 = arith.constant dense<0.000000e+00> : vector<8xf32>
    %194 = vector.multi_reduction <add>, %193, %cst_69 [1] : vector<8x8xf32> to vector<8xf32>
    %195 = vector.shape_cast %194 : vector<8xf32> to vector<8x1xf32>
    %196 = tpu.reciprocal %195 : vector<8x1xf32> -> vector<8x1xf32>
    %197 = vector.broadcast %196 : vector<8x1xf32> to vector<8x8xf32>
    %198 = arith.mulf %193, %197 : vector<8x8xf32>
    %199 = vector.extract_strided_slice %122 {offsets = [0, 24], sizes = [8, 8], strides = [1, 1]} : vector<8x32xf32> to vector<8x8xf32>
    %cst_70 = arith.constant dense<0.000000e+00> : vector<8x8xf32>
    %200 = tpu.matmul %198, %199, %cst_70 {dimension_numbers = #tpu.dot_dimension_numbers<[1], [0], [0], [1], [0, 0, 1, 1], [], []>} : vector<8x8xf32>, vector<8x8xf32>, vector<8x8xf32> -> vector<8x8xf32>
    %201 = tpu.concatenate %143, %162, %181, %200 in 1 : vector<8x8xf32>, vector<8x8xf32>, vector<8x8xf32>, vector<8x8xf32> -> vector<8x32xf32>
    %202 = tpu.concatenate %119, %201 in 0 : vector<8x32xf32>, vector<8x32xf32> -> vector<16x32xf32>
    %c0_71 = arith.constant 0 : index
    %c0_72 = arith.constant 0 : index
    %c0_73 = arith.constant 0 : index
    %203 = vector.load %arg8[%c0_71, %c0_72, %c0_73] : memref<2x32x32xf32, #tpu.memory_space<vmem>>, vector<1x32x32xf32>
    %204 = vector.shape_cast %203 : vector<1x32x32xf32> to vector<32x32xf32>
    %cst_74 = arith.constant dense<0.000000e+00> : vector<16x32xf32>
    %205 = tpu.matmul %202, %204, %cst_74 {dimension_numbers = #tpu.dot_dimension_numbers<[1], [0], [0], [1], [0, 0, 1, 1], [], []>} : vector<16x32xf32>, vector<32x32xf32>, vector<16x32xf32> -> vector<16x32xf32>
    %c0_75 = arith.constant 0 : index
    %c0_76 = arith.constant 0 : index
    %c0_77 = arith.constant 0 : index
    %206 = vector.load %arg9[%c0_75, %c0_76, %c0_77] : memref<2x1x32xf32, #tpu.memory_space<vmem>>, vector<1x1x32xf32>
    %207 = vector.shape_cast %206 : vector<1x1x32xf32> to vector<1x32xf32>
    %208 = vector.broadcast %207 : vector<1x32xf32> to vector<16x32xf32>
    %209 = arith.addf %205, %208 : vector<16x32xf32>
    %210 = arith.addf %12, %209 : vector<16x32xf32>
    %211 = vector.extract_strided_slice %25 {offsets = [0, 0], sizes = [1, 32], strides = [1, 1]} : vector<3x32xf32> to vector<1x32xf32>
    %212 = vector.extract_strided_slice %27 {offsets = [0, 0], sizes = [1, 32], strides = [1, 1]} : vector<3x32xf32> to vector<1x32xf32>
    %cst_78 = arith.constant dense<0.000000e+00> : vector<16xf32>
    %213 = vector.multi_reduction <add>, %210, %cst_78 [1] : vector<16x32xf32> to vector<16xf32>
    %214 = vector.shape_cast %213 : vector<16xf32> to vector<16x1xf32>
    %cst_79 = arith.constant 3.200000e+01 : f32
    %215 = vector.broadcast %cst_79 : f32 to vector<16x1xf32>
    %216 = arith.divf %214, %215 : vector<16x1xf32>
    %217 = vector.broadcast %216 : vector<16x1xf32> to vector<16x32xf32>
    %218 = arith.subf %210, %217 : vector<16x32xf32>
    %219 = arith.mulf %218, %218 : vector<16x32xf32>
    %cst_80 = arith.constant dense<0.000000e+00> : vector<16xf32>
    %220 = vector.multi_reduction <add>, %219, %cst_80 [1] : vector<16x32xf32> to vector<16xf32>
    %221 = vector.shape_cast %220 : vector<16xf32> to vector<16x1xf32>
    %cst_81 = arith.constant 3.200000e+01 : f32
    %222 = vector.broadcast %cst_81 : f32 to vector<16x1xf32>
    %223 = arith.divf %221, %222 : vector<16x1xf32>
    %224 = vector.broadcast %216 : vector<16x1xf32> to vector<16x32xf32>
    %225 = arith.subf %210, %224 : vector<16x32xf32>
    %cst_82 = arith.constant 9.99999974E-6 : f32
    %226 = vector.broadcast %cst_82 : f32 to vector<16x1xf32>
    %227 = arith.addf %223, %226 : vector<16x1xf32>
    %228 = math.rsqrt %227 : vector<16x1xf32>
    %229 = vector.broadcast %228 : vector<16x1xf32> to vector<16x32xf32>
    %230 = arith.mulf %225, %229 : vector<16x32xf32>
    %231 = vector.broadcast %211 : vector<1x32xf32> to vector<16x32xf32>
    %232 = arith.mulf %230, %231 : vector<16x32xf32>
    %233 = vector.broadcast %212 : vector<1x32xf32> to vector<16x32xf32>
    %234 = arith.addf %232, %233 : vector<16x32xf32>
    %c0_83 = arith.constant 0 : index
    %c0_84 = arith.constant 0 : index
    %c0_85 = arith.constant 0 : index
    %235 = vector.load %arg10[%c0_83, %c0_84, %c0_85] : memref<2x32x32xf32, #tpu.memory_space<vmem>>, vector<1x32x32xf32>
    %236 = vector.shape_cast %235 : vector<1x32x32xf32> to vector<32x32xf32>
    %cst_86 = arith.constant dense<0.000000e+00> : vector<16x32xf32>
    %237 = tpu.matmul %234, %236, %cst_86 {dimension_numbers = #tpu.dot_dimension_numbers<[1], [0], [0], [1], [0, 0, 1, 1], [], []>} : vector<16x32xf32>, vector<32x32xf32>, vector<16x32xf32> -> vector<16x32xf32>
    %c0_87 = arith.constant 0 : index
    %c0_88 = arith.constant 0 : index
    %c0_89 = arith.constant 0 : index
    %238 = vector.load %arg11[%c0_87, %c0_88, %c0_89] : memref<2x1x32xf32, #tpu.memory_space<vmem>>, vector<1x1x32xf32>
    %239 = vector.shape_cast %238 : vector<1x1x32xf32> to vector<1x32xf32>
    %240 = vector.broadcast %239 : vector<1x32xf32> to vector<16x32xf32>
    %241 = arith.addf %237, %240 : vector<16x32xf32>
    %c0_90 = arith.constant 0 : index
    %c0_91 = arith.constant 0 : index
    %c0_92 = arith.constant 0 : index
    %242 = vector.load %arg12[%c0_90, %c0_91, %c0_92] : memref<2x32x64xf32, #tpu.memory_space<vmem>>, vector<1x32x64xf32>
    %243 = vector.shape_cast %242 : vector<1x32x64xf32> to vector<32x64xf32>
    %cst_93 = arith.constant dense<0.000000e+00> : vector<20x64xf32>
    %244 = tpu.matmul %13, %243, %cst_93 {dimension_numbers = #tpu.dot_dimension_numbers<[1], [0], [0], [1], [0, 0, 1, 1], [], []>} : vector<20x32xf32>, vector<32x64xf32>, vector<20x64xf32> -> vector<20x64xf32>
    %c0_94 = arith.constant 0 : index
    %c0_95 = arith.constant 0 : index
    %c0_96 = arith.constant 0 : index
    %245 = vector.load %arg13[%c0_94, %c0_95, %c0_96] : memref<2x1x64xf32, #tpu.memory_space<vmem>>, vector<1x1x64xf32>
    %246 = vector.shape_cast %245 : vector<1x1x64xf32> to vector<1x64xf32>
    %247 = vector.broadcast %246 : vector<1x64xf32> to vector<20x64xf32>
    %248 = arith.addf %244, %247 : vector<20x64xf32>
    %249 = vector.extract_strided_slice %248 {offsets = [0, 0], sizes = [20, 32], strides = [1, 1]} : vector<20x64xf32> to vector<20x32xf32>
    %250 = vector.extract_strided_slice %248 {offsets = [0, 32], sizes = [20, 32], strides = [1, 1]} : vector<20x64xf32> to vector<20x32xf32>
    %251 = vector.extract_strided_slice %241 {offsets = [0, 0], sizes = [8, 32], strides = [1, 1]} : vector<16x32xf32> to vector<8x32xf32>
    %252 = vector.extract_strided_slice %249 {offsets = [0, 0], sizes = [10, 32], strides = [1, 1]} : vector<20x32xf32> to vector<10x32xf32>
    %253 = vector.extract_strided_slice %250 {offsets = [0, 0], sizes = [10, 32], strides = [1, 1]} : vector<20x32xf32> to vector<10x32xf32>
    %254 = vector.extract_strided_slice %23 {offsets = [0, 0, 0], sizes = [1, 1, 10], strides = [1, 1, 1]} : vector<2x1x10xf32> to vector<1x1x10xf32>
    %255 = vector.shape_cast %254 : vector<1x1x10xf32> to vector<1x10xf32>
    %256 = vector.extract_strided_slice %251 {offsets = [0, 0], sizes = [8, 8], strides = [1, 1]} : vector<8x32xf32> to vector<8x8xf32>
    %257 = vector.extract_strided_slice %252 {offsets = [0, 0], sizes = [10, 8], strides = [1, 1]} : vector<10x32xf32> to vector<10x8xf32>
    %258 = tpu.transpose %257, [1, 0] : vector<10x8xf32> -> vector<8x10xf32>
    %cst_97 = arith.constant dense<0.000000e+00> : vector<8x10xf32>
    %259 = tpu.matmul %256, %258, %cst_97 {dimension_numbers = #tpu.dot_dimension_numbers<[1], [0], [0], [1], [0, 0, 1, 1], [], []>} : vector<8x8xf32>, vector<8x10xf32>, vector<8x10xf32> -> vector<8x10xf32>
    %cst_98 = arith.constant 0.353553385 : f32
    %260 = vector.broadcast %cst_98 : f32 to vector<8x10xf32>
    %261 = arith.mulf %259, %260 : vector<8x10xf32>
    %262 = vector.broadcast %255 : vector<1x10xf32> to vector<8x10xf32>
    %263 = arith.addf %261, %262 : vector<8x10xf32>
    %cst_99 = arith.constant dense<0xFF800000> : vector<8xf32>
    %264 = vector.multi_reduction <maximumf>, %263, %cst_99 [1] : vector<8x10xf32> to vector<8xf32>
    %265 = vector.shape_cast %264 : vector<8xf32> to vector<8x1xf32>
    %266 = vector.broadcast %265 : vector<8x1xf32> to vector<8x10xf32>
    %267 = arith.subf %263, %266 : vector<8x10xf32>
    %268 = math.exp %267 : vector<8x10xf32>
    %cst_100 = arith.constant dense<0.000000e+00> : vector<8xf32>
    %269 = vector.multi_reduction <add>, %268, %cst_100 [1] : vector<8x10xf32> to vector<8xf32>
    %270 = vector.shape_cast %269 : vector<8xf32> to vector<8x1xf32>
    %271 = tpu.reciprocal %270 : vector<8x1xf32> -> vector<8x1xf32>
    %272 = vector.broadcast %271 : vector<8x1xf32> to vector<8x10xf32>
    %273 = arith.mulf %268, %272 : vector<8x10xf32>
    %274 = vector.extract_strided_slice %253 {offsets = [0, 0], sizes = [10, 8], strides = [1, 1]} : vector<10x32xf32> to vector<10x8xf32>
    %cst_101 = arith.constant dense<0.000000e+00> : vector<8x8xf32>
    %275 = tpu.matmul %273, %274, %cst_101 {dimension_numbers = #tpu.dot_dimension_numbers<[1], [0], [0], [1], [0, 0, 1, 1], [], []>} : vector<8x10xf32>, vector<10x8xf32>, vector<8x8xf32> -> vector<8x8xf32>
    %276 = vector.extract_strided_slice %251 {offsets = [0, 8], sizes = [8, 8], strides = [1, 1]} : vector<8x32xf32> to vector<8x8xf32>
    %277 = vector.extract_strided_slice %252 {offsets = [0, 8], sizes = [10, 8], strides = [1, 1]} : vector<10x32xf32> to vector<10x8xf32>
    %278 = tpu.transpose %277, [1, 0] : vector<10x8xf32> -> vector<8x10xf32>
    %cst_102 = arith.constant dense<0.000000e+00> : vector<8x10xf32>
    %279 = tpu.matmul %276, %278, %cst_102 {dimension_numbers = #tpu.dot_dimension_numbers<[1], [0], [0], [1], [0, 0, 1, 1], [], []>} : vector<8x8xf32>, vector<8x10xf32>, vector<8x10xf32> -> vector<8x10xf32>
    %cst_103 = arith.constant 0.353553385 : f32
    %280 = vector.broadcast %cst_103 : f32 to vector<8x10xf32>
    %281 = arith.mulf %279, %280 : vector<8x10xf32>
    %282 = vector.broadcast %255 : vector<1x10xf32> to vector<8x10xf32>
    %283 = arith.addf %281, %282 : vector<8x10xf32>
    %cst_104 = arith.constant dense<0xFF800000> : vector<8xf32>
    %284 = vector.multi_reduction <maximumf>, %283, %cst_104 [1] : vector<8x10xf32> to vector<8xf32>
    %285 = vector.shape_cast %284 : vector<8xf32> to vector<8x1xf32>
    %286 = vector.broadcast %285 : vector<8x1xf32> to vector<8x10xf32>
    %287 = arith.subf %283, %286 : vector<8x10xf32>
    %288 = math.exp %287 : vector<8x10xf32>
    %cst_105 = arith.constant dense<0.000000e+00> : vector<8xf32>
    %289 = vector.multi_reduction <add>, %288, %cst_105 [1] : vector<8x10xf32> to vector<8xf32>
    %290 = vector.shape_cast %289 : vector<8xf32> to vector<8x1xf32>
    %291 = tpu.reciprocal %290 : vector<8x1xf32> -> vector<8x1xf32>
    %292 = vector.broadcast %291 : vector<8x1xf32> to vector<8x10xf32>
    %293 = arith.mulf %288, %292 : vector<8x10xf32>
    %294 = vector.extract_strided_slice %253 {offsets = [0, 8], sizes = [10, 8], strides = [1, 1]} : vector<10x32xf32> to vector<10x8xf32>
    %cst_106 = arith.constant dense<0.000000e+00> : vector<8x8xf32>
    %295 = tpu.matmul %293, %294, %cst_106 {dimension_numbers = #tpu.dot_dimension_numbers<[1], [0], [0], [1], [0, 0, 1, 1], [], []>} : vector<8x10xf32>, vector<10x8xf32>, vector<8x8xf32> -> vector<8x8xf32>
    %296 = vector.extract_strided_slice %251 {offsets = [0, 16], sizes = [8, 8], strides = [1, 1]} : vector<8x32xf32> to vector<8x8xf32>
    %297 = vector.extract_strided_slice %252 {offsets = [0, 16], sizes = [10, 8], strides = [1, 1]} : vector<10x32xf32> to vector<10x8xf32>
    %298 = tpu.transpose %297, [1, 0] : vector<10x8xf32> -> vector<8x10xf32>
    %cst_107 = arith.constant dense<0.000000e+00> : vector<8x10xf32>
    %299 = tpu.matmul %296, %298, %cst_107 {dimension_numbers = #tpu.dot_dimension_numbers<[1], [0], [0], [1], [0, 0, 1, 1], [], []>} : vector<8x8xf32>, vector<8x10xf32>, vector<8x10xf32> -> vector<8x10xf32>
    %cst_108 = arith.constant 0.353553385 : f32
    %300 = vector.broadcast %cst_108 : f32 to vector<8x10xf32>
    %301 = arith.mulf %299, %300 : vector<8x10xf32>
    %302 = vector.broadcast %255 : vector<1x10xf32> to vector<8x10xf32>
    %303 = arith.addf %301, %302 : vector<8x10xf32>
    %cst_109 = arith.constant dense<0xFF800000> : vector<8xf32>
    %304 = vector.multi_reduction <maximumf>, %303, %cst_109 [1] : vector<8x10xf32> to vector<8xf32>
    %305 = vector.shape_cast %304 : vector<8xf32> to vector<8x1xf32>
    %306 = vector.broadcast %305 : vector<8x1xf32> to vector<8x10xf32>
    %307 = arith.subf %303, %306 : vector<8x10xf32>
    %308 = math.exp %307 : vector<8x10xf32>
    %cst_110 = arith.constant dense<0.000000e+00> : vector<8xf32>
    %309 = vector.multi_reduction <add>, %308, %cst_110 [1] : vector<8x10xf32> to vector<8xf32>
    %310 = vector.shape_cast %309 : vector<8xf32> to vector<8x1xf32>
    %311 = tpu.reciprocal %310 : vector<8x1xf32> -> vector<8x1xf32>
    %312 = vector.broadcast %311 : vector<8x1xf32> to vector<8x10xf32>
    %313 = arith.mulf %308, %312 : vector<8x10xf32>
    %314 = vector.extract_strided_slice %253 {offsets = [0, 16], sizes = [10, 8], strides = [1, 1]} : vector<10x32xf32> to vector<10x8xf32>
    %cst_111 = arith.constant dense<0.000000e+00> : vector<8x8xf32>
    %315 = tpu.matmul %313, %314, %cst_111 {dimension_numbers = #tpu.dot_dimension_numbers<[1], [0], [0], [1], [0, 0, 1, 1], [], []>} : vector<8x10xf32>, vector<10x8xf32>, vector<8x8xf32> -> vector<8x8xf32>
    %316 = vector.extract_strided_slice %251 {offsets = [0, 24], sizes = [8, 8], strides = [1, 1]} : vector<8x32xf32> to vector<8x8xf32>
    %317 = vector.extract_strided_slice %252 {offsets = [0, 24], sizes = [10, 8], strides = [1, 1]} : vector<10x32xf32> to vector<10x8xf32>
    %318 = tpu.transpose %317, [1, 0] : vector<10x8xf32> -> vector<8x10xf32>
    %cst_112 = arith.constant dense<0.000000e+00> : vector<8x10xf32>
    %319 = tpu.matmul %316, %318, %cst_112 {dimension_numbers = #tpu.dot_dimension_numbers<[1], [0], [0], [1], [0, 0, 1, 1], [], []>} : vector<8x8xf32>, vector<8x10xf32>, vector<8x10xf32> -> vector<8x10xf32>
    %cst_113 = arith.constant 0.353553385 : f32
    %320 = vector.broadcast %cst_113 : f32 to vector<8x10xf32>
    %321 = arith.mulf %319, %320 : vector<8x10xf32>
    %322 = vector.broadcast %255 : vector<1x10xf32> to vector<8x10xf32>
    %323 = arith.addf %321, %322 : vector<8x10xf32>
    %cst_114 = arith.constant dense<0xFF800000> : vector<8xf32>
    %324 = vector.multi_reduction <maximumf>, %323, %cst_114 [1] : vector<8x10xf32> to vector<8xf32>
    %325 = vector.shape_cast %324 : vector<8xf32> to vector<8x1xf32>
    %326 = vector.broadcast %325 : vector<8x1xf32> to vector<8x10xf32>
    %327 = arith.subf %323, %326 : vector<8x10xf32>
    %328 = math.exp %327 : vector<8x10xf32>
    %cst_115 = arith.constant dense<0.000000e+00> : vector<8xf32>
    %329 = vector.multi_reduction <add>, %328, %cst_115 [1] : vector<8x10xf32> to vector<8xf32>
    %330 = vector.shape_cast %329 : vector<8xf32> to vector<8x1xf32>
    %331 = tpu.reciprocal %330 : vector<8x1xf32> -> vector<8x1xf32>
    %332 = vector.broadcast %331 : vector<8x1xf32> to vector<8x10xf32>
    %333 = arith.mulf %328, %332 : vector<8x10xf32>
    %334 = vector.extract_strided_slice %253 {offsets = [0, 24], sizes = [10, 8], strides = [1, 1]} : vector<10x32xf32> to vector<10x8xf32>
    %cst_116 = arith.constant dense<0.000000e+00> : vector<8x8xf32>
    %335 = tpu.matmul %333, %334, %cst_116 {dimension_numbers = #tpu.dot_dimension_numbers<[1], [0], [0], [1], [0, 0, 1, 1], [], []>} : vector<8x10xf32>, vector<10x8xf32>, vector<8x8xf32> -> vector<8x8xf32>
    %336 = tpu.concatenate %275, %295, %315, %335 in 1 : vector<8x8xf32>, vector<8x8xf32>, vector<8x8xf32>, vector<8x8xf32> -> vector<8x32xf32>
    %337 = vector.extract_strided_slice %241 {offsets = [8, 0], sizes = [8, 32], strides = [1, 1]} : vector<16x32xf32> to vector<8x32xf32>
    %338 = vector.extract_strided_slice %249 {offsets = [10, 0], sizes = [10, 32], strides = [1, 1]} : vector<20x32xf32> to vector<10x32xf32>
    %339 = vector.extract_strided_slice %250 {offsets = [10, 0], sizes = [10, 32], strides = [1, 1]} : vector<20x32xf32> to vector<10x32xf32>
    %340 = vector.extract_strided_slice %23 {offsets = [1, 0, 0], sizes = [1, 1, 10], strides = [1, 1, 1]} : vector<2x1x10xf32> to vector<1x1x10xf32>
    %341 = vector.shape_cast %340 : vector<1x1x10xf32> to vector<1x10xf32>
    %342 = vector.extract_strided_slice %337 {offsets = [0, 0], sizes = [8, 8], strides = [1, 1]} : vector<8x32xf32> to vector<8x8xf32>
    %343 = vector.extract_strided_slice %338 {offsets = [0, 0], sizes = [10, 8], strides = [1, 1]} : vector<10x32xf32> to vector<10x8xf32>
    %344 = tpu.transpose %343, [1, 0] : vector<10x8xf32> -> vector<8x10xf32>
    %cst_117 = arith.constant dense<0.000000e+00> : vector<8x10xf32>
    %345 = tpu.matmul %342, %344, %cst_117 {dimension_numbers = #tpu.dot_dimension_numbers<[1], [0], [0], [1], [0, 0, 1, 1], [], []>} : vector<8x8xf32>, vector<8x10xf32>, vector<8x10xf32> -> vector<8x10xf32>
    %cst_118 = arith.constant 0.353553385 : f32
    %346 = vector.broadcast %cst_118 : f32 to vector<8x10xf32>
    %347 = arith.mulf %345, %346 : vector<8x10xf32>
    %348 = vector.broadcast %341 : vector<1x10xf32> to vector<8x10xf32>
    %349 = arith.addf %347, %348 : vector<8x10xf32>
    %cst_119 = arith.constant dense<0xFF800000> : vector<8xf32>
    %350 = vector.multi_reduction <maximumf>, %349, %cst_119 [1] : vector<8x10xf32> to vector<8xf32>
    %351 = vector.shape_cast %350 : vector<8xf32> to vector<8x1xf32>
    %352 = vector.broadcast %351 : vector<8x1xf32> to vector<8x10xf32>
    %353 = arith.subf %349, %352 : vector<8x10xf32>
    %354 = math.exp %353 : vector<8x10xf32>
    %cst_120 = arith.constant dense<0.000000e+00> : vector<8xf32>
    %355 = vector.multi_reduction <add>, %354, %cst_120 [1] : vector<8x10xf32> to vector<8xf32>
    %356 = vector.shape_cast %355 : vector<8xf32> to vector<8x1xf32>
    %357 = tpu.reciprocal %356 : vector<8x1xf32> -> vector<8x1xf32>
    %358 = vector.broadcast %357 : vector<8x1xf32> to vector<8x10xf32>
    %359 = arith.mulf %354, %358 : vector<8x10xf32>
    %360 = vector.extract_strided_slice %339 {offsets = [0, 0], sizes = [10, 8], strides = [1, 1]} : vector<10x32xf32> to vector<10x8xf32>
    %cst_121 = arith.constant dense<0.000000e+00> : vector<8x8xf32>
    %361 = tpu.matmul %359, %360, %cst_121 {dimension_numbers = #tpu.dot_dimension_numbers<[1], [0], [0], [1], [0, 0, 1, 1], [], []>} : vector<8x10xf32>, vector<10x8xf32>, vector<8x8xf32> -> vector<8x8xf32>
    %362 = vector.extract_strided_slice %337 {offsets = [0, 8], sizes = [8, 8], strides = [1, 1]} : vector<8x32xf32> to vector<8x8xf32>
    %363 = vector.extract_strided_slice %338 {offsets = [0, 8], sizes = [10, 8], strides = [1, 1]} : vector<10x32xf32> to vector<10x8xf32>
    %364 = tpu.transpose %363, [1, 0] : vector<10x8xf32> -> vector<8x10xf32>
    %cst_122 = arith.constant dense<0.000000e+00> : vector<8x10xf32>
    %365 = tpu.matmul %362, %364, %cst_122 {dimension_numbers = #tpu.dot_dimension_numbers<[1], [0], [0], [1], [0, 0, 1, 1], [], []>} : vector<8x8xf32>, vector<8x10xf32>, vector<8x10xf32> -> vector<8x10xf32>
    %cst_123 = arith.constant 0.353553385 : f32
    %366 = vector.broadcast %cst_123 : f32 to vector<8x10xf32>
    %367 = arith.mulf %365, %366 : vector<8x10xf32>
    %368 = vector.broadcast %341 : vector<1x10xf32> to vector<8x10xf32>
    %369 = arith.addf %367, %368 : vector<8x10xf32>
    %cst_124 = arith.constant dense<0xFF800000> : vector<8xf32>
    %370 = vector.multi_reduction <maximumf>, %369, %cst_124 [1] : vector<8x10xf32> to vector<8xf32>
    %371 = vector.shape_cast %370 : vector<8xf32> to vector<8x1xf32>
    %372 = vector.broadcast %371 : vector<8x1xf32> to vector<8x10xf32>
    %373 = arith.subf %369, %372 : vector<8x10xf32>
    %374 = math.exp %373 : vector<8x10xf32>
    %cst_125 = arith.constant dense<0.000000e+00> : vector<8xf32>
    %375 = vector.multi_reduction <add>, %374, %cst_125 [1] : vector<8x10xf32> to vector<8xf32>
    %376 = vector.shape_cast %375 : vector<8xf32> to vector<8x1xf32>
    %377 = tpu.reciprocal %376 : vector<8x1xf32> -> vector<8x1xf32>
    %378 = vector.broadcast %377 : vector<8x1xf32> to vector<8x10xf32>
    %379 = arith.mulf %374, %378 : vector<8x10xf32>
    %380 = vector.extract_strided_slice %339 {offsets = [0, 8], sizes = [10, 8], strides = [1, 1]} : vector<10x32xf32> to vector<10x8xf32>
    %cst_126 = arith.constant dense<0.000000e+00> : vector<8x8xf32>
    %381 = tpu.matmul %379, %380, %cst_126 {dimension_numbers = #tpu.dot_dimension_numbers<[1], [0], [0], [1], [0, 0, 1, 1], [], []>} : vector<8x10xf32>, vector<10x8xf32>, vector<8x8xf32> -> vector<8x8xf32>
    %382 = vector.extract_strided_slice %337 {offsets = [0, 16], sizes = [8, 8], strides = [1, 1]} : vector<8x32xf32> to vector<8x8xf32>
    %383 = vector.extract_strided_slice %338 {offsets = [0, 16], sizes = [10, 8], strides = [1, 1]} : vector<10x32xf32> to vector<10x8xf32>
    %384 = tpu.transpose %383, [1, 0] : vector<10x8xf32> -> vector<8x10xf32>
    %cst_127 = arith.constant dense<0.000000e+00> : vector<8x10xf32>
    %385 = tpu.matmul %382, %384, %cst_127 {dimension_numbers = #tpu.dot_dimension_numbers<[1], [0], [0], [1], [0, 0, 1, 1], [], []>} : vector<8x8xf32>, vector<8x10xf32>, vector<8x10xf32> -> vector<8x10xf32>
    %cst_128 = arith.constant 0.353553385 : f32
    %386 = vector.broadcast %cst_128 : f32 to vector<8x10xf32>
    %387 = arith.mulf %385, %386 : vector<8x10xf32>
    %388 = vector.broadcast %341 : vector<1x10xf32> to vector<8x10xf32>
    %389 = arith.addf %387, %388 : vector<8x10xf32>
    %cst_129 = arith.constant dense<0xFF800000> : vector<8xf32>
    %390 = vector.multi_reduction <maximumf>, %389, %cst_129 [1] : vector<8x10xf32> to vector<8xf32>
    %391 = vector.shape_cast %390 : vector<8xf32> to vector<8x1xf32>
    %392 = vector.broadcast %391 : vector<8x1xf32> to vector<8x10xf32>
    %393 = arith.subf %389, %392 : vector<8x10xf32>
    %394 = math.exp %393 : vector<8x10xf32>
    %cst_130 = arith.constant dense<0.000000e+00> : vector<8xf32>
    %395 = vector.multi_reduction <add>, %394, %cst_130 [1] : vector<8x10xf32> to vector<8xf32>
    %396 = vector.shape_cast %395 : vector<8xf32> to vector<8x1xf32>
    %397 = tpu.reciprocal %396 : vector<8x1xf32> -> vector<8x1xf32>
    %398 = vector.broadcast %397 : vector<8x1xf32> to vector<8x10xf32>
    %399 = arith.mulf %394, %398 : vector<8x10xf32>
    %400 = vector.extract_strided_slice %339 {offsets = [0, 16], sizes = [10, 8], strides = [1, 1]} : vector<10x32xf32> to vector<10x8xf32>
    %cst_131 = arith.constant dense<0.000000e+00> : vector<8x8xf32>
    %401 = tpu.matmul %399, %400, %cst_131 {dimension_numbers = #tpu.dot_dimension_numbers<[1], [0], [0], [1], [0, 0, 1, 1], [], []>} : vector<8x10xf32>, vector<10x8xf32>, vector<8x8xf32> -> vector<8x8xf32>
    %402 = vector.extract_strided_slice %337 {offsets = [0, 24], sizes = [8, 8], strides = [1, 1]} : vector<8x32xf32> to vector<8x8xf32>
    %403 = vector.extract_strided_slice %338 {offsets = [0, 24], sizes = [10, 8], strides = [1, 1]} : vector<10x32xf32> to vector<10x8xf32>
    %404 = tpu.transpose %403, [1, 0] : vector<10x8xf32> -> vector<8x10xf32>
    %cst_132 = arith.constant dense<0.000000e+00> : vector<8x10xf32>
    %405 = tpu.matmul %402, %404, %cst_132 {dimension_numbers = #tpu.dot_dimension_numbers<[1], [0], [0], [1], [0, 0, 1, 1], [], []>} : vector<8x8xf32>, vector<8x10xf32>, vector<8x10xf32> -> vector<8x10xf32>
    %cst_133 = arith.constant 0.353553385 : f32
    %406 = vector.broadcast %cst_133 : f32 to vector<8x10xf32>
    %407 = arith.mulf %405, %406 : vector<8x10xf32>
    %408 = vector.broadcast %341 : vector<1x10xf32> to vector<8x10xf32>
    %409 = arith.addf %407, %408 : vector<8x10xf32>
    %cst_134 = arith.constant dense<0xFF800000> : vector<8xf32>
    %410 = vector.multi_reduction <maximumf>, %409, %cst_134 [1] : vector<8x10xf32> to vector<8xf32>
    %411 = vector.shape_cast %410 : vector<8xf32> to vector<8x1xf32>
    %412 = vector.broadcast %411 : vector<8x1xf32> to vector<8x10xf32>
    %413 = arith.subf %409, %412 : vector<8x10xf32>
    %414 = math.exp %413 : vector<8x10xf32>
    %cst_135 = arith.constant dense<0.000000e+00> : vector<8xf32>
    %415 = vector.multi_reduction <add>, %414, %cst_135 [1] : vector<8x10xf32> to vector<8xf32>
    %416 = vector.shape_cast %415 : vector<8xf32> to vector<8x1xf32>
    %417 = tpu.reciprocal %416 : vector<8x1xf32> -> vector<8x1xf32>
    %418 = vector.broadcast %417 : vector<8x1xf32> to vector<8x10xf32>
    %419 = arith.mulf %414, %418 : vector<8x10xf32>
    %420 = vector.extract_strided_slice %339 {offsets = [0, 24], sizes = [10, 8], strides = [1, 1]} : vector<10x32xf32> to vector<10x8xf32>
    %cst_136 = arith.constant dense<0.000000e+00> : vector<8x8xf32>
    %421 = tpu.matmul %419, %420, %cst_136 {dimension_numbers = #tpu.dot_dimension_numbers<[1], [0], [0], [1], [0, 0, 1, 1], [], []>} : vector<8x10xf32>, vector<10x8xf32>, vector<8x8xf32> -> vector<8x8xf32>
    %422 = tpu.concatenate %361, %381, %401, %421 in 1 : vector<8x8xf32>, vector<8x8xf32>, vector<8x8xf32>, vector<8x8xf32> -> vector<8x32xf32>
    %423 = tpu.concatenate %336, %422 in 0 : vector<8x32xf32>, vector<8x32xf32> -> vector<16x32xf32>
    %c0_137 = arith.constant 0 : index
    %c0_138 = arith.constant 0 : index
    %c0_139 = arith.constant 0 : index
    %424 = vector.load %arg14[%c0_137, %c0_138, %c0_139] : memref<2x32x32xf32, #tpu.memory_space<vmem>>, vector<1x32x32xf32>
    %425 = vector.shape_cast %424 : vector<1x32x32xf32> to vector<32x32xf32>
    %cst_140 = arith.constant dense<0.000000e+00> : vector<16x32xf32>
    %426 = tpu.matmul %423, %425, %cst_140 {dimension_numbers = #tpu.dot_dimension_numbers<[1], [0], [0], [1], [0, 0, 1, 1], [], []>} : vector<16x32xf32>, vector<32x32xf32>, vector<16x32xf32> -> vector<16x32xf32>
    %c0_141 = arith.constant 0 : index
    %c0_142 = arith.constant 0 : index
    %c0_143 = arith.constant 0 : index
    %427 = vector.load %arg15[%c0_141, %c0_142, %c0_143] : memref<2x1x32xf32, #tpu.memory_space<vmem>>, vector<1x1x32xf32>
    %428 = vector.shape_cast %427 : vector<1x1x32xf32> to vector<1x32xf32>
    %429 = vector.broadcast %428 : vector<1x32xf32> to vector<16x32xf32>
    %430 = arith.addf %426, %429 : vector<16x32xf32>
    %431 = arith.addf %234, %430 : vector<16x32xf32>
    %432 = vector.extract_strided_slice %25 {offsets = [1, 0], sizes = [1, 32], strides = [1, 1]} : vector<3x32xf32> to vector<1x32xf32>
    %433 = vector.extract_strided_slice %27 {offsets = [1, 0], sizes = [1, 32], strides = [1, 1]} : vector<3x32xf32> to vector<1x32xf32>
    %cst_144 = arith.constant dense<0.000000e+00> : vector<16xf32>
    %434 = vector.multi_reduction <add>, %431, %cst_144 [1] : vector<16x32xf32> to vector<16xf32>
    %435 = vector.shape_cast %434 : vector<16xf32> to vector<16x1xf32>
    %cst_145 = arith.constant 3.200000e+01 : f32
    %436 = vector.broadcast %cst_145 : f32 to vector<16x1xf32>
    %437 = arith.divf %435, %436 : vector<16x1xf32>
    %438 = vector.broadcast %437 : vector<16x1xf32> to vector<16x32xf32>
    %439 = arith.subf %431, %438 : vector<16x32xf32>
    %440 = arith.mulf %439, %439 : vector<16x32xf32>
    %cst_146 = arith.constant dense<0.000000e+00> : vector<16xf32>
    %441 = vector.multi_reduction <add>, %440, %cst_146 [1] : vector<16x32xf32> to vector<16xf32>
    %442 = vector.shape_cast %441 : vector<16xf32> to vector<16x1xf32>
    %cst_147 = arith.constant 3.200000e+01 : f32
    %443 = vector.broadcast %cst_147 : f32 to vector<16x1xf32>
    %444 = arith.divf %442, %443 : vector<16x1xf32>
    %445 = vector.broadcast %437 : vector<16x1xf32> to vector<16x32xf32>
    %446 = arith.subf %431, %445 : vector<16x32xf32>
    %cst_148 = arith.constant 9.99999974E-6 : f32
    %447 = vector.broadcast %cst_148 : f32 to vector<16x1xf32>
    %448 = arith.addf %444, %447 : vector<16x1xf32>
    %449 = math.rsqrt %448 : vector<16x1xf32>
    %450 = vector.broadcast %449 : vector<16x1xf32> to vector<16x32xf32>
    %451 = arith.mulf %446, %450 : vector<16x32xf32>
    %452 = vector.broadcast %432 : vector<1x32xf32> to vector<16x32xf32>
    %453 = arith.mulf %451, %452 : vector<16x32xf32>
    %454 = vector.broadcast %433 : vector<1x32xf32> to vector<16x32xf32>
    %455 = arith.addf %453, %454 : vector<16x32xf32>
    %c0_149 = arith.constant 0 : index
    %c0_150 = arith.constant 0 : index
    %c0_151 = arith.constant 0 : index
    %456 = vector.load %arg18[%c0_149, %c0_150, %c0_151] : memref<2x32x64xf32, #tpu.memory_space<vmem>>, vector<1x32x64xf32>
    %457 = vector.shape_cast %456 : vector<1x32x64xf32> to vector<32x64xf32>
    %cst_152 = arith.constant dense<0.000000e+00> : vector<16x64xf32>
    %458 = tpu.matmul %455, %457, %cst_152 {dimension_numbers = #tpu.dot_dimension_numbers<[1], [0], [0], [1], [0, 0, 1, 1], [], []>} : vector<16x32xf32>, vector<32x64xf32>, vector<16x64xf32> -> vector<16x64xf32>
    %c0_153 = arith.constant 0 : index
    %c0_154 = arith.constant 0 : index
    %c0_155 = arith.constant 0 : index
    %459 = vector.load %arg19[%c0_153, %c0_154, %c0_155] : memref<2x1x64xf32, #tpu.memory_space<vmem>>, vector<1x1x64xf32>
    %460 = vector.shape_cast %459 : vector<1x1x64xf32> to vector<1x64xf32>
    %461 = vector.broadcast %460 : vector<1x64xf32> to vector<16x64xf32>
    %462 = arith.addf %458, %461 : vector<16x64xf32>
    %cst_156 = arith.constant 0.000000e+00 : f32
    %463 = vector.broadcast %cst_156 : f32 to vector<16x64xf32>
    %464 = arith.maximumf %462, %463 : vector<16x64xf32>
    %c0_157 = arith.constant 0 : index
    %c0_158 = arith.constant 0 : index
    %c0_159 = arith.constant 0 : index
    %465 = vector.load %arg20[%c0_157, %c0_158, %c0_159] : memref<2x64x32xf32, #tpu.memory_space<vmem>>, vector<1x64x32xf32>
    %466 = vector.shape_cast %465 : vector<1x64x32xf32> to vector<64x32xf32>
    %cst_160 = arith.constant dense<0.000000e+00> : vector<16x32xf32>
    %467 = tpu.matmul %464, %466, %cst_160 {dimension_numbers = #tpu.dot_dimension_numbers<[1], [0], [0], [1], [0, 0, 1, 1], [], []>} : vector<16x64xf32>, vector<64x32xf32>, vector<16x32xf32> -> vector<16x32xf32>
    %c0_161 = arith.constant 0 : index
    %c0_162 = arith.constant 0 : index
    %c0_163 = arith.constant 0 : index
    %468 = vector.load %arg21[%c0_161, %c0_162, %c0_163] : memref<2x1x32xf32, #tpu.memory_space<vmem>>, vector<1x1x32xf32>
    %469 = vector.shape_cast %468 : vector<1x1x32xf32> to vector<1x32xf32>
    %470 = vector.broadcast %469 : vector<1x32xf32> to vector<16x32xf32>
    %471 = arith.addf %467, %470 : vector<16x32xf32>
    %472 = arith.addf %455, %471 : vector<16x32xf32>
    %473 = vector.extract_strided_slice %25 {offsets = [2, 0], sizes = [1, 32], strides = [1, 1]} : vector<3x32xf32> to vector<1x32xf32>
    %474 = vector.extract_strided_slice %27 {offsets = [2, 0], sizes = [1, 32], strides = [1, 1]} : vector<3x32xf32> to vector<1x32xf32>
    %cst_164 = arith.constant dense<0.000000e+00> : vector<16xf32>
    %475 = vector.multi_reduction <add>, %472, %cst_164 [1] : vector<16x32xf32> to vector<16xf32>
    %476 = vector.shape_cast %475 : vector<16xf32> to vector<16x1xf32>
    %cst_165 = arith.constant 3.200000e+01 : f32
    %477 = vector.broadcast %cst_165 : f32 to vector<16x1xf32>
    %478 = arith.divf %476, %477 : vector<16x1xf32>
    %479 = vector.broadcast %478 : vector<16x1xf32> to vector<16x32xf32>
    %480 = arith.subf %472, %479 : vector<16x32xf32>
    %481 = arith.mulf %480, %480 : vector<16x32xf32>
    %cst_166 = arith.constant dense<0.000000e+00> : vector<16xf32>
    %482 = vector.multi_reduction <add>, %481, %cst_166 [1] : vector<16x32xf32> to vector<16xf32>
    %483 = vector.shape_cast %482 : vector<16xf32> to vector<16x1xf32>
    %cst_167 = arith.constant 3.200000e+01 : f32
    %484 = vector.broadcast %cst_167 : f32 to vector<16x1xf32>
    %485 = arith.divf %483, %484 : vector<16x1xf32>
    %486 = vector.broadcast %478 : vector<16x1xf32> to vector<16x32xf32>
    %487 = arith.subf %472, %486 : vector<16x32xf32>
    %cst_168 = arith.constant 9.99999974E-6 : f32
    %488 = vector.broadcast %cst_168 : f32 to vector<16x1xf32>
    %489 = arith.addf %485, %488 : vector<16x1xf32>
    %490 = math.rsqrt %489 : vector<16x1xf32>
    %491 = vector.broadcast %490 : vector<16x1xf32> to vector<16x32xf32>
    %492 = arith.mulf %487, %491 : vector<16x32xf32>
    %493 = vector.broadcast %473 : vector<1x32xf32> to vector<16x32xf32>
    %494 = arith.mulf %492, %493 : vector<16x32xf32>
    %495 = vector.broadcast %474 : vector<1x32xf32> to vector<16x32xf32>
    %496 = arith.addf %494, %495 : vector<16x32xf32>
    %c1 = arith.constant 1 : index
    %c0_169 = arith.constant 0 : index
    %c0_170 = arith.constant 0 : index
    %497 = vector.load %arg16[%c1, %c0_169, %c0_170] : memref<2x3x32xf32, #tpu.memory_space<vmem>>, vector<1x3x32xf32>
    %498 = vector.shape_cast %497 : vector<1x3x32xf32> to vector<3x32xf32>
    %c1_171 = arith.constant 1 : index
    %c0_172 = arith.constant 0 : index
    %c0_173 = arith.constant 0 : index
    %499 = vector.load %arg17[%c1_171, %c0_172, %c0_173] : memref<2x3x32xf32, #tpu.memory_space<vmem>>, vector<1x3x32xf32>
    %500 = vector.shape_cast %499 : vector<1x3x32xf32> to vector<3x32xf32>
    %c1_174 = arith.constant 1 : index
    %c0_175 = arith.constant 0 : index
    %c0_176 = arith.constant 0 : index
    %501 = vector.load %arg6[%c1_174, %c0_175, %c0_176] : memref<2x32x96xf32, #tpu.memory_space<vmem>>, vector<1x32x96xf32>
    %502 = vector.shape_cast %501 : vector<1x32x96xf32> to vector<32x96xf32>
    %cst_177 = arith.constant dense<0.000000e+00> : vector<16x96xf32>
    %503 = tpu.matmul %496, %502, %cst_177 {dimension_numbers = #tpu.dot_dimension_numbers<[1], [0], [0], [1], [0, 0, 1, 1], [], []>} : vector<16x32xf32>, vector<32x96xf32>, vector<16x96xf32> -> vector<16x96xf32>
    %c1_178 = arith.constant 1 : index
    %c0_179 = arith.constant 0 : index
    %c0_180 = arith.constant 0 : index
    %504 = vector.load %arg7[%c1_178, %c0_179, %c0_180] : memref<2x1x96xf32, #tpu.memory_space<vmem>>, vector<1x1x96xf32>
    %505 = vector.shape_cast %504 : vector<1x1x96xf32> to vector<1x96xf32>
    %506 = vector.broadcast %505 : vector<1x96xf32> to vector<16x96xf32>
    %507 = arith.addf %503, %506 : vector<16x96xf32>
    %508 = vector.extract_strided_slice %507 {offsets = [0, 0], sizes = [16, 32], strides = [1, 1]} : vector<16x96xf32> to vector<16x32xf32>
    %509 = vector.extract_strided_slice %507 {offsets = [0, 32], sizes = [16, 32], strides = [1, 1]} : vector<16x96xf32> to vector<16x32xf32>
    %510 = vector.extract_strided_slice %507 {offsets = [0, 64], sizes = [16, 32], strides = [1, 1]} : vector<16x96xf32> to vector<16x32xf32>
    %511 = vector.extract_strided_slice %508 {offsets = [0, 0], sizes = [8, 32], strides = [1, 1]} : vector<16x32xf32> to vector<8x32xf32>
    %512 = vector.extract_strided_slice %509 {offsets = [0, 0], sizes = [8, 32], strides = [1, 1]} : vector<16x32xf32> to vector<8x32xf32>
    %513 = vector.extract_strided_slice %510 {offsets = [0, 0], sizes = [8, 32], strides = [1, 1]} : vector<16x32xf32> to vector<8x32xf32>
    %514 = vector.extract_strided_slice %18 {offsets = [0, 0, 0], sizes = [1, 8, 8], strides = [1, 1, 1]} : vector<2x8x8xf32> to vector<1x8x8xf32>
    %515 = vector.shape_cast %514 : vector<1x8x8xf32> to vector<8x8xf32>
    %516 = vector.extract_strided_slice %511 {offsets = [0, 0], sizes = [8, 8], strides = [1, 1]} : vector<8x32xf32> to vector<8x8xf32>
    %517 = vector.extract_strided_slice %512 {offsets = [0, 0], sizes = [8, 8], strides = [1, 1]} : vector<8x32xf32> to vector<8x8xf32>
    %518 = tpu.transpose %517, [1, 0] : vector<8x8xf32> -> vector<8x8xf32>
    %cst_181 = arith.constant dense<0.000000e+00> : vector<8x8xf32>
    %519 = tpu.matmul %516, %518, %cst_181 {dimension_numbers = #tpu.dot_dimension_numbers<[1], [0], [0], [1], [0, 0, 1, 1], [], []>} : vector<8x8xf32>, vector<8x8xf32>, vector<8x8xf32> -> vector<8x8xf32>
    %cst_182 = arith.constant 0.353553385 : f32
    %520 = vector.broadcast %cst_182 : f32 to vector<8x8xf32>
    %521 = arith.mulf %519, %520 : vector<8x8xf32>
    %522 = arith.addf %521, %515 : vector<8x8xf32>
    %cst_183 = arith.constant dense<0xFF800000> : vector<8xf32>
    %523 = vector.multi_reduction <maximumf>, %522, %cst_183 [1] : vector<8x8xf32> to vector<8xf32>
    %524 = vector.shape_cast %523 : vector<8xf32> to vector<8x1xf32>
    %525 = vector.broadcast %524 : vector<8x1xf32> to vector<8x8xf32>
    %526 = arith.subf %522, %525 : vector<8x8xf32>
    %527 = math.exp %526 : vector<8x8xf32>
    %cst_184 = arith.constant dense<0.000000e+00> : vector<8xf32>
    %528 = vector.multi_reduction <add>, %527, %cst_184 [1] : vector<8x8xf32> to vector<8xf32>
    %529 = vector.shape_cast %528 : vector<8xf32> to vector<8x1xf32>
    %530 = tpu.reciprocal %529 : vector<8x1xf32> -> vector<8x1xf32>
    %531 = vector.broadcast %530 : vector<8x1xf32> to vector<8x8xf32>
    %532 = arith.mulf %527, %531 : vector<8x8xf32>
    %533 = vector.extract_strided_slice %513 {offsets = [0, 0], sizes = [8, 8], strides = [1, 1]} : vector<8x32xf32> to vector<8x8xf32>
    %cst_185 = arith.constant dense<0.000000e+00> : vector<8x8xf32>
    %534 = tpu.matmul %532, %533, %cst_185 {dimension_numbers = #tpu.dot_dimension_numbers<[1], [0], [0], [1], [0, 0, 1, 1], [], []>} : vector<8x8xf32>, vector<8x8xf32>, vector<8x8xf32> -> vector<8x8xf32>
    %535 = vector.extract_strided_slice %511 {offsets = [0, 8], sizes = [8, 8], strides = [1, 1]} : vector<8x32xf32> to vector<8x8xf32>
    %536 = vector.extract_strided_slice %512 {offsets = [0, 8], sizes = [8, 8], strides = [1, 1]} : vector<8x32xf32> to vector<8x8xf32>
    %537 = tpu.transpose %536, [1, 0] : vector<8x8xf32> -> vector<8x8xf32>
    %cst_186 = arith.constant dense<0.000000e+00> : vector<8x8xf32>
    %538 = tpu.matmul %535, %537, %cst_186 {dimension_numbers = #tpu.dot_dimension_numbers<[1], [0], [0], [1], [0, 0, 1, 1], [], []>} : vector<8x8xf32>, vector<8x8xf32>, vector<8x8xf32> -> vector<8x8xf32>
    %cst_187 = arith.constant 0.353553385 : f32
    %539 = vector.broadcast %cst_187 : f32 to vector<8x8xf32>
    %540 = arith.mulf %538, %539 : vector<8x8xf32>
    %541 = arith.addf %540, %515 : vector<8x8xf32>
    %cst_188 = arith.constant dense<0xFF800000> : vector<8xf32>
    %542 = vector.multi_reduction <maximumf>, %541, %cst_188 [1] : vector<8x8xf32> to vector<8xf32>
    %543 = vector.shape_cast %542 : vector<8xf32> to vector<8x1xf32>
    %544 = vector.broadcast %543 : vector<8x1xf32> to vector<8x8xf32>
    %545 = arith.subf %541, %544 : vector<8x8xf32>
    %546 = math.exp %545 : vector<8x8xf32>
    %cst_189 = arith.constant dense<0.000000e+00> : vector<8xf32>
    %547 = vector.multi_reduction <add>, %546, %cst_189 [1] : vector<8x8xf32> to vector<8xf32>
    %548 = vector.shape_cast %547 : vector<8xf32> to vector<8x1xf32>
    %549 = tpu.reciprocal %548 : vector<8x1xf32> -> vector<8x1xf32>
    %550 = vector.broadcast %549 : vector<8x1xf32> to vector<8x8xf32>
    %551 = arith.mulf %546, %550 : vector<8x8xf32>
    %552 = vector.extract_strided_slice %513 {offsets = [0, 8], sizes = [8, 8], strides = [1, 1]} : vector<8x32xf32> to vector<8x8xf32>
    %cst_190 = arith.constant dense<0.000000e+00> : vector<8x8xf32>
    %553 = tpu.matmul %551, %552, %cst_190 {dimension_numbers = #tpu.dot_dimension_numbers<[1], [0], [0], [1], [0, 0, 1, 1], [], []>} : vector<8x8xf32>, vector<8x8xf32>, vector<8x8xf32> -> vector<8x8xf32>
    %554 = vector.extract_strided_slice %511 {offsets = [0, 16], sizes = [8, 8], strides = [1, 1]} : vector<8x32xf32> to vector<8x8xf32>
    %555 = vector.extract_strided_slice %512 {offsets = [0, 16], sizes = [8, 8], strides = [1, 1]} : vector<8x32xf32> to vector<8x8xf32>
    %556 = tpu.transpose %555, [1, 0] : vector<8x8xf32> -> vector<8x8xf32>
    %cst_191 = arith.constant dense<0.000000e+00> : vector<8x8xf32>
    %557 = tpu.matmul %554, %556, %cst_191 {dimension_numbers = #tpu.dot_dimension_numbers<[1], [0], [0], [1], [0, 0, 1, 1], [], []>} : vector<8x8xf32>, vector<8x8xf32>, vector<8x8xf32> -> vector<8x8xf32>
    %cst_192 = arith.constant 0.353553385 : f32
    %558 = vector.broadcast %cst_192 : f32 to vector<8x8xf32>
    %559 = arith.mulf %557, %558 : vector<8x8xf32>
    %560 = arith.addf %559, %515 : vector<8x8xf32>
    %cst_193 = arith.constant dense<0xFF800000> : vector<8xf32>
    %561 = vector.multi_reduction <maximumf>, %560, %cst_193 [1] : vector<8x8xf32> to vector<8xf32>
    %562 = vector.shape_cast %561 : vector<8xf32> to vector<8x1xf32>
    %563 = vector.broadcast %562 : vector<8x1xf32> to vector<8x8xf32>
    %564 = arith.subf %560, %563 : vector<8x8xf32>
    %565 = math.exp %564 : vector<8x8xf32>
    %cst_194 = arith.constant dense<0.000000e+00> : vector<8xf32>
    %566 = vector.multi_reduction <add>, %565, %cst_194 [1] : vector<8x8xf32> to vector<8xf32>
    %567 = vector.shape_cast %566 : vector<8xf32> to vector<8x1xf32>
    %568 = tpu.reciprocal %567 : vector<8x1xf32> -> vector<8x1xf32>
    %569 = vector.broadcast %568 : vector<8x1xf32> to vector<8x8xf32>
    %570 = arith.mulf %565, %569 : vector<8x8xf32>
    %571 = vector.extract_strided_slice %513 {offsets = [0, 16], sizes = [8, 8], strides = [1, 1]} : vector<8x32xf32> to vector<8x8xf32>
    %cst_195 = arith.constant dense<0.000000e+00> : vector<8x8xf32>
    %572 = tpu.matmul %570, %571, %cst_195 {dimension_numbers = #tpu.dot_dimension_numbers<[1], [0], [0], [1], [0, 0, 1, 1], [], []>} : vector<8x8xf32>, vector<8x8xf32>, vector<8x8xf32> -> vector<8x8xf32>
    %573 = vector.extract_strided_slice %511 {offsets = [0, 24], sizes = [8, 8], strides = [1, 1]} : vector<8x32xf32> to vector<8x8xf32>
    %574 = vector.extract_strided_slice %512 {offsets = [0, 24], sizes = [8, 8], strides = [1, 1]} : vector<8x32xf32> to vector<8x8xf32>
    %575 = tpu.transpose %574, [1, 0] : vector<8x8xf32> -> vector<8x8xf32>
    %cst_196 = arith.constant dense<0.000000e+00> : vector<8x8xf32>
    %576 = tpu.matmul %573, %575, %cst_196 {dimension_numbers = #tpu.dot_dimension_numbers<[1], [0], [0], [1], [0, 0, 1, 1], [], []>} : vector<8x8xf32>, vector<8x8xf32>, vector<8x8xf32> -> vector<8x8xf32>
    %cst_197 = arith.constant 0.353553385 : f32
    %577 = vector.broadcast %cst_197 : f32 to vector<8x8xf32>
    %578 = arith.mulf %576, %577 : vector<8x8xf32>
    %579 = arith.addf %578, %515 : vector<8x8xf32>
    %cst_198 = arith.constant dense<0xFF800000> : vector<8xf32>
    %580 = vector.multi_reduction <maximumf>, %579, %cst_198 [1] : vector<8x8xf32> to vector<8xf32>
    %581 = vector.shape_cast %580 : vector<8xf32> to vector<8x1xf32>
    %582 = vector.broadcast %581 : vector<8x1xf32> to vector<8x8xf32>
    %583 = arith.subf %579, %582 : vector<8x8xf32>
    %584 = math.exp %583 : vector<8x8xf32>
    %cst_199 = arith.constant dense<0.000000e+00> : vector<8xf32>
    %585 = vector.multi_reduction <add>, %584, %cst_199 [1] : vector<8x8xf32> to vector<8xf32>
    %586 = vector.shape_cast %585 : vector<8xf32> to vector<8x1xf32>
    %587 = tpu.reciprocal %586 : vector<8x1xf32> -> vector<8x1xf32>
    %588 = vector.broadcast %587 : vector<8x1xf32> to vector<8x8xf32>
    %589 = arith.mulf %584, %588 : vector<8x8xf32>
    %590 = vector.extract_strided_slice %513 {offsets = [0, 24], sizes = [8, 8], strides = [1, 1]} : vector<8x32xf32> to vector<8x8xf32>
    %cst_200 = arith.constant dense<0.000000e+00> : vector<8x8xf32>
    %591 = tpu.matmul %589, %590, %cst_200 {dimension_numbers = #tpu.dot_dimension_numbers<[1], [0], [0], [1], [0, 0, 1, 1], [], []>} : vector<8x8xf32>, vector<8x8xf32>, vector<8x8xf32> -> vector<8x8xf32>
    %592 = tpu.concatenate %534, %553, %572, %591 in 1 : vector<8x8xf32>, vector<8x8xf32>, vector<8x8xf32>, vector<8x8xf32> -> vector<8x32xf32>
    %593 = vector.extract_strided_slice %508 {offsets = [8, 0], sizes = [8, 32], strides = [1, 1]} : vector<16x32xf32> to vector<8x32xf32>
    %594 = vector.extract_strided_slice %509 {offsets = [8, 0], sizes = [8, 32], strides = [1, 1]} : vector<16x32xf32> to vector<8x32xf32>
    %595 = vector.extract_strided_slice %510 {offsets = [8, 0], sizes = [8, 32], strides = [1, 1]} : vector<16x32xf32> to vector<8x32xf32>
    %596 = vector.extract_strided_slice %18 {offsets = [1, 0, 0], sizes = [1, 8, 8], strides = [1, 1, 1]} : vector<2x8x8xf32> to vector<1x8x8xf32>
    %597 = vector.shape_cast %596 : vector<1x8x8xf32> to vector<8x8xf32>
    %598 = vector.extract_strided_slice %593 {offsets = [0, 0], sizes = [8, 8], strides = [1, 1]} : vector<8x32xf32> to vector<8x8xf32>
    %599 = vector.extract_strided_slice %594 {offsets = [0, 0], sizes = [8, 8], strides = [1, 1]} : vector<8x32xf32> to vector<8x8xf32>
    %600 = tpu.transpose %599, [1, 0] : vector<8x8xf32> -> vector<8x8xf32>
    %cst_201 = arith.constant dense<0.000000e+00> : vector<8x8xf32>
    %601 = tpu.matmul %598, %600, %cst_201 {dimension_numbers = #tpu.dot_dimension_numbers<[1], [0], [0], [1], [0, 0, 1, 1], [], []>} : vector<8x8xf32>, vector<8x8xf32>, vector<8x8xf32> -> vector<8x8xf32>
    %cst_202 = arith.constant 0.353553385 : f32
    %602 = vector.broadcast %cst_202 : f32 to vector<8x8xf32>
    %603 = arith.mulf %601, %602 : vector<8x8xf32>
    %604 = arith.addf %603, %597 : vector<8x8xf32>
    %cst_203 = arith.constant dense<0xFF800000> : vector<8xf32>
    %605 = vector.multi_reduction <maximumf>, %604, %cst_203 [1] : vector<8x8xf32> to vector<8xf32>
    %606 = vector.shape_cast %605 : vector<8xf32> to vector<8x1xf32>
    %607 = vector.broadcast %606 : vector<8x1xf32> to vector<8x8xf32>
    %608 = arith.subf %604, %607 : vector<8x8xf32>
    %609 = math.exp %608 : vector<8x8xf32>
    %cst_204 = arith.constant dense<0.000000e+00> : vector<8xf32>
    %610 = vector.multi_reduction <add>, %609, %cst_204 [1] : vector<8x8xf32> to vector<8xf32>
    %611 = vector.shape_cast %610 : vector<8xf32> to vector<8x1xf32>
    %612 = tpu.reciprocal %611 : vector<8x1xf32> -> vector<8x1xf32>
    %613 = vector.broadcast %612 : vector<8x1xf32> to vector<8x8xf32>
    %614 = arith.mulf %609, %613 : vector<8x8xf32>
    %615 = vector.extract_strided_slice %595 {offsets = [0, 0], sizes = [8, 8], strides = [1, 1]} : vector<8x32xf32> to vector<8x8xf32>
    %cst_205 = arith.constant dense<0.000000e+00> : vector<8x8xf32>
    %616 = tpu.matmul %614, %615, %cst_205 {dimension_numbers = #tpu.dot_dimension_numbers<[1], [0], [0], [1], [0, 0, 1, 1], [], []>} : vector<8x8xf32>, vector<8x8xf32>, vector<8x8xf32> -> vector<8x8xf32>
    %617 = vector.extract_strided_slice %593 {offsets = [0, 8], sizes = [8, 8], strides = [1, 1]} : vector<8x32xf32> to vector<8x8xf32>
    %618 = vector.extract_strided_slice %594 {offsets = [0, 8], sizes = [8, 8], strides = [1, 1]} : vector<8x32xf32> to vector<8x8xf32>
    %619 = tpu.transpose %618, [1, 0] : vector<8x8xf32> -> vector<8x8xf32>
    %cst_206 = arith.constant dense<0.000000e+00> : vector<8x8xf32>
    %620 = tpu.matmul %617, %619, %cst_206 {dimension_numbers = #tpu.dot_dimension_numbers<[1], [0], [0], [1], [0, 0, 1, 1], [], []>} : vector<8x8xf32>, vector<8x8xf32>, vector<8x8xf32> -> vector<8x8xf32>
    %cst_207 = arith.constant 0.353553385 : f32
    %621 = vector.broadcast %cst_207 : f32 to vector<8x8xf32>
    %622 = arith.mulf %620, %621 : vector<8x8xf32>
    %623 = arith.addf %622, %597 : vector<8x8xf32>
    %cst_208 = arith.constant dense<0xFF800000> : vector<8xf32>
    %624 = vector.multi_reduction <maximumf>, %623, %cst_208 [1] : vector<8x8xf32> to vector<8xf32>
    %625 = vector.shape_cast %624 : vector<8xf32> to vector<8x1xf32>
    %626 = vector.broadcast %625 : vector<8x1xf32> to vector<8x8xf32>
    %627 = arith.subf %623, %626 : vector<8x8xf32>
    %628 = math.exp %627 : vector<8x8xf32>
    %cst_209 = arith.constant dense<0.000000e+00> : vector<8xf32>
    %629 = vector.multi_reduction <add>, %628, %cst_209 [1] : vector<8x8xf32> to vector<8xf32>
    %630 = vector.shape_cast %629 : vector<8xf32> to vector<8x1xf32>
    %631 = tpu.reciprocal %630 : vector<8x1xf32> -> vector<8x1xf32>
    %632 = vector.broadcast %631 : vector<8x1xf32> to vector<8x8xf32>
    %633 = arith.mulf %628, %632 : vector<8x8xf32>
    %634 = vector.extract_strided_slice %595 {offsets = [0, 8], sizes = [8, 8], strides = [1, 1]} : vector<8x32xf32> to vector<8x8xf32>
    %cst_210 = arith.constant dense<0.000000e+00> : vector<8x8xf32>
    %635 = tpu.matmul %633, %634, %cst_210 {dimension_numbers = #tpu.dot_dimension_numbers<[1], [0], [0], [1], [0, 0, 1, 1], [], []>} : vector<8x8xf32>, vector<8x8xf32>, vector<8x8xf32> -> vector<8x8xf32>
    %636 = vector.extract_strided_slice %593 {offsets = [0, 16], sizes = [8, 8], strides = [1, 1]} : vector<8x32xf32> to vector<8x8xf32>
    %637 = vector.extract_strided_slice %594 {offsets = [0, 16], sizes = [8, 8], strides = [1, 1]} : vector<8x32xf32> to vector<8x8xf32>
    %638 = tpu.transpose %637, [1, 0] : vector<8x8xf32> -> vector<8x8xf32>
    %cst_211 = arith.constant dense<0.000000e+00> : vector<8x8xf32>
    %639 = tpu.matmul %636, %638, %cst_211 {dimension_numbers = #tpu.dot_dimension_numbers<[1], [0], [0], [1], [0, 0, 1, 1], [], []>} : vector<8x8xf32>, vector<8x8xf32>, vector<8x8xf32> -> vector<8x8xf32>
    %cst_212 = arith.constant 0.353553385 : f32
    %640 = vector.broadcast %cst_212 : f32 to vector<8x8xf32>
    %641 = arith.mulf %639, %640 : vector<8x8xf32>
    %642 = arith.addf %641, %597 : vector<8x8xf32>
    %cst_213 = arith.constant dense<0xFF800000> : vector<8xf32>
    %643 = vector.multi_reduction <maximumf>, %642, %cst_213 [1] : vector<8x8xf32> to vector<8xf32>
    %644 = vector.shape_cast %643 : vector<8xf32> to vector<8x1xf32>
    %645 = vector.broadcast %644 : vector<8x1xf32> to vector<8x8xf32>
    %646 = arith.subf %642, %645 : vector<8x8xf32>
    %647 = math.exp %646 : vector<8x8xf32>
    %cst_214 = arith.constant dense<0.000000e+00> : vector<8xf32>
    %648 = vector.multi_reduction <add>, %647, %cst_214 [1] : vector<8x8xf32> to vector<8xf32>
    %649 = vector.shape_cast %648 : vector<8xf32> to vector<8x1xf32>
    %650 = tpu.reciprocal %649 : vector<8x1xf32> -> vector<8x1xf32>
    %651 = vector.broadcast %650 : vector<8x1xf32> to vector<8x8xf32>
    %652 = arith.mulf %647, %651 : vector<8x8xf32>
    %653 = vector.extract_strided_slice %595 {offsets = [0, 16], sizes = [8, 8], strides = [1, 1]} : vector<8x32xf32> to vector<8x8xf32>
    %cst_215 = arith.constant dense<0.000000e+00> : vector<8x8xf32>
    %654 = tpu.matmul %652, %653, %cst_215 {dimension_numbers = #tpu.dot_dimension_numbers<[1], [0], [0], [1], [0, 0, 1, 1], [], []>} : vector<8x8xf32>, vector<8x8xf32>, vector<8x8xf32> -> vector<8x8xf32>
    %655 = vector.extract_strided_slice %593 {offsets = [0, 24], sizes = [8, 8], strides = [1, 1]} : vector<8x32xf32> to vector<8x8xf32>
    %656 = vector.extract_strided_slice %594 {offsets = [0, 24], sizes = [8, 8], strides = [1, 1]} : vector<8x32xf32> to vector<8x8xf32>
    %657 = tpu.transpose %656, [1, 0] : vector<8x8xf32> -> vector<8x8xf32>
    %cst_216 = arith.constant dense<0.000000e+00> : vector<8x8xf32>
    %658 = tpu.matmul %655, %657, %cst_216 {dimension_numbers = #tpu.dot_dimension_numbers<[1], [0], [0], [1], [0, 0, 1, 1], [], []>} : vector<8x8xf32>, vector<8x8xf32>, vector<8x8xf32> -> vector<8x8xf32>
    %cst_217 = arith.constant 0.353553385 : f32
    %659 = vector.broadcast %cst_217 : f32 to vector<8x8xf32>
    %660 = arith.mulf %658, %659 : vector<8x8xf32>
    %661 = arith.addf %660, %597 : vector<8x8xf32>
    %cst_218 = arith.constant dense<0xFF800000> : vector<8xf32>
    %662 = vector.multi_reduction <maximumf>, %661, %cst_218 [1] : vector<8x8xf32> to vector<8xf32>
    %663 = vector.shape_cast %662 : vector<8xf32> to vector<8x1xf32>
    %664 = vector.broadcast %663 : vector<8x1xf32> to vector<8x8xf32>
    %665 = arith.subf %661, %664 : vector<8x8xf32>
    %666 = math.exp %665 : vector<8x8xf32>
    %cst_219 = arith.constant dense<0.000000e+00> : vector<8xf32>
    %667 = vector.multi_reduction <add>, %666, %cst_219 [1] : vector<8x8xf32> to vector<8xf32>
    %668 = vector.shape_cast %667 : vector<8xf32> to vector<8x1xf32>
    %669 = tpu.reciprocal %668 : vector<8x1xf32> -> vector<8x1xf32>
    %670 = vector.broadcast %669 : vector<8x1xf32> to vector<8x8xf32>
    %671 = arith.mulf %666, %670 : vector<8x8xf32>
    %672 = vector.extract_strided_slice %595 {offsets = [0, 24], sizes = [8, 8], strides = [1, 1]} : vector<8x32xf32> to vector<8x8xf32>
    %cst_220 = arith.constant dense<0.000000e+00> : vector<8x8xf32>
    %673 = tpu.matmul %671, %672, %cst_220 {dimension_numbers = #tpu.dot_dimension_numbers<[1], [0], [0], [1], [0, 0, 1, 1], [], []>} : vector<8x8xf32>, vector<8x8xf32>, vector<8x8xf32> -> vector<8x8xf32>
    %674 = tpu.concatenate %616, %635, %654, %673 in 1 : vector<8x8xf32>, vector<8x8xf32>, vector<8x8xf32>, vector<8x8xf32> -> vector<8x32xf32>
    %675 = tpu.concatenate %592, %674 in 0 : vector<8x32xf32>, vector<8x32xf32> -> vector<16x32xf32>
    %c1_221 = arith.constant 1 : index
    %c0_222 = arith.constant 0 : index
    %c0_223 = arith.constant 0 : index
    %676 = vector.load %arg8[%c1_221, %c0_222, %c0_223] : memref<2x32x32xf32, #tpu.memory_space<vmem>>, vector<1x32x32xf32>
    %677 = vector.shape_cast %676 : vector<1x32x32xf32> to vector<32x32xf32>
    %cst_224 = arith.constant dense<0.000000e+00> : vector<16x32xf32>
    %678 = tpu.matmul %675, %677, %cst_224 {dimension_numbers = #tpu.dot_dimension_numbers<[1], [0], [0], [1], [0, 0, 1, 1], [], []>} : vector<16x32xf32>, vector<32x32xf32>, vector<16x32xf32> -> vector<16x32xf32>
    %c1_225 = arith.constant 1 : index
    %c0_226 = arith.constant 0 : index
    %c0_227 = arith.constant 0 : index
    %679 = vector.load %arg9[%c1_225, %c0_226, %c0_227] : memref<2x1x32xf32, #tpu.memory_space<vmem>>, vector<1x1x32xf32>
    %680 = vector.shape_cast %679 : vector<1x1x32xf32> to vector<1x32xf32>
    %681 = vector.broadcast %680 : vector<1x32xf32> to vector<16x32xf32>
    %682 = arith.addf %678, %681 : vector<16x32xf32>
    %683 = arith.addf %496, %682 : vector<16x32xf32>
    %684 = vector.extract_strided_slice %498 {offsets = [0, 0], sizes = [1, 32], strides = [1, 1]} : vector<3x32xf32> to vector<1x32xf32>
    %685 = vector.extract_strided_slice %500 {offsets = [0, 0], sizes = [1, 32], strides = [1, 1]} : vector<3x32xf32> to vector<1x32xf32>
    %cst_228 = arith.constant dense<0.000000e+00> : vector<16xf32>
    %686 = vector.multi_reduction <add>, %683, %cst_228 [1] : vector<16x32xf32> to vector<16xf32>
    %687 = vector.shape_cast %686 : vector<16xf32> to vector<16x1xf32>
    %cst_229 = arith.constant 3.200000e+01 : f32
    %688 = vector.broadcast %cst_229 : f32 to vector<16x1xf32>
    %689 = arith.divf %687, %688 : vector<16x1xf32>
    %690 = vector.broadcast %689 : vector<16x1xf32> to vector<16x32xf32>
    %691 = arith.subf %683, %690 : vector<16x32xf32>
    %692 = arith.mulf %691, %691 : vector<16x32xf32>
    %cst_230 = arith.constant dense<0.000000e+00> : vector<16xf32>
    %693 = vector.multi_reduction <add>, %692, %cst_230 [1] : vector<16x32xf32> to vector<16xf32>
    %694 = vector.shape_cast %693 : vector<16xf32> to vector<16x1xf32>
    %cst_231 = arith.constant 3.200000e+01 : f32
    %695 = vector.broadcast %cst_231 : f32 to vector<16x1xf32>
    %696 = arith.divf %694, %695 : vector<16x1xf32>
    %697 = vector.broadcast %689 : vector<16x1xf32> to vector<16x32xf32>
    %698 = arith.subf %683, %697 : vector<16x32xf32>
    %cst_232 = arith.constant 9.99999974E-6 : f32
    %699 = vector.broadcast %cst_232 : f32 to vector<16x1xf32>
    %700 = arith.addf %696, %699 : vector<16x1xf32>
    %701 = math.rsqrt %700 : vector<16x1xf32>
    %702 = vector.broadcast %701 : vector<16x1xf32> to vector<16x32xf32>
    %703 = arith.mulf %698, %702 : vector<16x32xf32>
    %704 = vector.broadcast %684 : vector<1x32xf32> to vector<16x32xf32>
    %705 = arith.mulf %703, %704 : vector<16x32xf32>
    %706 = vector.broadcast %685 : vector<1x32xf32> to vector<16x32xf32>
    %707 = arith.addf %705, %706 : vector<16x32xf32>
    %c1_233 = arith.constant 1 : index
    %c0_234 = arith.constant 0 : index
    %c0_235 = arith.constant 0 : index
    %708 = vector.load %arg10[%c1_233, %c0_234, %c0_235] : memref<2x32x32xf32, #tpu.memory_space<vmem>>, vector<1x32x32xf32>
    %709 = vector.shape_cast %708 : vector<1x32x32xf32> to vector<32x32xf32>
    %cst_236 = arith.constant dense<0.000000e+00> : vector<16x32xf32>
    %710 = tpu.matmul %707, %709, %cst_236 {dimension_numbers = #tpu.dot_dimension_numbers<[1], [0], [0], [1], [0, 0, 1, 1], [], []>} : vector<16x32xf32>, vector<32x32xf32>, vector<16x32xf32> -> vector<16x32xf32>
    %c1_237 = arith.constant 1 : index
    %c0_238 = arith.constant 0 : index
    %c0_239 = arith.constant 0 : index
    %711 = vector.load %arg11[%c1_237, %c0_238, %c0_239] : memref<2x1x32xf32, #tpu.memory_space<vmem>>, vector<1x1x32xf32>
    %712 = vector.shape_cast %711 : vector<1x1x32xf32> to vector<1x32xf32>
    %713 = vector.broadcast %712 : vector<1x32xf32> to vector<16x32xf32>
    %714 = arith.addf %710, %713 : vector<16x32xf32>
    %c1_240 = arith.constant 1 : index
    %c0_241 = arith.constant 0 : index
    %c0_242 = arith.constant 0 : index
    %715 = vector.load %arg12[%c1_240, %c0_241, %c0_242] : memref<2x32x64xf32, #tpu.memory_space<vmem>>, vector<1x32x64xf32>
    %716 = vector.shape_cast %715 : vector<1x32x64xf32> to vector<32x64xf32>
    %cst_243 = arith.constant dense<0.000000e+00> : vector<20x64xf32>
    %717 = tpu.matmul %13, %716, %cst_243 {dimension_numbers = #tpu.dot_dimension_numbers<[1], [0], [0], [1], [0, 0, 1, 1], [], []>} : vector<20x32xf32>, vector<32x64xf32>, vector<20x64xf32> -> vector<20x64xf32>
    %c1_244 = arith.constant 1 : index
    %c0_245 = arith.constant 0 : index
    %c0_246 = arith.constant 0 : index
    %718 = vector.load %arg13[%c1_244, %c0_245, %c0_246] : memref<2x1x64xf32, #tpu.memory_space<vmem>>, vector<1x1x64xf32>
    %719 = vector.shape_cast %718 : vector<1x1x64xf32> to vector<1x64xf32>
    %720 = vector.broadcast %719 : vector<1x64xf32> to vector<20x64xf32>
    %721 = arith.addf %717, %720 : vector<20x64xf32>
    %722 = vector.extract_strided_slice %721 {offsets = [0, 0], sizes = [20, 32], strides = [1, 1]} : vector<20x64xf32> to vector<20x32xf32>
    %723 = vector.extract_strided_slice %721 {offsets = [0, 32], sizes = [20, 32], strides = [1, 1]} : vector<20x64xf32> to vector<20x32xf32>
    %724 = vector.extract_strided_slice %714 {offsets = [0, 0], sizes = [8, 32], strides = [1, 1]} : vector<16x32xf32> to vector<8x32xf32>
    %725 = vector.extract_strided_slice %722 {offsets = [0, 0], sizes = [10, 32], strides = [1, 1]} : vector<20x32xf32> to vector<10x32xf32>
    %726 = vector.extract_strided_slice %723 {offsets = [0, 0], sizes = [10, 32], strides = [1, 1]} : vector<20x32xf32> to vector<10x32xf32>
    %727 = vector.extract_strided_slice %23 {offsets = [0, 0, 0], sizes = [1, 1, 10], strides = [1, 1, 1]} : vector<2x1x10xf32> to vector<1x1x10xf32>
    %728 = vector.shape_cast %727 : vector<1x1x10xf32> to vector<1x10xf32>
    %729 = vector.extract_strided_slice %724 {offsets = [0, 0], sizes = [8, 8], strides = [1, 1]} : vector<8x32xf32> to vector<8x8xf32>
    %730 = vector.extract_strided_slice %725 {offsets = [0, 0], sizes = [10, 8], strides = [1, 1]} : vector<10x32xf32> to vector<10x8xf32>
    %731 = tpu.transpose %730, [1, 0] : vector<10x8xf32> -> vector<8x10xf32>
    %cst_247 = arith.constant dense<0.000000e+00> : vector<8x10xf32>
    %732 = tpu.matmul %729, %731, %cst_247 {dimension_numbers = #tpu.dot_dimension_numbers<[1], [0], [0], [1], [0, 0, 1, 1], [], []>} : vector<8x8xf32>, vector<8x10xf32>, vector<8x10xf32> -> vector<8x10xf32>
    %cst_248 = arith.constant 0.353553385 : f32
    %733 = vector.broadcast %cst_248 : f32 to vector<8x10xf32>
    %734 = arith.mulf %732, %733 : vector<8x10xf32>
    %735 = vector.broadcast %728 : vector<1x10xf32> to vector<8x10xf32>
    %736 = arith.addf %734, %735 : vector<8x10xf32>
    %cst_249 = arith.constant dense<0xFF800000> : vector<8xf32>
    %737 = vector.multi_reduction <maximumf>, %736, %cst_249 [1] : vector<8x10xf32> to vector<8xf32>
    %738 = vector.shape_cast %737 : vector<8xf32> to vector<8x1xf32>
    %739 = vector.broadcast %738 : vector<8x1xf32> to vector<8x10xf32>
    %740 = arith.subf %736, %739 : vector<8x10xf32>
    %741 = math.exp %740 : vector<8x10xf32>
    %cst_250 = arith.constant dense<0.000000e+00> : vector<8xf32>
    %742 = vector.multi_reduction <add>, %741, %cst_250 [1] : vector<8x10xf32> to vector<8xf32>
    %743 = vector.shape_cast %742 : vector<8xf32> to vector<8x1xf32>
    %744 = tpu.reciprocal %743 : vector<8x1xf32> -> vector<8x1xf32>
    %745 = vector.broadcast %744 : vector<8x1xf32> to vector<8x10xf32>
    %746 = arith.mulf %741, %745 : vector<8x10xf32>
    %c0_251 = arith.constant 0 : index
    %c0_252 = arith.constant 0 : index
    %c0_253 = arith.constant 0 : index
    %c0_254 = arith.constant 0 : index
    %747 = vector.load %arg25[%c0_251, %c0_252, %c0_253, %c0_254] : memref<2x4x8x10xf32, #tpu.memory_space<vmem>>, vector<1x1x8x10xf32>
    %748 = vector.shape_cast %747 : vector<1x1x8x10xf32> to vector<8x10xf32>
    %749 = vector.shape_cast %746 : vector<8x10xf32> to vector<1x1x8x10xf32>
    tpu.vector_store %arg25[%c0_251, %c0_252, %c0_253, %c0_254], %749 {strides = array<i32>} : memref<2x4x8x10xf32, #tpu.memory_space<vmem>>, vector<1x1x8x10xf32>,
    %750 = vector.extract_strided_slice %726 {offsets = [0, 0], sizes = [10, 8], strides = [1, 1]} : vector<10x32xf32> to vector<10x8xf32>
    %cst_255 = arith.constant dense<0.000000e+00> : vector<8x8xf32>
    %751 = tpu.matmul %746, %750, %cst_255 {dimension_numbers = #tpu.dot_dimension_numbers<[1], [0], [0], [1], [0, 0, 1, 1], [], []>} : vector<8x10xf32>, vector<10x8xf32>, vector<8x8xf32> -> vector<8x8xf32>
    %752 = vector.extract_strided_slice %724 {offsets = [0, 8], sizes = [8, 8], strides = [1, 1]} : vector<8x32xf32> to vector<8x8xf32>
    %753 = vector.extract_strided_slice %725 {offsets = [0, 8], sizes = [10, 8], strides = [1, 1]} : vector<10x32xf32> to vector<10x8xf32>
    %754 = tpu.transpose %753, [1, 0] : vector<10x8xf32> -> vector<8x10xf32>
    %cst_256 = arith.constant dense<0.000000e+00> : vector<8x10xf32>
    %755 = tpu.matmul %752, %754, %cst_256 {dimension_numbers = #tpu.dot_dimension_numbers<[1], [0], [0], [1], [0, 0, 1, 1], [], []>} : vector<8x8xf32>, vector<8x10xf32>, vector<8x10xf32> -> vector<8x10xf32>
    %cst_257 = arith.constant 0.353553385 : f32
    %756 = vector.broadcast %cst_257 : f32 to vector<8x10xf32>
    %757 = arith.mulf %755, %756 : vector<8x10xf32>
    %758 = vector.broadcast %728 : vector<1x10xf32> to vector<8x10xf32>
    %759 = arith.addf %757, %758 : vector<8x10xf32>
    %cst_258 = arith.constant dense<0xFF800000> : vector<8xf32>
    %760 = vector.multi_reduction <maximumf>, %759, %cst_258 [1] : vector<8x10xf32> to vector<8xf32>
    %761 = vector.shape_cast %760 : vector<8xf32> to vector<8x1xf32>
    %762 = vector.broadcast %761 : vector<8x1xf32> to vector<8x10xf32>
    %763 = arith.subf %759, %762 : vector<8x10xf32>
    %764 = math.exp %763 : vector<8x10xf32>
    %cst_259 = arith.constant dense<0.000000e+00> : vector<8xf32>
    %765 = vector.multi_reduction <add>, %764, %cst_259 [1] : vector<8x10xf32> to vector<8xf32>
    %766 = vector.shape_cast %765 : vector<8xf32> to vector<8x1xf32>
    %767 = tpu.reciprocal %766 : vector<8x1xf32> -> vector<8x1xf32>
    %768 = vector.broadcast %767 : vector<8x1xf32> to vector<8x10xf32>
    %769 = arith.mulf %764, %768 : vector<8x10xf32>
    %c0_260 = arith.constant 0 : index
    %c1_261 = arith.constant 1 : index
    %c0_262 = arith.constant 0 : index
    %c0_263 = arith.constant 0 : index
    %770 = vector.load %arg25[%c0_260, %c1_261, %c0_262, %c0_263] : memref<2x4x8x10xf32, #tpu.memory_space<vmem>>, vector<1x1x8x10xf32>
    %771 = vector.shape_cast %770 : vector<1x1x8x10xf32> to vector<8x10xf32>
    %772 = vector.shape_cast %769 : vector<8x10xf32> to vector<1x1x8x10xf32>
    tpu.vector_store %arg25[%c0_260, %c1_261, %c0_262, %c0_263], %772 {strides = array<i32>} : memref<2x4x8x10xf32, #tpu.memory_space<vmem>>, vector<1x1x8x10xf32>,
    %773 = vector.extract_strided_slice %726 {offsets = [0, 8], sizes = [10, 8], strides = [1, 1]} : vector<10x32xf32> to vector<10x8xf32>
    %cst_264 = arith.constant dense<0.000000e+00> : vector<8x8xf32>
    %774 = tpu.matmul %769, %773, %cst_264 {dimension_numbers = #tpu.dot_dimension_numbers<[1], [0], [0], [1], [0, 0, 1, 1], [], []>} : vector<8x10xf32>, vector<10x8xf32>, vector<8x8xf32> -> vector<8x8xf32>
    %775 = vector.extract_strided_slice %724 {offsets = [0, 16], sizes = [8, 8], strides = [1, 1]} : vector<8x32xf32> to vector<8x8xf32>
    %776 = vector.extract_strided_slice %725 {offsets = [0, 16], sizes = [10, 8], strides = [1, 1]} : vector<10x32xf32> to vector<10x8xf32>
    %777 = tpu.transpose %776, [1, 0] : vector<10x8xf32> -> vector<8x10xf32>
    %cst_265 = arith.constant dense<0.000000e+00> : vector<8x10xf32>
    %778 = tpu.matmul %775, %777, %cst_265 {dimension_numbers = #tpu.dot_dimension_numbers<[1], [0], [0], [1], [0, 0, 1, 1], [], []>} : vector<8x8xf32>, vector<8x10xf32>, vector<8x10xf32> -> vector<8x10xf32>
    %cst_266 = arith.constant 0.353553385 : f32
    %779 = vector.broadcast %cst_266 : f32 to vector<8x10xf32>
    %780 = arith.mulf %778, %779 : vector<8x10xf32>
    %781 = vector.broadcast %728 : vector<1x10xf32> to vector<8x10xf32>
    %782 = arith.addf %780, %781 : vector<8x10xf32>
    %cst_267 = arith.constant dense<0xFF800000> : vector<8xf32>
    %783 = vector.multi_reduction <maximumf>, %782, %cst_267 [1] : vector<8x10xf32> to vector<8xf32>
    %784 = vector.shape_cast %783 : vector<8xf32> to vector<8x1xf32>
    %785 = vector.broadcast %784 : vector<8x1xf32> to vector<8x10xf32>
    %786 = arith.subf %782, %785 : vector<8x10xf32>
    %787 = math.exp %786 : vector<8x10xf32>
    %cst_268 = arith.constant dense<0.000000e+00> : vector<8xf32>
    %788 = vector.multi_reduction <add>, %787, %cst_268 [1] : vector<8x10xf32> to vector<8xf32>
    %789 = vector.shape_cast %788 : vector<8xf32> to vector<8x1xf32>
    %790 = tpu.reciprocal %789 : vector<8x1xf32> -> vector<8x1xf32>
    %791 = vector.broadcast %790 : vector<8x1xf32> to vector<8x10xf32>
    %792 = arith.mulf %787, %791 : vector<8x10xf32>
    %c0_269 = arith.constant 0 : index
    %c2 = arith.constant 2 : index
    %c0_270 = arith.constant 0 : index
    %c0_271 = arith.constant 0 : index
    %793 = vector.load %arg25[%c0_269, %c2, %c0_270, %c0_271] : memref<2x4x8x10xf32, #tpu.memory_space<vmem>>, vector<1x1x8x10xf32>
    %794 = vector.shape_cast %793 : vector<1x1x8x10xf32> to vector<8x10xf32>
    %795 = vector.shape_cast %792 : vector<8x10xf32> to vector<1x1x8x10xf32>
    tpu.vector_store %arg25[%c0_269, %c2, %c0_270, %c0_271], %795 {strides = array<i32>} : memref<2x4x8x10xf32, #tpu.memory_space<vmem>>, vector<1x1x8x10xf32>,
    %796 = vector.extract_strided_slice %726 {offsets = [0, 16], sizes = [10, 8], strides = [1, 1]} : vector<10x32xf32> to vector<10x8xf32>
    %cst_272 = arith.constant dense<0.000000e+00> : vector<8x8xf32>
    %797 = tpu.matmul %792, %796, %cst_272 {dimension_numbers = #tpu.dot_dimension_numbers<[1], [0], [0], [1], [0, 0, 1, 1], [], []>} : vector<8x10xf32>, vector<10x8xf32>, vector<8x8xf32> -> vector<8x8xf32>
    %798 = vector.extract_strided_slice %724 {offsets = [0, 24], sizes = [8, 8], strides = [1, 1]} : vector<8x32xf32> to vector<8x8xf32>
    %799 = vector.extract_strided_slice %725 {offsets = [0, 24], sizes = [10, 8], strides = [1, 1]} : vector<10x32xf32> to vector<10x8xf32>
    %800 = tpu.transpose %799, [1, 0] : vector<10x8xf32> -> vector<8x10xf32>
    %cst_273 = arith.constant dense<0.000000e+00> : vector<8x10xf32>
    %801 = tpu.matmul %798, %800, %cst_273 {dimension_numbers = #tpu.dot_dimension_numbers<[1], [0], [0], [1], [0, 0, 1, 1], [], []>} : vector<8x8xf32>, vector<8x10xf32>, vector<8x10xf32> -> vector<8x10xf32>
    %cst_274 = arith.constant 0.353553385 : f32
    %802 = vector.broadcast %cst_274 : f32 to vector<8x10xf32>
    %803 = arith.mulf %801, %802 : vector<8x10xf32>
    %804 = vector.broadcast %728 : vector<1x10xf32> to vector<8x10xf32>
    %805 = arith.addf %803, %804 : vector<8x10xf32>
    %cst_275 = arith.constant dense<0xFF800000> : vector<8xf32>
    %806 = vector.multi_reduction <maximumf>, %805, %cst_275 [1] : vector<8x10xf32> to vector<8xf32>
    %807 = vector.shape_cast %806 : vector<8xf32> to vector<8x1xf32>
    %808 = vector.broadcast %807 : vector<8x1xf32> to vector<8x10xf32>
    %809 = arith.subf %805, %808 : vector<8x10xf32>
    %810 = math.exp %809 : vector<8x10xf32>
    %cst_276 = arith.constant dense<0.000000e+00> : vector<8xf32>
    %811 = vector.multi_reduction <add>, %810, %cst_276 [1] : vector<8x10xf32> to vector<8xf32>
    %812 = vector.shape_cast %811 : vector<8xf32> to vector<8x1xf32>
    %813 = tpu.reciprocal %812 : vector<8x1xf32> -> vector<8x1xf32>
    %814 = vector.broadcast %813 : vector<8x1xf32> to vector<8x10xf32>
    %815 = arith.mulf %810, %814 : vector<8x10xf32>
    %c0_277 = arith.constant 0 : index
    %c3 = arith.constant 3 : index
    %c0_278 = arith.constant 0 : index
    %c0_279 = arith.constant 0 : index
    %816 = vector.load %arg25[%c0_277, %c3, %c0_278, %c0_279] : memref<2x4x8x10xf32, #tpu.memory_space<vmem>>, vector<1x1x8x10xf32>
    %817 = vector.shape_cast %816 : vector<1x1x8x10xf32> to vector<8x10xf32>
    %818 = vector.shape_cast %815 : vector<8x10xf32> to vector<1x1x8x10xf32>
    tpu.vector_store %arg25[%c0_277, %c3, %c0_278, %c0_279], %818 {strides = array<i32>} : memref<2x4x8x10xf32, #tpu.memory_space<vmem>>, vector<1x1x8x10xf32>,
    %819 = vector.extract_strided_slice %726 {offsets = [0, 24], sizes = [10, 8], strides = [1, 1]} : vector<10x32xf32> to vector<10x8xf32>
    %cst_280 = arith.constant dense<0.000000e+00> : vector<8x8xf32>
    %820 = tpu.matmul %815, %819, %cst_280 {dimension_numbers = #tpu.dot_dimension_numbers<[1], [0], [0], [1], [0, 0, 1, 1], [], []>} : vector<8x10xf32>, vector<10x8xf32>, vector<8x8xf32> -> vector<8x8xf32>
    %821 = tpu.concatenate %751, %774, %797, %820 in 1 : vector<8x8xf32>, vector<8x8xf32>, vector<8x8xf32>, vector<8x8xf32> -> vector<8x32xf32>
    %822 = vector.extract_strided_slice %714 {offsets = [8, 0], sizes = [8, 32], strides = [1, 1]} : vector<16x32xf32> to vector<8x32xf32>
    %823 = vector.extract_strided_slice %722 {offsets = [10, 0], sizes = [10, 32], strides = [1, 1]} : vector<20x32xf32> to vector<10x32xf32>
    %824 = vector.extract_strided_slice %723 {offsets = [10, 0], sizes = [10, 32], strides = [1, 1]} : vector<20x32xf32> to vector<10x32xf32>
    %825 = vector.extract_strided_slice %23 {offsets = [1, 0, 0], sizes = [1, 1, 10], strides = [1, 1, 1]} : vector<2x1x10xf32> to vector<1x1x10xf32>
    %826 = vector.shape_cast %825 : vector<1x1x10xf32> to vector<1x10xf32>
    %827 = vector.extract_strided_slice %822 {offsets = [0, 0], sizes = [8, 8], strides = [1, 1]} : vector<8x32xf32> to vector<8x8xf32>
    %828 = vector.extract_strided_slice %823 {offsets = [0, 0], sizes = [10, 8], strides = [1, 1]} : vector<10x32xf32> to vector<10x8xf32>
    %829 = tpu.transpose %828, [1, 0] : vector<10x8xf32> -> vector<8x10xf32>
    %cst_281 = arith.constant dense<0.000000e+00> : vector<8x10xf32>
    %830 = tpu.matmul %827, %829, %cst_281 {dimension_numbers = #tpu.dot_dimension_numbers<[1], [0], [0], [1], [0, 0, 1, 1], [], []>} : vector<8x8xf32>, vector<8x10xf32>, vector<8x10xf32> -> vector<8x10xf32>
    %cst_282 = arith.constant 0.353553385 : f32
    %831 = vector.broadcast %cst_282 : f32 to vector<8x10xf32>
    %832 = arith.mulf %830, %831 : vector<8x10xf32>
    %833 = vector.broadcast %826 : vector<1x10xf32> to vector<8x10xf32>
    %834 = arith.addf %832, %833 : vector<8x10xf32>
    %cst_283 = arith.constant dense<0xFF800000> : vector<8xf32>
    %835 = vector.multi_reduction <maximumf>, %834, %cst_283 [1] : vector<8x10xf32> to vector<8xf32>
    %836 = vector.shape_cast %835 : vector<8xf32> to vector<8x1xf32>
    %837 = vector.broadcast %836 : vector<8x1xf32> to vector<8x10xf32>
    %838 = arith.subf %834, %837 : vector<8x10xf32>
    %839 = math.exp %838 : vector<8x10xf32>
    %cst_284 = arith.constant dense<0.000000e+00> : vector<8xf32>
    %840 = vector.multi_reduction <add>, %839, %cst_284 [1] : vector<8x10xf32> to vector<8xf32>
    %841 = vector.shape_cast %840 : vector<8xf32> to vector<8x1xf32>
    %842 = tpu.reciprocal %841 : vector<8x1xf32> -> vector<8x1xf32>
    %843 = vector.broadcast %842 : vector<8x1xf32> to vector<8x10xf32>
    %844 = arith.mulf %839, %843 : vector<8x10xf32>
    %c1_285 = arith.constant 1 : index
    %c0_286 = arith.constant 0 : index
    %c0_287 = arith.constant 0 : index
    %c0_288 = arith.constant 0 : index
    %845 = vector.load %arg25[%c1_285, %c0_286, %c0_287, %c0_288] : memref<2x4x8x10xf32, #tpu.memory_space<vmem>>, vector<1x1x8x10xf32>
    %846 = vector.shape_cast %845 : vector<1x1x8x10xf32> to vector<8x10xf32>
    %847 = vector.shape_cast %844 : vector<8x10xf32> to vector<1x1x8x10xf32>
    tpu.vector_store %arg25[%c1_285, %c0_286, %c0_287, %c0_288], %847 {strides = array<i32>} : memref<2x4x8x10xf32, #tpu.memory_space<vmem>>, vector<1x1x8x10xf32>,
    %848 = vector.extract_strided_slice %824 {offsets = [0, 0], sizes = [10, 8], strides = [1, 1]} : vector<10x32xf32> to vector<10x8xf32>
    %cst_289 = arith.constant dense<0.000000e+00> : vector<8x8xf32>
    %849 = tpu.matmul %844, %848, %cst_289 {dimension_numbers = #tpu.dot_dimension_numbers<[1], [0], [0], [1], [0, 0, 1, 1], [], []>} : vector<8x10xf32>, vector<10x8xf32>, vector<8x8xf32> -> vector<8x8xf32>
    %850 = vector.extract_strided_slice %822 {offsets = [0, 8], sizes = [8, 8], strides = [1, 1]} : vector<8x32xf32> to vector<8x8xf32>
    %851 = vector.extract_strided_slice %823 {offsets = [0, 8], sizes = [10, 8], strides = [1, 1]} : vector<10x32xf32> to vector<10x8xf32>
    %852 = tpu.transpose %851, [1, 0] : vector<10x8xf32> -> vector<8x10xf32>
    %cst_290 = arith.constant dense<0.000000e+00> : vector<8x10xf32>
    %853 = tpu.matmul %850, %852, %cst_290 {dimension_numbers = #tpu.dot_dimension_numbers<[1], [0], [0], [1], [0, 0, 1, 1], [], []>} : vector<8x8xf32>, vector<8x10xf32>, vector<8x10xf32> -> vector<8x10xf32>
    %cst_291 = arith.constant 0.353553385 : f32
    %854 = vector.broadcast %cst_291 : f32 to vector<8x10xf32>
    %855 = arith.mulf %853, %854 : vector<8x10xf32>
    %856 = vector.broadcast %826 : vector<1x10xf32> to vector<8x10xf32>
    %857 = arith.addf %855, %856 : vector<8x10xf32>
    %cst_292 = arith.constant dense<0xFF800000> : vector<8xf32>
    %858 = vector.multi_reduction <maximumf>, %857, %cst_292 [1] : vector<8x10xf32> to vector<8xf32>
    %859 = vector.shape_cast %858 : vector<8xf32> to vector<8x1xf32>
    %860 = vector.broadcast %859 : vector<8x1xf32> to vector<8x10xf32>
    %861 = arith.subf %857, %860 : vector<8x10xf32>
    %862 = math.exp %861 : vector<8x10xf32>
    %cst_293 = arith.constant dense<0.000000e+00> : vector<8xf32>
    %863 = vector.multi_reduction <add>, %862, %cst_293 [1] : vector<8x10xf32> to vector<8xf32>
    %864 = vector.shape_cast %863 : vector<8xf32> to vector<8x1xf32>
    %865 = tpu.reciprocal %864 : vector<8x1xf32> -> vector<8x1xf32>
    %866 = vector.broadcast %865 : vector<8x1xf32> to vector<8x10xf32>
    %867 = arith.mulf %862, %866 : vector<8x10xf32>
    %c1_294 = arith.constant 1 : index
    %c1_295 = arith.constant 1 : index
    %c0_296 = arith.constant 0 : index
    %c0_297 = arith.constant 0 : index
    %868 = vector.load %arg25[%c1_294, %c1_295, %c0_296, %c0_297] : memref<2x4x8x10xf32, #tpu.memory_space<vmem>>, vector<1x1x8x10xf32>
    %869 = vector.shape_cast %868 : vector<1x1x8x10xf32> to vector<8x10xf32>
    %870 = vector.shape_cast %867 : vector<8x10xf32> to vector<1x1x8x10xf32>
    tpu.vector_store %arg25[%c1_294, %c1_295, %c0_296, %c0_297], %870 {strides = array<i32>} : memref<2x4x8x10xf32, #tpu.memory_space<vmem>>, vector<1x1x8x10xf32>,
    %871 = vector.extract_strided_slice %824 {offsets = [0, 8], sizes = [10, 8], strides = [1, 1]} : vector<10x32xf32> to vector<10x8xf32>
    %cst_298 = arith.constant dense<0.000000e+00> : vector<8x8xf32>
    %872 = tpu.matmul %867, %871, %cst_298 {dimension_numbers = #tpu.dot_dimension_numbers<[1], [0], [0], [1], [0, 0, 1, 1], [], []>} : vector<8x10xf32>, vector<10x8xf32>, vector<8x8xf32> -> vector<8x8xf32>
    %873 = vector.extract_strided_slice %822 {offsets = [0, 16], sizes = [8, 8], strides = [1, 1]} : vector<8x32xf32> to vector<8x8xf32>
    %874 = vector.extract_strided_slice %823 {offsets = [0, 16], sizes = [10, 8], strides = [1, 1]} : vector<10x32xf32> to vector<10x8xf32>
    %875 = tpu.transpose %874, [1, 0] : vector<10x8xf32> -> vector<8x10xf32>
    %cst_299 = arith.constant dense<0.000000e+00> : vector<8x10xf32>
    %876 = tpu.matmul %873, %875, %cst_299 {dimension_numbers = #tpu.dot_dimension_numbers<[1], [0], [0], [1], [0, 0, 1, 1], [], []>} : vector<8x8xf32>, vector<8x10xf32>, vector<8x10xf32> -> vector<8x10xf32>
    %cst_300 = arith.constant 0.353553385 : f32
    %877 = vector.broadcast %cst_300 : f32 to vector<8x10xf32>
    %878 = arith.mulf %876, %877 : vector<8x10xf32>
    %879 = vector.broadcast %826 : vector<1x10xf32> to vector<8x10xf32>
    %880 = arith.addf %878, %879 : vector<8x10xf32>
    %cst_301 = arith.constant dense<0xFF800000> : vector<8xf32>
    %881 = vector.multi_reduction <maximumf>, %880, %cst_301 [1] : vector<8x10xf32> to vector<8xf32>
    %882 = vector.shape_cast %881 : vector<8xf32> to vector<8x1xf32>
    %883 = vector.broadcast %882 : vector<8x1xf32> to vector<8x10xf32>
    %884 = arith.subf %880, %883 : vector<8x10xf32>
    %885 = math.exp %884 : vector<8x10xf32>
    %cst_302 = arith.constant dense<0.000000e+00> : vector<8xf32>
    %886 = vector.multi_reduction <add>, %885, %cst_302 [1] : vector<8x10xf32> to vector<8xf32>
    %887 = vector.shape_cast %886 : vector<8xf32> to vector<8x1xf32>
    %888 = tpu.reciprocal %887 : vector<8x1xf32> -> vector<8x1xf32>
    %889 = vector.broadcast %888 : vector<8x1xf32> to vector<8x10xf32>
    %890 = arith.mulf %885, %889 : vector<8x10xf32>
    %c1_303 = arith.constant 1 : index
    %c2_304 = arith.constant 2 : index
    %c0_305 = arith.constant 0 : index
    %c0_306 = arith.constant 0 : index
    %891 = vector.load %arg25[%c1_303, %c2_304, %c0_305, %c0_306] : memref<2x4x8x10xf32, #tpu.memory_space<vmem>>, vector<1x1x8x10xf32>
    %892 = vector.shape_cast %891 : vector<1x1x8x10xf32> to vector<8x10xf32>
    %893 = vector.shape_cast %890 : vector<8x10xf32> to vector<1x1x8x10xf32>
    tpu.vector_store %arg25[%c1_303, %c2_304, %c0_305, %c0_306], %893 {strides = array<i32>} : memref<2x4x8x10xf32, #tpu.memory_space<vmem>>, vector<1x1x8x10xf32>,
    %894 = vector.extract_strided_slice %824 {offsets = [0, 16], sizes = [10, 8], strides = [1, 1]} : vector<10x32xf32> to vector<10x8xf32>
    %cst_307 = arith.constant dense<0.000000e+00> : vector<8x8xf32>
    %895 = tpu.matmul %890, %894, %cst_307 {dimension_numbers = #tpu.dot_dimension_numbers<[1], [0], [0], [1], [0, 0, 1, 1], [], []>} : vector<8x10xf32>, vector<10x8xf32>, vector<8x8xf32> -> vector<8x8xf32>
    %896 = vector.extract_strided_slice %822 {offsets = [0, 24], sizes = [8, 8], strides = [1, 1]} : vector<8x32xf32> to vector<8x8xf32>
    %897 = vector.extract_strided_slice %823 {offsets = [0, 24], sizes = [10, 8], strides = [1, 1]} : vector<10x32xf32> to vector<10x8xf32>
    %898 = tpu.transpose %897, [1, 0] : vector<10x8xf32> -> vector<8x10xf32>
    %cst_308 = arith.constant dense<0.000000e+00> : vector<8x10xf32>
    %899 = tpu.matmul %896, %898, %cst_308 {dimension_numbers = #tpu.dot_dimension_numbers<[1], [0], [0], [1], [0, 0, 1, 1], [], []>} : vector<8x8xf32>, vector<8x10xf32>, vector<8x10xf32> -> vector<8x10xf32>
    %cst_309 = arith.constant 0.353553385 : f32
    %900 = vector.broadcast %cst_309 : f32 to vector<8x10xf32>
    %901 = arith.mulf %899, %900 : vector<8x10xf32>
    %902 = vector.broadcast %826 : vector<1x10xf32> to vector<8x10xf32>
    %903 = arith.addf %901, %902 : vector<8x10xf32>
    %cst_310 = arith.constant dense<0xFF800000> : vector<8xf32>
    %904 = vector.multi_reduction <maximumf>, %903, %cst_310 [1] : vector<8x10xf32> to vector<8xf32>
    %905 = vector.shape_cast %904 : vector<8xf32> to vector<8x1xf32>
    %906 = vector.broadcast %905 : vector<8x1xf32> to vector<8x10xf32>
    %907 = arith.subf %903, %906 : vector<8x10xf32>
    %908 = math.exp %907 : vector<8x10xf32>
    %cst_311 = arith.constant dense<0.000000e+00> : vector<8xf32>
    %909 = vector.multi_reduction <add>, %908, %cst_311 [1] : vector<8x10xf32> to vector<8xf32>
    %910 = vector.shape_cast %909 : vector<8xf32> to vector<8x1xf32>
    %911 = tpu.reciprocal %910 : vector<8x1xf32> -> vector<8x1xf32>
    %912 = vector.broadcast %911 : vector<8x1xf32> to vector<8x10xf32>
    %913 = arith.mulf %908, %912 : vector<8x10xf32>
    %c1_312 = arith.constant 1 : index
    %c3_313 = arith.constant 3 : index
    %c0_314 = arith.constant 0 : index
    %c0_315 = arith.constant 0 : index
    %914 = vector.load %arg25[%c1_312, %c3_313, %c0_314, %c0_315] : memref<2x4x8x10xf32, #tpu.memory_space<vmem>>, vector<1x1x8x10xf32>
    %915 = vector.shape_cast %914 : vector<1x1x8x10xf32> to vector<8x10xf32>
    %916 = vector.shape_cast %913 : vector<8x10xf32> to vector<1x1x8x10xf32>
    tpu.vector_store %arg25[%c1_312, %c3_313, %c0_314, %c0_315], %916 {strides = array<i32>} : memref<2x4x8x10xf32, #tpu.memory_space<vmem>>, vector<1x1x8x10xf32>,
    %917 = vector.extract_strided_slice %824 {offsets = [0, 24], sizes = [10, 8], strides = [1, 1]} : vector<10x32xf32> to vector<10x8xf32>
    %cst_316 = arith.constant dense<0.000000e+00> : vector<8x8xf32>
    %918 = tpu.matmul %913, %917, %cst_316 {dimension_numbers = #tpu.dot_dimension_numbers<[1], [0], [0], [1], [0, 0, 1, 1], [], []>} : vector<8x10xf32>, vector<10x8xf32>, vector<8x8xf32> -> vector<8x8xf32>
    %919 = tpu.concatenate %849, %872, %895, %918 in 1 : vector<8x8xf32>, vector<8x8xf32>, vector<8x8xf32>, vector<8x8xf32> -> vector<8x32xf32>
    %920 = tpu.concatenate %821, %919 in 0 : vector<8x32xf32>, vector<8x32xf32> -> vector<16x32xf32>
    %c1_317 = arith.constant 1 : index
    %c0_318 = arith.constant 0 : index
    %c0_319 = arith.constant 0 : index
    %921 = vector.load %arg14[%c1_317, %c0_318, %c0_319] : memref<2x32x32xf32, #tpu.memory_space<vmem>>, vector<1x32x32xf32>
    %922 = vector.shape_cast %921 : vector<1x32x32xf32> to vector<32x32xf32>
    %cst_320 = arith.constant dense<0.000000e+00> : vector<16x32xf32>
    %923 = tpu.matmul %920, %922, %cst_320 {dimension_numbers = #tpu.dot_dimension_numbers<[1], [0], [0], [1], [0, 0, 1, 1], [], []>} : vector<16x32xf32>, vector<32x32xf32>, vector<16x32xf32> -> vector<16x32xf32>
    %c1_321 = arith.constant 1 : index
    %c0_322 = arith.constant 0 : index
    %c0_323 = arith.constant 0 : index
    %924 = vector.load %arg15[%c1_321, %c0_322, %c0_323] : memref<2x1x32xf32, #tpu.memory_space<vmem>>, vector<1x1x32xf32>
    %925 = vector.shape_cast %924 : vector<1x1x32xf32> to vector<1x32xf32>
    %926 = vector.broadcast %925 : vector<1x32xf32> to vector<16x32xf32>
    %927 = arith.addf %923, %926 : vector<16x32xf32>
    %928 = arith.addf %707, %927 : vector<16x32xf32>
    %929 = vector.extract_strided_slice %498 {offsets = [1, 0], sizes = [1, 32], strides = [1, 1]} : vector<3x32xf32> to vector<1x32xf32>
    %930 = vector.extract_strided_slice %500 {offsets = [1, 0], sizes = [1, 32], strides = [1, 1]} : vector<3x32xf32> to vector<1x32xf32>
    %cst_324 = arith.constant dense<0.000000e+00> : vector<16xf32>
    %931 = vector.multi_reduction <add>, %928, %cst_324 [1] : vector<16x32xf32> to vector<16xf32>
    %932 = vector.shape_cast %931 : vector<16xf32> to vector<16x1xf32>
    %cst_325 = arith.constant 3.200000e+01 : f32
    %933 = vector.broadcast %cst_325 : f32 to vector<16x1xf32>
    %934 = arith.divf %932, %933 : vector<16x1xf32>
    %935 = vector.broadcast %934 : vector<16x1xf32> to vector<16x32xf32>
    %936 = arith.subf %928, %935 : vector<16x32xf32>
    %937 = arith.mulf %936, %936 : vector<16x32xf32>
    %cst_326 = arith.constant dense<0.000000e+00> : vector<16xf32>
    %938 = vector.multi_reduction <add>, %937, %cst_326 [1] : vector<16x32xf32> to vector<16xf32>
    %939 = vector.shape_cast %938 : vector<16xf32> to vector<16x1xf32>
    %cst_327 = arith.constant 3.200000e+01 : f32
    %940 = vector.broadcast %cst_327 : f32 to vector<16x1xf32>
    %941 = arith.divf %939, %940 : vector<16x1xf32>
    %942 = vector.broadcast %934 : vector<16x1xf32> to vector<16x32xf32>
    %943 = arith.subf %928, %942 : vector<16x32xf32>
    %cst_328 = arith.constant 9.99999974E-6 : f32
    %944 = vector.broadcast %cst_328 : f32 to vector<16x1xf32>
    %945 = arith.addf %941, %944 : vector<16x1xf32>
    %946 = math.rsqrt %945 : vector<16x1xf32>
    %947 = vector.broadcast %946 : vector<16x1xf32> to vector<16x32xf32>
    %948 = arith.mulf %943, %947 : vector<16x32xf32>
    %949 = vector.broadcast %929 : vector<1x32xf32> to vector<16x32xf32>
    %950 = arith.mulf %948, %949 : vector<16x32xf32>
    %951 = vector.broadcast %930 : vector<1x32xf32> to vector<16x32xf32>
    %952 = arith.addf %950, %951 : vector<16x32xf32>
    %c1_329 = arith.constant 1 : index
    %c0_330 = arith.constant 0 : index
    %c0_331 = arith.constant 0 : index
    %953 = vector.load %arg18[%c1_329, %c0_330, %c0_331] : memref<2x32x64xf32, #tpu.memory_space<vmem>>, vector<1x32x64xf32>
    %954 = vector.shape_cast %953 : vector<1x32x64xf32> to vector<32x64xf32>
    %cst_332 = arith.constant dense<0.000000e+00> : vector<16x64xf32>
    %955 = tpu.matmul %952, %954, %cst_332 {dimension_numbers = #tpu.dot_dimension_numbers<[1], [0], [0], [1], [0, 0, 1, 1], [], []>} : vector<16x32xf32>, vector<32x64xf32>, vector<16x64xf32> -> vector<16x64xf32>
    %c1_333 = arith.constant 1 : index
    %c0_334 = arith.constant 0 : index
    %c0_335 = arith.constant 0 : index
    %956 = vector.load %arg19[%c1_333, %c0_334, %c0_335] : memref<2x1x64xf32, #tpu.memory_space<vmem>>, vector<1x1x64xf32>
    %957 = vector.shape_cast %956 : vector<1x1x64xf32> to vector<1x64xf32>
    %958 = vector.broadcast %957 : vector<1x64xf32> to vector<16x64xf32>
    %959 = arith.addf %955, %958 : vector<16x64xf32>
    %cst_336 = arith.constant 0.000000e+00 : f32
    %960 = vector.broadcast %cst_336 : f32 to vector<16x64xf32>
    %961 = arith.maximumf %959, %960 : vector<16x64xf32>
    %c1_337 = arith.constant 1 : index
    %c0_338 = arith.constant 0 : index
    %c0_339 = arith.constant 0 : index
    %962 = vector.load %arg20[%c1_337, %c0_338, %c0_339] : memref<2x64x32xf32, #tpu.memory_space<vmem>>, vector<1x64x32xf32>
    %963 = vector.shape_cast %962 : vector<1x64x32xf32> to vector<64x32xf32>
    %cst_340 = arith.constant dense<0.000000e+00> : vector<16x32xf32>
    %964 = tpu.matmul %961, %963, %cst_340 {dimension_numbers = #tpu.dot_dimension_numbers<[1], [0], [0], [1], [0, 0, 1, 1], [], []>} : vector<16x64xf32>, vector<64x32xf32>, vector<16x32xf32> -> vector<16x32xf32>
    %c1_341 = arith.constant 1 : index
    %c0_342 = arith.constant 0 : index
    %c0_343 = arith.constant 0 : index
    %965 = vector.load %arg21[%c1_341, %c0_342, %c0_343] : memref<2x1x32xf32, #tpu.memory_space<vmem>>, vector<1x1x32xf32>
    %966 = vector.shape_cast %965 : vector<1x1x32xf32> to vector<1x32xf32>
    %967 = vector.broadcast %966 : vector<1x32xf32> to vector<16x32xf32>
    %968 = arith.addf %964, %967 : vector<16x32xf32>
    %969 = arith.addf %952, %968 : vector<16x32xf32>
    %970 = vector.extract_strided_slice %498 {offsets = [2, 0], sizes = [1, 32], strides = [1, 1]} : vector<3x32xf32> to vector<1x32xf32>
    %971 = vector.extract_strided_slice %500 {offsets = [2, 0], sizes = [1, 32], strides = [1, 1]} : vector<3x32xf32> to vector<1x32xf32>
    %cst_344 = arith.constant dense<0.000000e+00> : vector<16xf32>
    %972 = vector.multi_reduction <add>, %969, %cst_344 [1] : vector<16x32xf32> to vector<16xf32>
    %973 = vector.shape_cast %972 : vector<16xf32> to vector<16x1xf32>
    %cst_345 = arith.constant 3.200000e+01 : f32
    %974 = vector.broadcast %cst_345 : f32 to vector<16x1xf32>
    %975 = arith.divf %973, %974 : vector<16x1xf32>
    %976 = vector.broadcast %975 : vector<16x1xf32> to vector<16x32xf32>
    %977 = arith.subf %969, %976 : vector<16x32xf32>
    %978 = arith.mulf %977, %977 : vector<16x32xf32>
    %cst_346 = arith.constant dense<0.000000e+00> : vector<16xf32>
    %979 = vector.multi_reduction <add>, %978, %cst_346 [1] : vector<16x32xf32> to vector<16xf32>
    %980 = vector.shape_cast %979 : vector<16xf32> to vector<16x1xf32>
    %cst_347 = arith.constant 3.200000e+01 : f32
    %981 = vector.broadcast %cst_347 : f32 to vector<16x1xf32>
    %982 = arith.divf %980, %981 : vector<16x1xf32>
    %983 = vector.broadcast %975 : vector<16x1xf32> to vector<16x32xf32>
    %984 = arith.subf %969, %983 : vector<16x32xf32>
    %cst_348 = arith.constant 9.99999974E-6 : f32
    %985 = vector.broadcast %cst_348 : f32 to vector<16x1xf32>
    %986 = arith.addf %982, %985 : vector<16x1xf32>
    %987 = math.rsqrt %986 : vector<16x1xf32>
    %988 = vector.broadcast %987 : vector<16x1xf32> to vector<16x32xf32>
    %989 = arith.mulf %984, %988 : vector<16x32xf32>
    %990 = vector.broadcast %970 : vector<1x32xf32> to vector<16x32xf32>
    %991 = arith.mulf %989, %990 : vector<16x32xf32>
    %992 = vector.broadcast %971 : vector<1x32xf32> to vector<16x32xf32>
    %993 = arith.addf %991, %992 : vector<16x32xf32>
    %c0_349 = arith.constant 0 : index
    %c0_350 = arith.constant 0 : index
    %994 = vector.load %arg22[%c0_349, %c0_350] : memref<32x40xf32, #tpu.memory_space<vmem>>, vector<32x40xf32>
    %cst_351 = arith.constant dense<0.000000e+00> : vector<16x40xf32>
    %995 = tpu.matmul %993, %994, %cst_351 {dimension_numbers = #tpu.dot_dimension_numbers<[1], [0], [0], [1], [0, 0, 1, 1], [], []>} : vector<16x32xf32>, vector<32x40xf32>, vector<16x40xf32> -> vector<16x40xf32>
    %c0_352 = arith.constant 0 : index
    %c0_353 = arith.constant 0 : index
    %996 = vector.load %arg23[%c0_352, %c0_353] : memref<1x40xf32, #tpu.memory_space<vmem>>, vector<1x40xf32>
    %997 = vector.broadcast %996 : vector<1x40xf32> to vector<16x40xf32>
    %998 = arith.addf %995, %997 : vector<16x40xf32>
    %c0_354 = arith.constant 0 : index
    %c0_355 = arith.constant 0 : index
    %999 = vector.load %arg24[%c0_354, %c0_355] : memref<16x40xf32, #tpu.memory_space<vmem>>, vector<16x40xf32>
    tpu.vector_store %arg24[%c0_354, %c0_355], %998 {strides = array<i32>} : memref<16x40xf32, #tpu.memory_space<vmem>>, vector<16x40xf32>,
    return
  }
}

</mosaic_0001>

<llo_original>
// kernel: decoder_forward.1
$region0: #{decoder_forward.1}
  #allocation0 [shape = 'u32[]', space=smem, size = 0x4, offset = 0x4, fixed_abs, tag = 'smem constant byte address 0x4 - core index']
  #allocation1 [shape = 'u32[144,128]{1,0:T(1,128)}', space=vmem, size = 0x12000, scoped, tag = 'internal scratch']
  %s0 = inlined_call_operand.vmem [shape: s32[16,1], index: 0, kind: input, shape index: {}]
  %s1 = inlined_call_operand.hbm [shape: f32[8,32], index: 1, kind: input, shape index: {}]
  %s2 = inlined_call_operand.vmem [shape: f32[40,32], index: 2, kind: input, shape index: {}]
  %s3 = inlined_call_operand.vmem [shape: f32[20,32], index: 3, kind: input, shape index: {}]
  %s4 = inlined_call_operand.hbm [shape: f32[2,8,8], index: 4, kind: input, shape index: {}]
  %s5 = inlined_call_operand.hbm [shape: f32[2,1,10], index: 5, kind: input, shape index: {}]
  %s6 = inlined_call_operand.vmem [shape: f32[2,32,96], index: 6, kind: input, shape index: {}]
  %s7 = inlined_call_operand.vmem [shape: f32[2,1,96], index: 7, kind: input, shape index: {}]
  %s8 = inlined_call_operand.vmem [shape: f32[2,32,32], index: 8, kind: input, shape index: {}]
  %s9 = inlined_call_operand.vmem [shape: f32[2,1,32], index: 9, kind: input, shape index: {}]
  %s10 = inlined_call_operand.vmem [shape: f32[2,32,32], index: 10, kind: input, shape index: {}]
  %s11 = inlined_call_operand.hbm [shape: f32[2,1,32], index: 11, kind: input, shape index: {}]
  %s12 = inlined_call_operand.vmem [shape: f32[2,32,64], index: 12, kind: input, shape index: {}]
  %s13 = inlined_call_operand.hbm [shape: f32[2,1,64], index: 13, kind: input, shape index: {}]
  %s14 = inlined_call_operand.vmem [shape: f32[2,32,32], index: 14, kind: input, shape index: {}]
  %s15 = inlined_call_operand.hbm [shape: f32[2,1,32], index: 15, kind: input, shape index: {}]
  %s16 = inlined_call_operand.vmem [shape: f32[2,3,32], index: 16, kind: input, shape index: {}]
  %s17 = inlined_call_operand.vmem [shape: f32[2,3,32], index: 17, kind: input, shape index: {}]
  %s18 = inlined_call_operand.vmem [shape: f32[2,32,64], index: 18, kind: input, shape index: {}]
  %s19 = inlined_call_operand.hbm [shape: f32[2,1,64], index: 19, kind: input, shape index: {}]
  %s20 = inlined_call_operand.vmem [shape: f32[2,64,32], index: 20, kind: input, shape index: {}]
  %s21 = inlined_call_operand.hbm [shape: f32[2,1,32], index: 21, kind: input, shape index: {}]
  %s22 = inlined_call_operand.hbm [shape: f32[32,40], index: 22, kind: input, shape index: {}]
  %s23 = inlined_call_operand.hbm [shape: f32[1,40], index: 23, kind: input, shape index: {}]
  %s24 = inlined_call_operand.hbm [shape: f32[16,40], index: 24, kind: output, shape index: {0}]
  %s25 = inlined_call_operand.hbm [shape: f32[2,4,8,10], index: 25, kind: output, shape index: {1}]
  %26 = xla_tuple %s24, %s25
  %s27 = sld [smem:[#allocation0]]
  $region154: #{decoder_forward.1} parent=0
    _
  %s29 = ssub.s32 1, %s27
  %s30 = scalar_select 0, %s29, %s27
  $region1: #{decoder_forward.1} parent=0
    #allocation2 [shape = 'u8[4096]{0}', space=vmem, size = 0x1000, scoped, tag = 'input window, operand 1, single buffered']
    #allocation3 [shape = 's32[1]{0}', space=sflag, size = 0x4, scoped, tag = 'scoped memory for decoder_forward.1']
    #allocation4 [shape = 's32[1]{0}', space=sflag, size = 0x4, scoped, tag = 'scoped memory for decoder_forward.1']
    #allocation5 [shape = 'u8[8192]{0}', space=vmem, size = 0x2000, scoped, tag = 'input window, operand 4, single buffered']
    #allocation6 [shape = 's32[1]{0}', space=sflag, size = 0x4, scoped, tag = 'scoped memory for decoder_forward.1']
    #allocation7 [shape = 'u8[1024]{0}', space=vmem, size = 0x400, scoped, tag = 'input window, operand 5, single buffered']
    #allocation8 [shape = 'u8[1024]{0}', space=vmem, size = 0x400, scoped, tag = 'input window, operand 11, single buffered']
    #allocation9 [shape = 's32[1]{0}', space=sflag, size = 0x4, scoped, tag = 'scoped memory for decoder_forward.1']
    #allocation10 [shape = 'u8[1024]{0}', space=vmem, size = 0x400, scoped, tag = 'input window, operand 13, single buffered']
    #allocation11 [shape = 'u8[1024]{0}', space=vmem, size = 0x400, scoped, tag = 'input window, operand 15, single buffered']
    #allocation12 [shape = 's32[1]{0}', space=sflag, size = 0x4, scoped, tag = 'scoped memory for decoder_forward.1']
    #allocation13 [shape = 'u8[1024]{0}', space=vmem, size = 0x400, scoped, tag = 'input window, operand 19, single buffered']
    #allocation14 [shape = 'u8[1024]{0}', space=vmem, size = 0x400, scoped, tag = 'input window, operand 21, single buffered']
    #allocation15 [shape = 's32[1]{0}', space=sflag, size = 0x4, scoped, tag = 'scoped memory for decoder_forward.1']
    #allocation16 [shape = 'u8[16384]{0}', space=vmem, size = 0x4000, scoped, tag = 'input window, operand 22, single buffered']
    #allocation17 [shape = 'u8[512]{0}', space=vmem, size = 0x400, scoped, tag = 'input window, operand 23, single buffered']
    #allocation18 [shape = 's32[1]{0}', space=sflag, size = 0x4, scoped, tag = 'scoped memory for decoder_forward.1']
    #allocation19 [shape = 'u8[8192]{0}', space=vmem, size = 0x2000, scoped, tag = 'output window, operand 0, single buffered']
    #allocation20 [shape = 'u8[32768]{0}', space=vmem, size = 0x8000, scoped, tag = 'output window, operand 1, single buffered']
    #allocation21 [shape = 's32[1]{0}', space=sflag, size = 0x4, scoped, tag = 'scoped memory for decoder_forward.1']
    %31 = vsyncpa [#allocation3], 0
    %32 = vsyncpa [#allocation6], 0
    %33 = vsyncpa [#allocation9], 0
    %34 = vsyncpa [#allocation12], 0
    %35 = vsyncpa [#allocation15], 0
    %36 = vsyncpa [#allocation18], 0
    %37 = vsyncpa [#allocation4], 0
    %38 = vsyncpa [#allocation21], 0
    // Predicated region
    $region2: #{decoder_forward.1} parent=1 // pred_check
      _
    $region3: #{decoder_forward.1} parent=1 // pred_check_branch
      %40 = sbr.rel (0) target = $region5
    $region4: #{decoder_forward.1} parent=1 // pred_region
      _
    $region5: #{decoder_forward.1} parent=1 // pred_fallthru
      _
    // Predicated region
    $region6: #{decoder_forward.1} parent=1 // pred_check
      _
    $region7: #{decoder_forward.1} parent=1 // pred_check_branch
      %42 = sbr.rel (0) target = $region9
    $region8: #{decoder_forward.1} parent=1 // pred_region
      %s44 = ssub.s32 128, 128
      %45 = vsyncadd [#allocation3], %s44
      %s47 = sshll.u32 [#allocation2], 4
      %s48 = int_to_ptr.vmem [resolvable:$true] %s47
      %50 = dma.hbm_to_vmem [thread:$0]  %s1, 128, %s48, [#allocation3]
    $region9: #{decoder_forward.1} parent=1 // pred_fallthru
      _
    // Predicated region
    $region10: #{decoder_forward.1} parent=1 // pred_check
      _
    $region11: #{decoder_forward.1} parent=1 // pred_check_branch
      %52 = sbr.rel (0) target = $region13
    $region12: #{decoder_forward.1} parent=1 // pred_region
      _
    $region13: #{decoder_forward.1} parent=1 // pred_fallthru
      _
    // Predicated region
    $region14: #{decoder_forward.1} parent=1 // pred_check
      _
    $region15: #{decoder_forward.1} parent=1 // pred_check_branch
      %54 = sbr.rel (0) target = $region17
    $region16: #{decoder_forward.1} parent=1 // pred_region
      _
    $region17: #{decoder_forward.1} parent=1 // pred_fallthru
      _
    // Predicated region
    $region18: #{decoder_forward.1} parent=1 // pred_check
      _
    $region19: #{decoder_forward.1} parent=1 // pred_check_branch
      %56 = sbr.rel (0) target = $region21
    $region20: #{decoder_forward.1} parent=1 // pred_region
      %s58 = ssub.s32 256, 256
      %59 = vsyncadd [#allocation6], %s58
      %s60 = sshll.u32 [#allocation5], 4
      %s61 = int_to_ptr.vmem [resolvable:$true] %s60
      %66 = dma.hbm_to_vmem [thread:$0]  %s4, 256, %s61, [#allocation6], 128, 128, 8
    $region21: #{decoder_forward.1} parent=1 // pred_fallthru
      _
    // Predicated region
    $region22: #{decoder_forward.1} parent=1 // pred_check
      _
    $region23: #{decoder_forward.1} parent=1 // pred_check_branch
      %68 = sbr.rel (0) target = $region25
    $region24: #{decoder_forward.1} parent=1 // pred_region
      %s70 = ssub.s32 32, 32
      %71 = vsyncadd [#allocation6], %s70
      %s72 = sshll.u32 [#allocation7], 4
      %s73 = int_to_ptr.vmem [resolvable:$true] %s72
      %78 = dma.hbm_to_vmem [thread:$0]  %s5, 32, %s73, [#allocation6], 16, 16, 1
    $region25: #{decoder_forward.1} parent=1 // pred_fallthru
      _
    // Predicated region
    $region26: #{decoder_forward.1} parent=1 // pred_check
      _
    $region27: #{decoder_forward.1} parent=1 // pred_check_branch
      %80 = sbr.rel (0) target = $region29
    $region28: #{decoder_forward.1} parent=1 // pred_region
      _
    $region29: #{decoder_forward.1} parent=1 // pred_fallthru
      _
    // Predicated region
    $region30: #{decoder_forward.1} parent=1 // pred_check
      _
    $region31: #{decoder_forward.1} parent=1 // pred_check_branch
      %82 = sbr.rel (0) target = $region33
    $region32: #{decoder_forward.1} parent=1 // pred_region
      _
    $region33: #{decoder_forward.1} parent=1 // pred_fallthru
      _
    // Predicated region
    $region34: #{decoder_forward.1} parent=1 // pred_check
      _
    $region35: #{decoder_forward.1} parent=1 // pred_check_branch
      %84 = sbr.rel (0) target = $region37
    $region36: #{decoder_forward.1} parent=1 // pred_region
      _
    $region37: #{decoder_forward.1} parent=1 // pred_fallthru
      _
    // Predicated region
    $region38: #{decoder_forward.1} parent=1 // pred_check
      _
    $region39: #{decoder_forward.1} parent=1 // pred_check_branch
      %86 = sbr.rel (0) target = $region41
    $region40: #{decoder_forward.1} parent=1 // pred_region
      _
    $region41: #{decoder_forward.1} parent=1 // pred_fallthru
      _
    // Predicated region
    $region42: #{decoder_forward.1} parent=1 // pred_check
      _
    $region43: #{decoder_forward.1} parent=1 // pred_check_branch
      %88 = sbr.rel (0) target = $region45
    $region44: #{decoder_forward.1} parent=1 // pred_region
      _
    $region45: #{decoder_forward.1} parent=1 // pred_fallthru
      _
    // Predicated region
    $region46: #{decoder_forward.1} parent=1 // pred_check
      _
    $region47: #{decoder_forward.1} parent=1 // pred_check_branch
      %90 = sbr.rel (0) target = $region49
    $region48: #{decoder_forward.1} parent=1 // pred_region
      %s92 = ssub.s32 32, 32
      %93 = vsyncadd [#allocation9], %s92
      %s94 = sshll.u32 [#allocation8], 4
      %s95 = int_to_ptr.vmem [resolvable:$true] %s94
      %100 = dma.hbm_to_vmem [thread:$0]  %s11, 32, %s95, [#allocation9], 16, 16, 1
    $region49: #{decoder_forward.1} parent=1 // pred_fallthru
      _
    // Predicated region
    $region50: #{decoder_forward.1} parent=1 // pred_check
      _
    $region51: #{decoder_forward.1} parent=1 // pred_check_branch
      %102 = sbr.rel (0) target = $region53
    $region52: #{decoder_forward.1} parent=1 // pred_region
      _
    $region53: #{decoder_forward.1} parent=1 // pred_fallthru
      _
    // Predicated region
    $region54: #{decoder_forward.1} parent=1 // pred_check
      _
    $region55: #{decoder_forward.1} parent=1 // pred_check_branch
      %104 = sbr.rel (0) target = $region57
    $region56: #{decoder_forward.1} parent=1 // pred_region
      %s106 = ssub.s32 32, 32
      %107 = vsyncadd [#allocation9], %s106
      %s108 = sshll.u32 [#allocation10], 4
      %s109 = int_to_ptr.vmem [resolvable:$true] %s108
      %114 = dma.hbm_to_vmem [thread:$0]  %s13, 32, %s109, [#allocation9], 16, 16, 1
    $region57: #{decoder_forward.1} parent=1 // pred_fallthru
      _
    // Predicated region
    $region58: #{decoder_forward.1} parent=1 // pred_check
      _
    $region59: #{decoder_forward.1} parent=1 // pred_check_branch
      %116 = sbr.rel (0) target = $region61
    $region60: #{decoder_forward.1} parent=1 // pred_region
      _
    $region61: #{decoder_forward.1} parent=1 // pred_fallthru
      _
    // Predicated region
    $region62: #{decoder_forward.1} parent=1 // pred_check
      _
    $region63: #{decoder_forward.1} parent=1 // pred_check_branch
      %118 = sbr.rel (0) target = $region65
    $region64: #{decoder_forward.1} parent=1 // pred_region
      %s120 = ssub.s32 32, 32
      %121 = vsyncadd [#allocation12], %s120
      %s122 = sshll.u32 [#allocation11], 4
      %s123 = int_to_ptr.vmem [resolvable:$true] %s122
      %128 = dma.hbm_to_vmem [thread:$0]  %s15, 32, %s123, [#allocation12], 16, 16, 1
    $region65: #{decoder_forward.1} parent=1 // pred_fallthru
      _
    // Predicated region
    $region66: #{decoder_forward.1} parent=1 // pred_check
      _
    $region67: #{decoder_forward.1} parent=1 // pred_check_branch
      %130 = sbr.rel (0) target = $region69
    $region68: #{decoder_forward.1} parent=1 // pred_region
      _
    $region69: #{decoder_forward.1} parent=1 // pred_fallthru
      _
    // Predicated region
    $region70: #{decoder_forward.1} parent=1 // pred_check
      _
    $region71: #{decoder_forward.1} parent=1 // pred_check_branch
      %132 = sbr.rel (0) target = $region73
    $region72: #{decoder_forward.1} parent=1 // pred_region
      _
    $region73: #{decoder_forward.1} parent=1 // pred_fallthru
      _
    // Predicated region
    $region74: #{decoder_forward.1} parent=1 // pred_check
      _
    $region75: #{decoder_forward.1} parent=1 // pred_check_branch
      %134 = sbr.rel (0) target = $region77
    $region76: #{decoder_forward.1} parent=1 // pred_region
      _
    $region77: #{decoder_forward.1} parent=1 // pred_fallthru
      _
    // Predicated region
    $region78: #{decoder_forward.1} parent=1 // pred_check
      _
    $region79: #{decoder_forward.1} parent=1 // pred_check_branch
      %136 = sbr.rel (0) target = $region81
    $region80: #{decoder_forward.1} parent=1 // pred_region
      %s138 = ssub.s32 32, 32
      %139 = vsyncadd [#allocation12], %s138
      %s140 = sshll.u32 [#allocation13], 4
      %s141 = int_to_ptr.vmem [resolvable:$true] %s140
      %146 = dma.hbm_to_vmem [thread:$0]  %s19, 32, %s141, [#allocation12], 16, 16, 1
    $region81: #{decoder_forward.1} parent=1 // pred_fallthru
      _
    // Predicated region
    $region82: #{decoder_forward.1} parent=1 // pred_check
      _
    $region83: #{decoder_forward.1} parent=1 // pred_check_branch
      %148 = sbr.rel (0) target = $region85
    $region84: #{decoder_forward.1} parent=1 // pred_region
      _
    $region85: #{decoder_forward.1} parent=1 // pred_fallthru
      _
    // Predicated region
    $region86: #{decoder_forward.1} parent=1 // pred_check
      _
    $region87: #{decoder_forward.1} parent=1 // pred_check_branch
      %150 = sbr.rel (0) target = $region89
    $region88: #{decoder_forward.1} parent=1 // pred_region
      %s152 = ssub.s32 32, 32
      %153 = vsyncadd [#allocation15], %s152
      %s154 = sshll.u32 [#allocation14], 4
      %s155 = int_to_ptr.vmem [resolvable:$true] %s154
      %160 = dma.hbm_to_vmem [thread:$0]  %s21, 32, %s155, [#allocation15], 16, 16, 1
    $region89: #{decoder_forward.1} parent=1 // pred_fallthru
      _
    // Predicated region
    $region90: #{decoder_forward.1} parent=1 // pred_check
      _
    $region91: #{decoder_forward.1} parent=1 // pred_check_branch
      %162 = sbr.rel (0) target = $region93
    $region92: #{decoder_forward.1} parent=1 // pred_region
      %s164 = ssub.s32 512, 512
      %165 = vsyncadd [#allocation15], %s164
      %s166 = sshll.u32 [#allocation16], 4
      %s167 = int_to_ptr.vmem [resolvable:$true] %s166
      %172 = dma.hbm_to_vmem [thread:$0]  %s22, 512, %s167, [#allocation15], 128, 128, 8
    $region93: #{decoder_forward.1} parent=1 // pred_fallthru
      _
    // Predicated region
    $region94: #{decoder_forward.1} parent=1 // pred_check
      _
    $region95: #{decoder_forward.1} parent=1 // pred_check_branch
      %174 = sbr.rel (0) target = $region97
    $region96: #{decoder_forward.1} parent=1 // pred_region
      %s176 = ssub.s32 16, 16
      %177 = vsyncadd [#allocation18], %s176
      %s179 = sshll.u32 [#allocation17], 4
      %s180 = int_to_ptr.vmem [resolvable:$true] %s179
      %182 = dma.hbm_to_vmem [thread:$0]  %s23, 16, %s180, [#allocation18]
    $region97: #{decoder_forward.1} parent=1 // pred_fallthru
      _
    // Predicated region
    $region98: #{decoder_forward.1} parent=1 // pred_check
      _
    $region99: #{decoder_forward.1} parent=1 // pred_check_branch
      %184 = sbr.rel (0) target = $region101
    $region100: #{decoder_forward.1} parent=1 // pred_region
      %185 = dma.done [#allocation3], 128
    $region101: #{decoder_forward.1} parent=1 // pred_fallthru
      _
    // Predicated region
    $region102: #{decoder_forward.1} parent=1 // pred_check
      _
    $region103: #{decoder_forward.1} parent=1 // pred_check_branch
      %187 = sbr.rel (0) target = $region105
    $region104: #{decoder_forward.1} parent=1 // pred_region
      %188 = dma.done [#allocation6], 256
    $region105: #{decoder_forward.1} parent=1 // pred_fallthru
      _
    // Predicated region
    $region106: #{decoder_forward.1} parent=1 // pred_check
      _
    $region107: #{decoder_forward.1} parent=1 // pred_check_branch
      %190 = sbr.rel (0) target = $region109
    $region108: #{decoder_forward.1} parent=1 // pred_region
      %191 = dma.done [#allocation6], 32
    $region109: #{decoder_forward.1} parent=1 // pred_fallthru
      _
    // Predicated region
    $region110: #{decoder_forward.1} parent=1 // pred_check
      _
    $region111: #{decoder_forward.1} parent=1 // pred_check_branch
      %193 = sbr.rel (0) target = $region113
    $region112: #{decoder_forward.1} parent=1 // pred_region
      %194 = dma.done [#allocation9], 32
    $region113: #{decoder_forward.1} parent=1 // pred_fallthru
      _
    // Predicated region
    $region114: #{decoder_forward.1} parent=1 // pred_check
      _
    $region115: #{decoder_forward.1} parent=1 // pred_check_branch
      %196 = sbr.rel (0) target = $region117
    $region116: #{decoder_forward.1} parent=1 // pred_region
      %197 = dma.done [#allocation9], 32
    $region117: #{decoder_forward.1} parent=1 // pred_fallthru
      _
    // Predicated region
    $region118: #{decoder_forward.1} parent=1 // pred_check
      _
    $region119: #{decoder_forward.1} parent=1 // pred_check_branch
      %199 = sbr.rel (0) target = $region121
    $region120: #{decoder_forward.1} parent=1 // pred_region
      %200 = dma.done [#allocation12], 32
    $region121: #{decoder_forward.1} parent=1 // pred_fallthru
      _
    // Predicated region
    $region122: #{decoder_forward.1} parent=1 // pred_check
      _
    $region123: #{decoder_forward.1} parent=1 // pred_check_branch
      %202 = sbr.rel (0) target = $region125
    $region124: #{decoder_forward.1} parent=1 // pred_region
      %203 = dma.done [#allocation12], 32
    $region125: #{decoder_forward.1} parent=1 // pred_fallthru
      _
    // Predicated region
    $region126: #{decoder_forward.1} parent=1 // pred_check
      _
    $region127: #{decoder_forward.1} parent=1 // pred_check_branch
      %205 = sbr.rel (0) target = $region129
    $region128: #{decoder_forward.1} parent=1 // pred_region
      %206 = dma.done [#allocation15], 32
    $region129: #{decoder_forward.1} parent=1 // pred_fallthru
      _
    // Predicated region
    $region130: #{decoder_forward.1} parent=1 // pred_check
      _
    $region131: #{decoder_forward.1} parent=1 // pred_check_branch
      %208 = sbr.rel (0) target = $region133
    $region132: #{decoder_forward.1} parent=1 // pred_region
      %209 = dma.done [#allocation15], 512
    $region133: #{decoder_forward.1} parent=1 // pred_fallthru
      _
    // Predicated region
    $region134: #{decoder_forward.1} parent=1 // pred_check
      _
    $region135: #{decoder_forward.1} parent=1 // pred_check_branch
      %211 = sbr.rel (0) target = $region137
    $region136: #{decoder_forward.1} parent=1 // pred_region
      %212 = dma.done [#allocation18], 16
    $region137: #{decoder_forward.1} parent=1 // pred_fallthru
      _
    %v213 = vld [vmem:[%s0] sm:$0xff]
    %v214 = vld [vmem:[%s0 + $0x8] sm:$0xff]
    %v215 = vlaneseq
    %v216 = vand.u32 %v215, 127
    %217 = vset.pattern.permute.xlu0 0
    %218 = vperm.xlu0 %217, %v213
    %v219 = vpop.permute.xlu0 %218
    %220 = vset.pattern.permute.xlu0 0
    %221 = vperm.xlu0 %220, %v214
    %v222 = vpop.permute.xlu0 %221
    %vm223 = vcmp.eq.s32.totalorder %v219, %v216
    %vm224 = vcmp.eq.s32.totalorder %v222, %v216
    %v225 = vsel %vm223, 1, 0
    %v226 = vsel %vm224, 1, 0
    %v227 = vcvt.s32.f32 %v225
    %v228 = vcvt.s32.f32 %v226
    %v229 = vld [vmem:[%s2] sm:$0xff]
    %v230 = vld [vmem:[%s2 + $0x8] sm:$0xff]
    %v231 = vld [vmem:[%s2 + $0x10] sm:$0xff]
    %v232 = vld [vmem:[%s2 + $0x18] sm:$0xff]
    %v233 = vld [vmem:[%s2 + $0x20] sm:$0xff]
    %vm234 = vcmask 326656
    %v236 = vsel %vm234, %v227, 0
    %v239 = vsel %vm234, %v228, 0
    %241 = vmatprep.subr.mxu0 0.0
    %242 = vmatpush1.msra.mxu0 %v229
    %243 = vmatprep.subr.mxu0 0.0
    %244 = vmatpush1.msra.mxu0 %v230
    %245 = vmatprep.subr.mxu0 0.0
    %246 = vmatpush1.msra.mxu0 %v231
    %247 = vmatprep.subr.mxu0 0.0
    %248 = vmatpush1.msra.mxu0 %v232
    %249 = vmatprep.subr.mxu0 0.0
    %250 = vmatpush1.msra.mxu0 %v233
    %251 = vmatprep.subr.mxu0 0.0
    %252 = vmatpush1.msra.mxu0 0.0
    %253 = vmatprep.subr.mxu0 0.0
    %254 = vmatpush1.msra.mxu0 0.0
    %255 = vmatprep.subr.mxu0 0.0
    %256 = vmatpush1.msra.mxu0 0.0
    %257 = vmatprep.subr.mxu0 0.0
    %258 = vmatpush1.msra.mxu0 0.0
    %259 = vmatprep.subr.mxu0 0.0
    %260 = vmatpush1.msra.mxu0 0.0
    %261 = vmatprep.subr.mxu0 0.0
    %262 = vmatpush1.msra.mxu0 0.0
    %263 = vmatprep.subr.mxu0 0.0
    %264 = vmatpush1.msra.mxu0 0.0
    %265 = vmatprep.subr.mxu0 0.0
    %266 = vmatpush1.msra.mxu0 0.0
    %267 = vmatprep.subr.mxu0 0.0
    %268 = vmatpush1.msra.mxu0 0.0
    %269 = vmatprep.subr.mxu0 0.0
    %270 = vmatpush1.msra.mxu0 0.0
    %271 = vmatprep.subr.mxu0 0.0
    %272 = vmatpush1.msra.mxu0 0.0
    %273 = vmatprep.subr.mxu0 0.0
    %274 = vmatpush1.msra.mxu0 0.0
    %275 = vmatprep.subr.mxu0 0.0
    %276 = vmatpush1.msra.mxu0 0.0
    %277 = vmatprep.subr.mxu0 0.0
    %278 = vmatpush1.msra.mxu0 0.0
    %279 = vmatprep.subr.mxu0 0.0
    %280 = vmatpush1.msra.mxu0 0.0
    %281 = vmatprep.subr.mxu0 0.0
    %282 = vmatpush1.msra.mxu0 0.0
    %283 = vmatprep.subr.mxu0 0.0
    %284 = vmatpush1.msra.mxu0 0.0
    %285 = vmatprep.subr.mxu0 0.0
    %286 = vmatpush1.msra.mxu0 0.0
    %287 = vmatprep.subr.mxu0 0.0
    %288 = vmatpush1.msra.mxu0 0.0
    %289 = vmatprep.subr.mxu0 0.0
    %290 = vmatpush1.msra.mxu0 0.0
    %291 = vmatprep.subr.mxu0 0.0
    %292 = vmatpush1.msra.mxu0 0.0
    %293 = vmatprep.subr.mxu0 0.0
    %294 = vmatpush1.msra.mxu0 0.0
    %295 = vmatprep.subr.mxu0 0.0
    %296 = vmatpush1.msra.mxu0 0.0
    %297 = vmatprep.subr.mxu0 0.0
    %298 = vmatpush1.msra.mxu0 0.0
    %299 = vmatprep.subr.mxu0 0.0
    %300 = vmatpush1.msra.mxu0 0.0
    %301 = vmatprep.subr.mxu0 0.0
    %302 = vmatpush1.msra.mxu0 0.0
    %303 = vmatprep.subr.mxu0 0.0
    %304 = vmatpush1.msra.mxu0 0.0
    %305 = vmatprep.mubr.f32.mxu0 0.0
    %306 = vmatmul.mubr.f32.gmra.mrb[0].mxu0 %v236
    %v307 = vpop.f32.mrb[0].mxu0
    %v308 = vadd.f32 0.0, %v307
    %v309 = vpop.f32.mrb[0].mxu0
    %310 = vmatprep.mubr.f32.mxu0 0.0
    %311 = vmatmul.mubr.f32.gmra.mrb[0].mxu0 %v239
    %v312 = vpop.f32.mrb[0].mxu0
    %v313 = vadd.f32 0.0, %v312
    %v314 = vpop.f32.mrb[0].mxu0
    %315 = vdwg.mxu0
    %v316 = vld [vmem:[#allocation2] sm:$0xff]
    %v317 = vmul.f32 %v308, 5.656854
    %v318 = vmul.f32 %v313, 5.656854
    %v319 = vadd.f32 %v317, %v316
    %v320 = vadd.f32 %v318, %v316
    %v321 = vld [vmem:[%s3] sm:$0xff]
    %v322 = vld [vmem:[%s3 + $0x8] sm:$0xff]
    %v323 = vld [vmem:[%s3 + $0x10] sm:$0xf]
    %v324 = vld [vmem:[#allocation5] sm:$0xff]
    %v325 = vld [vmem:[#allocation5 + $0x8] sm:$0xff]
    %v326 = vsub.f32 %v324, 1.0
    %v327 = vsub.f32 %v325, 1.0
    %v328 = vmul.f32 %v326, 1e+10
    %v329 = vmul.f32 %v327, 1e+10
    %v330 = vld [vmem:[#allocation7] sm:$0x1]
    %v331 = vld [vmem:[#allocation7 + $0x1] sm:$0x1]
    %v332 = vsub.f32 %v330, 1.0
    %v333 = vsub.f32 %v331, 1.0
    %v334 = vmul.f32 %v332, 1e+10
    %v335 = vmul.f32 %v333, 1e+10
    %v336 = vld [vmem:[%s16] sm:$0x7]
    %v337 = vld [vmem:[%s17] sm:$0x7]
    %v338 = vld [vmem:[%s6] sm:$0xff]
    %v339 = vld [vmem:[%s6 + $0x8] sm:$0xff]
    %v340 = vld [vmem:[%s6 + $0x10] sm:$0xff]
    %v341 = vld [vmem:[%s6 + $0x18] sm:$0xff]
    %v342 = vld [vmem:[%s7] sm:$0x1]
    %v344 = vlaneseq
    %v345 = vshrl.u32 %v344, 7
    %v346 = vsub.s32 0, %v345
    %v347 = vrot.slane %v342, %v346
    %vm349 = vcmask 261120
    %v351 = vsel %vm349, %v319, 0
    %v354 = vsel %vm349, %v320, 0
    %356 = vmatprep.subr.mxu0 0.0
    %357 = vmatpush1.msra.mxu0 %v338
    %358 = vmatprep.subr.mxu0 0.0
    %359 = vmatpush1.msra.mxu0 %v339
    %360 = vmatprep.subr.mxu0 0.0
    %361 = vmatpush1.msra.mxu0 %v340
    %362 = vmatprep.subr.mxu0 0.0
    %363 = vmatpush1.msra.mxu0 %v341
    %364 = vmatprep.subr.mxu0 0.0
    %365 = vmatpush1.msra.mxu0 0.0
    %366 = vmatprep.subr.mxu0 0.0
    %367 = vmatpush1.msra.mxu0 0.0
    %368 = vmatprep.subr.mxu0 0.0
    %369 = vmatpush1.msra.mxu0 0.0
    %370 = vmatprep.subr.mxu0 0.0
    %371 = vmatpush1.msra.mxu0 0.0
    %372 = vmatprep.subr.mxu0 0.0
    %373 = vmatpush1.msra.mxu0 0.0
    %374 = vmatprep.subr.mxu0 0.0
    %375 = vmatpush1.msra.mxu0 0.0
    %376 = vmatprep.subr.mxu0 0.0
    %377 = vmatpush1.msra.mxu0 0.0
    %378 = vmatprep.subr.mxu0 0.0
    %379 = vmatpush1.msra.mxu0 0.0
    %380 = vmatprep.subr.mxu0 0.0
    %381 = vmatpush1.msra.mxu0 0.0
    %382 = vmatprep.subr.mxu0 0.0
    %383 = vmatpush1.msra.mxu0 0.0
    %384 = vmatprep.subr.mxu0 0.0
    %385 = vmatpush1.msra.mxu0 0.0
    %386 = vmatprep.subr.mxu0 0.0
    %387 = vmatpush1.msra.mxu0 0.0
    %388 = vmatprep.subr.mxu0 0.0
    %389 = vmatpush1.msra.mxu0 0.0
    %390 = vmatprep.subr.mxu0 0.0
    %391 = vmatpush1.msra.mxu0 0.0
    %392 = vmatprep.subr.mxu0 0.0
    %393 = vmatpush1.msra.mxu0 0.0
    %394 = vmatprep.subr.mxu0 0.0
    %395 = vmatpush1.msra.mxu0 0.0
    %396 = vmatprep.subr.mxu0 0.0
    %397 = vmatpush1.msra.mxu0 0.0
    %398 = vmatprep.subr.mxu0 0.0
    %399 = vmatpush1.msra.mxu0 0.0
    %400 = vmatprep.subr.mxu0 0.0
    %401 = vmatpush1.msra.mxu0 0.0
    %402 = vmatprep.subr.mxu0 0.0
    %403 = vmatpush1.msra.mxu0 0.0
    %404 = vmatprep.subr.mxu0 0.0
    %405 = vmatpush1.msra.mxu0 0.0
    %406 = vmatprep.subr.mxu0 0.0
    %407 = vmatpush1.msra.mxu0 0.0
    %408 = vmatprep.subr.mxu0 0.0
    %409 = vmatpush1.msra.mxu0 0.0
    %410 = vmatprep.subr.mxu0 0.0
    %411 = vmatpush1.msra.mxu0 0.0
    %412 = vmatprep.subr.mxu0 0.0
    %413 = vmatpush1.msra.mxu0 0.0
    %414 = vmatprep.subr.mxu0 0.0
    %415 = vmatpush1.msra.mxu0 0.0
    %416 = vmatprep.subr.mxu0 0.0
    %417 = vmatpush1.msra.mxu0 0.0
    %418 = vmatprep.subr.mxu0 0.0
    %419 = vmatpush1.msra.mxu0 0.0
    %420 = vmatprep.mubr.f32.mxu0 0.0
    %421 = vmatmul.mubr.f32.gmra.mrb[0].mxu0 %v351
    %v422 = vpop.f32.mrb[0].mxu0
    %v423 = vadd.f32 %v347, %v422
    %v424 = vpop.f32.mrb[0].mxu0
    %425 = vmatprep.mubr.f32.mxu0 0.0
    %426 = vmatmul.mubr.f32.gmra.mrb[0].mxu0 %v354
    %v427 = vpop.f32.mrb[0].mxu0
    %v428 = vadd.f32 %v347, %v427
    %v429 = vpop.f32.mrb[0].mxu0
    %430 = vdwg.mxu0
    %432 = vrot.lane.b32.xlu0 %v423, 96
    %v433 = vpop.permute.xlu0 %432
    %vm434 = vcmask 64512
    %v435 = vsel %vm434, %v423, 0
    %v437 = vsel %vm434, %v433, 0
    %439 = vmatprep.subr.mxu0 0.0
    %440 = vmatpush1.xpose.msra.mxu0 %v437
    %441 = vmatprep.subr.mxu0 0.0
    %442 = vmatpush1.xpose.msra.mxu0 0.0
    %443 = vmatprep.subr.mxu0 0.0
    %444 = vmatpush1.xpose.msra.mxu0 0.0
    %445 = vmatprep.subr.mxu0 0.0
    %446 = vmatpush1.xpose.msra.mxu0 0.0
    %447 = vmatprep.subr.mxu0 0.0
    %448 = vmatpush1.xpose.msra.mxu0 0.0
    %449 = vmatprep.subr.mxu0 0.0
    %450 = vmatpush1.xpose.msra.mxu0 0.0
    %451 = vmatprep.subr.mxu0 0.0
    %452 = vmatpush1.xpose.msra.mxu0 0.0
    %453 = vmatprep.subr.mxu0 0.0
    %454 = vmatpush1.xpose.msra.mxu0 0.0
    %455 = vmatprep.subr.mxu0 0.0
    %456 = vmatpush1.xpose.msra.mxu0 0.0
    %457 = vmatprep.subr.mxu0 0.0
    %458 = vmatpush1.xpose.msra.mxu0 0.0
    %459 = vmatprep.subr.mxu0 0.0
    %460 = vmatpush1.xpose.msra.mxu0 0.0
    %461 = vmatprep.subr.mxu0 0.0
    %462 = vmatpush1.xpose.msra.mxu0 0.0
    %463 = vmatprep.subr.mxu0 0.0
    %464 = vmatpush1.xpose.msra.mxu0 0.0
    %465 = vmatprep.subr.mxu0 0.0
    %466 = vmatpush1.xpose.msra.mxu0 0.0
    %467 = vmatprep.subr.mxu0 0.0
    %468 = vmatpush1.xpose.msra.mxu0 0.0
    %469 = vmatprep.subr.mxu0 0.0
    %470 = vmatpush1.xpose.msra.mxu0 0.0
    %471 = vmatprep.subr.mxu0 0.0
    %472 = vmatpush1.xpose.msra.mxu0 0.0
    %473 = vmatprep.subr.mxu0 0.0
    %474 = vmatpush1.xpose.msra.mxu0 0.0
    %475 = vmatprep.subr.mxu0 0.0
    %476 = vmatpush1.xpose.msra.mxu0 0.0
    %477 = vmatprep.subr.mxu0 0.0
    %478 = vmatpush1.xpose.msra.mxu0 0.0
    %479 = vmatprep.subr.mxu0 0.0
    %480 = vmatpush1.xpose.msra.mxu0 0.0
    %481 = vmatprep.subr.mxu0 0.0
    %482 = vmatpush1.xpose.msra.mxu0 0.0
    %483 = vmatprep.subr.mxu0 0.0
    %484 = vmatpush1.xpose.msra.mxu0 0.0
    %485 = vmatprep.subr.mxu0 0.0
    %486 = vmatpush1.xpose.msra.mxu0 0.0
    %487 = vmatprep.subr.mxu0 0.0
    %488 = vmatpush1.xpose.msra.mxu0 0.0
    %489 = vmatprep.subr.mxu0 0.0
    %490 = vmatpush1.xpose.msra.mxu0 0.0
    %491 = vmatprep.subr.mxu0 0.0
    %492 = vmatpush1.xpose.msra.mxu0 0.0
    %493 = vmatprep.subr.mxu0 0.0
    %494 = vmatpush1.xpose.msra.mxu0 0.0
    %495 = vmatprep.subr.mxu0 0.0
    %496 = vmatpush1.xpose.msra.mxu0 0.0
    %497 = vmatprep.subr.mxu0 0.0
    %498 = vmatpush1.xpose.msra.mxu0 0.0
    %499 = vmatprep.subr.mxu0 0.0
    %500 = vmatpush1.xpose.msra.mxu0 0.0
    %501 = vmatprep.subr.mxu0 0.0
    %502 = vmatpush1.xpose.msra.mxu0 0.0
    %503 = vmatprep.mubr.f32.mxu0 0.0
    %504 = vmatmul.mubr.f32.gmra.mrb[0].mxu0 %v435
    %v505 = vpop.f32.mrb[0].mxu0
    %v506 = vadd.f32 0.0, %v505
    %v507 = vpop.f32.mrb[0].mxu0
    %508 = vdwg.mxu0
    %v509 = vmul.f32 %v506, 0.35355338
    %v510 = vadd.f32 %v509, %v328
    %v511 = vsel %vm434, %v510, -inf
    %512 = vmax.xlane.f32.xlu0 %v511
    %v513 = vpop.xlane.xlu0 %512
    %v514 = vsub.f32 %v510, %v513
    %v515 = vmul.f32 %v514, 1.442695
    %v516 = vpow.pop %v515
    %v517 = vsel %vm434, %v516, 0.0
    %518 = vadd.xlane.f32.xlu0 %v517
    %v519 = vpop.xlane.xlu0 %518
    %v520 = vrcp.pop %v519
    %v521 = vmul.f32 %v516, %v520
    %522 = vrot.lane.b32.xlu0 %v423, 64
    %v523 = vpop.permute.xlu0 %522
    %v526 = vsel %vm434, %v521, 0
    %528 = vmatprep.subr.mxu0 0.0
    %529 = vmatpush1.msra.mxu0 %v523
    %530 = vmatprep.subr.mxu0 0.0
    %531 = vmatpush1.msra.mxu0 0.0
    %532 = vmatprep.subr.mxu0 0.0
    %533 = vmatpush1.msra.mxu0 0.0
    %534 = vmatprep.subr.mxu0 0.0
    %535 = vmatpush1.msra.mxu0 0.0
    %536 = vmatprep.subr.mxu0 0.0
    %537 = vmatpush1.msra.mxu0 0.0
    %538 = vmatprep.subr.mxu0 0.0
    %539 = vmatpush1.msra.mxu0 0.0
    %540 = vmatprep.subr.mxu0 0.0
    %541 = vmatpush1.msra.mxu0 0.0
    %542 = vmatprep.subr.mxu0 0.0
    %543 = vmatpush1.msra.mxu0 0.0
    %544 = vmatprep.subr.mxu0 0.0
    %545 = vmatpush1.msra.mxu0 0.0
    %546 = vmatprep.subr.mxu0 0.0
    %547 = vmatpush1.msra.mxu0 0.0
    %548 = vmatprep.subr.mxu0 0.0
    %549 = vmatpush1.msra.mxu0 0.0
    %550 = vmatprep.subr.mxu0 0.0
    %551 = vmatpush1.msra.mxu0 0.0
    %552 = vmatprep.subr.mxu0 0.0
    %553 = vmatpush1.msra.mxu0 0.0
    %554 = vmatprep.subr.mxu0 0.0
    %555 = vmatpush1.msra.mxu0 0.0
    %556 = vmatprep.subr.mxu0 0.0
    %557 = vmatpush1.msra.mxu0 0.0
    %558 = vmatprep.subr.mxu0 0.0
    %559 = vmatpush1.msra.mxu0 0.0
    %560 = vmatprep.subr.mxu0 0.0
    %561 = vmatpush1.msra.mxu0 0.0
    %562 = vmatprep.subr.mxu0 0.0
    %563 = vmatpush1.msra.mxu0 0.0
    %564 = vmatprep.subr.mxu0 0.0
    %565 = vmatpush1.msra.mxu0 0.0
    %566 = vmatprep.subr.mxu0 0.0
    %567 = vmatpush1.msra.mxu0 0.0
    %568 = vmatprep.subr.mxu0 0.0
    %569 = vmatpush1.msra.mxu0 0.0
    %570 = vmatprep.subr.mxu0 0.0
    %571 = vmatpush1.msra.mxu0 0.0
    %572 = vmatprep.subr.mxu0 0.0
    %573 = vmatpush1.msra.mxu0 0.0
    %574 = vmatprep.subr.mxu0 0.0
    %575 = vmatpush1.msra.mxu0 0.0
    %576 = vmatprep.subr.mxu0 0.0
    %577 = vmatpush1.msra.mxu0 0.0
    %578 = vmatprep.subr.mxu0 0.0
    %579 = vmatpush1.msra.mxu0 0.0
    %580 = vmatprep.subr.mxu0 0.0
    %581 = vmatpush1.msra.mxu0 0.0
    %582 = vmatprep.subr.mxu0 0.0
    %583 = vmatpush1.msra.mxu0 0.0
    %584 = vmatprep.subr.mxu0 0.0
    %585 = vmatpush1.msra.mxu0 0.0
    %586 = vmatprep.subr.mxu0 0.0
    %587 = vmatpush1.msra.mxu0 0.0
    %588 = vmatprep.subr.mxu0 0.0
    %589 = vmatpush1.msra.mxu0 0.0
    %590 = vmatprep.subr.mxu0 0.0
    %591 = vmatpush1.msra.mxu0 0.0
    %592 = vmatprep.mubr.f32.mxu0 0.0
    %593 = vmatmul.mubr.f32.gmra.mrb[0].mxu0 %v526
    %v594 = vpop.f32.mrb[0].mxu0
    %v595 = vadd.f32 0.0, %v594
    %v596 = vpop.f32.mrb[0].mxu0
    %597 = vdwg.mxu0
    %598 = vrot.lane.b32.xlu0 %v423, 120
    %v599 = vpop.permute.xlu0 %598
    %600 = vrot.lane.b32.xlu0 %v423, 88
    %v601 = vpop.permute.xlu0 %600
    %v602 = vsel %vm434, %v599, 0
    %v604 = vsel %vm434, %v601, 0
    %606 = vmatprep.subr.mxu0 0.0
    %607 = vmatpush1.xpose.msra.mxu0 %v604
    %608 = vmatprep.subr.mxu0 0.0
    %609 = vmatpush1.xpose.msra.mxu0 0.0
    %610 = vmatprep.subr.mxu0 0.0
    %611 = vmatpush1.xpose.msra.mxu0 0.0
    %612 = vmatprep.subr.mxu0 0.0
    %613 = vmatpush1.xpose.msra.mxu0 0.0
    %614 = vmatprep.subr.mxu0 0.0
    %615 = vmatpush1.xpose.msra.mxu0 0.0
    %616 = vmatprep.subr.mxu0 0.0
    %617 = vmatpush1.xpose.msra.mxu0 0.0
    %618 = vmatprep.subr.mxu0 0.0
    %619 = vmatpush1.xpose.msra.mxu0 0.0
    %620 = vmatprep.subr.mxu0 0.0
    %621 = vmatpush1.xpose.msra.mxu0 0.0
    %622 = vmatprep.subr.mxu0 0.0
    %623 = vmatpush1.xpose.msra.mxu0 0.0
    %624 = vmatprep.subr.mxu0 0.0
    %625 = vmatpush1.xpose.msra.mxu0 0.0
    %626 = vmatprep.subr.mxu0 0.0
    %627 = vmatpush1.xpose.msra.mxu0 0.0
    %628 = vmatprep.subr.mxu0 0.0
    %629 = vmatpush1.xpose.msra.mxu0 0.0
    %630 = vmatprep.subr.mxu0 0.0
    %631 = vmatpush1.xpose.msra.mxu0 0.0
    %632 = vmatprep.subr.mxu0 0.0
    %633 = vmatpush1.xpose.msra.mxu0 0.0
    %634 = vmatprep.subr.mxu0 0.0
    %635 = vmatpush1.xpose.msra.mxu0 0.0
    %636 = vmatprep.subr.mxu0 0.0
    %637 = vmatpush1.xpose.msra.mxu0 0.0
    %638 = vmatprep.subr.mxu0 0.0
    %639 = vmatpush1.xpose.msra.mxu0 0.0
    %640 = vmatprep.subr.mxu0 0.0
    %641 = vmatpush1.xpose.msra.mxu0 0.0
    %642 = vmatprep.subr.mxu0 0.0
    %643 = vmatpush1.xpose.msra.mxu0 0.0
    %644 = vmatprep.subr.mxu0 0.0
    %645 = vmatpush1.xpose.msra.mxu0 0.0
    %646 = vmatprep.subr.mxu0 0.0
    %647 = vmatpush1.xpose.msra.mxu0 0.0
    %648 = vmatprep.subr.mxu0 0.0
    %649 = vmatpush1.xpose.msra.mxu0 0.0
    %650 = vmatprep.subr.mxu0 0.0
    %651 = vmatpush1.xpose.msra.mxu0 0.0
    %652 = vmatprep.subr.mxu0 0.0
    %653 = vmatpush1.xpose.msra.mxu0 0.0
    %654 = vmatprep.subr.mxu0 0.0
    %655 = vmatpush1.xpose.msra.mxu0 0.0
    %656 = vmatprep.subr.mxu0 0.0
    %657 = vmatpush1.xpose.msra.mxu0 0.0
    %658 = vmatprep.subr.mxu0 0.0
    %659 = vmatpush1.xpose.msra.mxu0 0.0
    %660 = vmatprep.subr.mxu0 0.0
    %661 = vmatpush1.xpose.msra.mxu0 0.0
    %662 = vmatprep.subr.mxu0 0.0
    %663 = vmatpush1.xpose.msra.mxu0 0.0
    %664 = vmatprep.subr.mxu0 0.0
    %665 = vmatpush1.xpose.msra.mxu0 0.0
    %666 = vmatprep.subr.mxu0 0.0
    %667 = vmatpush1.xpose.msra.mxu0 0.0
    %668 = vmatprep.subr.mxu0 0.0
    %669 = vmatpush1.xpose.msra.mxu0 0.0
    %670 = vmatprep.mubr.f32.mxu0 0.0
    %671 = vmatmul.mubr.f32.gmra.mrb[0].mxu0 %v602
    %v672 = vpop.f32.mrb[0].mxu0
    %v673 = vadd.f32 0.0, %v672
    %v674 = vpop.f32.mrb[0].mxu0
    %675 = vdwg.mxu0
    %v676 = vmul.f32 %v673, 0.35355338
    %v677 = vadd.f32 %v676, %v328
    %v678 = vsel %vm434, %v677, -inf
    %679 = vmax.xlane.f32.xlu0 %v678
    %v680 = vpop.xlane.xlu0 %679
    %v681 = vsub.f32 %v677, %v680
    %v682 = vmul.f32 %v681, 1.442695
    %v683 = vpow.pop %v682
    %v684 = vsel %vm434, %v683, 0.0
    %685 = vadd.xlane.f32.xlu0 %v684
    %v686 = vpop.xlane.xlu0 %685
    %v687 = vrcp.pop %v686
    %v688 = vmul.f32 %v683, %v687
    %689 = vrot.lane.b32.xlu0 %v423, 56
    %v690 = vpop.permute.xlu0 %689
    %v693 = vsel %vm434, %v688, 0
    %695 = vmatprep.subr.mxu0 0.0
    %696 = vmatpush1.msra.mxu0 %v690
    %697 = vmatprep.subr.mxu0 0.0
    %698 = vmatpush1.msra.mxu0 0.0
    %699 = vmatprep.subr.mxu0 0.0
    %700 = vmatpush1.msra.mxu0 0.0
    %701 = vmatprep.subr.mxu0 0.0
    %702 = vmatpush1.msra.mxu0 0.0
    %703 = vmatprep.subr.mxu0 0.0
    %704 = vmatpush1.msra.mxu0 0.0
    %705 = vmatprep.subr.mxu0 0.0
    %706 = vmatpush1.msra.mxu0 0.0
    %707 = vmatprep.subr.mxu0 0.0
    %708 = vmatpush1.msra.mxu0 0.0
    %709 = vmatprep.subr.mxu0 0.0
    %710 = vmatpush1.msra.mxu0 0.0
    %711 = vmatprep.subr.mxu0 0.0
    %712 = vmatpush1.msra.mxu0 0.0
    %713 = vmatprep.subr.mxu0 0.0
    %714 = vmatpush1.msra.mxu0 0.0
    %715 = vmatprep.subr.mxu0 0.0
    %716 = vmatpush1.msra.mxu0 0.0
    %717 = vmatprep.subr.mxu0 0.0
    %718 = vmatpush1.msra.mxu0 0.0
    %719 = vmatprep.subr.mxu0 0.0
    %720 = vmatpush1.msra.mxu0 0.0
    %721 = vmatprep.subr.mxu0 0.0
    %722 = vmatpush1.msra.mxu0 0.0
    %723 = vmatprep.subr.mxu0 0.0
    %724 = vmatpush1.msra.mxu0 0.0
    %725 = vmatprep.subr.mxu0 0.0
    %726 = vmatpush1.msra.mxu0 0.0
    %727 = vmatprep.subr.mxu0 0.0
    %728 = vmatpush1.msra.mxu0 0.0
    %729 = vmatprep.subr.mxu0 0.0
    %730 = vmatpush1.msra.mxu0 0.0
    %731 = vmatprep.subr.mxu0 0.0
    %732 = vmatpush1.msra.mxu0 0.0
    %733 = vmatprep.subr.mxu0 0.0
    %734 = vmatpush1.msra.mxu0 0.0
    %735 = vmatprep.subr.mxu0 0.0
    %736 = vmatpush1.msra.mxu0 0.0
    %737 = vmatprep.subr.mxu0 0.0
    %738 = vmatpush1.msra.mxu0 0.0
    %739 = vmatprep.subr.mxu0 0.0
    %740 = vmatpush1.msra.mxu0 0.0
    %741 = vmatprep.subr.mxu0 0.0
    %742 = vmatpush1.msra.mxu0 0.0
    %743 = vmatprep.subr.mxu0 0.0
    %744 = vmatpush1.msra.mxu0 0.0
    %745 = vmatprep.subr.mxu0 0.0
    %746 = vmatpush1.msra.mxu0 0.0
    %747 = vmatprep.subr.mxu0 0.0
    %748 = vmatpush1.msra.mxu0 0.0
    %749 = vmatprep.subr.mxu0 0.0
    %750 = vmatpush1.msra.mxu0 0.0
    %751 = vmatprep.subr.mxu0 0.0
    %752 = vmatpush1.msra.mxu0 0.0
    %753 = vmatprep.subr.mxu0 0.0
    %754 = vmatpush1.msra.mxu0 0.0
    %755 = vmatprep.subr.mxu0 0.0
    %756 = vmatpush1.msra.mxu0 0.0
    %757 = vmatprep.subr.mxu0 0.0
    %758 = vmatpush1.msra.mxu0 0.0
    %759 = vmatprep.mubr.f32.mxu0 0.0
    %760 = vmatmul.mubr.f32.gmra.mrb[0].mxu0 %v693
    %v761 = vpop.f32.mrb[0].mxu0
    %v762 = vadd.f32 0.0, %v761
    %v763 = vpop.f32.mrb[0].mxu0
    %764 = vdwg.mxu0
    %765 = vrot.lane.b32.xlu0 %v423, 112
    %v766 = vpop.permute.xlu0 %765
    %767 = vrot.lane.b32.xlu0 %v423, 80
    %v768 = vpop.permute.xlu0 %767
    %v769 = vsel %vm434, %v766, 0
    %v771 = vsel %vm434, %v768, 0
    %773 = vmatprep.subr.mxu0 0.0
    %774 = vmatpush1.xpose.msra.mxu0 %v771
    %775 = vmatprep.subr.mxu0 0.0
    %776 = vmatpush1.xpose.msra.mxu0 0.0
    %777 = vmatprep.subr.mxu0 0.0
    %778 = vmatpush1.xpose.msra.mxu0 0.0
    %779 = vmatprep.subr.mxu0 0.0
    %780 = vmatpush1.xpose.msra.mxu0 0.0
    %781 = vmatprep.subr.mxu0 0.0
    %782 = vmatpush1.xpose.msra.mxu0 0.0
    %783 = vmatprep.subr.mxu0 0.0
    %784 = vmatpush1.xpose.msra.mxu0 0.0
    %785 = vmatprep.subr.mxu0 0.0
    %786 = vmatpush1.xpose.msra.mxu0 0.0
    %787 = vmatprep.subr.mxu0 0.0
    %788 = vmatpush1.xpose.msra.mxu0 0.0
    %789 = vmatprep.subr.mxu0 0.0
    %790 = vmatpush1.xpose.msra.mxu0 0.0
    %791 = vmatprep.subr.mxu0 0.0
    %792 = vmatpush1.xpose.msra.mxu0 0.0
    %793 = vmatprep.subr.mxu0 0.0
    %794 = vmatpush1.xpose.msra.mxu0 0.0
    %795 = vmatprep.subr.mxu0 0.0
    %796 = vmatpush1.xpose.msra.mxu0 0.0
    %797 = vmatprep.subr.mxu0 0.0
    %798 = vmatpush1.xpose.msra.mxu0 0.0
    %799 = vmatprep.subr.mxu0 0.0
    %800 = vmatpush1.xpose.msra.mxu0 0.0
    %801 = vmatprep.subr.mxu0 0.0
    %802 = vmatpush1.xpose.msra.mxu0 0.0
    %803 = vmatprep.subr.mxu0 0.0
    %804 = vmatpush1.xpose.msra.mxu0 0.0
    %805 = vmatprep.subr.mxu0 0.0
    %806 = vmatpush1.xpose.msra.mxu0 0.0
    %807 = vmatprep.subr.mxu0 0.0
    %808 = vmatpush1.xpose.msra.mxu0 0.0
    %809 = vmatprep.subr.mxu0 0.0
    %810 = vmatpush1.xpose.msra.mxu0 0.0
    %811 = vmatprep.subr.mxu0 0.0
    %812 = vmatpush1.xpose.msra.mxu0 0.0
    %813 = vmatprep.subr.mxu0 0.0
    %814 = vmatpush1.xpose.msra.mxu0 0.0
    %815 = vmatprep.subr.mxu0 0.0
    %816 = vmatpush1.xpose.msra.mxu0 0.0
    %817 = vmatprep.subr.mxu0 0.0
    %818 = vmatpush1.xpose.msra.mxu0 0.0
    %819 = vmatprep.subr.mxu0 0.0
    %820 = vmatpush1.xpose.msra.mxu0 0.0
    %821 = vmatprep.subr.mxu0 0.0
    %822 = vmatpush1.xpose.msra.mxu0 0.0
    %823 = vmatprep.subr.mxu0 0.0
    %824 = vmatpush1.xpose.msra.mxu0 0.0
    %825 = vmatprep.subr.mxu0 0.0
    %826 = vmatpush1.xpose.msra.mxu0 0.0
    %827 = vmatprep.subr.mxu0 0.0
    %828 = vmatpush1.xpose.msra.mxu0 0.0
    %829 = vmatprep.subr.mxu0 0.0
    %830 = vmatpush1.xpose.msra.mxu0 0.0
    %831 = vmatprep.subr.mxu0 0.0
    %832 = vmatpush1.xpose.msra.mxu0 0.0
    %833 = vmatprep.subr.mxu0 0.0
    %834 = vmatpush1.xpose.msra.mxu0 0.0
    %835 = vmatprep.subr.mxu0 0.0
    %836 = vmatpush1.xpose.msra.mxu0 0.0
    %837 = vmatprep.mubr.f32.mxu0 0.0
    %838 = vmatmul.mubr.f32.gmra.mrb[0].mxu0 %v769
    %v839 = vpop.f32.mrb[0].mxu0
    %v840 = vadd.f32 0.0, %v839
    %v841 = vpop.f32.mrb[0].mxu0
    %842 = vdwg.mxu0
    %v843 = vmul.f32 %v840, 0.35355338
    %v844 = vadd.f32 %v843, %v328
    %v845 = vsel %vm434, %v844, -inf
    %846 = vmax.xlane.f32.xlu0 %v845
    %v847 = vpop.xlane.xlu0 %846
    %v848 = vsub.f32 %v844, %v847
    %v849 = vmul.f32 %v848, 1.442695
    %v850 = vpow.pop %v849
    %v851 = vsel %vm434, %v850, 0.0
    %852 = vadd.xlane.f32.xlu0 %v851
    %v853 = vpop.xlane.xlu0 %852
    %v854 = vrcp.pop %v853
    %v855 = vmul.f32 %v850, %v854
    %856 = vrot.lane.b32.xlu0 %v423, 48
    %v857 = vpop.permute.xlu0 %856
    %v860 = vsel %vm434, %v855, 0
    %862 = vmatprep.subr.mxu0 0.0
    %863 = vmatpush1.msra.mxu0 %v857
    %864 = vmatprep.subr.mxu0 0.0
    %865 = vmatpush1.msra.mxu0 0.0
    %866 = vmatprep.subr.mxu0 0.0
    %867 = vmatpush1.msra.mxu0 0.0
    %868 = vmatprep.subr.mxu0 0.0
    %869 = vmatpush1.msra.mxu0 0.0
    %870 = vmatprep.subr.mxu0 0.0
    %871 = vmatpush1.msra.mxu0 0.0
    %872 = vmatprep.subr.mxu0 0.0
    %873 = vmatpush1.msra.mxu0 0.0
    %874 = vmatprep.subr.mxu0 0.0
    %875 = vmatpush1.msra.mxu0 0.0
    %876 = vmatprep.subr.mxu0 0.0
    %877 = vmatpush1.msra.mxu0 0.0
    %878 = vmatprep.subr.mxu0 0.0
    %879 = vmatpush1.msra.mxu0 0.0
    %880 = vmatprep.subr.mxu0 0.0
    %881 = vmatpush1.msra.mxu0 0.0
    %882 = vmatprep.subr.mxu0 0.0
    %883 = vmatpush1.msra.mxu0 0.0
    %884 = vmatprep.subr.mxu0 0.0
    %885 = vmatpush1.msra.mxu0 0.0
    %886 = vmatprep.subr.mxu0 0.0
    %887 = vmatpush1.msra.mxu0 0.0
    %888 = vmatprep.subr.mxu0 0.0
    %889 = vmatpush1.msra.mxu0 0.0
    %890 = vmatprep.subr.mxu0 0.0
    %891 = vmatpush1.msra.mxu0 0.0
    %892 = vmatprep.subr.mxu0 0.0
    %893 = vmatpush1.msra.mxu0 0.0
    %894 = vmatprep.subr.mxu0 0.0
    %895 = vmatpush1.msra.mxu0 0.0
    %896 = vmatprep.subr.mxu0 0.0
    %897 = vmatpush1.msra.mxu0 0.0
    %898 = vmatprep.subr.mxu0 0.0
    %899 = vmatpush1.msra.mxu0 0.0
    %900 = vmatprep.subr.mxu0 0.0
    %901 = vmatpush1.msra.mxu0 0.0
    %902 = vmatprep.subr.mxu0 0.0
    %903 = vmatpush1.msra.mxu0 0.0
    %904 = vmatprep.subr.mxu0 0.0
    %905 = vmatpush1.msra.mxu0 0.0
    %906 = vmatprep.subr.mxu0 0.0
    %907 = vmatpush1.msra.mxu0 0.0
    %908 = vmatprep.subr.mxu0 0.0
    %909 = vmatpush1.msra.mxu0 0.0
    %910 = vmatprep.subr.mxu0 0.0
    %911 = vmatpush1.msra.mxu0 0.0
    %912 = vmatprep.subr.mxu0 0.0
    %913 = vmatpush1.msra.mxu0 0.0
    %914 = vmatprep.subr.mxu0 0.0
    %915 = vmatpush1.msra.mxu0 0.0
    %916 = vmatprep.subr.mxu0 0.0
    %917 = vmatpush1.msra.mxu0 0.0
    %918 = vmatprep.subr.mxu0 0.0
    %919 = vmatpush1.msra.mxu0 0.0
    %920 = vmatprep.subr.mxu0 0.0
    %921 = vmatpush1.msra.mxu0 0.0
    %922 = vmatprep.subr.mxu0 0.0
    %923 = vmatpush1.msra.mxu0 0.0
    %924 = vmatprep.subr.mxu0 0.0
    %925 = vmatpush1.msra.mxu0 0.0
    %926 = vmatprep.mubr.f32.mxu0 0.0
    %927 = vmatmul.mubr.f32.gmra.mrb[0].mxu0 %v860
    %v928 = vpop.f32.mrb[0].mxu0
    %v929 = vadd.f32 0.0, %v928
    %v930 = vpop.f32.mrb[0].mxu0
    %931 = vdwg.mxu0
    %932 = vrot.lane.b32.xlu0 %v423, 104
    %v933 = vpop.permute.xlu0 %932
    %934 = vrot.lane.b32.xlu0 %v423, 72
    %v935 = vpop.permute.xlu0 %934
    %v936 = vsel %vm434, %v933, 0
    %v938 = vsel %vm434, %v935, 0
    %940 = vmatprep.subr.mxu0 0.0
    %941 = vmatpush1.xpose.msra.mxu0 %v938
    %942 = vmatprep.subr.mxu0 0.0
    %943 = vmatpush1.xpose.msra.mxu0 0.0
    %944 = vmatprep.subr.mxu0 0.0
    %945 = vmatpush1.xpose.msra.mxu0 0.0
    %946 = vmatprep.subr.mxu0 0.0
    %947 = vmatpush1.xpose.msra.mxu0 0.0
    %948 = vmatprep.subr.mxu0 0.0
    %949 = vmatpush1.xpose.msra.mxu0 0.0
    %950 = vmatprep.subr.mxu0 0.0
    %951 = vmatpush1.xpose.msra.mxu0 0.0
    %952 = vmatprep.subr.mxu0 0.0
    %953 = vmatpush1.xpose.msra.mxu0 0.0
    %954 = vmatprep.subr.mxu0 0.0
    %955 = vmatpush1.xpose.msra.mxu0 0.0
    %956 = vmatprep.subr.mxu0 0.0
    %957 = vmatpush1.xpose.msra.mxu0 0.0
    %958 = vmatprep.subr.mxu0 0.0
    %959 = vmatpush1.xpose.msra.mxu0 0.0
    %960 = vmatprep.subr.mxu0 0.0
    %961 = vmatpush1.xpose.msra.mxu0 0.0
    %962 = vmatprep.subr.mxu0 0.0
    %963 = vmatpush1.xpose.msra.mxu0 0.0
    %964 = vmatprep.subr.mxu0 0.0
    %965 = vmatpush1.xpose.msra.mxu0 0.0
    %966 = vmatprep.subr.mxu0 0.0
    %967 = vmatpush1.xpose.msra.mxu0 0.0
    %968 = vmatprep.subr.mxu0 0.0
    %969 = vmatpush1.xpose.msra.mxu0 0.0
    %970 = vmatprep.subr.mxu0 0.0
    %971 = vmatpush1.xpose.msra.mxu0 0.0
    %972 = vmatprep.subr.mxu0 0.0
    %973 = vmatpush1.xpose.msra.mxu0 0.0
    %974 = vmatprep.subr.mxu0 0.0
    %975 = vmatpush1.xpose.msra.mxu0 0.0
    %976 = vmatprep.subr.mxu0 0.0
    %977 = vmatpush1.xpose.msra.mxu0 0.0
    %978 = vmatprep.subr.mxu0 0.0
    %979 = vmatpush1.xpose.msra.mxu0 0.0
    %980 = vmatprep.subr.mxu0 0.0
    %981 = vmatpush1.xpose.msra.mxu0 0.0
    %982 = vmatprep.subr.mxu0 0.0
    %983 = vmatpush1.xpose.msra.mxu0 0.0
    %984 = vmatprep.subr.mxu0 0.0
    %985 = vmatpush1.xpose.msra.mxu0 0.0
    %986 = vmatprep.subr.mxu0 0.0
    %987 = vmatpush1.xpose.msra.mxu0 0.0
    %988 = vmatprep.subr.mxu0 0.0
    %989 = vmatpush1.xpose.msra.mxu0 0.0
    %990 = vmatprep.subr.mxu0 0.0
    %991 = vmatpush1.xpose.msra.mxu0 0.0
    %992 = vmatprep.subr.mxu0 0.0
    %993 = vmatpush1.xpose.msra.mxu0 0.0
    %994 = vmatprep.subr.mxu0 0.0
    %995 = vmatpush1.xpose.msra.mxu0 0.0
    %996 = vmatprep.subr.mxu0 0.0
    %997 = vmatpush1.xpose.msra.mxu0 0.0
    %998 = vmatprep.subr.mxu0 0.0
    %999 = vmatpush1.xpose.msra.mxu0 0.0
    %1000 = vmatprep.subr.mxu0 0.0
    %1001 = vmatpush1.xpose.msra.mxu0 0.0
    %1002 = vmatprep.subr.mxu0 0.0
    %1003 = vmatpush1.xpose.msra.mxu0 0.0
    %1004 = vmatprep.mubr.f32.mxu0 0.0
    %1005 = vmatmul.mubr.f32.gmra.mrb[0].mxu0 %v936
    %v1006 = vpop.f32.mrb[0].mxu0
    %v1007 = vadd.f32 0.0, %v1006
    %v1008 = vpop.f32.mrb[0].mxu0
    %1009 = vdwg.mxu0
    %v1010 = vmul.f32 %v1007, 0.35355338
    %v1011 = vadd.f32 %v1010, %v328
    %v1012 = vsel %vm434, %v1011, -inf
    %1013 = vmax.xlane.f32.xlu0 %v1012
    %v1014 = vpop.xlane.xlu0 %1013
    %v1015 = vsub.f32 %v1011, %v1014
    %v1016 = vmul.f32 %v1015, 1.442695
    %v1017 = vpow.pop %v1016
    %v1018 = vsel %vm434, %v1017, 0.0
    %1019 = vadd.xlane.f32.xlu0 %v1018
    %v1020 = vpop.xlane.xlu0 %1019
    %v1021 = vrcp.pop %v1020
    %v1022 = vmul.f32 %v1017, %v1021
    %1023 = vrot.lane.b32.xlu0 %v423, 40
    %v1024 = vpop.permute.xlu0 %1023
    %v1027 = vsel %vm434, %v1022, 0
    %1029 = vmatprep.subr.mxu0 0.0
    %1030 = vmatpush1.msra.mxu0 %v1024
    %1031 = vmatprep.subr.mxu0 0.0
    %1032 = vmatpush1.msra.mxu0 0.0
    %1033 = vmatprep.subr.mxu0 0.0
    %1034 = vmatpush1.msra.mxu0 0.0
    %1035 = vmatprep.subr.mxu0 0.0
    %1036 = vmatpush1.msra.mxu0 0.0
    %1037 = vmatprep.subr.mxu0 0.0
    %1038 = vmatpush1.msra.mxu0 0.0
    %1039 = vmatprep.subr.mxu0 0.0
    %1040 = vmatpush1.msra.mxu0 0.0
    %1041 = vmatprep.subr.mxu0 0.0
    %1042 = vmatpush1.msra.mxu0 0.0
    %1043 = vmatprep.subr.mxu0 0.0
    %1044 = vmatpush1.msra.mxu0 0.0
    %1045 = vmatprep.subr.mxu0 0.0
    %1046 = vmatpush1.msra.mxu0 0.0
    %1047 = vmatprep.subr.mxu0 0.0
    %1048 = vmatpush1.msra.mxu0 0.0
    %1049 = vmatprep.subr.mxu0 0.0
    %1050 = vmatpush1.msra.mxu0 0.0
    %1051 = vmatprep.subr.mxu0 0.0
    %1052 = vmatpush1.msra.mxu0 0.0
    %1053 = vmatprep.subr.mxu0 0.0
    %1054 = vmatpush1.msra.mxu0 0.0
    %1055 = vmatprep.subr.mxu0 0.0
    %1056 = vmatpush1.msra.mxu0 0.0
    %1057 = vmatprep.subr.mxu0 0.0
    %1058 = vmatpush1.msra.mxu0 0.0
    %1059 = vmatprep.subr.mxu0 0.0
    %1060 = vmatpush1.msra.mxu0 0.0
    %1061 = vmatprep.subr.mxu0 0.0
    %1062 = vmatpush1.msra.mxu0 0.0
    %1063 = vmatprep.subr.mxu0 0.0
    %1064 = vmatpush1.msra.mxu0 0.0
    %1065 = vmatprep.subr.mxu0 0.0
    %1066 = vmatpush1.msra.mxu0 0.0
    %1067 = vmatprep.subr.mxu0 0.0
    %1068 = vmatpush1.msra.mxu0 0.0
    %1069 = vmatprep.subr.mxu0 0.0
    %1070 = vmatpush1.msra.mxu0 0.0
    %1071 = vmatprep.subr.mxu0 0.0
    %1072 = vmatpush1.msra.mxu0 0.0
    %1073 = vmatprep.subr.mxu0 0.0
    %1074 = vmatpush1.msra.mxu0 0.0
    %1075 = vmatprep.subr.mxu0 0.0
    %1076 = vmatpush1.msra.mxu0 0.0
    %1077 = vmatprep.subr.mxu0 0.0
    %1078 = vmatpush1.msra.mxu0 0.0
    %1079 = vmatprep.subr.mxu0 0.0
    %1080 = vmatpush1.msra.mxu0 0.0
    %1081 = vmatprep.subr.mxu0 0.0
    %1082 = vmatpush1.msra.mxu0 0.0
    %1083 = vmatprep.subr.mxu0 0.0
    %1084 = vmatpush1.msra.mxu0 0.0
    %1085 = vmatprep.subr.mxu0 0.0
    %1086 = vmatpush1.msra.mxu0 0.0
    %1087 = vmatprep.subr.mxu0 0.0
    %1088 = vmatpush1.msra.mxu0 0.0
    %1089 = vmatprep.subr.mxu0 0.0
    %1090 = vmatpush1.msra.mxu0 0.0
    %1091 = vmatprep.subr.mxu0 0.0
    %1092 = vmatpush1.msra.mxu0 0.0
    %1093 = vmatprep.mubr.f32.mxu0 0.0
    %1094 = vmatmul.mubr.f32.gmra.mrb[0].mxu0 %v1027
    %v1095 = vpop.f32.mrb[0].mxu0
    %v1096 = vadd.f32 0.0, %v1095
    %v1097 = vpop.f32.mrb[0].mxu0
    %1098 = vdwg.mxu0
    %1100 = vrot.lane.b32.xlu0 %v762, 8
    %v1101 = vpop.permute.xlu0 %1100
    %1104 = vrot.lane.b32.xlu0 %v929, 16
    %v1105 = vpop.permute.xlu0 %1104
    %1108 = vrot.lane.b32.xlu0 %v1096, 24
    %v1109 = vpop.permute.xlu0 %1108
    %v1111 = vsel %vm434, %v595, %v1101
    %vm1112 = vcmask 130048
    %v1113 = vsel %vm1112, %v1111, %v1105
    %vm1114 = vcmask 195584
    %v1115 = vsel %vm1114, %v1113, %v1109
    %1117 = vrot.lane.b32.xlu0 %v428, 96
    %v1118 = vpop.permute.xlu0 %1117
    %v1119 = vsel %vm434, %v428, 0
    %v1121 = vsel %vm434, %v1118, 0
    %1123 = vmatprep.subr.mxu0 0.0
    %1124 = vmatpush1.xpose.msra.mxu0 %v1121
    %1125 = vmatprep.subr.mxu0 0.0
    %1126 = vmatpush1.xpose.msra.mxu0 0.0
    %1127 = vmatprep.subr.mxu0 0.0
    %1128 = vmatpush1.xpose.msra.mxu0 0.0
    %1129 = vmatprep.subr.mxu0 0.0
    %1130 = vmatpush1.xpose.msra.mxu0 0.0
    %1131 = vmatprep.subr.mxu0 0.0
    %1132 = vmatpush1.xpose.msra.mxu0 0.0
    %1133 = vmatprep.subr.mxu0 0.0
    %1134 = vmatpush1.xpose.msra.mxu0 0.0
    %1135 = vmatprep.subr.mxu0 0.0
    %1136 = vmatpush1.xpose.msra.mxu0 0.0
    %1137 = vmatprep.subr.mxu0 0.0
    %1138 = vmatpush1.xpose.msra.mxu0 0.0
    %1139 = vmatprep.subr.mxu0 0.0
    %1140 = vmatpush1.xpose.msra.mxu0 0.0
    %1141 = vmatprep.subr.mxu0 0.0
    %1142 = vmatpush1.xpose.msra.mxu0 0.0
    %1143 = vmatprep.subr.mxu0 0.0
    %1144 = vmatpush1.xpose.msra.mxu0 0.0
    %1145 = vmatprep.subr.mxu0 0.0
    %1146 = vmatpush1.xpose.msra.mxu0 0.0
    %1147 = vmatprep.subr.mxu0 0.0
    %1148 = vmatpush1.xpose.msra.mxu0 0.0
    %1149 = vmatprep.subr.mxu0 0.0
    %1150 = vmatpush1.xpose.msra.mxu0 0.0
    %1151 = vmatprep.subr.mxu0 0.0
    %1152 = vmatpush1.xpose.msra.mxu0 0.0
    %1153 = vmatprep.subr.mxu0 0.0
    %1154 = vmatpush1.xpose.msra.mxu0 0.0
    %1155 = vmatprep.subr.mxu0 0.0
    %1156 = vmatpush1.xpose.msra.mxu0 0.0
    %1157 = vmatprep.subr.mxu0 0.0
    %1158 = vmatpush1.xpose.msra.mxu0 0.0
    %1159 = vmatprep.subr.mxu0 0.0
    %1160 = vmatpush1.xpose.msra.mxu0 0.0
    %1161 = vmatprep.subr.mxu0 0.0
    %1162 = vmatpush1.xpose.msra.mxu0 0.0
    %1163 = vmatprep.subr.mxu0 0.0
    %1164 = vmatpush1.xpose.msra.mxu0 0.0
    %1165 = vmatprep.subr.mxu0 0.0
    %1166 = vmatpush1.xpose.msra.mxu0 0.0
    %1167 = vmatprep.subr.mxu0 0.0
    %1168 = vmatpush1.xpose.msra.mxu0 0.0
    %1169 = vmatprep.subr.mxu0 0.0
    %1170 = vmatpush1.xpose.msra.mxu0 0.0
    %1171 = vmatprep.subr.mxu0 0.0
    %1172 = vmatpush1.xpose.msra.mxu0 0.0
    %1173 = vmatprep.subr.mxu0 0.0
    %1174 = vmatpush1.xpose.msra.mxu0 0.0
    %1175 = vmatprep.subr.mxu0 0.0
    %1176 = vmatpush1.xpose.msra.mxu0 0.0
    %1177 = vmatprep.subr.mxu0 0.0
    %1178 = vmatpush1.xpose.msra.mxu0 0.0
    %1179 = vmatprep.subr.mxu0 0.0
    %1180 = vmatpush1.xpose.msra.mxu0 0.0
    %1181 = vmatprep.subr.mxu0 0.0
    %1182 = vmatpush1.xpose.msra.mxu0 0.0
    %1183 = vmatprep.subr.mxu0 0.0
    %1184 = vmatpush1.xpose.msra.mxu0 0.0
    %1185 = vmatprep.subr.mxu0 0.0
    %1186 = vmatpush1.xpose.msra.mxu0 0.0
    %1187 = vmatprep.mubr.f32.mxu0 0.0
    %1188 = vmatmul.mubr.f32.gmra.mrb[0].mxu0 %v1119
    %v1189 = vpop.f32.mrb[0].mxu0
    %v1190 = vadd.f32 0.0, %v1189
    %v1191 = vpop.f32.mrb[0].mxu0
    %1192 = vdwg.mxu0
    %v1193 = vmul.f32 %v1190, 0.35355338
    %v1194 = vadd.f32 %v1193, %v329
    %v1195 = vsel %vm434, %v1194, -inf
    %1196 = vmax.xlane.f32.xlu0 %v1195
    %v1197 = vpop.xlane.xlu0 %1196
    %v1198 = vsub.f32 %v1194, %v1197
    %v1199 = vmul.f32 %v1198, 1.442695
    %v1200 = vpow.pop %v1199
    %v1201 = vsel %vm434, %v1200, 0.0
    %1202 = vadd.xlane.f32.xlu0 %v1201
    %v1203 = vpop.xlane.xlu0 %1202
    %v1204 = vrcp.pop %v1203
    %v1205 = vmul.f32 %v1200, %v1204
    %1206 = vrot.lane.b32.xlu0 %v428, 64
    %v1207 = vpop.permute.xlu0 %1206
    %v1210 = vsel %vm434, %v1205, 0
    %1212 = vmatprep.subr.mxu0 0.0
    %1213 = vmatpush1.msra.mxu0 %v1207
    %1214 = vmatprep.subr.mxu0 0.0
    %1215 = vmatpush1.msra.mxu0 0.0
    %1216 = vmatprep.subr.mxu0 0.0
    %1217 = vmatpush1.msra.mxu0 0.0
    %1218 = vmatprep.subr.mxu0 0.0
    %1219 = vmatpush1.msra.mxu0 0.0
    %1220 = vmatprep.subr.mxu0 0.0
    %1221 = vmatpush1.msra.mxu0 0.0
    %1222 = vmatprep.subr.mxu0 0.0
    %1223 = vmatpush1.msra.mxu0 0.0
    %1224 = vmatprep.subr.mxu0 0.0
    %1225 = vmatpush1.msra.mxu0 0.0
    %1226 = vmatprep.subr.mxu0 0.0
    %1227 = vmatpush1.msra.mxu0 0.0
    %1228 = vmatprep.subr.mxu0 0.0
    %1229 = vmatpush1.msra.mxu0 0.0
    %1230 = vmatprep.subr.mxu0 0.0
    %1231 = vmatpush1.msra.mxu0 0.0
    %1232 = vmatprep.subr.mxu0 0.0
    %1233 = vmatpush1.msra.mxu0 0.0
    %1234 = vmatprep.subr.mxu0 0.0
    %1235 = vmatpush1.msra.mxu0 0.0
    %1236 = vmatprep.subr.mxu0 0.0
    %1237 = vmatpush1.msra.mxu0 0.0
    %1238 = vmatprep.subr.mxu0 0.0
    %1239 = vmatpush1.msra.mxu0 0.0
    %1240 = vmatprep.subr.mxu0 0.0
    %1241 = vmatpush1.msra.mxu0 0.0
    %1242 = vmatprep.subr.mxu0 0.0
    %1243 = vmatpush1.msra.mxu0 0.0
    %1244 = vmatprep.subr.mxu0 0.0
    %1245 = vmatpush1.msra.mxu0 0.0
    %1246 = vmatprep.subr.mxu0 0.0
    %1247 = vmatpush1.msra.mxu0 0.0
    %1248 = vmatprep.subr.mxu0 0.0
    %1249 = vmatpush1.msra.mxu0 0.0
    %1250 = vmatprep.subr.mxu0 0.0
    %1251 = vmatpush1.msra.mxu0 0.0
    %1252 = vmatprep.subr.mxu0 0.0
    %1253 = vmatpush1.msra.mxu0 0.0
    %1254 = vmatprep.subr.mxu0 0.0
    %1255 = vmatpush1.msra.mxu0 0.0
    %1256 = vmatprep.subr.mxu0 0.0
    %1257 = vmatpush1.msra.mxu0 0.0
    %1258 = vmatprep.subr.mxu0 0.0
    %1259 = vmatpush1.msra.mxu0 0.0
    %1260 = vmatprep.subr.mxu0 0.0
    %1261 = vmatpush1.msra.mxu0 0.0
    %1262 = vmatprep.subr.mxu0 0.0
    %1263 = vmatpush1.msra.mxu0 0.0
    %1264 = vmatprep.subr.mxu0 0.0
    %1265 = vmatpush1.msra.mxu0 0.0
    %1266 = vmatprep.subr.mxu0 0.0
    %1267 = vmatpush1.msra.mxu0 0.0
    %1268 = vmatprep.subr.mxu0 0.0
    %1269 = vmatpush1.msra.mxu0 0.0
    %1270 = vmatprep.subr.mxu0 0.0
    %1271 = vmatpush1.msra.mxu0 0.0
    %1272 = vmatprep.subr.mxu0 0.0
    %1273 = vmatpush1.msra.mxu0 0.0
    %1274 = vmatprep.subr.mxu0 0.0
    %1275 = vmatpush1.msra.mxu0 0.0
    %1276 = vmatprep.mubr.f32.mxu0 0.0
    %1277 = vmatmul.mubr.f32.gmra.mrb[0].mxu0 %v1210
    %v1278 = vpop.f32.mrb[0].mxu0
    %v1279 = vadd.f32 0.0, %v1278
    %v1280 = vpop.f32.mrb[0].mxu0
    %1281 = vdwg.mxu0
    %1282 = vrot.lane.b32.xlu0 %v428, 120
    %v1283 = vpop.permute.xlu0 %1282
    %1284 = vrot.lane.b32.xlu0 %v428, 88
    %v1285 = vpop.permute.xlu0 %1284
    %v1286 = vsel %vm434, %v1283, 0
    %v1288 = vsel %vm434, %v1285, 0
    %1290 = vmatprep.subr.mxu0 0.0
    %1291 = vmatpush1.xpose.msra.mxu0 %v1288
    %1292 = vmatprep.subr.mxu0 0.0
    %1293 = vmatpush1.xpose.msra.mxu0 0.0
    %1294 = vmatprep.subr.mxu0 0.0
    %1295 = vmatpush1.xpose.msra.mxu0 0.0
    %1296 = vmatprep.subr.mxu0 0.0
    %1297 = vmatpush1.xpose.msra.mxu0 0.0
    %1298 = vmatprep.subr.mxu0 0.0
    %1299 = vmatpush1.xpose.msra.mxu0 0.0
    %1300 = vmatprep.subr.mxu0 0.0
    %1301 = vmatpush1.xpose.msra.mxu0 0.0
    %1302 = vmatprep.subr.mxu0 0.0
    %1303 = vmatpush1.xpose.msra.mxu0 0.0
    %1304 = vmatprep.subr.mxu0 0.0
    %1305 = vmatpush1.xpose.msra.mxu0 0.0
    %1306 = vmatprep.subr.mxu0 0.0
    %1307 = vmatpush1.xpose.msra.mxu0 0.0
    %1308 = vmatprep.subr.mxu0 0.0
    %1309 = vmatpush1.xpose.msra.mxu0 0.0
    %1310 = vmatprep.subr.mxu0 0.0
    %1311 = vmatpush1.xpose.msra.mxu0 0.0
    %1312 = vmatprep.subr.mxu0 0.0
    %1313 = vmatpush1.xpose.msra.mxu0 0.0
    %1314 = vmatprep.subr.mxu0 0.0
    %1315 = vmatpush1.xpose.msra.mxu0 0.0
    %1316 = vmatprep.subr.mxu0 0.0
    %1317 = vmatpush1.xpose.msra.mxu0 0.0
    %1318 = vmatprep.subr.mxu0 0.0
    %1319 = vmatpush1.xpose.msra.mxu0 0.0
    %1320 = vmatprep.subr.mxu0 0.0
    %1321 = vmatpush1.xpose.msra.mxu0 0.0
    %1322 = vmatprep.subr.mxu0 0.0
    %1323 = vmatpush1.xpose.msra.mxu0 0.0
    %1324 = vmatprep.subr.mxu0 0.0
    %1325 = vmatpush1.xpose.msra.mxu0 0.0
    %1326 = vmatprep.subr.mxu0 0.0
    %1327 = vmatpush1.xpose.msra.mxu0 0.0
    %1328 = vmatprep.subr.mxu0 0.0
    %1329 = vmatpush1.xpose.msra.mxu0 0.0
    %1330 = vmatprep.subr.mxu0 0.0
    %1331 = vmatpush1.xpose.msra.mxu0 0.0
    %1332 = vmatprep.subr.mxu0 0.0
    %1333 = vmatpush1.xpose.msra.mxu0 0.0
    %1334 = vmatprep.subr.mxu0 0.0
    %1335 = vmatpush1.xpose.msra.mxu0 0.0
    %1336 = vmatprep.subr.mxu0 0.0
    %1337 = vmatpush1.xpose.msra.mxu0 0.0
    %1338 = vmatprep.subr.mxu0 0.0
    %1339 = vmatpush1.xpose.msra.mxu0 0.0
    %1340 = vmatprep.subr.mxu0 0.0
    %1341 = vmatpush1.xpose.msra.mxu0 0.0
    %1342 = vmatprep.subr.mxu0 0.0
    %1343 = vmatpush1.xpose.msra.mxu0 0.0
    %1344 = vmatprep.subr.mxu0 0.0
    %1345 = vmatpush1.xpose.msra.mxu0 0.0
    %1346 = vmatprep.subr.mxu0 0.0
    %1347 = vmatpush1.xpose.msra.mxu0 0.0
    %1348 = vmatprep.subr.mxu0 0.0
    %1349 = vmatpush1.xpose.msra.mxu0 0.0
    %1350 = vmatprep.subr.mxu0 0.0
    %1351 = vmatpush1.xpose.msra.mxu0 0.0
    %1352 = vmatprep.subr.mxu0 0.0
    %1353 = vmatpush1.xpose.msra.mxu0 0.0
    %1354 = vmatprep.mubr.f32.mxu0 0.0
    %1355 = vmatmul.mubr.f32.gmra.mrb[0].mxu0 %v1286
    %v1356 = vpop.f32.mrb[0].mxu0
    %v1357 = vadd.f32 0.0, %v1356
    %v1358 = vpop.f32.mrb[0].mxu0
    %1359 = vdwg.mxu0
    %v1360 = vmul.f32 %v1357, 0.35355338
    %v1361 = vadd.f32 %v1360, %v329
    %v1362 = vsel %vm434, %v1361, -inf
    %1363 = vmax.xlane.f32.xlu0 %v1362
    %v1364 = vpop.xlane.xlu0 %1363
    %v1365 = vsub.f32 %v1361, %v1364
    %v1366 = vmul.f32 %v1365, 1.442695
    %v1367 = vpow.pop %v1366
    %v1368 = vsel %vm434, %v1367, 0.0
    %1369 = vadd.xlane.f32.xlu0 %v1368
    %v1370 = vpop.xlane.xlu0 %1369
    %v1371 = vrcp.pop %v1370
    %v1372 = vmul.f32 %v1367, %v1371
    %1373 = vrot.lane.b32.xlu0 %v428, 56
    %v1374 = vpop.permute.xlu0 %1373
    %v1377 = vsel %vm434, %v1372, 0
    %1379 = vmatprep.subr.mxu0 0.0
    %1380 = vmatpush1.msra.mxu0 %v1374
    %1381 = vmatprep.subr.mxu0 0.0
    %1382 = vmatpush1.msra.mxu0 0.0
    %1383 = vmatprep.subr.mxu0 0.0
    %1384 = vmatpush1.msra.mxu0 0.0
    %1385 = vmatprep.subr.mxu0 0.0
    %1386 = vmatpush1.msra.mxu0 0.0
    %1387 = vmatprep.subr.mxu0 0.0
    %1388 = vmatpush1.msra.mxu0 0.0
    %1389 = vmatprep.subr.mxu0 0.0
    %1390 = vmatpush1.msra.mxu0 0.0
    %1391 = vmatprep.subr.mxu0 0.0
    %1392 = vmatpush1.msra.mxu0 0.0
    %1393 = vmatprep.subr.mxu0 0.0
    %1394 = vmatpush1.msra.mxu0 0.0
    %1395 = vmatprep.subr.mxu0 0.0
    %1396 = vmatpush1.msra.mxu0 0.0
    %1397 = vmatprep.subr.mxu0 0.0
    %1398 = vmatpush1.msra.mxu0 0.0
    %1399 = vmatprep.subr.mxu0 0.0
    %1400 = vmatpush1.msra.mxu0 0.0
    %1401 = vmatprep.subr.mxu0 0.0
    %1402 = vmatpush1.msra.mxu0 0.0
    %1403 = vmatprep.subr.mxu0 0.0
    %1404 = vmatpush1.msra.mxu0 0.0
    %1405 = vmatprep.subr.mxu0 0.0
    %1406 = vmatpush1.msra.mxu0 0.0
    %1407 = vmatprep.subr.mxu0 0.0
    %1408 = vmatpush1.msra.mxu0 0.0
    %1409 = vmatprep.subr.mxu0 0.0
    %1410 = vmatpush1.msra.mxu0 0.0
    %1411 = vmatprep.subr.mxu0 0.0
    %1412 = vmatpush1.msra.mxu0 0.0
    %1413 = vmatprep.subr.mxu0 0.0
    %1414 = vmatpush1.msra.mxu0 0.0
    %1415 = vmatprep.subr.mxu0 0.0
    %1416 = vmatpush1.msra.mxu0 0.0
    %1417 = vmatprep.subr.mxu0 0.0
    %1418 = vmatpush1.msra.mxu0 0.0
    %1419 = vmatprep.subr.mxu0 0.0
    %1420 = vmatpush1.msra.mxu0 0.0
    %1421 = vmatprep.subr.mxu0 0.0
    %1422 = vmatpush1.msra.mxu0 0.0
    %1423 = vmatprep.subr.mxu0 0.0
    %1424 = vmatpush1.msra.mxu0 0.0
    %1425 = vmatprep.subr.mxu0 0.0
    %1426 = vmatpush1.msra.mxu0 0.0
    %1427 = vmatprep.subr.mxu0 0.0
    %1428 = vmatpush1.msra.mxu0 0.0
    %1429 = vmatprep.subr.mxu0 0.0
    %1430 = vmatpush1.msra.mxu0 0.0
    %1431 = vmatprep.subr.mxu0 0.0
    %1432 = vmatpush1.msra.mxu0 0.0
    %1433 = vmatprep.subr.mxu0 0.0
    %1434 = vmatpush1.msra.mxu0 0.0
    %1435 = vmatprep.subr.mxu0 0.0
    %1436 = vmatpush1.msra.mxu0 0.0
    %1437 = vmatprep.subr.mxu0 0.0
    %1438 = vmatpush1.msra.mxu0 0.0
    %1439 = vmatprep.subr.mxu0 0.0
    %1440 = vmatpush1.msra.mxu0 0.0
    %1441 = vmatprep.subr.mxu0 0.0
    %1442 = vmatpush1.msra.mxu0 0.0
    %1443 = vmatprep.mubr.f32.mxu0 0.0
    %1444 = vmatmul.mubr.f32.gmra.mrb[0].mxu0 %v1377
    %v1445 = vpop.f32.mrb[0].mxu0
    %v1446 = vadd.f32 0.0, %v1445
    %v1447 = vpop.f32.mrb[0].mxu0
    %1448 = vdwg.mxu0
    %1449 = vrot.lane.b32.xlu0 %v428, 112
    %v1450 = vpop.permute.xlu0 %1449
    %1451 = vrot.lane.b32.xlu0 %v428, 80
    %v1452 = vpop.permute.xlu0 %1451
    %v1453 = vsel %vm434, %v1450, 0
    %v1455 = vsel %vm434, %v1452, 0
    %1457 = vmatprep.subr.mxu0 0.0
    %1458 = vmatpush1.xpose.msra.mxu0 %v1455
    %1459 = vmatprep.subr.mxu0 0.0
    %1460 = vmatpush1.xpose.msra.mxu0 0.0
    %1461 = vmatprep.subr.mxu0 0.0
    %1462 = vmatpush1.xpose.msra.mxu0 0.0
    %1463 = vmatprep.subr.mxu0 0.0
    %1464 = vmatpush1.xpose.msra.mxu0 0.0
    %1465 = vmatprep.subr.mxu0 0.0
    %1466 = vmatpush1.xpose.msra.mxu0 0.0
    %1467 = vmatprep.subr.mxu0 0.0
    %1468 = vmatpush1.xpose.msra.mxu0 0.0
    %1469 = vmatprep.subr.mxu0 0.0
    %1470 = vmatpush1.xpose.msra.mxu0 0.0
    %1471 = vmatprep.subr.mxu0 0.0
    %1472 = vmatpush1.xpose.msra.mxu0 0.0
    %1473 = vmatprep.subr.mxu0 0.0
    %1474 = vmatpush1.xpose.msra.mxu0 0.0
    %1475 = vmatprep.subr.mxu0 0.0
    %1476 = vmatpush1.xpose.msra.mxu0 0.0
    %1477 = vmatprep.subr.mxu0 0.0
    %1478 = vmatpush1.xpose.msra.mxu0 0.0
    %1479 = vmatprep.subr.mxu0 0.0
    %1480 = vmatpush1.xpose.msra.mxu0 0.0
    %1481 = vmatprep.subr.mxu0 0.0
    %1482 = vmatpush1.xpose.msra.mxu0 0.0
    %1483 = vmatprep.subr.mxu0 0.0
    %1484 = vmatpush1.xpose.msra.mxu0 0.0
    %1485 = vmatprep.subr.mxu0 0.0
    %1486 = vmatpush1.xpose.msra.mxu0 0.0
    %1487 = vmatprep.subr.mxu0 0.0
    %1488 = vmatpush1.xpose.msra.mxu0 0.0
    %1489 = vmatprep.subr.mxu0 0.0
    %1490 = vmatpush1.xpose.msra.mxu0 0.0
    %1491 = vmatprep.subr.mxu0 0.0
    %1492 = vmatpush1.xpose.msra.mxu0 0.0
    %1493 = vmatprep.subr.mxu0 0.0
    %1494 = vmatpush1.xpose.msra.mxu0 0.0
    %1495 = vmatprep.subr.mxu0 0.0
    %1496 = vmatpush1.xpose.msra.mxu0 0.0
    %1497 = vmatprep.subr.mxu0 0.0
    %1498 = vmatpush1.xpose.msra.mxu0 0.0
    %1499 = vmatprep.subr.mxu0 0.0
    %1500 = vmatpush1.xpose.msra.mxu0 0.0
    %1501 = vmatprep.subr.mxu0 0.0
    %1502 = vmatpush1.xpose.msra.mxu0 0.0
    %1503 = vmatprep.subr.mxu0 0.0
    %1504 = vmatpush1.xpose.msra.mxu0 0.0
    %1505 = vmatprep.subr.mxu0 0.0
    %1506 = vmatpush1.xpose.msra.mxu0 0.0
    %1507 = vmatprep.subr.mxu0 0.0
    %1508 = vmatpush1.xpose.msra.mxu0 0.0
    %1509 = vmatprep.subr.mxu0 0.0
    %1510 = vmatpush1.xpose.msra.mxu0 0.0
    %1511 = vmatprep.subr.mxu0 0.0
    %1512 = vmatpush1.xpose.msra.mxu0 0.0
    %1513 = vmatprep.subr.mxu0 0.0
    %1514 = vmatpush1.xpose.msra.mxu0 0.0
    %1515 = vmatprep.subr.mxu0 0.0
    %1516 = vmatpush1.xpose.msra.mxu0 0.0
    %1517 = vmatprep.subr.mxu0 0.0
    %1518 = vmatpush1.xpose.msra.mxu0 0.0
    %1519 = vmatprep.subr.mxu0 0.0
    %1520 = vmatpush1.xpose.msra.mxu0 0.0
    %1521 = vmatprep.mubr.f32.mxu0 0.0
    %1522 = vmatmul.mubr.f32.gmra.mrb[0].mxu0 %v1453
    %v1523 = vpop.f32.mrb[0].mxu0
    %v1524 = vadd.f32 0.0, %v1523
    %v1525 = vpop.f32.mrb[0].mxu0
    %1526 = vdwg.mxu0
    %v1527 = vmul.f32 %v1524, 0.35355338
    %v1528 = vadd.f32 %v1527, %v329
    %v1529 = vsel %vm434, %v1528, -inf
    %1530 = vmax.xlane.f32.xlu0 %v1529
    %v1531 = vpop.xlane.xlu0 %1530
    %v1532 = vsub.f32 %v1528, %v1531
    %v1533 = vmul.f32 %v1532, 1.442695
    %v1534 = vpow.pop %v1533
    %v1535 = vsel %vm434, %v1534, 0.0
    %1536 = vadd.xlane.f32.xlu0 %v1535
    %v1537 = vpop.xlane.xlu0 %1536
    %v1538 = vrcp.pop %v1537
    %v1539 = vmul.f32 %v1534, %v1538
    %1540 = vrot.lane.b32.xlu0 %v428, 48
    %v1541 = vpop.permute.xlu0 %1540
    %v1544 = vsel %vm434, %v1539, 0
    %1546 = vmatprep.subr.mxu0 0.0
    %1547 = vmatpush1.msra.mxu0 %v1541
    %1548 = vmatprep.subr.mxu0 0.0
    %1549 = vmatpush1.msra.mxu0 0.0
    %1550 = vmatprep.subr.mxu0 0.0
    %1551 = vmatpush1.msra.mxu0 0.0
    %1552 = vmatprep.subr.mxu0 0.0
    %1553 = vmatpush1.msra.mxu0 0.0
    %1554 = vmatprep.subr.mxu0 0.0
    %1555 = vmatpush1.msra.mxu0 0.0
    %1556 = vmatprep.subr.mxu0 0.0
    %1557 = vmatpush1.msra.mxu0 0.0
    %1558 = vmatprep.subr.mxu0 0.0
    %1559 = vmatpush1.msra.mxu0 0.0
    %1560 = vmatprep.subr.mxu0 0.0
    %1561 = vmatpush1.msra.mxu0 0.0
    %1562 = vmatprep.subr.mxu0 0.0
    %1563 = vmatpush1.msra.mxu0 0.0
    %1564 = vmatprep.subr.mxu0 0.0
    %1565 = vmatpush1.msra.mxu0 0.0
    %1566 = vmatprep.subr.mxu0 0.0
    %1567 = vmatpush1.msra.mxu0 0.0
    %1568 = vmatprep.subr.mxu0 0.0
    %1569 = vmatpush1.msra.mxu0 0.0
    %1570 = vmatprep.subr.mxu0 0.0
    %1571 = vmatpush1.msra.mxu0 0.0
    %1572 = vmatprep.subr.mxu0 0.0
    %1573 = vmatpush1.msra.mxu0 0.0
    %1574 = vmatprep.subr.mxu0 0.0
    %1575 = vmatpush1.msra.mxu0 0.0
    %1576 = vmatprep.subr.mxu0 0.0
    %1577 = vmatpush1.msra.mxu0 0.0
    %1578 = vmatprep.subr.mxu0 0.0
    %1579 = vmatpush1.msra.mxu0 0.0
    %1580 = vmatprep.subr.mxu0 0.0
    %1581 = vmatpush1.msra.mxu0 0.0
    %1582 = vmatprep.subr.mxu0 0.0
    %1583 = vmatpush1.msra.mxu0 0.0
    %1584 = vmatprep.subr.mxu0 0.0
    %1585 = vmatpush1.msra.mxu0 0.0
    %1586 = vmatprep.subr.mxu0 0.0
    %1587 = vmatpush1.msra.mxu0 0.0
    %1588 = vmatprep.subr.mxu0 0.0
    %1589 = vmatpush1.msra.mxu0 0.0
    %1590 = vmatprep.subr.mxu0 0.0
    %1591 = vmatpush1.msra.mxu0 0.0
    %1592 = vmatprep.subr.mxu0 0.0
    %1593 = vmatpush1.msra.mxu0 0.0
    %1594 = vmatprep.subr.mxu0 0.0
    %1595 = vmatpush1.msra.mxu0 0.0
    %1596 = vmatprep.subr.mxu0 0.0
    %1597 = vmatpush1.msra.mxu0 0.0
    %1598 = vmatprep.subr.mxu0 0.0
    %1599 = vmatpush1.msra.mxu0 0.0
    %1600 = vmatprep.subr.mxu0 0.0
    %1601 = vmatpush1.msra.mxu0 0.0
    %1602 = vmatprep.subr.mxu0 0.0
    %1603 = vmatpush1.msra.mxu0 0.0
    %1604 = vmatprep.subr.mxu0 0.0
    %1605 = vmatpush1.msra.mxu0 0.0
    %1606 = vmatprep.subr.mxu0 0.0
    %1607 = vmatpush1.msra.mxu0 0.0
    %1608 = vmatprep.subr.mxu0 0.0
    %1609 = vmatpush1.msra.mxu0 0.0
    %1610 = vmatprep.mubr.f32.mxu0 0.0
    %1611 = vmatmul.mubr.f32.gmra.mrb[0].mxu0 %v1544
    %v1612 = vpop.f32.mrb[0].mxu0
    %v1613 = vadd.f32 0.0, %v1612
    %v1614 = vpop.f32.mrb[0].mxu0
    %1615 = vdwg.mxu0
    %1616 = vrot.lane.b32.xlu0 %v428, 104
    %v1617 = vpop.permute.xlu0 %1616
    %1618 = vrot.lane.b32.xlu0 %v428, 72
    %v1619 = vpop.permute.xlu0 %1618
    %v1620 = vsel %vm434, %v1617, 0
    %v1622 = vsel %vm434, %v1619, 0
    %1624 = vmatprep.subr.mxu0 0.0
    %1625 = vmatpush1.xpose.msra.mxu0 %v1622
    %1626 = vmatprep.subr.mxu0 0.0
    %1627 = vmatpush1.xpose.msra.mxu0 0.0
    %1628 = vmatprep.subr.mxu0 0.0
    %1629 = vmatpush1.xpose.msra.mxu0 0.0
    %1630 = vmatprep.subr.mxu0 0.0
    %1631 = vmatpush1.xpose.msra.mxu0 0.0
    %1632 = vmatprep.subr.mxu0 0.0
    %1633 = vmatpush1.xpose.msra.mxu0 0.0
    %1634 = vmatprep.subr.mxu0 0.0
    %1635 = vmatpush1.xpose.msra.mxu0 0.0
    %1636 = vmatprep.subr.mxu0 0.0
    %1637 = vmatpush1.xpose.msra.mxu0 0.0
    %1638 = vmatprep.subr.mxu0 0.0
    %1639 = vmatpush1.xpose.msra.mxu0 0.0
    %1640 = vmatprep.subr.mxu0 0.0
    %1641 = vmatpush1.xpose.msra.mxu0 0.0
    %1642 = vmatprep.subr.mxu0 0.0
    %1643 = vmatpush1.xpose.msra.mxu0 0.0
    %1644 = vmatprep.subr.mxu0 0.0
    %1645 = vmatpush1.xpose.msra.mxu0 0.0
    %1646 = vmatprep.subr.mxu0 0.0
    %1647 = vmatpush1.xpose.msra.mxu0 0.0
    %1648 = vmatprep.subr.mxu0 0.0
    %1649 = vmatpush1.xpose.msra.mxu0 0.0
    %1650 = vmatprep.subr.mxu0 0.0
    %1651 = vmatpush1.xpose.msra.mxu0 0.0
    %1652 = vmatprep.subr.mxu0 0.0
    %1653 = vmatpush1.xpose.msra.mxu0 0.0
    %1654 = vmatprep.subr.mxu0 0.0
    %1655 = vmatpush1.xpose.msra.mxu0 0.0
    %1656 = vmatprep.subr.mxu0 0.0
    %1657 = vmatpush1.xpose.msra.mxu0 0.0
    %1658 = vmatprep.subr.mxu0 0.0
    %1659 = vmatpush1.xpose.msra.mxu0 0.0
    %1660 = vmatprep.subr.mxu0 0.0
    %1661 = vmatpush1.xpose.msra.mxu0 0.0
    %1662 = vmatprep.subr.mxu0 0.0
    %1663 = vmatpush1.xpose.msra.mxu0 0.0
    %1664 = vmatprep.subr.mxu0 0.0
    %1665 = vmatpush1.xpose.msra.mxu0 0.0
    %1666 = vmatprep.subr.mxu0 0.0
    %1667 = vmatpush1.xpose.msra.mxu0 0.0
    %1668 = vmatprep.subr.mxu0 0.0
    %1669 = vmatpush1.xpose.msra.mxu0 0.0
    %1670 = vmatprep.subr.mxu0 0.0
    %1671 = vmatpush1.xpose.msra.mxu0 0.0
    %1672 = vmatprep.subr.mxu0 0.0
    %1673 = vmatpush1.xpose.msra.mxu0 0.0
    %1674 = vmatprep.subr.mxu0 0.0
    %1675 = vmatpush1.xpose.msra.mxu0 0.0
    %1676 = vmatprep.subr.mxu0 0.0
    %1677 = vmatpush1.xpose.msra.mxu0 0.0
    %1678 = vmatprep.subr.mxu0 0.0
    %1679 = vmatpush1.xpose.msra.mxu0 0.0
    %1680 = vmatprep.subr.mxu0 0.0
    %1681 = vmatpush1.xpose.msra.mxu0 0.0
    %1682 = vmatprep.subr.mxu0 0.0
    %1683 = vmatpush1.xpose.msra.mxu0 0.0
    %1684 = vmatprep.subr.mxu0 0.0
    %1685 = vmatpush1.xpose.msra.mxu0 0.0
    %1686 = vmatprep.subr.mxu0 0.0
    %1687 = vmatpush1.xpose.msra.mxu0 0.0
    %1688 = vmatprep.mubr.f32.mxu0 0.0
    %1689 = vmatmul.mubr.f32.gmra.mrb[0].mxu0 %v1620
    %v1690 = vpop.f32.mrb[0].mxu0
    %v1691 = vadd.f32 0.0, %v1690
    %v1692 = vpop.f32.mrb[0].mxu0
    %1693 = vdwg.mxu0
    %v1694 = vmul.f32 %v1691, 0.35355338
    %v1695 = vadd.f32 %v1694, %v329
    %v1696 = vsel %vm434, %v1695, -inf
    %1697 = vmax.xlane.f32.xlu0 %v1696
    %v1698 = vpop.xlane.xlu0 %1697
    %v1699 = vsub.f32 %v1695, %v1698
    %v1700 = vmul.f32 %v1699, 1.442695
    %v1701 = vpow.pop %v1700
    %v1702 = vsel %vm434, %v1701, 0.0
    %1703 = vadd.xlane.f32.xlu0 %v1702
    %v1704 = vpop.xlane.xlu0 %1703
    %v1705 = vrcp.pop %v1704
    %v1706 = vmul.f32 %v1701, %v1705
    %1707 = vrot.lane.b32.xlu0 %v428, 40
    %v1708 = vpop.permute.xlu0 %1707
    %v1711 = vsel %vm434, %v1706, 0
    %1713 = vmatprep.subr.mxu0 0.0
    %1714 = vmatpush1.msra.mxu0 %v1708
    %1715 = vmatprep.subr.mxu0 0.0
    %1716 = vmatpush1.msra.mxu0 0.0
    %1717 = vmatprep.subr.mxu0 0.0
    %1718 = vmatpush1.msra.mxu0 0.0
    %1719 = vmatprep.subr.mxu0 0.0
    %1720 = vmatpush1.msra.mxu0 0.0
    %1721 = vmatprep.subr.mxu0 0.0
    %1722 = vmatpush1.msra.mxu0 0.0
    %1723 = vmatprep.subr.mxu0 0.0
    %1724 = vmatpush1.msra.mxu0 0.0
    %1725 = vmatprep.subr.mxu0 0.0
    %1726 = vmatpush1.msra.mxu0 0.0
    %1727 = vmatprep.subr.mxu0 0.0
    %1728 = vmatpush1.msra.mxu0 0.0
    %1729 = vmatprep.subr.mxu0 0.0
    %1730 = vmatpush1.msra.mxu0 0.0
    %1731 = vmatprep.subr.mxu0 0.0
    %1732 = vmatpush1.msra.mxu0 0.0
    %1733 = vmatprep.subr.mxu0 0.0
    %1734 = vmatpush1.msra.mxu0 0.0
    %1735 = vmatprep.subr.mxu0 0.0
    %1736 = vmatpush1.msra.mxu0 0.0
    %1737 = vmatprep.subr.mxu0 0.0
    %1738 = vmatpush1.msra.mxu0 0.0
    %1739 = vmatprep.subr.mxu0 0.0
    %1740 = vmatpush1.msra.mxu0 0.0
    %1741 = vmatprep.subr.mxu0 0.0
    %1742 = vmatpush1.msra.mxu0 0.0
    %1743 = vmatprep.subr.mxu0 0.0
    %1744 = vmatpush1.msra.mxu0 0.0
    %1745 = vmatprep.subr.mxu0 0.0
    %1746 = vmatpush1.msra.mxu0 0.0
    %1747 = vmatprep.subr.mxu0 0.0
    %1748 = vmatpush1.msra.mxu0 0.0
    %1749 = vmatprep.subr.mxu0 0.0
    %1750 = vmatpush1.msra.mxu0 0.0
    %1751 = vmatprep.subr.mxu0 0.0
    %1752 = vmatpush1.msra.mxu0 0.0
    %1753 = vmatprep.subr.mxu0 0.0
    %1754 = vmatpush1.msra.mxu0 0.0
    %1755 = vmatprep.subr.mxu0 0.0
    %1756 = vmatpush1.msra.mxu0 0.0
    %1757 = vmatprep.subr.mxu0 0.0
    %1758 = vmatpush1.msra.mxu0 0.0
    %1759 = vmatprep.subr.mxu0 0.0
    %1760 = vmatpush1.msra.mxu0 0.0
    %1761 = vmatprep.subr.mxu0 0.0
    %1762 = vmatpush1.msra.mxu0 0.0
    %1763 = vmatprep.subr.mxu0 0.0
    %1764 = vmatpush1.msra.mxu0 0.0
    %1765 = vmatprep.subr.mxu0 0.0
    %1766 = vmatpush1.msra.mxu0 0.0
    %1767 = vmatprep.subr.mxu0 0.0
    %1768 = vmatpush1.msra.mxu0 0.0
    %1769 = vmatprep.subr.mxu0 0.0
    %1770 = vmatpush1.msra.mxu0 0.0
    %1771 = vmatprep.subr.mxu0 0.0
    %1772 = vmatpush1.msra.mxu0 0.0
    %1773 = vmatprep.subr.mxu0 0.0
    %1774 = vmatpush1.msra.mxu0 0.0
    %1775 = vmatprep.subr.mxu0 0.0
    %1776 = vmatpush1.msra.mxu0 0.0
    %1777 = vmatprep.mubr.f32.mxu0 0.0
    %1778 = vmatmul.mubr.f32.gmra.mrb[0].mxu0 %v1711
    %v1779 = vpop.f32.mrb[0].mxu0
    %v1780 = vadd.f32 0.0, %v1779
    %v1781 = vpop.f32.mrb[0].mxu0
    %1782 = vdwg.mxu0
    %1784 = vrot.lane.b32.xlu0 %v1446, 8
    %v1785 = vpop.permute.xlu0 %1784
    %1788 = vrot.lane.b32.xlu0 %v1613, 16
    %v1789 = vpop.permute.xlu0 %1788
    %1792 = vrot.lane.b32.xlu0 %v1780, 24
    %v1793 = vpop.permute.xlu0 %1792
    %v1795 = vsel %vm434, %v1279, %v1785
    %v1796 = vsel %vm1112, %v1795, %v1789
    %v1797 = vsel %vm1114, %v1796, %v1793
    %v1798 = vld [vmem:[%s8] sm:$0xff]
    %v1799 = vld [vmem:[%s8 + $0x8] sm:$0xff]
    %v1800 = vld [vmem:[%s8 + $0x10] sm:$0xff]
    %v1801 = vld [vmem:[%s8 + $0x18] sm:$0xff]
    %v1802 = vld [vmem:[%s9] sm:$0x1]
    %v1804 = vlaneseq
    %v1805 = vshrl.u32 %v1804, 7
    %v1806 = vsub.s32 0, %v1805
    %v1807 = vrot.slane %v1802, %v1806
    %v1810 = vsel %vm349, %v1115, 0
    %v1813 = vsel %vm349, %v1797, 0
    %1815 = vmatprep.subr.mxu0 0.0
    %1816 = vmatpush1.msra.mxu0 %v1798
    %1817 = vmatprep.subr.mxu0 0.0
    %1818 = vmatpush1.msra.mxu0 %v1799
    %1819 = vmatprep.subr.mxu0 0.0
    %1820 = vmatpush1.msra.mxu0 %v1800
    %1821 = vmatprep.subr.mxu0 0.0
    %1822 = vmatpush1.msra.mxu0 %v1801
    %1823 = vmatprep.subr.mxu0 0.0
    %1824 = vmatpush1.msra.mxu0 0.0
    %1825 = vmatprep.subr.mxu0 0.0
    %1826 = vmatpush1.msra.mxu0 0.0
    %1827 = vmatprep.subr.mxu0 0.0
    %1828 = vmatpush1.msra.mxu0 0.0
    %1829 = vmatprep.subr.mxu0 0.0
    %1830 = vmatpush1.msra.mxu0 0.0
    %1831 = vmatprep.subr.mxu0 0.0
    %1832 = vmatpush1.msra.mxu0 0.0
    %1833 = vmatprep.subr.mxu0 0.0
    %1834 = vmatpush1.msra.mxu0 0.0
    %1835 = vmatprep.subr.mxu0 0.0
    %1836 = vmatpush1.msra.mxu0 0.0
    %1837 = vmatprep.subr.mxu0 0.0
    %1838 = vmatpush1.msra.mxu0 0.0
    %1839 = vmatprep.subr.mxu0 0.0
    %1840 = vmatpush1.msra.mxu0 0.0
    %1841 = vmatprep.subr.mxu0 0.0
    %1842 = vmatpush1.msra.mxu0 0.0
    %1843 = vmatprep.subr.mxu0 0.0
    %1844 = vmatpush1.msra.mxu0 0.0
    %1845 = vmatprep.subr.mxu0 0.0
    %1846 = vmatpush1.msra.mxu0 0.0
    %1847 = vmatprep.subr.mxu0 0.0
    %1848 = vmatpush1.msra.mxu0 0.0
    %1849 = vmatprep.subr.mxu0 0.0
    %1850 = vmatpush1.msra.mxu0 0.0
    %1851 = vmatprep.subr.mxu0 0.0
    %1852 = vmatpush1.msra.mxu0 0.0
    %1853 = vmatprep.subr.mxu0 0.0
    %1854 = vmatpush1.msra.mxu0 0.0
    %1855 = vmatprep.subr.mxu0 0.0
    %1856 = vmatpush1.msra.mxu0 0.0
    %1857 = vmatprep.subr.mxu0 0.0
    %1858 = vmatpush1.msra.mxu0 0.0
    %1859 = vmatprep.subr.mxu0 0.0
    %1860 = vmatpush1.msra.mxu0 0.0
    %1861 = vmatprep.subr.mxu0 0.0
    %1862 = vmatpush1.msra.mxu0 0.0
    %1863 = vmatprep.subr.mxu0 0.0
    %1864 = vmatpush1.msra.mxu0 0.0
    %1865 = vmatprep.subr.mxu0 0.0
    %1866 = vmatpush1.msra.mxu0 0.0
    %1867 = vmatprep.subr.mxu0 0.0
    %1868 = vmatpush1.msra.mxu0 0.0
    %1869 = vmatprep.subr.mxu0 0.0
    %1870 = vmatpush1.msra.mxu0 0.0
    %1871 = vmatprep.subr.mxu0 0.0
    %1872 = vmatpush1.msra.mxu0 0.0
    %1873 = vmatprep.subr.mxu0 0.0
    %1874 = vmatpush1.msra.mxu0 0.0
    %1875 = vmatprep.subr.mxu0 0.0
    %1876 = vmatpush1.msra.mxu0 0.0
    %1877 = vmatprep.subr.mxu0 0.0
    %1878 = vmatpush1.msra.mxu0 0.0
    %1879 = vmatprep.mubr.f32.mxu0 0.0
    %1880 = vmatmul.mubr.f32.gmra.mrb[0].mxu0 %v1810
    %v1881 = vpop.f32.mrb[0].mxu0
    %v1882 = vadd.f32 %v1807, %v1881
    %v1883 = vpop.f32.mrb[0].mxu0
    %1884 = vmatprep.mubr.f32.mxu0 0.0
    %1885 = vmatmul.mubr.f32.gmra.mrb[0].mxu0 %v1813
    %v1886 = vpop.f32.mrb[0].mxu0
    %v1887 = vadd.f32 %v1807, %v1886
    %v1888 = vpop.f32.mrb[0].mxu0
    %1889 = vdwg.mxu0
    %v1890 = vadd.f32 %v319, %v1882
    %v1891 = vadd.f32 %v320, %v1887
    %v1892 = vsel %vm349, %v1890, 0.0
    %1893 = vadd.xlane.f32.xlu0 %v1892
    %v1894 = vpop.xlane.xlu0 %1893
    %v1895 = vsel %vm349, %v1891, 0.0
    %1896 = vadd.xlane.f32.xlu0 %v1895
    %v1897 = vpop.xlane.xlu0 %1896
    %v1898 = vrcp.pop 32.0
    %v1899 = vmul.f32 %v1894, %v1898
    %v1900 = vmul.f32 %v1897, %v1898
    %v1901 = vsub.f32 %v1890, %v1899
    %v1902 = vsub.f32 %v1891, %v1900
    %v1903 = vmul.f32 %v1901, %v1901
    %v1904 = vmul.f32 %v1902, %v1902
    %v1905 = vsel %vm349, %v1903, 0.0
    %1906 = vadd.xlane.f32.xlu0 %v1905
    %v1907 = vpop.xlane.xlu0 %1906
    %v1908 = vsel %vm349, %v1904, 0.0
    %1909 = vadd.xlane.f32.xlu0 %v1908
    %v1910 = vpop.xlane.xlu0 %1909
    %v1911 = vmul.f32 %v1907, %v1898
    %v1912 = vmul.f32 %v1910, %v1898
    %v1913 = vadd.f32 %v1911, 1e-05
    %v1914 = vadd.f32 %v1912, 1e-05
    %v1915 = vrsqrt.pop %v1913
    %v1916 = vrsqrt.pop %v1914
    %v1917 = vmul.f32 %v1901, %v1915
    %v1918 = vmul.f32 %v1902, %v1916
    %v1919 = vlaneseq
    %v1920 = vshrl.u32 %v1919, 7
    %v1921 = vsub.s32 0, %v1920
    %v1922 = vrot.slane %v336, %v1921
    %v1923 = vmul.f32 %v1917, %v1922
    %v1924 = vmul.f32 %v1918, %v1922
    %v1925 = vlaneseq
    %v1926 = vshrl.u32 %v1925, 7
    %v1927 = vsub.s32 0, %v1926
    %v1928 = vrot.slane %v337, %v1927
    %v1929 = vadd.f32 %v1923, %v1928
    %v1930 = vadd.f32 %v1924, %v1928
    %v1931 = vld [vmem:[%s10] sm:$0xff]
    %v1932 = vld [vmem:[%s10 + $0x8] sm:$0xff]
    %v1933 = vld [vmem:[%s10 + $0x10] sm:$0xff]
    %v1934 = vld [vmem:[%s10 + $0x18] sm:$0xff]
    %v1935 = vld [vmem:[#allocation8] sm:$0x1]
    %v1937 = vlaneseq
    %v1938 = vshrl.u32 %v1937, 7
    %v1939 = vsub.s32 0, %v1938
    %v1940 = vrot.slane %v1935, %v1939
    %v1943 = vsel %vm349, %v1929, 0
    %v1946 = vsel %vm349, %v1930, 0
    %1948 = vmatprep.subr.mxu0 0.0
    %1949 = vmatpush1.msra.mxu0 %v1931
    %1950 = vmatprep.subr.mxu0 0.0
    %1951 = vmatpush1.msra.mxu0 %v1932
    %1952 = vmatprep.subr.mxu0 0.0
    %1953 = vmatpush1.msra.mxu0 %v1933
    %1954 = vmatprep.subr.mxu0 0.0
    %1955 = vmatpush1.msra.mxu0 %v1934
    %1956 = vmatprep.subr.mxu0 0.0
    %1957 = vmatpush1.msra.mxu0 0.0
    %1958 = vmatprep.subr.mxu0 0.0
    %1959 = vmatpush1.msra.mxu0 0.0
    %1960 = vmatprep.subr.mxu0 0.0
    %1961 = vmatpush1.msra.mxu0 0.0
    %1962 = vmatprep.subr.mxu0 0.0
    %1963 = vmatpush1.msra.mxu0 0.0
    %1964 = vmatprep.subr.mxu0 0.0
    %1965 = vmatpush1.msra.mxu0 0.0
    %1966 = vmatprep.subr.mxu0 0.0
    %1967 = vmatpush1.msra.mxu0 0.0
    %1968 = vmatprep.subr.mxu0 0.0
    %1969 = vmatpush1.msra.mxu0 0.0
    %1970 = vmatprep.subr.mxu0 0.0
    %1971 = vmatpush1.msra.mxu0 0.0
    %1972 = vmatprep.subr.mxu0 0.0
    %1973 = vmatpush1.msra.mxu0 0.0
    %1974 = vmatprep.subr.mxu0 0.0
    %1975 = vmatpush1.msra.mxu0 0.0
    %1976 = vmatprep.subr.mxu0 0.0
    %1977 = vmatpush1.msra.mxu0 0.0
    %1978 = vmatprep.subr.mxu0 0.0
    %1979 = vmatpush1.msra.mxu0 0.0
    %1980 = vmatprep.subr.mxu0 0.0
    %1981 = vmatpush1.msra.mxu0 0.0
    %1982 = vmatprep.subr.mxu0 0.0
    %1983 = vmatpush1.msra.mxu0 0.0
    %1984 = vmatprep.subr.mxu0 0.0
    %1985 = vmatpush1.msra.mxu0 0.0
    %1986 = vmatprep.subr.mxu0 0.0
    %1987 = vmatpush1.msra.mxu0 0.0
    %1988 = vmatprep.subr.mxu0 0.0
    %1989 = vmatpush1.msra.mxu0 0.0
    %1990 = vmatprep.subr.mxu0 0.0
    %1991 = vmatpush1.msra.mxu0 0.0
    %1992 = vmatprep.subr.mxu0 0.0
    %1993 = vmatpush1.msra.mxu0 0.0
    %1994 = vmatprep.subr.mxu0 0.0
    %1995 = vmatpush1.msra.mxu0 0.0
    %1996 = vmatprep.subr.mxu0 0.0
    %1997 = vmatpush1.msra.mxu0 0.0
    %1998 = vmatprep.subr.mxu0 0.0
    %1999 = vmatpush1.msra.mxu0 0.0
    %2000 = vmatprep.subr.mxu0 0.0
    %2001 = vmatpush1.msra.mxu0 0.0
    %2002 = vmatprep.subr.mxu0 0.0
    %2003 = vmatpush1.msra.mxu0 0.0
    %2004 = vmatprep.subr.mxu0 0.0
    %2005 = vmatpush1.msra.mxu0 0.0
    %2006 = vmatprep.subr.mxu0 0.0
    %2007 = vmatpush1.msra.mxu0 0.0
    %2008 = vmatprep.subr.mxu0 0.0
    %2009 = vmatpush1.msra.mxu0 0.0
    %2010 = vmatprep.subr.mxu0 0.0
    %2011 = vmatpush1.msra.mxu0 0.0
    %2012 = vmatprep.mubr.f32.mxu0 0.0
    %2013 = vmatmul.mubr.f32.gmra.mrb[0].mxu0 %v1943
    %v2014 = vpop.f32.mrb[0].mxu0
    %v2015 = vadd.f32 %v1940, %v2014
    %v2016 = vpop.f32.mrb[0].mxu0
    %2017 = vmatprep.mubr.f32.mxu0 0.0
    %2018 = vmatmul.mubr.f32.gmra.mrb[0].mxu0 %v1946
    %v2019 = vpop.f32.mrb[0].mxu0
    %v2020 = vadd.f32 %v1940, %v2019
    %v2021 = vpop.f32.mrb[0].mxu0
    %2022 = vdwg.mxu0
    %v2023 = vld [vmem:[%s12] sm:$0xff]
    %v2024 = vld [vmem:[%s12 + $0x8] sm:$0xff]
    %v2025 = vld [vmem:[%s12 + $0x10] sm:$0xff]
    %v2026 = vld [vmem:[%s12 + $0x18] sm:$0xff]
    %v2027 = vld [vmem:[#allocation10] sm:$0x1]
    %v2029 = vlaneseq
    %v2030 = vshrl.u32 %v2029, 7
    %v2031 = vsub.s32 0, %v2030
    %v2032 = vrot.slane %v2027, %v2031
    %v2035 = vsel %vm349, %v321, 0
    %v2038 = vsel %vm349, %v322, 0
    %v2041 = vsel %vm349, %v323, 0
    %2043 = vmatprep.subr.mxu0 0.0
    %2044 = vmatpush1.msra.mxu0 %v2023
    %2045 = vmatprep.subr.mxu0 0.0
    %2046 = vmatpush1.msra.mxu0 %v2024
    %2047 = vmatprep.subr.mxu0 0.0
    %2048 = vmatpush1.msra.mxu0 %v2025
    %2049 = vmatprep.subr.mxu0 0.0
    %2050 = vmatpush1.msra.mxu0 %v2026
    %2051 = vmatprep.subr.mxu0 0.0
    %2052 = vmatpush1.msra.mxu0 0.0
    %2053 = vmatprep.subr.mxu0 0.0
    %2054 = vmatpush1.msra.mxu0 0.0
    %2055 = vmatprep.subr.mxu0 0.0
    %2056 = vmatpush1.msra.mxu0 0.0
    %2057 = vmatprep.subr.mxu0 0.0
    %2058 = vmatpush1.msra.mxu0 0.0
    %2059 = vmatprep.subr.mxu0 0.0
    %2060 = vmatpush1.msra.mxu0 0.0
    %2061 = vmatprep.subr.mxu0 0.0
    %2062 = vmatpush1.msra.mxu0 0.0
    %2063 = vmatprep.subr.mxu0 0.0
    %2064 = vmatpush1.msra.mxu0 0.0
    %2065 = vmatprep.subr.mxu0 0.0
    %2066 = vmatpush1.msra.mxu0 0.0
    %2067 = vmatprep.subr.mxu0 0.0
    %2068 = vmatpush1.msra.mxu0 0.0
    %2069 = vmatprep.subr.mxu0 0.0
    %2070 = vmatpush1.msra.mxu0 0.0
    %2071 = vmatprep.subr.mxu0 0.0
    %2072 = vmatpush1.msra.mxu0 0.0
    %2073 = vmatprep.subr.mxu0 0.0
    %2074 = vmatpush1.msra.mxu0 0.0
    %2075 = vmatprep.subr.mxu0 0.0
    %2076 = vmatpush1.msra.mxu0 0.0
    %2077 = vmatprep.subr.mxu0 0.0
    %2078 = vmatpush1.msra.mxu0 0.0
    %2079 = vmatprep.subr.mxu0 0.0
    %2080 = vmatpush1.msra.mxu0 0.0
    %2081 = vmatprep.subr.mxu0 0.0
    %2082 = vmatpush1.msra.mxu0 0.0
    %2083 = vmatprep.subr.mxu0 0.0
    %2084 = vmatpush1.msra.mxu0 0.0
    %2085 = vmatprep.subr.mxu0 0.0
    %2086 = vmatpush1.msra.mxu0 0.0
    %2087 = vmatprep.subr.mxu0 0.0
    %2088 = vmatpush1.msra.mxu0 0.0
    %2089 = vmatprep.subr.mxu0 0.0
    %2090 = vmatpush1.msra.mxu0 0.0
    %2091 = vmatprep.subr.mxu0 0.0
    %2092 = vmatpush1.msra.mxu0 0.0
    %2093 = vmatprep.subr.mxu0 0.0
    %2094 = vmatpush1.msra.mxu0 0.0
    %2095 = vmatprep.subr.mxu0 0.0
    %2096 = vmatpush1.msra.mxu0 0.0
    %2097 = vmatprep.subr.mxu0 0.0
    %2098 = vmatpush1.msra.mxu0 0.0
    %2099 = vmatprep.subr.mxu0 0.0
    %2100 = vmatpush1.msra.mxu0 0.0
    %2101 = vmatprep.subr.mxu0 0.0
    %2102 = vmatpush1.msra.mxu0 0.0
    %2103 = vmatprep.subr.mxu0 0.0
    %2104 = vmatpush1.msra.mxu0 0.0
    %2105 = vmatprep.subr.mxu0 0.0
    %2106 = vmatpush1.msra.mxu0 0.0
    %2107 = vmatprep.mubr.f32.mxu0 0.0
    %2108 = vmatmul.mubr.f32.gmra.mrb[0].mxu0 %v2035
    %v2109 = vpop.f32.mrb[0].mxu0
    %v2110 = vadd.f32 %v2032, %v2109
    %v2111 = vpop.f32.mrb[0].mxu0
    %2112 = vmatprep.mubr.f32.mxu0 0.0
    %2113 = vmatmul.mubr.f32.gmra.mrb[0].mxu0 %v2038
    %v2114 = vpop.f32.mrb[0].mxu0
    %v2115 = vadd.f32 %v2032, %v2114
    %v2116 = vpop.f32.mrb[0].mxu0
    %2117 = vmatprep.mubr.f32.mxu0 0.0
    %2118 = vmatmul.mubr.f32.gmra.mrb[0].mxu0 %v2041
    %v2119 = vpop.f32.mrb[0].mxu0
    %v2120 = vadd.f32 %v2032, %v2119
    %v2121 = vpop.f32.mrb[0].mxu0
    %2122 = vdwg.mxu0
    %v2124 = vsel %vm434, %v2015, 0
    %v2127 = vsel %vm434, %v2110, 0
    %v2130 = vsel %vm434, %v2115, 0
    %2132 = vmatprep.subr.mxu0 0.0
    %2133 = vmatpush1.xpose.msra.mxu0 %v2127
    %2134 = vmatprep.subr.mxu0 0.0
    %2135 = vmatpush1.xpose.msra.mxu0 %v2130
    %2136 = vmatprep.subr.mxu0 0.0
    %2137 = vmatpush1.xpose.msra.mxu0 0.0
    %2138 = vmatprep.subr.mxu0 0.0
    %2139 = vmatpush1.xpose.msra.mxu0 0.0
    %2140 = vmatprep.subr.mxu0 0.0
    %2141 = vmatpush1.xpose.msra.mxu0 0.0
    %2142 = vmatprep.subr.mxu0 0.0
    %2143 = vmatpush1.xpose.msra.mxu0 0.0
    %2144 = vmatprep.subr.mxu0 0.0
    %2145 = vmatpush1.xpose.msra.mxu0 0.0
    %2146 = vmatprep.subr.mxu0 0.0
    %2147 = vmatpush1.xpose.msra.mxu0 0.0
    %2148 = vmatprep.subr.mxu0 0.0
    %2149 = vmatpush1.xpose.msra.mxu0 0.0
    %2150 = vmatprep.subr.mxu0 0.0
    %2151 = vmatpush1.xpose.msra.mxu0 0.0
    %2152 = vmatprep.subr.mxu0 0.0
    %2153 = vmatpush1.xpose.msra.mxu0 0.0
    %2154 = vmatprep.subr.mxu0 0.0
    %2155 = vmatpush1.xpose.msra.mxu0 0.0
    %2156 = vmatprep.subr.mxu0 0.0
    %2157 = vmatpush1.xpose.msra.mxu0 0.0
    %2158 = vmatprep.subr.mxu0 0.0
    %2159 = vmatpush1.xpose.msra.mxu0 0.0
    %2160 = vmatprep.subr.mxu0 0.0
    %2161 = vmatpush1.xpose.msra.mxu0 0.0
    %2162 = vmatprep.subr.mxu0 0.0
    %2163 = vmatpush1.xpose.msra.mxu0 0.0
    %2164 = vmatprep.subr.mxu0 0.0
    %2165 = vmatpush1.xpose.msra.mxu0 0.0
    %2166 = vmatprep.subr.mxu0 0.0
    %2167 = vmatpush1.xpose.msra.mxu0 0.0
    %2168 = vmatprep.subr.mxu0 0.0
    %2169 = vmatpush1.xpose.msra.mxu0 0.0
    %2170 = vmatprep.subr.mxu0 0.0
    %2171 = vmatpush1.xpose.msra.mxu0 0.0
    %2172 = vmatprep.subr.mxu0 0.0
    %2173 = vmatpush1.xpose.msra.mxu0 0.0
    %2174 = vmatprep.subr.mxu0 0.0
    %2175 = vmatpush1.xpose.msra.mxu0 0.0
    %2176 = vmatprep.subr.mxu0 0.0
    %2177 = vmatpush1.xpose.msra.mxu0 0.0
    %2178 = vmatprep.subr.mxu0 0.0
    %2179 = vmatpush1.xpose.msra.mxu0 0.0
    %2180 = vmatprep.subr.mxu0 0.0
    %2181 = vmatpush1.xpose.msra.mxu0 0.0
    %2182 = vmatprep.subr.mxu0 0.0
    %2183 = vmatpush1.xpose.msra.mxu0 0.0
    %2184 = vmatprep.subr.mxu0 0.0
    %2185 = vmatpush1.xpose.msra.mxu0 0.0
    %2186 = vmatprep.subr.mxu0 0.0
    %2187 = vmatpush1.xpose.msra.mxu0 0.0
    %2188 = vmatprep.subr.mxu0 0.0
    %2189 = vmatpush1.xpose.msra.mxu0 0.0
    %2190 = vmatprep.subr.mxu0 0.0
    %2191 = vmatpush1.xpose.msra.mxu0 0.0
    %2192 = vmatprep.subr.mxu0 0.0
    %2193 = vmatpush1.xpose.msra.mxu0 0.0
    %2194 = vmatprep.subr.mxu0 0.0
    %2195 = vmatpush1.xpose.msra.mxu0 0.0
    %2196 = vmatprep.mubr.f32.mxu0 0.0
    %2197 = vmatmul.mubr.f32.gmra.mrb[0].mxu0 %v2124
    %v2198 = vpop.f32.mrb[0].mxu0
    %v2199 = vadd.f32 0.0, %v2198
    %v2200 = vpop.f32.mrb[0].mxu0
    %2201 = vdwg.mxu0
    %v2202 = vmul.f32 %v2199, 0.35355338
    %v2204 = vlaneseq
    %v2205 = vshrl.u32 %v2204, 7
    %v2206 = vsub.s32 0, %v2205
    %v2207 = vrot.slane %v334, %v2206
    %v2209 = vadd.f32 %v2202, %v2207
    %vm2210 = vcmask 80896
    %v2211 = vsel %vm2210, %v2209, -inf
    %2212 = vmax.xlane.f32.xlu0 %v2211
    %v2213 = vpop.xlane.xlu0 %2212
    %v2214 = vsub.f32 %v2209, %v2213
    %v2215 = vmul.f32 %v2214, 1.442695
    %v2216 = vpow.pop %v2215
    %v2217 = vsel %vm2210, %v2216, 0.0
    %2218 = vadd.xlane.f32.xlu0 %v2217
    %v2219 = vpop.xlane.xlu0 %2218
    %v2220 = vrcp.pop %v2219
    %v2221 = vmul.f32 %v2216, %v2220
    %2222 = vrot.lane.b32.xlu0 %v2110, 96
    %v2223 = vpop.permute.xlu0 %2222
    %2224 = vrot.lane.b32.xlu0 %v2115, 96
    %v2225 = vpop.permute.xlu0 %2224
    %v2228 = vsel %vm2210, %v2221, 0
    %vm2230 = vcmask 1041408
    %v2231 = vsel %vm2230, %v2225, 0
    %2233 = vmatprep.subr.mxu0 0.0
    %2234 = vmatpush1.msra.mxu0 %v2223
    %2235 = vmatprep.subr.mxu0 0.0
    %2236 = vmatpush1.msra.mxu0 %v2231
    %2237 = vmatprep.subr.mxu0 0.0
    %2238 = vmatpush1.msra.mxu0 0.0
    %2239 = vmatprep.subr.mxu0 0.0
    %2240 = vmatpush1.msra.mxu0 0.0
    %2241 = vmatprep.subr.mxu0 0.0
    %2242 = vmatpush1.msra.mxu0 0.0
    %2243 = vmatprep.subr.mxu0 0.0
    %2244 = vmatpush1.msra.mxu0 0.0
    %2245 = vmatprep.subr.mxu0 0.0
    %2246 = vmatpush1.msra.mxu0 0.0
    %2247 = vmatprep.subr.mxu0 0.0
    %2248 = vmatpush1.msra.mxu0 0.0
    %2249 = vmatprep.subr.mxu0 0.0
    %2250 = vmatpush1.msra.mxu0 0.0
    %2251 = vmatprep.subr.mxu0 0.0
    %2252 = vmatpush1.msra.mxu0 0.0
    %2253 = vmatprep.subr.mxu0 0.0
    %2254 = vmatpush1.msra.mxu0 0.0
    %2255 = vmatprep.subr.mxu0 0.0
    %2256 = vmatpush1.msra.mxu0 0.0
    %2257 = vmatprep.subr.mxu0 0.0
    %2258 = vmatpush1.msra.mxu0 0.0
    %2259 = vmatprep.subr.mxu0 0.0
    %2260 = vmatpush1.msra.mxu0 0.0
    %2261 = vmatprep.subr.mxu0 0.0
    %2262 = vmatpush1.msra.mxu0 0.0
    %2263 = vmatprep.subr.mxu0 0.0
    %2264 = vmatpush1.msra.mxu0 0.0
    %2265 = vmatprep.subr.mxu0 0.0
    %2266 = vmatpush1.msra.mxu0 0.0
    %2267 = vmatprep.subr.mxu0 0.0
    %2268 = vmatpush1.msra.mxu0 0.0
    %2269 = vmatprep.subr.mxu0 0.0
    %2270 = vmatpush1.msra.mxu0 0.0
    %2271 = vmatprep.subr.mxu0 0.0
    %2272 = vmatpush1.msra.mxu0 0.0
    %2273 = vmatprep.subr.mxu0 0.0
    %2274 = vmatpush1.msra.mxu0 0.0
    %2275 = vmatprep.subr.mxu0 0.0
    %2276 = vmatpush1.msra.mxu0 0.0
    %2277 = vmatprep.subr.mxu0 0.0
    %2278 = vmatpush1.msra.mxu0 0.0
    %2279 = vmatprep.subr.mxu0 0.0
    %2280 = vmatpush1.msra.mxu0 0.0
    %2281 = vmatprep.subr.mxu0 0.0
    %2282 = vmatpush1.msra.mxu0 0.0
    %2283 = vmatprep.subr.mxu0 0.0
    %2284 = vmatpush1.msra.mxu0 0.0
    %2285 = vmatprep.subr.mxu0 0.0
    %2286 = vmatpush1.msra.mxu0 0.0
    %2287 = vmatprep.subr.mxu0 0.0
    %2288 = vmatpush1.msra.mxu0 0.0
    %2289 = vmatprep.subr.mxu0 0.0
    %2290 = vmatpush1.msra.mxu0 0.0
    %2291 = vmatprep.subr.mxu0 0.0
    %2292 = vmatpush1.msra.mxu0 0.0
    %2293 = vmatprep.subr.mxu0 0.0
    %2294 = vmatpush1.msra.mxu0 0.0
    %2295 = vmatprep.subr.mxu0 0.0
    %2296 = vmatpush1.msra.mxu0 0.0
    %2297 = vmatprep.mubr.f32.mxu0 0.0
    %2298 = vmatmul.mubr.f32.gmra.mrb[0].mxu0 %v2228
    %v2299 = vpop.f32.mrb[0].mxu0
    %v2300 = vadd.f32 0.0, %v2299
    %v2301 = vpop.f32.mrb[0].mxu0
    %2302 = vdwg.mxu0
    %2303 = vrot.lane.b32.xlu0 %v2015, 120
    %v2304 = vpop.permute.xlu0 %2303
    %2305 = vrot.lane.b32.xlu0 %v2110, 120
    %v2306 = vpop.permute.xlu0 %2305
    %2307 = vrot.lane.b32.xlu0 %v2115, 120
    %v2308 = vpop.permute.xlu0 %2307
    %v2309 = vsel %vm434, %v2304, 0
    %v2311 = vsel %vm434, %v2306, 0
    %v2313 = vsel %vm434, %v2308, 0
    %2315 = vmatprep.subr.mxu0 0.0
    %2316 = vmatpush1.xpose.msra.mxu0 %v2311
    %2317 = vmatprep.subr.mxu0 0.0
    %2318 = vmatpush1.xpose.msra.mxu0 %v2313
    %2319 = vmatprep.subr.mxu0 0.0
    %2320 = vmatpush1.xpose.msra.mxu0 0.0
    %2321 = vmatprep.subr.mxu0 0.0
    %2322 = vmatpush1.xpose.msra.mxu0 0.0
    %2323 = vmatprep.subr.mxu0 0.0
    %2324 = vmatpush1.xpose.msra.mxu0 0.0
    %2325 = vmatprep.subr.mxu0 0.0
    %2326 = vmatpush1.xpose.msra.mxu0 0.0
    %2327 = vmatprep.subr.mxu0 0.0
    %2328 = vmatpush1.xpose.msra.mxu0 0.0
    %2329 = vmatprep.subr.mxu0 0.0
    %2330 = vmatpush1.xpose.msra.mxu0 0.0
    %2331 = vmatprep.subr.mxu0 0.0
    %2332 = vmatpush1.xpose.msra.mxu0 0.0
    %2333 = vmatprep.subr.mxu0 0.0
    %2334 = vmatpush1.xpose.msra.mxu0 0.0
    %2335 = vmatprep.subr.mxu0 0.0
    %2336 = vmatpush1.xpose.msra.mxu0 0.0
    %2337 = vmatprep.subr.mxu0 0.0
    %2338 = vmatpush1.xpose.msra.mxu0 0.0
    %2339 = vmatprep.subr.mxu0 0.0
    %2340 = vmatpush1.xpose.msra.mxu0 0.0
    %2341 = vmatprep.subr.mxu0 0.0
    %2342 = vmatpush1.xpose.msra.mxu0 0.0
    %2343 = vmatprep.subr.mxu0 0.0
    %2344 = vmatpush1.xpose.msra.mxu0 0.0
    %2345 = vmatprep.subr.mxu0 0.0
    %2346 = vmatpush1.xpose.msra.mxu0 0.0
    %2347 = vmatprep.subr.mxu0 0.0
    %2348 = vmatpush1.xpose.msra.mxu0 0.0
    %2349 = vmatprep.subr.mxu0 0.0
    %2350 = vmatpush1.xpose.msra.mxu0 0.0
    %2351 = vmatprep.subr.mxu0 0.0
    %2352 = vmatpush1.xpose.msra.mxu0 0.0
    %2353 = vmatprep.subr.mxu0 0.0
    %2354 = vmatpush1.xpose.msra.mxu0 0.0
    %2355 = vmatprep.subr.mxu0 0.0
    %2356 = vmatpush1.xpose.msra.mxu0 0.0
    %2357 = vmatprep.subr.mxu0 0.0
    %2358 = vmatpush1.xpose.msra.mxu0 0.0
    %2359 = vmatprep.subr.mxu0 0.0
    %2360 = vmatpush1.xpose.msra.mxu0 0.0
    %2361 = vmatprep.subr.mxu0 0.0
    %2362 = vmatpush1.xpose.msra.mxu0 0.0
    %2363 = vmatprep.subr.mxu0 0.0
    %2364 = vmatpush1.xpose.msra.mxu0 0.0
    %2365 = vmatprep.subr.mxu0 0.0
    %2366 = vmatpush1.xpose.msra.mxu0 0.0
    %2367 = vmatprep.subr.mxu0 0.0
    %2368 = vmatpush1.xpose.msra.mxu0 0.0
    %2369 = vmatprep.subr.mxu0 0.0
    %2370 = vmatpush1.xpose.msra.mxu0 0.0
    %2371 = vmatprep.subr.mxu0 0.0
    %2372 = vmatpush1.xpose.msra.mxu0 0.0
    %2373 = vmatprep.subr.mxu0 0.0
    %2374 = vmatpush1.xpose.msra.mxu0 0.0
    %2375 = vmatprep.subr.mxu0 0.0
    %2376 = vmatpush1.xpose.msra.mxu0 0.0
    %2377 = vmatprep.subr.mxu0 0.0
    %2378 = vmatpush1.xpose.msra.mxu0 0.0
    %2379 = vmatprep.mubr.f32.mxu0 0.0
    %2380 = vmatmul.mubr.f32.gmra.mrb[0].mxu0 %v2309
    %v2381 = vpop.f32.mrb[0].mxu0
    %v2382 = vadd.f32 0.0, %v2381
    %v2383 = vpop.f32.mrb[0].mxu0
    %2384 = vdwg.mxu0
    %v2385 = vmul.f32 %v2382, 0.35355338
    %v2386 = vadd.f32 %v2385, %v2207
    %v2387 = vsel %vm2210, %v2386, -inf
    %2388 = vmax.xlane.f32.xlu0 %v2387
    %v2389 = vpop.xlane.xlu0 %2388
    %v2390 = vsub.f32 %v2386, %v2389
    %v2391 = vmul.f32 %v2390, 1.442695
    %v2392 = vpow.pop %v2391
    %v2393 = vsel %vm2210, %v2392, 0.0
    %2394 = vadd.xlane.f32.xlu0 %v2393
    %v2395 = vpop.xlane.xlu0 %2394
    %v2396 = vrcp.pop %v2395
    %v2397 = vmul.f32 %v2392, %v2396
    %2398 = vrot.lane.b32.xlu0 %v2110, 88
    %v2399 = vpop.permute.xlu0 %2398
    %2400 = vrot.lane.b32.xlu0 %v2115, 88
    %v2401 = vpop.permute.xlu0 %2400
    %v2404 = vsel %vm2210, %v2397, 0
    %v2406 = vsel %vm2230, %v2401, 0
    %2408 = vmatprep.subr.mxu0 0.0
    %2409 = vmatpush1.msra.mxu0 %v2399
    %2410 = vmatprep.subr.mxu0 0.0
    %2411 = vmatpush1.msra.mxu0 %v2406
    %2412 = vmatprep.subr.mxu0 0.0
    %2413 = vmatpush1.msra.mxu0 0.0
    %2414 = vmatprep.subr.mxu0 0.0
    %2415 = vmatpush1.msra.mxu0 0.0
    %2416 = vmatprep.subr.mxu0 0.0
    %2417 = vmatpush1.msra.mxu0 0.0
    %2418 = vmatprep.subr.mxu0 0.0
    %2419 = vmatpush1.msra.mxu0 0.0
    %2420 = vmatprep.subr.mxu0 0.0
    %2421 = vmatpush1.msra.mxu0 0.0
    %2422 = vmatprep.subr.mxu0 0.0
    %2423 = vmatpush1.msra.mxu0 0.0
    %2424 = vmatprep.subr.mxu0 0.0
    %2425 = vmatpush1.msra.mxu0 0.0
    %2426 = vmatprep.subr.mxu0 0.0
    %2427 = vmatpush1.msra.mxu0 0.0
    %2428 = vmatprep.subr.mxu0 0.0
    %2429 = vmatpush1.msra.mxu0 0.0
    %2430 = vmatprep.subr.mxu0 0.0
    %2431 = vmatpush1.msra.mxu0 0.0
    %2432 = vmatprep.subr.mxu0 0.0
    %2433 = vmatpush1.msra.mxu0 0.0
    %2434 = vmatprep.subr.mxu0 0.0
    %2435 = vmatpush1.msra.mxu0 0.0
    %2436 = vmatprep.subr.mxu0 0.0
    %2437 = vmatpush1.msra.mxu0 0.0
    %2438 = vmatprep.subr.mxu0 0.0
    %2439 = vmatpush1.msra.mxu0 0.0
    %2440 = vmatprep.subr.mxu0 0.0
    %2441 = vmatpush1.msra.mxu0 0.0
    %2442 = vmatprep.subr.mxu0 0.0
    %2443 = vmatpush1.msra.mxu0 0.0
    %2444 = vmatprep.subr.mxu0 0.0
    %2445 = vmatpush1.msra.mxu0 0.0
    %2446 = vmatprep.subr.mxu0 0.0
    %2447 = vmatpush1.msra.mxu0 0.0
    %2448 = vmatprep.subr.mxu0 0.0
    %2449 = vmatpush1.msra.mxu0 0.0
    %2450 = vmatprep.subr.mxu0 0.0
    %2451 = vmatpush1.msra.mxu0 0.0
    %2452 = vmatprep.subr.mxu0 0.0
    %2453 = vmatpush1.msra.mxu0 0.0
    %2454 = vmatprep.subr.mxu0 0.0
    %2455 = vmatpush1.msra.mxu0 0.0
    %2456 = vmatprep.subr.mxu0 0.0
    %2457 = vmatpush1.msra.mxu0 0.0
    %2458 = vmatprep.subr.mxu0 0.0
    %2459 = vmatpush1.msra.mxu0 0.0
    %2460 = vmatprep.subr.mxu0 0.0
    %2461 = vmatpush1.msra.mxu0 0.0
    %2462 = vmatprep.subr.mxu0 0.0
    %2463 = vmatpush1.msra.mxu0 0.0
    %2464 = vmatprep.subr.mxu0 0.0
    %2465 = vmatpush1.msra.mxu0 0.0
    %2466 = vmatprep.subr.mxu0 0.0
    %2467 = vmatpush1.msra.mxu0 0.0
    %2468 = vmatprep.subr.mxu0 0.0
    %2469 = vmatpush1.msra.mxu0 0.0
    %2470 = vmatprep.subr.mxu0 0.0
    %2471 = vmatpush1.msra.mxu0 0.0
    %2472 = vmatprep.mubr.f32.mxu0 0.0
    %2473 = vmatmul.mubr.f32.gmra.mrb[0].mxu0 %v2404
    %v2474 = vpop.f32.mrb[0].mxu0
    %v2475 = vadd.f32 0.0, %v2474
    %v2476 = vpop.f32.mrb[0].mxu0
    %2477 = vdwg.mxu0
    %2478 = vrot.lane.b32.xlu0 %v2015, 112
    %v2479 = vpop.permute.xlu0 %2478
    %2480 = vrot.lane.b32.xlu0 %v2110, 112
    %v2481 = vpop.permute.xlu0 %2480
    %2482 = vrot.lane.b32.xlu0 %v2115, 112
    %v2483 = vpop.permute.xlu0 %2482
    %v2484 = vsel %vm434, %v2479, 0
    %v2486 = vsel %vm434, %v2481, 0
    %v2488 = vsel %vm434, %v2483, 0
    %2490 = vmatprep.subr.mxu0 0.0
    %2491 = vmatpush1.xpose.msra.mxu0 %v2486
    %2492 = vmatprep.subr.mxu0 0.0
    %2493 = vmatpush1.xpose.msra.mxu0 %v2488
    %2494 = vmatprep.subr.mxu0 0.0
    %2495 = vmatpush1.xpose.msra.mxu0 0.0
    %2496 = vmatprep.subr.mxu0 0.0
    %2497 = vmatpush1.xpose.msra.mxu0 0.0
    %2498 = vmatprep.subr.mxu0 0.0
    %2499 = vmatpush1.xpose.msra.mxu0 0.0
    %2500 = vmatprep.subr.mxu0 0.0
    %2501 = vmatpush1.xpose.msra.mxu0 0.0
    %2502 = vmatprep.subr.mxu0 0.0
    %2503 = vmatpush1.xpose.msra.mxu0 0.0
    %2504 = vmatprep.subr.mxu0 0.0
    %2505 = vmatpush1.xpose.msra.mxu0 0.0
    %2506 = vmatprep.subr.mxu0 0.0
    %2507 = vmatpush1.xpose.msra.mxu0 0.0
    %2508 = vmatprep.subr.mxu0 0.0
    %2509 = vmatpush1.xpose.msra.mxu0 0.0
    %2510 = vmatprep.subr.mxu0 0.0
    %2511 = vmatpush1.xpose.msra.mxu0 0.0
    %2512 = vmatprep.subr.mxu0 0.0
    %2513 = vmatpush1.xpose.msra.mxu0 0.0
    %2514 = vmatprep.subr.mxu0 0.0
    %2515 = vmatpush1.xpose.msra.mxu0 0.0
    %2516 = vmatprep.subr.mxu0 0.0
    %2517 = vmatpush1.xpose.msra.mxu0 0.0
    %2518 = vmatprep.subr.mxu0 0.0
    %2519 = vmatpush1.xpose.msra.mxu0 0.0
    %2520 = vmatprep.subr.mxu0 0.0
    %2521 = vmatpush1.xpose.msra.mxu0 0.0
    %2522 = vmatprep.subr.mxu0 0.0
    %2523 = vmatpush1.xpose.msra.mxu0 0.0
    %2524 = vmatprep.subr.mxu0 0.0
    %2525 = vmatpush1.xpose.msra.mxu0 0.0
    %2526 = vmatprep.subr.mxu0 0.0
    %2527 = vmatpush1.xpose.msra.mxu0 0.0
    %2528 = vmatprep.subr.mxu0 0.0
    %2529 = vmatpush1.xpose.msra.mxu0 0.0
    %2530 = vmatprep.subr.mxu0 0.0
    %2531 = vmatpush1.xpose.msra.mxu0 0.0
    %2532 = vmatprep.subr.mxu0 0.0
    %2533 = vmatpush1.xpose.msra.mxu0 0.0
    %2534 = vmatprep.subr.mxu0 0.0
    %2535 = vmatpush1.xpose.msra.mxu0 0.0
    %2536 = vmatprep.subr.mxu0 0.0
    %2537 = vmatpush1.xpose.msra.mxu0 0.0
    %2538 = vmatprep.subr.mxu0 0.0
    %2539 = vmatpush1.xpose.msra.mxu0 0.0
    %2540 = vmatprep.subr.mxu0 0.0
    %2541 = vmatpush1.xpose.msra.mxu0 0.0
    %2542 = vmatprep.subr.mxu0 0.0
    %2543 = vmatpush1.xpose.msra.mxu0 0.0
    %2544 = vmatprep.subr.mxu0 0.0
    %2545 = vmatpush1.xpose.msra.mxu0 0.0
    %2546 = vmatprep.subr.mxu0 0.0
    %2547 = vmatpush1.xpose.msra.mxu0 0.0
    %2548 = vmatprep.subr.mxu0 0.0
    %2549 = vmatpush1.xpose.msra.mxu0 0.0
    %2550 = vmatprep.subr.mxu0 0.0
    %2551 = vmatpush1.xpose.msra.mxu0 0.0
    %2552 = vmatprep.subr.mxu0 0.0
    %2553 = vmatpush1.xpose.msra.mxu0 0.0
    %2554 = vmatprep.mubr.f32.mxu0 0.0
    %2555 = vmatmul.mubr.f32.gmra.mrb[0].mxu0 %v2484
    %v2556 = vpop.f32.mrb[0].mxu0
    %v2557 = vadd.f32 0.0, %v2556
    %v2558 = vpop.f32.mrb[0].mxu0
    %2559 = vdwg.mxu0
    %v2560 = vmul.f32 %v2557, 0.35355338
    %v2561 = vadd.f32 %v2560, %v2207
    %v2562 = vsel %vm2210, %v2561, -inf
    %2563 = vmax.xlane.f32.xlu0 %v2562
    %v2564 = vpop.xlane.xlu0 %2563
    %v2565 = vsub.f32 %v2561, %v2564
    %v2566 = vmul.f32 %v2565, 1.442695
    %v2567 = vpow.pop %v2566
    %v2568 = vsel %vm2210, %v2567, 0.0
    %2569 = vadd.xlane.f32.xlu0 %v2568
    %v2570 = vpop.xlane.xlu0 %2569
    %v2571 = vrcp.pop %v2570
    %v2572 = vmul.f32 %v2567, %v2571
    %2573 = vrot.lane.b32.xlu0 %v2110, 80
    %v2574 = vpop.permute.xlu0 %2573
    %2575 = vrot.lane.b32.xlu0 %v2115, 80
    %v2576 = vpop.permute.xlu0 %2575
    %v2579 = vsel %vm2210, %v2572, 0
    %v2581 = vsel %vm2230, %v2576, 0
    %2583 = vmatprep.subr.mxu0 0.0
    %2584 = vmatpush1.msra.mxu0 %v2574
    %2585 = vmatprep.subr.mxu0 0.0
    %2586 = vmatpush1.msra.mxu0 %v2581
    %2587 = vmatprep.subr.mxu0 0.0
    %2588 = vmatpush1.msra.mxu0 0.0
    %2589 = vmatprep.subr.mxu0 0.0
    %2590 = vmatpush1.msra.mxu0 0.0
    %2591 = vmatprep.subr.mxu0 0.0
    %2592 = vmatpush1.msra.mxu0 0.0
    %2593 = vmatprep.subr.mxu0 0.0
    %2594 = vmatpush1.msra.mxu0 0.0
    %2595 = vmatprep.subr.mxu0 0.0
    %2596 = vmatpush1.msra.mxu0 0.0
    %2597 = vmatprep.subr.mxu0 0.0
    %2598 = vmatpush1.msra.mxu0 0.0
    %2599 = vmatprep.subr.mxu0 0.0
    %2600 = vmatpush1.msra.mxu0 0.0
    %2601 = vmatprep.subr.mxu0 0.0
    %2602 = vmatpush1.msra.mxu0 0.0
    %2603 = vmatprep.subr.mxu0 0.0
    %2604 = vmatpush1.msra.mxu0 0.0
    %2605 = vmatprep.subr.mxu0 0.0
    %2606 = vmatpush1.msra.mxu0 0.0
    %2607 = vmatprep.subr.mxu0 0.0
    %2608 = vmatpush1.msra.mxu0 0.0
    %2609 = vmatprep.subr.mxu0 0.0
    %2610 = vmatpush1.msra.mxu0 0.0
    %2611 = vmatprep.subr.mxu0 0.0
    %2612 = vmatpush1.msra.mxu0 0.0
    %2613 = vmatprep.subr.mxu0 0.0
    %2614 = vmatpush1.msra.mxu0 0.0
    %2615 = vmatprep.subr.mxu0 0.0
    %2616 = vmatpush1.msra.mxu0 0.0
    %2617 = vmatprep.subr.mxu0 0.0
    %2618 = vmatpush1.msra.mxu0 0.0
    %2619 = vmatprep.subr.mxu0 0.0
    %2620 = vmatpush1.msra.mxu0 0.0
    %2621 = vmatprep.subr.mxu0 0.0
    %2622 = vmatpush1.msra.mxu0 0.0
    %2623 = vmatprep.subr.mxu0 0.0
    %2624 = vmatpush1.msra.mxu0 0.0
    %2625 = vmatprep.subr.mxu0 0.0
    %2626 = vmatpush1.msra.mxu0 0.0
    %2627 = vmatprep.subr.mxu0 0.0
    %2628 = vmatpush1.msra.mxu0 0.0
    %2629 = vmatprep.subr.mxu0 0.0
    %2630 = vmatpush1.msra.mxu0 0.0
    %2631 = vmatprep.subr.mxu0 0.0
    %2632 = vmatpush1.msra.mxu0 0.0
    %2633 = vmatprep.subr.mxu0 0.0
    %2634 = vmatpush1.msra.mxu0 0.0
    %2635 = vmatprep.subr.mxu0 0.0
    %2636 = vmatpush1.msra.mxu0 0.0
    %2637 = vmatprep.subr.mxu0 0.0
    %2638 = vmatpush1.msra.mxu0 0.0
    %2639 = vmatprep.subr.mxu0 0.0
    %2640 = vmatpush1.msra.mxu0 0.0
    %2641 = vmatprep.subr.mxu0 0.0
    %2642 = vmatpush1.msra.mxu0 0.0
    %2643 = vmatprep.subr.mxu0 0.0
    %2644 = vmatpush1.msra.mxu0 0.0
    %2645 = vmatprep.subr.mxu0 0.0
    %2646 = vmatpush1.msra.mxu0 0.0
    %2647 = vmatprep.mubr.f32.mxu0 0.0
    %2648 = vmatmul.mubr.f32.gmra.mrb[0].mxu0 %v2579
    %v2649 = vpop.f32.mrb[0].mxu0
    %v2650 = vadd.f32 0.0, %v2649
    %v2651 = vpop.f32.mrb[0].mxu0
    %2652 = vdwg.mxu0
    %2653 = vrot.lane.b32.xlu0 %v2015, 104
    %v2654 = vpop.permute.xlu0 %2653
    %2655 = vrot.lane.b32.xlu0 %v2110, 104
    %v2656 = vpop.permute.xlu0 %2655
    %2657 = vrot.lane.b32.xlu0 %v2115, 104
    %v2658 = vpop.permute.xlu0 %2657
    %v2659 = vsel %vm434, %v2654, 0
    %v2661 = vsel %vm434, %v2656, 0
    %v2663 = vsel %vm434, %v2658, 0
    %2665 = vmatprep.subr.mxu0 0.0
    %2666 = vmatpush1.xpose.msra.mxu0 %v2661
    %2667 = vmatprep.subr.mxu0 0.0
    %2668 = vmatpush1.xpose.msra.mxu0 %v2663
    %2669 = vmatprep.subr.mxu0 0.0
    %2670 = vmatpush1.xpose.msra.mxu0 0.0
    %2671 = vmatprep.subr.mxu0 0.0
    %2672 = vmatpush1.xpose.msra.mxu0 0.0
    %2673 = vmatprep.subr.mxu0 0.0
    %2674 = vmatpush1.xpose.msra.mxu0 0.0
    %2675 = vmatprep.subr.mxu0 0.0
    %2676 = vmatpush1.xpose.msra.mxu0 0.0
    %2677 = vmatprep.subr.mxu0 0.0
    %2678 = vmatpush1.xpose.msra.mxu0 0.0
    %2679 = vmatprep.subr.mxu0 0.0
    %2680 = vmatpush1.xpose.msra.mxu0 0.0
    %2681 = vmatprep.subr.mxu0 0.0
    %2682 = vmatpush1.xpose.msra.mxu0 0.0
    %2683 = vmatprep.subr.mxu0 0.0
    %2684 = vmatpush1.xpose.msra.mxu0 0.0
    %2685 = vmatprep.subr.mxu0 0.0
    %2686 = vmatpush1.xpose.msra.mxu0 0.0
    %2687 = vmatprep.subr.mxu0 0.0
    %2688 = vmatpush1.xpose.msra.mxu0 0.0
    %2689 = vmatprep.subr.mxu0 0.0
    %2690 = vmatpush1.xpose.msra.mxu0 0.0
    %2691 = vmatprep.subr.mxu0 0.0
    %2692 = vmatpush1.xpose.msra.mxu0 0.0
    %2693 = vmatprep.subr.mxu0 0.0
    %2694 = vmatpush1.xpose.msra.mxu0 0.0
    %2695 = vmatprep.subr.mxu0 0.0
    %2696 = vmatpush1.xpose.msra.mxu0 0.0
    %2697 = vmatprep.subr.mxu0 0.0
    %2698 = vmatpush1.xpose.msra.mxu0 0.0
    %2699 = vmatprep.subr.mxu0 0.0
    %2700 = vmatpush1.xpose.msra.mxu0 0.0
    %2701 = vmatprep.subr.mxu0 0.0
    %2702 = vmatpush1.xpose.msra.mxu0 0.0
    %2703 = vmatprep.subr.mxu0 0.0
    %2704 = vmatpush1.xpose.msra.mxu0 0.0
    %2705 = vmatprep.subr.mxu0 0.0
    %2706 = vmatpush1.xpose.msra.mxu0 0.0
    %2707 = vmatprep.subr.mxu0 0.0
    %2708 = vmatpush1.xpose.msra.mxu0 0.0
    %2709 = vmatprep.subr.mxu0 0.0
    %2710 = vmatpush1.xpose.msra.mxu0 0.0
    %2711 = vmatprep.subr.mxu0 0.0
    %2712 = vmatpush1.xpose.msra.mxu0 0.0
    %2713 = vmatprep.subr.mxu0 0.0
    %2714 = vmatpush1.xpose.msra.mxu0 0.0
    %2715 = vmatprep.subr.mxu0 0.0
    %2716 = vmatpush1.xpose.msra.mxu0 0.0
    %2717 = vmatprep.subr.mxu0 0.0
    %2718 = vmatpush1.xpose.msra.mxu0 0.0
    %2719 = vmatprep.subr.mxu0 0.0
    %2720 = vmatpush1.xpose.msra.mxu0 0.0
    %2721 = vmatprep.subr.mxu0 0.0
    %2722 = vmatpush1.xpose.msra.mxu0 0.0
    %2723 = vmatprep.subr.mxu0 0.0
    %2724 = vmatpush1.xpose.msra.mxu0 0.0
    %2725 = vmatprep.subr.mxu0 0.0
    %2726 = vmatpush1.xpose.msra.mxu0 0.0
    %2727 = vmatprep.subr.mxu0 0.0
    %2728 = vmatpush1.xpose.msra.mxu0 0.0
    %2729 = vmatprep.mubr.f32.mxu0 0.0
    %2730 = vmatmul.mubr.f32.gmra.mrb[0].mxu0 %v2659
    %v2731 = vpop.f32.mrb[0].mxu0
    %v2732 = vadd.f32 0.0, %v2731
    %v2733 = vpop.f32.mrb[0].mxu0
    %2734 = vdwg.mxu0
    %v2735 = vmul.f32 %v2732, 0.35355338
    %v2736 = vadd.f32 %v2735, %v2207
    %v2737 = vsel %vm2210, %v2736, -inf
    %2738 = vmax.xlane.f32.xlu0 %v2737
    %v2739 = vpop.xlane.xlu0 %2738
    %v2740 = vsub.f32 %v2736, %v2739
    %v2741 = vmul.f32 %v2740, 1.442695
    %v2742 = vpow.pop %v2741
    %v2743 = vsel %vm2210, %v2742, 0.0
    %2744 = vadd.xlane.f32.xlu0 %v2743
    %v2745 = vpop.xlane.xlu0 %2744
    %v2746 = vrcp.pop %v2745
    %v2747 = vmul.f32 %v2742, %v2746
    %2748 = vrot.lane.b32.xlu0 %v2110, 72
    %v2749 = vpop.permute.xlu0 %2748
    %2750 = vrot.lane.b32.xlu0 %v2115, 72
    %v2751 = vpop.permute.xlu0 %2750
    %v2754 = vsel %vm2210, %v2747, 0
    %v2756 = vsel %vm2230, %v2751, 0
    %2758 = vmatprep.subr.mxu0 0.0
    %2759 = vmatpush1.msra.mxu0 %v2749
    %2760 = vmatprep.subr.mxu0 0.0
    %2761 = vmatpush1.msra.mxu0 %v2756
    %2762 = vmatprep.subr.mxu0 0.0
    %2763 = vmatpush1.msra.mxu0 0.0
    %2764 = vmatprep.subr.mxu0 0.0
    %2765 = vmatpush1.msra.mxu0 0.0
    %2766 = vmatprep.subr.mxu0 0.0
    %2767 = vmatpush1.msra.mxu0 0.0
    %2768 = vmatprep.subr.mxu0 0.0
    %2769 = vmatpush1.msra.mxu0 0.0
    %2770 = vmatprep.subr.mxu0 0.0
    %2771 = vmatpush1.msra.mxu0 0.0
    %2772 = vmatprep.subr.mxu0 0.0
    %2773 = vmatpush1.msra.mxu0 0.0
    %2774 = vmatprep.subr.mxu0 0.0
    %2775 = vmatpush1.msra.mxu0 0.0
    %2776 = vmatprep.subr.mxu0 0.0
    %2777 = vmatpush1.msra.mxu0 0.0
    %2778 = vmatprep.subr.mxu0 0.0
    %2779 = vmatpush1.msra.mxu0 0.0
    %2780 = vmatprep.subr.mxu0 0.0
    %2781 = vmatpush1.msra.mxu0 0.0
    %2782 = vmatprep.subr.mxu0 0.0
    %2783 = vmatpush1.msra.mxu0 0.0
    %2784 = vmatprep.subr.mxu0 0.0
    %2785 = vmatpush1.msra.mxu0 0.0
    %2786 = vmatprep.subr.mxu0 0.0
    %2787 = vmatpush1.msra.mxu0 0.0
    %2788 = vmatprep.subr.mxu0 0.0
    %2789 = vmatpush1.msra.mxu0 0.0
    %2790 = vmatprep.subr.mxu0 0.0
    %2791 = vmatpush1.msra.mxu0 0.0
    %2792 = vmatprep.subr.mxu0 0.0
    %2793 = vmatpush1.msra.mxu0 0.0
    %2794 = vmatprep.subr.mxu0 0.0
    %2795 = vmatpush1.msra.mxu0 0.0
    %2796 = vmatprep.subr.mxu0 0.0
    %2797 = vmatpush1.msra.mxu0 0.0
    %2798 = vmatprep.subr.mxu0 0.0
    %2799 = vmatpush1.msra.mxu0 0.0
    %2800 = vmatprep.subr.mxu0 0.0
    %2801 = vmatpush1.msra.mxu0 0.0
    %2802 = vmatprep.subr.mxu0 0.0
    %2803 = vmatpush1.msra.mxu0 0.0
    %2804 = vmatprep.subr.mxu0 0.0
    %2805 = vmatpush1.msra.mxu0 0.0
    %2806 = vmatprep.subr.mxu0 0.0
    %2807 = vmatpush1.msra.mxu0 0.0
    %2808 = vmatprep.subr.mxu0 0.0
    %2809 = vmatpush1.msra.mxu0 0.0
    %2810 = vmatprep.subr.mxu0 0.0
    %2811 = vmatpush1.msra.mxu0 0.0
    %2812 = vmatprep.subr.mxu0 0.0
    %2813 = vmatpush1.msra.mxu0 0.0
    %2814 = vmatprep.subr.mxu0 0.0
    %2815 = vmatpush1.msra.mxu0 0.0
    %2816 = vmatprep.subr.mxu0 0.0
    %2817 = vmatpush1.msra.mxu0 0.0
    %2818 = vmatprep.subr.mxu0 0.0
    %2819 = vmatpush1.msra.mxu0 0.0
    %2820 = vmatprep.subr.mxu0 0.0
    %2821 = vmatpush1.msra.mxu0 0.0
    %2822 = vmatprep.mubr.f32.mxu0 0.0
    %2823 = vmatmul.mubr.f32.gmra.mrb[0].mxu0 %v2754
    %v2824 = vpop.f32.mrb[0].mxu0
    %v2825 = vadd.f32 0.0, %v2824
    %v2826 = vpop.f32.mrb[0].mxu0
    %2827 = vdwg.mxu0
    %2829 = vrot.lane.b32.xlu0 %v2475, 8
    %v2830 = vpop.permute.xlu0 %2829
    %2833 = vrot.lane.b32.xlu0 %v2650, 16
    %v2834 = vpop.permute.xlu0 %2833
    %2837 = vrot.lane.b32.xlu0 %v2825, 24
    %v2838 = vpop.permute.xlu0 %2837
    %v2840 = vsel %vm434, %v2300, %v2830
    %v2841 = vsel %vm1112, %v2840, %v2834
    %v2842 = vsel %vm1114, %v2841, %v2838
    %vm2844 = vcmask 1045504
    %v2845 = vrot.slane %v2115, 2
    %v2846 = vrot.slane %v2120, 2
    %v2847 = vsel %vm2844, %v2845, %v2846
    %v2849 = vsel %vm434, %v2020, 0
    %v2851 = vsel %vm434, %v2847, 0
    %v2853 = vsel %vm434, %v2846, 0
    %2855 = vmatprep.subr.mxu0 0.0
    %2856 = vmatpush1.xpose.msra.mxu0 %v2851
    %2857 = vmatprep.subr.mxu0 0.0
    %2858 = vmatpush1.xpose.msra.mxu0 %v2853
    %2859 = vmatprep.subr.mxu0 0.0
    %2860 = vmatpush1.xpose.msra.mxu0 0.0
    %2861 = vmatprep.subr.mxu0 0.0
    %2862 = vmatpush1.xpose.msra.mxu0 0.0
    %2863 = vmatprep.subr.mxu0 0.0
    %2864 = vmatpush1.xpose.msra.mxu0 0.0
    %2865 = vmatprep.subr.mxu0 0.0
    %2866 = vmatpush1.xpose.msra.mxu0 0.0
    %2867 = vmatprep.subr.mxu0 0.0
    %2868 = vmatpush1.xpose.msra.mxu0 0.0
    %2869 = vmatprep.subr.mxu0 0.0
    %2870 = vmatpush1.xpose.msra.mxu0 0.0
    %2871 = vmatprep.subr.mxu0 0.0
    %2872 = vmatpush1.xpose.msra.mxu0 0.0
    %2873 = vmatprep.subr.mxu0 0.0
    %2874 = vmatpush1.xpose.msra.mxu0 0.0
    %2875 = vmatprep.subr.mxu0 0.0
    %2876 = vmatpush1.xpose.msra.mxu0 0.0
    %2877 = vmatprep.subr.mxu0 0.0
    %2878 = vmatpush1.xpose.msra.mxu0 0.0
    %2879 = vmatprep.subr.mxu0 0.0
    %2880 = vmatpush1.xpose.msra.mxu0 0.0
    %2881 = vmatprep.subr.mxu0 0.0
    %2882 = vmatpush1.xpose.msra.mxu0 0.0
    %2883 = vmatprep.subr.mxu0 0.0
    %2884 = vmatpush1.xpose.msra.mxu0 0.0
    %2885 = vmatprep.subr.mxu0 0.0
    %2886 = vmatpush1.xpose.msra.mxu0 0.0
    %2887 = vmatprep.subr.mxu0 0.0
    %2888 = vmatpush1.xpose.msra.mxu0 0.0
    %2889 = vmatprep.subr.mxu0 0.0
    %2890 = vmatpush1.xpose.msra.mxu0 0.0
    %2891 = vmatprep.subr.mxu0 0.0
    %2892 = vmatpush1.xpose.msra.mxu0 0.0
    %2893 = vmatprep.subr.mxu0 0.0
    %2894 = vmatpush1.xpose.msra.mxu0 0.0
    %2895 = vmatprep.subr.mxu0 0.0
    %2896 = vmatpush1.xpose.msra.mxu0 0.0
    %2897 = vmatprep.subr.mxu0 0.0
    %2898 = vmatpush1.xpose.msra.mxu0 0.0
    %2899 = vmatprep.subr.mxu0 0.0
    %2900 = vmatpush1.xpose.msra.mxu0 0.0
    %2901 = vmatprep.subr.mxu0 0.0
    %2902 = vmatpush1.xpose.msra.mxu0 0.0
    %2903 = vmatprep.subr.mxu0 0.0
    %2904 = vmatpush1.xpose.msra.mxu0 0.0
    %2905 = vmatprep.subr.mxu0 0.0
    %2906 = vmatpush1.xpose.msra.mxu0 0.0
    %2907 = vmatprep.subr.mxu0 0.0
    %2908 = vmatpush1.xpose.msra.mxu0 0.0
    %2909 = vmatprep.subr.mxu0 0.0
    %2910 = vmatpush1.xpose.msra.mxu0 0.0
    %2911 = vmatprep.subr.mxu0 0.0
    %2912 = vmatpush1.xpose.msra.mxu0 0.0
    %2913 = vmatprep.subr.mxu0 0.0
    %2914 = vmatpush1.xpose.msra.mxu0 0.0
    %2915 = vmatprep.subr.mxu0 0.0
    %2916 = vmatpush1.xpose.msra.mxu0 0.0
    %2917 = vmatprep.subr.mxu0 0.0
    %2918 = vmatpush1.xpose.msra.mxu0 0.0
    %2919 = vmatprep.mubr.f32.mxu0 0.0
    %2920 = vmatmul.mubr.f32.gmra.mrb[0].mxu0 %v2849
    %v2921 = vpop.f32.mrb[0].mxu0
    %v2922 = vadd.f32 0.0, %v2921
    %v2923 = vpop.f32.mrb[0].mxu0
    %2924 = vdwg.mxu0
    %v2925 = vmul.f32 %v2922, 0.35355338
    %v2927 = vlaneseq
    %v2928 = vshrl.u32 %v2927, 7
    %v2929 = vsub.s32 0, %v2928
    %v2930 = vrot.slane %v335, %v2929
    %v2932 = vadd.f32 %v2925, %v2930
    %v2933 = vsel %vm2210, %v2932, -inf
    %2934 = vmax.xlane.f32.xlu0 %v2933
    %v2935 = vpop.xlane.xlu0 %2934
    %v2936 = vsub.f32 %v2932, %v2935
    %v2937 = vmul.f32 %v2936, 1.442695
    %v2938 = vpow.pop %v2937
    %v2939 = vsel %vm2210, %v2938, 0.0
    %2940 = vadd.xlane.f32.xlu0 %v2939
    %v2941 = vpop.xlane.xlu0 %2940
    %v2942 = vrcp.pop %v2941
    %v2943 = vmul.f32 %v2938, %v2942
    %2944 = vrot.lane.b32.xlu0 %v2847, 96
    %v2945 = vpop.permute.xlu0 %2944
    %2946 = vrot.lane.b32.xlu0 %v2846, 96
    %v2947 = vpop.permute.xlu0 %2946
    %v2950 = vsel %vm2210, %v2943, 0
    %v2952 = vsel %vm2230, %v2947, 0
    %2954 = vmatprep.subr.mxu0 0.0
    %2955 = vmatpush1.msra.mxu0 %v2945
    %2956 = vmatprep.subr.mxu0 0.0
    %2957 = vmatpush1.msra.mxu0 %v2952
    %2958 = vmatprep.subr.mxu0 0.0
    %2959 = vmatpush1.msra.mxu0 0.0
    %2960 = vmatprep.subr.mxu0 0.0
    %2961 = vmatpush1.msra.mxu0 0.0
    %2962 = vmatprep.subr.mxu0 0.0
    %2963 = vmatpush1.msra.mxu0 0.0
    %2964 = vmatprep.subr.mxu0 0.0
    %2965 = vmatpush1.msra.mxu0 0.0
    %2966 = vmatprep.subr.mxu0 0.0
    %2967 = vmatpush1.msra.mxu0 0.0
    %2968 = vmatprep.subr.mxu0 0.0
    %2969 = vmatpush1.msra.mxu0 0.0
    %2970 = vmatprep.subr.mxu0 0.0
    %2971 = vmatpush1.msra.mxu0 0.0
    %2972 = vmatprep.subr.mxu0 0.0
    %2973 = vmatpush1.msra.mxu0 0.0
    %2974 = vmatprep.subr.mxu0 0.0
    %2975 = vmatpush1.msra.mxu0 0.0
    %2976 = vmatprep.subr.mxu0 0.0
    %2977 = vmatpush1.msra.mxu0 0.0
    %2978 = vmatprep.subr.mxu0 0.0
    %2979 = vmatpush1.msra.mxu0 0.0
    %2980 = vmatprep.subr.mxu0 0.0
    %2981 = vmatpush1.msra.mxu0 0.0
    %2982 = vmatprep.subr.mxu0 0.0
    %2983 = vmatpush1.msra.mxu0 0.0
    %2984 = vmatprep.subr.mxu0 0.0
    %2985 = vmatpush1.msra.mxu0 0.0
    %2986 = vmatprep.subr.mxu0 0.0
    %2987 = vmatpush1.msra.mxu0 0.0
    %2988 = vmatprep.subr.mxu0 0.0
    %2989 = vmatpush1.msra.mxu0 0.0
    %2990 = vmatprep.subr.mxu0 0.0
    %2991 = vmatpush1.msra.mxu0 0.0
    %2992 = vmatprep.subr.mxu0 0.0
    %2993 = vmatpush1.msra.mxu0 0.0
    %2994 = vmatprep.subr.mxu0 0.0
    %2995 = vmatpush1.msra.mxu0 0.0
    %2996 = vmatprep.subr.mxu0 0.0
    %2997 = vmatpush1.msra.mxu0 0.0
    %2998 = vmatprep.subr.mxu0 0.0
    %2999 = vmatpush1.msra.mxu0 0.0
    %3000 = vmatprep.subr.mxu0 0.0
    %3001 = vmatpush1.msra.mxu0 0.0
    %3002 = vmatprep.subr.mxu0 0.0
    %3003 = vmatpush1.msra.mxu0 0.0
    %3004 = vmatprep.subr.mxu0 0.0
    %3005 = vmatpush1.msra.mxu0 0.0
    %3006 = vmatprep.subr.mxu0 0.0
    %3007 = vmatpush1.msra.mxu0 0.0
    %3008 = vmatprep.subr.mxu0 0.0
    %3009 = vmatpush1.msra.mxu0 0.0
    %3010 = vmatprep.subr.mxu0 0.0
    %3011 = vmatpush1.msra.mxu0 0.0
    %3012 = vmatprep.subr.mxu0 0.0
    %3013 = vmatpush1.msra.mxu0 0.0
    %3014 = vmatprep.subr.mxu0 0.0
    %3015 = vmatpush1.msra.mxu0 0.0
    %3016 = vmatprep.subr.mxu0 0.0
    %3017 = vmatpush1.msra.mxu0 0.0
    %3018 = vmatprep.mubr.f32.mxu0 0.0
    %3019 = vmatmul.mubr.f32.gmra.mrb[0].mxu0 %v2950
    %v3020 = vpop.f32.mrb[0].mxu0
    %v3021 = vadd.f32 0.0, %v3020
    %v3022 = vpop.f32.mrb[0].mxu0
    %3023 = vdwg.mxu0
    %3024 = vrot.lane.b32.xlu0 %v2020, 120
    %v3025 = vpop.permute.xlu0 %3024
    %3026 = vrot.lane.b32.xlu0 %v2847, 120
    %v3027 = vpop.permute.xlu0 %3026
    %3028 = vrot.lane.b32.xlu0 %v2846, 120
    %v3029 = vpop.permute.xlu0 %3028
    %v3030 = vsel %vm434, %v3025, 0
    %v3032 = vsel %vm434, %v3027, 0
    %v3034 = vsel %vm434, %v3029, 0
    %3036 = vmatprep.subr.mxu0 0.0
    %3037 = vmatpush1.xpose.msra.mxu0 %v3032
    %3038 = vmatprep.subr.mxu0 0.0
    %3039 = vmatpush1.xpose.msra.mxu0 %v3034
    %3040 = vmatprep.subr.mxu0 0.0
    %3041 = vmatpush1.xpose.msra.mxu0 0.0
    %3042 = vmatprep.subr.mxu0 0.0
    %3043 = vmatpush1.xpose.msra.mxu0 0.0
    %3044 = vmatprep.subr.mxu0 0.0
    %3045 = vmatpush1.xpose.msra.mxu0 0.0
    %3046 = vmatprep.subr.mxu0 0.0
    %3047 = vmatpush1.xpose.msra.mxu0 0.0
    %3048 = vmatprep.subr.mxu0 0.0
    %3049 = vmatpush1.xpose.msra.mxu0 0.0
    %3050 = vmatprep.subr.mxu0 0.0
    %3051 = vmatpush1.xpose.msra.mxu0 0.0
    %3052 = vmatprep.subr.mxu0 0.0
    %3053 = vmatpush1.xpose.msra.mxu0 0.0
    %3054 = vmatprep.subr.mxu0 0.0
    %3055 = vmatpush1.xpose.msra.mxu0 0.0
    %3056 = vmatprep.subr.mxu0 0.0
    %3057 = vmatpush1.xpose.msra.mxu0 0.0
    %3058 = vmatprep.subr.mxu0 0.0
    %3059 = vmatpush1.xpose.msra.mxu0 0.0
    %3060 = vmatprep.subr.mxu0 0.0
    %3061 = vmatpush1.xpose.msra.mxu0 0.0
    %3062 = vmatprep.subr.mxu0 0.0
    %3063 = vmatpush1.xpose.msra.mxu0 0.0
    %3064 = vmatprep.subr.mxu0 0.0
    %3065 = vmatpush1.xpose.msra.mxu0 0.0
    %3066 = vmatprep.subr.mxu0 0.0
    %3067 = vmatpush1.xpose.msra.mxu0 0.0
    %3068 = vmatprep.subr.mxu0 0.0
    %3069 = vmatpush1.xpose.msra.mxu0 0.0
    %3070 = vmatprep.subr.mxu0 0.0
    %3071 = vmatpush1.xpose.msra.mxu0 0.0
    %3072 = vmatprep.subr.mxu0 0.0
    %3073 = vmatpush1.xpose.msra.mxu0 0.0
    %3074 = vmatprep.subr.mxu0 0.0
    %3075 = vmatpush1.xpose.msra.mxu0 0.0
    %3076 = vmatprep.subr.mxu0 0.0
    %3077 = vmatpush1.xpose.msra.mxu0 0.0
    %3078 = vmatprep.subr.mxu0 0.0
    %3079 = vmatpush1.xpose.msra.mxu0 0.0
    %3080 = vmatprep.subr.mxu0 0.0
    %3081 = vmatpush1.xpose.msra.mxu0 0.0
    %3082 = vmatprep.subr.mxu0 0.0
    %3083 = vmatpush1.xpose.msra.mxu0 0.0
    %3084 = vmatprep.subr.mxu0 0.0
    %3085 = vmatpush1.xpose.msra.mxu0 0.0
    %3086 = vmatprep.subr.mxu0 0.0
    %3087 = vmatpush1.xpose.msra.mxu0 0.0
    %3088 = vmatprep.subr.mxu0 0.0
    %3089 = vmatpush1.xpose.msra.mxu0 0.0
    %3090 = vmatprep.subr.mxu0 0.0
    %3091 = vmatpush1.xpose.msra.mxu0 0.0
    %3092 = vmatprep.subr.mxu0 0.0
    %3093 = vmatpush1.xpose.msra.mxu0 0.0
    %3094 = vmatprep.subr.mxu0 0.0
    %3095 = vmatpush1.xpose.msra.mxu0 0.0
    %3096 = vmatprep.subr.mxu0 0.0
    %3097 = vmatpush1.xpose.msra.mxu0 0.0
    %3098 = vmatprep.subr.mxu0 0.0
    %3099 = vmatpush1.xpose.msra.mxu0 0.0
    %3100 = vmatprep.mubr.f32.mxu0 0.0
    %3101 = vmatmul.mubr.f32.gmra.mrb[0].mxu0 %v3030
    %v3102 = vpop.f32.mrb[0].mxu0
    %v3103 = vadd.f32 0.0, %v3102
    %v3104 = vpop.f32.mrb[0].mxu0
    %3105 = vdwg.mxu0
    %v3106 = vmul.f32 %v3103, 0.35355338
    %v3107 = vadd.f32 %v3106, %v2930
    %v3108 = vsel %vm2210, %v3107, -inf
    %3109 = vmax.xlane.f32.xlu0 %v3108
    %v3110 = vpop.xlane.xlu0 %3109
    %v3111 = vsub.f32 %v3107, %v3110
    %v3112 = vmul.f32 %v3111, 1.442695
    %v3113 = vpow.pop %v3112
    %v3114 = vsel %vm2210, %v3113, 0.0
    %3115 = vadd.xlane.f32.xlu0 %v3114
    %v3116 = vpop.xlane.xlu0 %3115
    %v3117 = vrcp.pop %v3116
    %v3118 = vmul.f32 %v3113, %v3117
    %3119 = vrot.lane.b32.xlu0 %v2847, 88
    %v3120 = vpop.permute.xlu0 %3119
    %3121 = vrot.lane.b32.xlu0 %v2846, 88
    %v3122 = vpop.permute.xlu0 %3121
    %v3125 = vsel %vm2210, %v3118, 0
    %v3127 = vsel %vm2230, %v3122, 0
    %3129 = vmatprep.subr.mxu0 0.0
    %3130 = vmatpush1.msra.mxu0 %v3120
    %3131 = vmatprep.subr.mxu0 0.0
    %3132 = vmatpush1.msra.mxu0 %v3127
    %3133 = vmatprep.subr.mxu0 0.0
    %3134 = vmatpush1.msra.mxu0 0.0
    %3135 = vmatprep.subr.mxu0 0.0
    %3136 = vmatpush1.msra.mxu0 0.0
    %3137 = vmatprep.subr.mxu0 0.0
    %3138 = vmatpush1.msra.mxu0 0.0
    %3139 = vmatprep.subr.mxu0 0.0
    %3140 = vmatpush1.msra.mxu0 0.0
    %3141 = vmatprep.subr.mxu0 0.0
    %3142 = vmatpush1.msra.mxu0 0.0
    %3143 = vmatprep.subr.mxu0 0.0
    %3144 = vmatpush1.msra.mxu0 0.0
    %3145 = vmatprep.subr.mxu0 0.0
    %3146 = vmatpush1.msra.mxu0 0.0
    %3147 = vmatprep.subr.mxu0 0.0
    %3148 = vmatpush1.msra.mxu0 0.0
    %3149 = vmatprep.subr.mxu0 0.0
    %3150 = vmatpush1.msra.mxu0 0.0
    %3151 = vmatprep.subr.mxu0 0.0
    %3152 = vmatpush1.msra.mxu0 0.0
    %3153 = vmatprep.subr.mxu0 0.0
    %3154 = vmatpush1.msra.mxu0 0.0
    %3155 = vmatprep.subr.mxu0 0.0
    %3156 = vmatpush1.msra.mxu0 0.0
    %3157 = vmatprep.subr.mxu0 0.0
    %3158 = vmatpush1.msra.mxu0 0.0
    %3159 = vmatprep.subr.mxu0 0.0
    %3160 = vmatpush1.msra.mxu0 0.0
    %3161 = vmatprep.subr.mxu0 0.0
    %3162 = vmatpush1.msra.mxu0 0.0
    %3163 = vmatprep.subr.mxu0 0.0
    %3164 = vmatpush1.msra.mxu0 0.0
    %3165 = vmatprep.subr.mxu0 0.0
    %3166 = vmatpush1.msra.mxu0 0.0
    %3167 = vmatprep.subr.mxu0 0.0
    %3168 = vmatpush1.msra.mxu0 0.0
    %3169 = vmatprep.subr.mxu0 0.0
    %3170 = vmatpush1.msra.mxu0 0.0
    %3171 = vmatprep.subr.mxu0 0.0
    %3172 = vmatpush1.msra.mxu0 0.0
    %3173 = vmatprep.subr.mxu0 0.0
    %3174 = vmatpush1.msra.mxu0 0.0
    %3175 = vmatprep.subr.mxu0 0.0
    %3176 = vmatpush1.msra.mxu0 0.0
    %3177 = vmatprep.subr.mxu0 0.0
    %3178 = vmatpush1.msra.mxu0 0.0
    %3179 = vmatprep.subr.mxu0 0.0
    %3180 = vmatpush1.msra.mxu0 0.0
    %3181 = vmatprep.subr.mxu0 0.0
    %3182 = vmatpush1.msra.mxu0 0.0
    %3183 = vmatprep.subr.mxu0 0.0
    %3184 = vmatpush1.msra.mxu0 0.0
    %3185 = vmatprep.subr.mxu0 0.0
    %3186 = vmatpush1.msra.mxu0 0.0
    %3187 = vmatprep.subr.mxu0 0.0
    %3188 = vmatpush1.msra.mxu0 0.0
    %3189 = vmatprep.subr.mxu0 0.0
    %3190 = vmatpush1.msra.mxu0 0.0
    %3191 = vmatprep.subr.mxu0 0.0
    %3192 = vmatpush1.msra.mxu0 0.0
    %3193 = vmatprep.mubr.f32.mxu0 0.0
    %3194 = vmatmul.mubr.f32.gmra.mrb[0].mxu0 %v3125
    %v3195 = vpop.f32.mrb[0].mxu0
    %v3196 = vadd.f32 0.0, %v3195
    %v3197 = vpop.f32.mrb[0].mxu0
    %3198 = vdwg.mxu0
    %3199 = vrot.lane.b32.xlu0 %v2020, 112
    %v3200 = vpop.permute.xlu0 %3199
    %3201 = vrot.lane.b32.xlu0 %v2847, 112
    %v3202 = vpop.permute.xlu0 %3201
    %3203 = vrot.lane.b32.xlu0 %v2846, 112
    %v3204 = vpop.permute.xlu0 %3203
    %v3205 = vsel %vm434, %v3200, 0
    %v3207 = vsel %vm434, %v3202, 0
    %v3209 = vsel %vm434, %v3204, 0
    %3211 = vmatprep.subr.mxu0 0.0
    %3212 = vmatpush1.xpose.msra.mxu0 %v3207
    %3213 = vmatprep.subr.mxu0 0.0
    %3214 = vmatpush1.xpose.msra.mxu0 %v3209
    %3215 = vmatprep.subr.mxu0 0.0
    %3216 = vmatpush1.xpose.msra.mxu0 0.0
    %3217 = vmatprep.subr.mxu0 0.0
    %3218 = vmatpush1.xpose.msra.mxu0 0.0
    %3219 = vmatprep.subr.mxu0 0.0
    %3220 = vmatpush1.xpose.msra.mxu0 0.0
    %3221 = vmatprep.subr.mxu0 0.0
    %3222 = vmatpush1.xpose.msra.mxu0 0.0
    %3223 = vmatprep.subr.mxu0 0.0
    %3224 = vmatpush1.xpose.msra.mxu0 0.0
    %3225 = vmatprep.subr.mxu0 0.0
    %3226 = vmatpush1.xpose.msra.mxu0 0.0
    %3227 = vmatprep.subr.mxu0 0.0
    %3228 = vmatpush1.xpose.msra.mxu0 0.0
    %3229 = vmatprep.subr.mxu0 0.0
    %3230 = vmatpush1.xpose.msra.mxu0 0.0
    %3231 = vmatprep.subr.mxu0 0.0
    %3232 = vmatpush1.xpose.msra.mxu0 0.0
    %3233 = vmatprep.subr.mxu0 0.0
    %3234 = vmatpush1.xpose.msra.mxu0 0.0
    %3235 = vmatprep.subr.mxu0 0.0
    %3236 = vmatpush1.xpose.msra.mxu0 0.0
    %3237 = vmatprep.subr.mxu0 0.0
    %3238 = vmatpush1.xpose.msra.mxu0 0.0
    %3239 = vmatprep.subr.mxu0 0.0
    %3240 = vmatpush1.xpose.msra.mxu0 0.0
    %3241 = vmatprep.subr.mxu0 0.0
    %3242 = vmatpush1.xpose.msra.mxu0 0.0
    %3243 = vmatprep.subr.mxu0 0.0
    %3244 = vmatpush1.xpose.msra.mxu0 0.0
    %3245 = vmatprep.subr.mxu0 0.0
    %3246 = vmatpush1.xpose.msra.mxu0 0.0
    %3247 = vmatprep.subr.mxu0 0.0
    %3248 = vmatpush1.xpose.msra.mxu0 0.0
    %3249 = vmatprep.subr.mxu0 0.0
    %3250 = vmatpush1.xpose.msra.mxu0 0.0
    %3251 = vmatprep.subr.mxu0 0.0
    %3252 = vmatpush1.xpose.msra.mxu0 0.0
    %3253 = vmatprep.subr.mxu0 0.0
    %3254 = vmatpush1.xpose.msra.mxu0 0.0
    %3255 = vmatprep.subr.mxu0 0.0
    %3256 = vmatpush1.xpose.msra.mxu0 0.0
    %3257 = vmatprep.subr.mxu0 0.0
    %3258 = vmatpush1.xpose.msra.mxu0 0.0
    %3259 = vmatprep.subr.mxu0 0.0
    %3260 = vmatpush1.xpose.msra.mxu0 0.0
    %3261 = vmatprep.subr.mxu0 0.0
    %3262 = vmatpush1.xpose.msra.mxu0 0.0
    %3263 = vmatprep.subr.mxu0 0.0
    %3264 = vmatpush1.xpose.msra.mxu0 0.0
    %3265 = vmatprep.subr.mxu0 0.0
    %3266 = vmatpush1.xpose.msra.mxu0 0.0
    %3267 = vmatprep.subr.mxu0 0.0
    %3268 = vmatpush1.xpose.msra.mxu0 0.0
    %3269 = vmatprep.subr.mxu0 0.0
    %3270 = vmatpush1.xpose.msra.mxu0 0.0
    %3271 = vmatprep.subr.mxu0 0.0
    %3272 = vmatpush1.xpose.msra.mxu0 0.0
    %3273 = vmatprep.subr.mxu0 0.0
    %3274 = vmatpush1.xpose.msra.mxu0 0.0
    %3275 = vmatprep.mubr.f32.mxu0 0.0
    %3276 = vmatmul.mubr.f32.gmra.mrb[0].mxu0 %v3205
    %v3277 = vpop.f32.mrb[0].mxu0
    %v3278 = vadd.f32 0.0, %v3277
    %v3279 = vpop.f32.mrb[0].mxu0
    %3280 = vdwg.mxu0
    %v3281 = vmul.f32 %v3278, 0.35355338
    %v3282 = vadd.f32 %v3281, %v2930
    %v3283 = vsel %vm2210, %v3282, -inf
    %3284 = vmax.xlane.f32.xlu0 %v3283
    %v3285 = vpop.xlane.xlu0 %3284
    %v3286 = vsub.f32 %v3282, %v3285
    %v3287 = vmul.f32 %v3286, 1.442695
    %v3288 = vpow.pop %v3287
    %v3289 = vsel %vm2210, %v3288, 0.0
    %3290 = vadd.xlane.f32.xlu0 %v3289
    %v3291 = vpop.xlane.xlu0 %3290
    %v3292 = vrcp.pop %v3291
    %v3293 = vmul.f32 %v3288, %v3292
    %3294 = vrot.lane.b32.xlu0 %v2847, 80
    %v3295 = vpop.permute.xlu0 %3294
    %3296 = vrot.lane.b32.xlu0 %v2846, 80
    %v3297 = vpop.permute.xlu0 %3296
    %v3300 = vsel %vm2210, %v3293, 0
    %v3302 = vsel %vm2230, %v3297, 0
    %3304 = vmatprep.subr.mxu0 0.0
    %3305 = vmatpush1.msra.mxu0 %v3295
    %3306 = vmatprep.subr.mxu0 0.0
    %3307 = vmatpush1.msra.mxu0 %v3302
    %3308 = vmatprep.subr.mxu0 0.0
    %3309 = vmatpush1.msra.mxu0 0.0
    %3310 = vmatprep.subr.mxu0 0.0
    %3311 = vmatpush1.msra.mxu0 0.0
    %3312 = vmatprep.subr.mxu0 0.0
    %3313 = vmatpush1.msra.mxu0 0.0
    %3314 = vmatprep.subr.mxu0 0.0
    %3315 = vmatpush1.msra.mxu0 0.0
    %3316 = vmatprep.subr.mxu0 0.0
    %3317 = vmatpush1.msra.mxu0 0.0
    %3318 = vmatprep.subr.mxu0 0.0
    %3319 = vmatpush1.msra.mxu0 0.0
    %3320 = vmatprep.subr.mxu0 0.0
    %3321 = vmatpush1.msra.mxu0 0.0
    %3322 = vmatprep.subr.mxu0 0.0
    %3323 = vmatpush1.msra.mxu0 0.0
    %3324 = vmatprep.subr.mxu0 0.0
    %3325 = vmatpush1.msra.mxu0 0.0
    %3326 = vmatprep.subr.mxu0 0.0
    %3327 = vmatpush1.msra.mxu0 0.0
    %3328 = vmatprep.subr.mxu0 0.0
    %3329 = vmatpush1.msra.mxu0 0.0
    %3330 = vmatprep.subr.mxu0 0.0
    %3331 = vmatpush1.msra.mxu0 0.0
    %3332 = vmatprep.subr.mxu0 0.0
    %3333 = vmatpush1.msra.mxu0 0.0
    %3334 = vmatprep.subr.mxu0 0.0
    %3335 = vmatpush1.msra.mxu0 0.0
    %3336 = vmatprep.subr.mxu0 0.0
    %3337 = vmatpush1.msra.mxu0 0.0
    %3338 = vmatprep.subr.mxu0 0.0
    %3339 = vmatpush1.msra.mxu0 0.0
    %3340 = vmatprep.subr.mxu0 0.0
    %3341 = vmatpush1.msra.mxu0 0.0
    %3342 = vmatprep.subr.mxu0 0.0
    %3343 = vmatpush1.msra.mxu0 0.0
    %3344 = vmatprep.subr.mxu0 0.0
    %3345 = vmatpush1.msra.mxu0 0.0
    %3346 = vmatprep.subr.mxu0 0.0
    %3347 = vmatpush1.msra.mxu0 0.0
    %3348 = vmatprep.subr.mxu0 0.0
    %3349 = vmatpush1.msra.mxu0 0.0
    %3350 = vmatprep.subr.mxu0 0.0
    %3351 = vmatpush1.msra.mxu0 0.0
    %3352 = vmatprep.subr.mxu0 0.0
    %3353 = vmatpush1.msra.mxu0 0.0
    %3354 = vmatprep.subr.mxu0 0.0
    %3355 = vmatpush1.msra.mxu0 0.0
    %3356 = vmatprep.subr.mxu0 0.0
    %3357 = vmatpush1.msra.mxu0 0.0
    %3358 = vmatprep.subr.mxu0 0.0
    %3359 = vmatpush1.msra.mxu0 0.0
    %3360 = vmatprep.subr.mxu0 0.0
    %3361 = vmatpush1.msra.mxu0 0.0
    %3362 = vmatprep.subr.mxu0 0.0
    %3363 = vmatpush1.msra.mxu0 0.0
    %3364 = vmatprep.subr.mxu0 0.0
    %3365 = vmatpush1.msra.mxu0 0.0
    %3366 = vmatprep.subr.mxu0 0.0
    %3367 = vmatpush1.msra.mxu0 0.0
    %3368 = vmatprep.mubr.f32.mxu0 0.0
    %3369 = vmatmul.mubr.f32.gmra.mrb[0].mxu0 %v3300
    %v3370 = vpop.f32.mrb[0].mxu0
    %v3371 = vadd.f32 0.0, %v3370
    %v3372 = vpop.f32.mrb[0].mxu0
    %3373 = vdwg.mxu0
    %3374 = vrot.lane.b32.xlu0 %v2020, 104
    %v3375 = vpop.permute.xlu0 %3374
    %3376 = vrot.lane.b32.xlu0 %v2847, 104
    %v3377 = vpop.permute.xlu0 %3376
    %3378 = vrot.lane.b32.xlu0 %v2846, 104
    %v3379 = vpop.permute.xlu0 %3378
    %v3380 = vsel %vm434, %v3375, 0
    %v3382 = vsel %vm434, %v3377, 0
    %v3384 = vsel %vm434, %v3379, 0
    %3386 = vmatprep.subr.mxu0 0.0
    %3387 = vmatpush1.xpose.msra.mxu0 %v3382
    %3388 = vmatprep.subr.mxu0 0.0
    %3389 = vmatpush1.xpose.msra.mxu0 %v3384
    %3390 = vmatprep.subr.mxu0 0.0
    %3391 = vmatpush1.xpose.msra.mxu0 0.0
    %3392 = vmatprep.subr.mxu0 0.0
    %3393 = vmatpush1.xpose.msra.mxu0 0.0
    %3394 = vmatprep.subr.mxu0 0.0
    %3395 = vmatpush1.xpose.msra.mxu0 0.0
    %3396 = vmatprep.subr.mxu0 0.0
    %3397 = vmatpush1.xpose.msra.mxu0 0.0
    %3398 = vmatprep.subr.mxu0 0.0
    %3399 = vmatpush1.xpose.msra.mxu0 0.0
    %3400 = vmatprep.subr.mxu0 0.0
    %3401 = vmatpush1.xpose.msra.mxu0 0.0
    %3402 = vmatprep.subr.mxu0 0.0
    %3403 = vmatpush1.xpose.msra.mxu0 0.0
    %3404 = vmatprep.subr.mxu0 0.0
    %3405 = vmatpush1.xpose.msra.mxu0 0.0
    %3406 = vmatprep.subr.mxu0 0.0
    %3407 = vmatpush1.xpose.msra.mxu0 0.0
    %3408 = vmatprep.subr.mxu0 0.0
    %3409 = vmatpush1.xpose.msra.mxu0 0.0
    %3410 = vmatprep.subr.mxu0 0.0
    %3411 = vmatpush1.xpose.msra.mxu0 0.0
    %3412 = vmatprep.subr.mxu0 0.0
    %3413 = vmatpush1.xpose.msra.mxu0 0.0
    %3414 = vmatprep.subr.mxu0 0.0
    %3415 = vmatpush1.xpose.msra.mxu0 0.0
    %3416 = vmatprep.subr.mxu0 0.0
    %3417 = vmatpush1.xpose.msra.mxu0 0.0
    %3418 = vmatprep.subr.mxu0 0.0
    %3419 = vmatpush1.xpose.msra.mxu0 0.0
    %3420 = vmatprep.subr.mxu0 0.0
    %3421 = vmatpush1.xpose.msra.mxu0 0.0
    %3422 = vmatprep.subr.mxu0 0.0
    %3423 = vmatpush1.xpose.msra.mxu0 0.0
    %3424 = vmatprep.subr.mxu0 0.0
    %3425 = vmatpush1.xpose.msra.mxu0 0.0
    %3426 = vmatprep.subr.mxu0 0.0
    %3427 = vmatpush1.xpose.msra.mxu0 0.0
    %3428 = vmatprep.subr.mxu0 0.0
    %3429 = vmatpush1.xpose.msra.mxu0 0.0
    %3430 = vmatprep.subr.mxu0 0.0
    %3431 = vmatpush1.xpose.msra.mxu0 0.0
    %3432 = vmatprep.subr.mxu0 0.0
    %3433 = vmatpush1.xpose.msra.mxu0 0.0
    %3434 = vmatprep.subr.mxu0 0.0
    %3435 = vmatpush1.xpose.msra.mxu0 0.0
    %3436 = vmatprep.subr.mxu0 0.0
    %3437 = vmatpush1.xpose.msra.mxu0 0.0
    %3438 = vmatprep.subr.mxu0 0.0
    %3439 = vmatpush1.xpose.msra.mxu0 0.0
    %3440 = vmatprep.subr.mxu0 0.0
    %3441 = vmatpush1.xpose.msra.mxu0 0.0
    %3442 = vmatprep.subr.mxu0 0.0
    %3443 = vmatpush1.xpose.msra.mxu0 0.0
    %3444 = vmatprep.subr.mxu0 0.0
    %3445 = vmatpush1.xpose.msra.mxu0 0.0
    %3446 = vmatprep.subr.mxu0 0.0
    %3447 = vmatpush1.xpose.msra.mxu0 0.0
    %3448 = vmatprep.subr.mxu0 0.0
    %3449 = vmatpush1.xpose.msra.mxu0 0.0
    %3450 = vmatprep.mubr.f32.mxu0 0.0
    %3451 = vmatmul.mubr.f32.gmra.mrb[0].mxu0 %v3380
    %v3452 = vpop.f32.mrb[0].mxu0
    %v3453 = vadd.f32 0.0, %v3452
    %v3454 = vpop.f32.mrb[0].mxu0
    %3455 = vdwg.mxu0
    %v3456 = vmul.f32 %v3453, 0.35355338
    %v3457 = vadd.f32 %v3456, %v2930
    %v3458 = vsel %vm2210, %v3457, -inf
    %3459 = vmax.xlane.f32.xlu0 %v3458
    %v3460 = vpop.xlane.xlu0 %3459
    %v3461 = vsub.f32 %v3457, %v3460
    %v3462 = vmul.f32 %v3461, 1.442695
    %v3463 = vpow.pop %v3462
    %v3464 = vsel %vm2210, %v3463, 0.0
    %3465 = vadd.xlane.f32.xlu0 %v3464
    %v3466 = vpop.xlane.xlu0 %3465
    %v3467 = vrcp.pop %v3466
    %v3468 = vmul.f32 %v3463, %v3467
    %3469 = vrot.lane.b32.xlu0 %v2847, 72
    %v3470 = vpop.permute.xlu0 %3469
    %3471 = vrot.lane.b32.xlu0 %v2846, 72
    %v3472 = vpop.permute.xlu0 %3471
    %v3475 = vsel %vm2210, %v3468, 0
    %v3477 = vsel %vm2230, %v3472, 0
    %3479 = vmatprep.subr.mxu0 0.0
    %3480 = vmatpush1.msra.mxu0 %v3470
    %3481 = vmatprep.subr.mxu0 0.0
    %3482 = vmatpush1.msra.mxu0 %v3477
    %3483 = vmatprep.subr.mxu0 0.0
    %3484 = vmatpush1.msra.mxu0 0.0
    %3485 = vmatprep.subr.mxu0 0.0
    %3486 = vmatpush1.msra.mxu0 0.0
    %3487 = vmatprep.subr.mxu0 0.0
    %3488 = vmatpush1.msra.mxu0 0.0
    %3489 = vmatprep.subr.mxu0 0.0
    %3490 = vmatpush1.msra.mxu0 0.0
    %3491 = vmatprep.subr.mxu0 0.0
    %3492 = vmatpush1.msra.mxu0 0.0
    %3493 = vmatprep.subr.mxu0 0.0
    %3494 = vmatpush1.msra.mxu0 0.0
    %3495 = vmatprep.subr.mxu0 0.0
    %3496 = vmatpush1.msra.mxu0 0.0
    %3497 = vmatprep.subr.mxu0 0.0
    %3498 = vmatpush1.msra.mxu0 0.0
    %3499 = vmatprep.subr.mxu0 0.0
    %3500 = vmatpush1.msra.mxu0 0.0
    %3501 = vmatprep.subr.mxu0 0.0
    %3502 = vmatpush1.msra.mxu0 0.0
    %3503 = vmatprep.subr.mxu0 0.0
    %3504 = vmatpush1.msra.mxu0 0.0
    %3505 = vmatprep.subr.mxu0 0.0
    %3506 = vmatpush1.msra.mxu0 0.0
    %3507 = vmatprep.subr.mxu0 0.0
    %3508 = vmatpush1.msra.mxu0 0.0
    %3509 = vmatprep.subr.mxu0 0.0
    %3510 = vmatpush1.msra.mxu0 0.0
    %3511 = vmatprep.subr.mxu0 0.0
    %3512 = vmatpush1.msra.mxu0 0.0
    %3513 = vmatprep.subr.mxu0 0.0
    %3514 = vmatpush1.msra.mxu0 0.0
    %3515 = vmatprep.subr.mxu0 0.0
    %3516 = vmatpush1.msra.mxu0 0.0
    %3517 = vmatprep.subr.mxu0 0.0
    %3518 = vmatpush1.msra.mxu0 0.0
    %3519 = vmatprep.subr.mxu0 0.0
    %3520 = vmatpush1.msra.mxu0 0.0
    %3521 = vmatprep.subr.mxu0 0.0
    %3522 = vmatpush1.msra.mxu0 0.0
    %3523 = vmatprep.subr.mxu0 0.0
    %3524 = vmatpush1.msra.mxu0 0.0
    %3525 = vmatprep.subr.mxu0 0.0
    %3526 = vmatpush1.msra.mxu0 0.0
    %3527 = vmatprep.subr.mxu0 0.0
    %3528 = vmatpush1.msra.mxu0 0.0
    %3529 = vmatprep.subr.mxu0 0.0
    %3530 = vmatpush1.msra.mxu0 0.0
    %3531 = vmatprep.subr.mxu0 0.0
    %3532 = vmatpush1.msra.mxu0 0.0
    %3533 = vmatprep.subr.mxu0 0.0
    %3534 = vmatpush1.msra.mxu0 0.0
    %3535 = vmatprep.subr.mxu0 0.0
    %3536 = vmatpush1.msra.mxu0 0.0
    %3537 = vmatprep.subr.mxu0 0.0
    %3538 = vmatpush1.msra.mxu0 0.0
    %3539 = vmatprep.subr.mxu0 0.0
    %3540 = vmatpush1.msra.mxu0 0.0
    %3541 = vmatprep.subr.mxu0 0.0
    %3542 = vmatpush1.msra.mxu0 0.0
    %3543 = vmatprep.mubr.f32.mxu0 0.0
    %3544 = vmatmul.mubr.f32.gmra.mrb[0].mxu0 %v3475
    %v3545 = vpop.f32.mrb[0].mxu0
    %v3546 = vadd.f32 0.0, %v3545
    %v3547 = vpop.f32.mrb[0].mxu0
    %3548 = vdwg.mxu0
    %3550 = vrot.lane.b32.xlu0 %v3196, 8
    %v3551 = vpop.permute.xlu0 %3550
    %3554 = vrot.lane.b32.xlu0 %v3371, 16
    %v3555 = vpop.permute.xlu0 %3554
    %3558 = vrot.lane.b32.xlu0 %v3546, 24
    %v3559 = vpop.permute.xlu0 %3558
    %v3561 = vsel %vm434, %v3021, %v3551
    %v3562 = vsel %vm1112, %v3561, %v3555
    %v3563 = vsel %vm1114, %v3562, %v3559
    %v3564 = vld [vmem:[%s14] sm:$0xff]
    %v3565 = vld [vmem:[%s14 + $0x8] sm:$0xff]
    %v3566 = vld [vmem:[%s14 + $0x10] sm:$0xff]
    %v3567 = vld [vmem:[%s14 + $0x18] sm:$0xff]
    %v3568 = vld [vmem:[#allocation11] sm:$0x1]
    %v3570 = vlaneseq
    %v3571 = vshrl.u32 %v3570, 7
    %v3572 = vsub.s32 0, %v3571
    %v3573 = vrot.slane %v3568, %v3572
    %v3576 = vsel %vm349, %v2842, 0
    %v3579 = vsel %vm349, %v3563, 0
    %3581 = vmatprep.subr.mxu0 0.0
    %3582 = vmatpush1.msra.mxu0 %v3564
    %3583 = vmatprep.subr.mxu0 0.0
    %3584 = vmatpush1.msra.mxu0 %v3565
    %3585 = vmatprep.subr.mxu0 0.0
    %3586 = vmatpush1.msra.mxu0 %v3566
    %3587 = vmatprep.subr.mxu0 0.0
    %3588 = vmatpush1.msra.mxu0 %v3567
    %3589 = vmatprep.subr.mxu0 0.0
    %3590 = vmatpush1.msra.mxu0 0.0
    %3591 = vmatprep.subr.mxu0 0.0
    %3592 = vmatpush1.msra.mxu0 0.0
    %3593 = vmatprep.subr.mxu0 0.0
    %3594 = vmatpush1.msra.mxu0 0.0
    %3595 = vmatprep.subr.mxu0 0.0
    %3596 = vmatpush1.msra.mxu0 0.0
    %3597 = vmatprep.subr.mxu0 0.0
    %3598 = vmatpush1.msra.mxu0 0.0
    %3599 = vmatprep.subr.mxu0 0.0
    %3600 = vmatpush1.msra.mxu0 0.0
    %3601 = vmatprep.subr.mxu0 0.0
    %3602 = vmatpush1.msra.mxu0 0.0
    %3603 = vmatprep.subr.mxu0 0.0
    %3604 = vmatpush1.msra.mxu0 0.0
    %3605 = vmatprep.subr.mxu0 0.0
    %3606 = vmatpush1.msra.mxu0 0.0
    %3607 = vmatprep.subr.mxu0 0.0
    %3608 = vmatpush1.msra.mxu0 0.0
    %3609 = vmatprep.subr.mxu0 0.0
    %3610 = vmatpush1.msra.mxu0 0.0
    %3611 = vmatprep.subr.mxu0 0.0
    %3612 = vmatpush1.msra.mxu0 0.0
    %3613 = vmatprep.subr.mxu0 0.0
    %3614 = vmatpush1.msra.mxu0 0.0
    %3615 = vmatprep.subr.mxu0 0.0
    %3616 = vmatpush1.msra.mxu0 0.0
    %3617 = vmatprep.subr.mxu0 0.0
    %3618 = vmatpush1.msra.mxu0 0.0
    %3619 = vmatprep.subr.mxu0 0.0
    %3620 = vmatpush1.msra.mxu0 0.0
    %3621 = vmatprep.subr.mxu0 0.0
    %3622 = vmatpush1.msra.mxu0 0.0
    %3623 = vmatprep.subr.mxu0 0.0
    %3624 = vmatpush1.msra.mxu0 0.0
    %3625 = vmatprep.subr.mxu0 0.0
    %3626 = vmatpush1.msra.mxu0 0.0
    %3627 = vmatprep.subr.mxu0 0.0
    %3628 = vmatpush1.msra.mxu0 0.0
    %3629 = vmatprep.subr.mxu0 0.0
    %3630 = vmatpush1.msra.mxu0 0.0
    %3631 = vmatprep.subr.mxu0 0.0
    %3632 = vmatpush1.msra.mxu0 0.0
    %3633 = vmatprep.subr.mxu0 0.0
    %3634 = vmatpush1.msra.mxu0 0.0
    %3635 = vmatprep.subr.mxu0 0.0
    %3636 = vmatpush1.msra.mxu0 0.0
    %3637 = vmatprep.subr.mxu0 0.0
    %3638 = vmatpush1.msra.mxu0 0.0
    %3639 = vmatprep.subr.mxu0 0.0
    %3640 = vmatpush1.msra.mxu0 0.0
    %3641 = vmatprep.subr.mxu0 0.0
    %3642 = vmatpush1.msra.mxu0 0.0
    %3643 = vmatprep.subr.mxu0 0.0
    %3644 = vmatpush1.msra.mxu0 0.0
    %3645 = vmatprep.mubr.f32.mxu0 0.0
    %3646 = vmatmul.mubr.f32.gmra.mrb[0].mxu0 %v3576
    %v3647 = vpop.f32.mrb[0].mxu0
    %v3648 = vadd.f32 %v3573, %v3647
    %v3649 = vpop.f32.mrb[0].mxu0
    %3650 = vmatprep.mubr.f32.mxu0 0.0
    %3651 = vmatmul.mubr.f32.gmra.mrb[0].mxu0 %v3579
    %v3652 = vpop.f32.mrb[0].mxu0
    %v3653 = vadd.f32 %v3573, %v3652
    %v3654 = vpop.f32.mrb[0].mxu0
    %3655 = vdwg.mxu0
    %v3656 = vadd.f32 %v1929, %v3648
    %v3657 = vadd.f32 %v1930, %v3653
    %v3658 = vsel %vm349, %v3656, 0.0
    %3659 = vadd.xlane.f32.xlu0 %v3658
    %v3660 = vpop.xlane.xlu0 %3659
    %v3661 = vsel %vm349, %v3657, 0.0
    %3662 = vadd.xlane.f32.xlu0 %v3661
    %v3663 = vpop.xlane.xlu0 %3662
    %v3664 = vmul.f32 %v3660, %v1898
    %v3665 = vmul.f32 %v3663, %v1898
    %v3666 = vsub.f32 %v3656, %v3664
    %v3667 = vsub.f32 %v3657, %v3665
    %v3668 = vmul.f32 %v3666, %v3666
    %v3669 = vmul.f32 %v3667, %v3667
    %v3670 = vsel %vm349, %v3668, 0.0
    %3671 = vadd.xlane.f32.xlu0 %v3670
    %v3672 = vpop.xlane.xlu0 %3671
    %v3673 = vsel %vm349, %v3669, 0.0
    %3674 = vadd.xlane.f32.xlu0 %v3673
    %v3675 = vpop.xlane.xlu0 %3674
    %v3676 = vmul.f32 %v3672, %v1898
    %v3677 = vmul.f32 %v3675, %v1898
    %v3678 = vadd.f32 %v3676, 1e-05
    %v3679 = vadd.f32 %v3677, 1e-05
    %v3680 = vrsqrt.pop %v3678
    %v3681 = vrsqrt.pop %v3679
    %v3682 = vmul.f32 %v3666, %v3680
    %v3683 = vmul.f32 %v3667, %v3681
    %v3684 = vlaneseq
    %v3685 = vshrl.u32 %v3684, 7
    %v3686 = vsub.s32 1, %v3685
    %v3687 = vrot.slane %v336, %v3686
    %v3688 = vmul.f32 %v3682, %v3687
    %v3689 = vmul.f32 %v3683, %v3687
    %v3690 = vlaneseq
    %v3691 = vshrl.u32 %v3690, 7
    %v3692 = vsub.s32 1, %v3691
    %v3693 = vrot.slane %v337, %v3692
    %v3694 = vadd.f32 %v3688, %v3693
    %v3695 = vadd.f32 %v3689, %v3693
    %v3696 = vld [vmem:[%s18] sm:$0xff]
    %v3697 = vld [vmem:[%s18 + $0x8] sm:$0xff]
    %v3698 = vld [vmem:[%s18 + $0x10] sm:$0xff]
    %v3699 = vld [vmem:[%s18 + $0x18] sm:$0xff]
    %v3700 = vld [vmem:[#allocation13] sm:$0x1]
    %v3702 = vlaneseq
    %v3703 = vshrl.u32 %v3702, 7
    %v3704 = vsub.s32 0, %v3703
    %v3705 = vrot.slane %v3700, %v3704
    %v3708 = vsel %vm349, %v3694, 0
    %v3711 = vsel %vm349, %v3695, 0
    %3713 = vmatprep.subr.mxu0 0.0
    %3714 = vmatpush1.msra.mxu0 %v3696
    %3715 = vmatprep.subr.mxu0 0.0
    %3716 = vmatpush1.msra.mxu0 %v3697
    %3717 = vmatprep.subr.mxu0 0.0
    %3718 = vmatpush1.msra.mxu0 %v3698
    %3719 = vmatprep.subr.mxu0 0.0
    %3720 = vmatpush1.msra.mxu0 %v3699
    %3721 = vmatprep.subr.mxu0 0.0
    %3722 = vmatpush1.msra.mxu0 0.0
    %3723 = vmatprep.subr.mxu0 0.0
    %3724 = vmatpush1.msra.mxu0 0.0
    %3725 = vmatprep.subr.mxu0 0.0
    %3726 = vmatpush1.msra.mxu0 0.0
    %3727 = vmatprep.subr.mxu0 0.0
    %3728 = vmatpush1.msra.mxu0 0.0
    %3729 = vmatprep.subr.mxu0 0.0
    %3730 = vmatpush1.msra.mxu0 0.0
    %3731 = vmatprep.subr.mxu0 0.0
    %3732 = vmatpush1.msra.mxu0 0.0
    %3733 = vmatprep.subr.mxu0 0.0
    %3734 = vmatpush1.msra.mxu0 0.0
    %3735 = vmatprep.subr.mxu0 0.0
    %3736 = vmatpush1.msra.mxu0 0.0
    %3737 = vmatprep.subr.mxu0 0.0
    %3738 = vmatpush1.msra.mxu0 0.0
    %3739 = vmatprep.subr.mxu0 0.0
    %3740 = vmatpush1.msra.mxu0 0.0
    %3741 = vmatprep.subr.mxu0 0.0
    %3742 = vmatpush1.msra.mxu0 0.0
    %3743 = vmatprep.subr.mxu0 0.0
    %3744 = vmatpush1.msra.mxu0 0.0
    %3745 = vmatprep.subr.mxu0 0.0
    %3746 = vmatpush1.msra.mxu0 0.0
    %3747 = vmatprep.subr.mxu0 0.0
    %3748 = vmatpush1.msra.mxu0 0.0
    %3749 = vmatprep.subr.mxu0 0.0
    %3750 = vmatpush1.msra.mxu0 0.0
    %3751 = vmatprep.subr.mxu0 0.0
    %3752 = vmatpush1.msra.mxu0 0.0
    %3753 = vmatprep.subr.mxu0 0.0
    %3754 = vmatpush1.msra.mxu0 0.0
    %3755 = vmatprep.subr.mxu0 0.0
    %3756 = vmatpush1.msra.mxu0 0.0
    %3757 = vmatprep.subr.mxu0 0.0
    %3758 = vmatpush1.msra.mxu0 0.0
    %3759 = vmatprep.subr.mxu0 0.0
    %3760 = vmatpush1.msra.mxu0 0.0
    %3761 = vmatprep.subr.mxu0 0.0
    %3762 = vmatpush1.msra.mxu0 0.0
    %3763 = vmatprep.subr.mxu0 0.0
    %3764 = vmatpush1.msra.mxu0 0.0
    %3765 = vmatprep.subr.mxu0 0.0
    %3766 = vmatpush1.msra.mxu0 0.0
    %3767 = vmatprep.subr.mxu0 0.0
    %3768 = vmatpush1.msra.mxu0 0.0
    %3769 = vmatprep.subr.mxu0 0.0
    %3770 = vmatpush1.msra.mxu0 0.0
    %3771 = vmatprep.subr.mxu0 0.0
    %3772 = vmatpush1.msra.mxu0 0.0
    %3773 = vmatprep.subr.mxu0 0.0
    %3774 = vmatpush1.msra.mxu0 0.0
    %3775 = vmatprep.subr.mxu0 0.0
    %3776 = vmatpush1.msra.mxu0 0.0
    %3777 = vmatprep.mubr.f32.mxu0 0.0
    %3778 = vmatmul.mubr.f32.gmra.mrb[0].mxu0 %v3708
    %v3779 = vpop.f32.mrb[0].mxu0
    %v3780 = vadd.f32 %v3705, %v3779
    %v3781 = vpop.f32.mrb[0].mxu0
    %3782 = vmatprep.mubr.f32.mxu0 0.0
    %3783 = vmatmul.mubr.f32.gmra.mrb[0].mxu0 %v3711
    %v3784 = vpop.f32.mrb[0].mxu0
    %v3785 = vadd.f32 %v3705, %v3784
    %v3786 = vpop.f32.mrb[0].mxu0
    %3787 = vdwg.mxu0
    %v3788 = vmax.f32 %v3780, 0.0
    %v3789 = vmax.f32 %v3785, 0.0
    %v3790 = vld [vmem:[%s20] sm:$0xff]
    %v3791 = vld [vmem:[%s20 + $0x8] sm:$0xff]
    %v3792 = vld [vmem:[%s20 + $0x10] sm:$0xff]
    %v3793 = vld [vmem:[%s20 + $0x18] sm:$0xff]
    %v3794 = vld [vmem:[%s20 + $0x20] sm:$0xff]
    %v3795 = vld [vmem:[%s20 + $0x28] sm:$0xff]
    %v3796 = vld [vmem:[%s20 + $0x30] sm:$0xff]
    %v3797 = vld [vmem:[%s20 + $0x38] sm:$0xff]
    %v3798 = vld [vmem:[#allocation14] sm:$0x1]
    %v3800 = vlaneseq
    %v3801 = vshrl.u32 %v3800, 7
    %v3802 = vsub.s32 0, %v3801
    %v3803 = vrot.slane %v3798, %v3802
    %vm3805 = vcmask 523264
    %v3807 = vsel %vm3805, %v3788, 0
    %v3810 = vsel %vm3805, %v3789, 0
    %3812 = vmatprep.subr.mxu0 0.0
    %3813 = vmatpush1.msra.mxu0 %v3790
    %3814 = vmatprep.subr.mxu0 0.0
    %3815 = vmatpush1.msra.mxu0 %v3791
    %3816 = vmatprep.subr.mxu0 0.0
    %3817 = vmatpush1.msra.mxu0 %v3792
    %3818 = vmatprep.subr.mxu0 0.0
    %3819 = vmatpush1.msra.mxu0 %v3793
    %3820 = vmatprep.subr.mxu0 0.0
    %3821 = vmatpush1.msra.mxu0 %v3794
    %3822 = vmatprep.subr.mxu0 0.0
    %3823 = vmatpush1.msra.mxu0 %v3795
    %3824 = vmatprep.subr.mxu0 0.0
    %3825 = vmatpush1.msra.mxu0 %v3796
    %3826 = vmatprep.subr.mxu0 0.0
    %3827 = vmatpush1.msra.mxu0 %v3797
    %3828 = vmatprep.subr.mxu0 0.0
    %3829 = vmatpush1.msra.mxu0 0.0
    %3830 = vmatprep.subr.mxu0 0.0
    %3831 = vmatpush1.msra.mxu0 0.0
    %3832 = vmatprep.subr.mxu0 0.0
    %3833 = vmatpush1.msra.mxu0 0.0
    %3834 = vmatprep.subr.mxu0 0.0
    %3835 = vmatpush1.msra.mxu0 0.0
    %3836 = vmatprep.subr.mxu0 0.0
    %3837 = vmatpush1.msra.mxu0 0.0
    %3838 = vmatprep.subr.mxu0 0.0
    %3839 = vmatpush1.msra.mxu0 0.0
    %3840 = vmatprep.subr.mxu0 0.0
    %3841 = vmatpush1.msra.mxu0 0.0
    %3842 = vmatprep.subr.mxu0 0.0
    %3843 = vmatpush1.msra.mxu0 0.0
    %3844 = vmatprep.subr.mxu0 0.0
    %3845 = vmatpush1.msra.mxu0 0.0
    %3846 = vmatprep.subr.mxu0 0.0
    %3847 = vmatpush1.msra.mxu0 0.0
    %3848 = vmatprep.subr.mxu0 0.0
    %3849 = vmatpush1.msra.mxu0 0.0
    %3850 = vmatprep.subr.mxu0 0.0
    %3851 = vmatpush1.msra.mxu0 0.0
    %3852 = vmatprep.subr.mxu0 0.0
    %3853 = vmatpush1.msra.mxu0 0.0
    %3854 = vmatprep.subr.mxu0 0.0
    %3855 = vmatpush1.msra.mxu0 0.0
    %3856 = vmatprep.subr.mxu0 0.0
    %3857 = vmatpush1.msra.mxu0 0.0
    %3858 = vmatprep.subr.mxu0 0.0
    %3859 = vmatpush1.msra.mxu0 0.0
    %3860 = vmatprep.subr.mxu0 0.0
    %3861 = vmatpush1.msra.mxu0 0.0
    %3862 = vmatprep.subr.mxu0 0.0
    %3863 = vmatpush1.msra.mxu0 0.0
    %3864 = vmatprep.subr.mxu0 0.0
    %3865 = vmatpush1.msra.mxu0 0.0
    %3866 = vmatprep.subr.mxu0 0.0
    %3867 = vmatpush1.msra.mxu0 0.0
    %3868 = vmatprep.subr.mxu0 0.0
    %3869 = vmatpush1.msra.mxu0 0.0
    %3870 = vmatprep.subr.mxu0 0.0
    %3871 = vmatpush1.msra.mxu0 0.0
    %3872 = vmatprep.subr.mxu0 0.0
    %3873 = vmatpush1.msra.mxu0 0.0
    %3874 = vmatprep.subr.mxu0 0.0
    %3875 = vmatpush1.msra.mxu0 0.0
    %3876 = vmatprep.mubr.f32.mxu0 0.0
    %3877 = vmatmul.mubr.f32.gmra.mrb[0].mxu0 %v3807
    %v3878 = vpop.f32.mrb[0].mxu0
    %v3879 = vadd.f32 %v3803, %v3878
    %v3880 = vpop.f32.mrb[0].mxu0
    %3881 = vmatprep.mubr.f32.mxu0 0.0
    %3882 = vmatmul.mubr.f32.gmra.mrb[0].mxu0 %v3810
    %v3883 = vpop.f32.mrb[0].mxu0
    %v3884 = vadd.f32 %v3803, %v3883
    %v3885 = vpop.f32.mrb[0].mxu0
    %3886 = vdwg.mxu0
    %v3887 = vadd.f32 %v3694, %v3879
    %v3888 = vadd.f32 %v3695, %v3884
    %v3889 = vsel %vm349, %v3887, 0.0
    %3890 = vadd.xlane.f32.xlu0 %v3889
    %v3891 = vpop.xlane.xlu0 %3890
    %v3892 = vsel %vm349, %v3888, 0.0
    %3893 = vadd.xlane.f32.xlu0 %v3892
    %v3894 = vpop.xlane.xlu0 %3893
    %v3895 = vmul.f32 %v3891, %v1898
    %v3896 = vmul.f32 %v3894, %v1898
    %v3897 = vsub.f32 %v3887, %v3895
    %v3898 = vsub.f32 %v3888, %v3896
    %v3899 = vmul.f32 %v3897, %v3897
    %v3900 = vmul.f32 %v3898, %v3898
    %v3901 = vsel %vm349, %v3899, 0.0
    %3902 = vadd.xlane.f32.xlu0 %v3901
    %v3903 = vpop.xlane.xlu0 %3902
    %v3904 = vsel %vm349, %v3900, 0.0
    %3905 = vadd.xlane.f32.xlu0 %v3904
    %v3906 = vpop.xlane.xlu0 %3905
    %v3907 = vmul.f32 %v3903, %v1898
    %v3908 = vmul.f32 %v3906, %v1898
    %v3909 = vadd.f32 %v3907, 1e-05
    %v3910 = vadd.f32 %v3908, 1e-05
    %v3911 = vrsqrt.pop %v3909
    %v3912 = vrsqrt.pop %v3910
    %v3913 = vmul.f32 %v3897, %v3911
    %v3914 = vmul.f32 %v3898, %v3912
    %v3915 = vlaneseq
    %v3916 = vshrl.u32 %v3915, 7
    %v3917 = vsub.s32 2, %v3916
    %v3918 = vrot.slane %v336, %v3917
    %v3919 = vmul.f32 %v3913, %v3918
    %v3920 = vmul.f32 %v3914, %v3918
    %v3921 = vlaneseq
    %v3922 = vshrl.u32 %v3921, 7
    %v3923 = vsub.s32 2, %v3922
    %v3924 = vrot.slane %v337, %v3923
    %v3925 = vadd.f32 %v3919, %v3924
    %v3926 = vadd.f32 %v3920, %v3924
    %s3927 = scalar_lea.vmem %s16, 4
    %v3928 = vld [vmem:[%s3927] sm:$0x7]
    %s3929 = scalar_lea.vmem %s17, 4
    %v3930 = vld [vmem:[%s3929] sm:$0x7]
    %s3931 = scalar_lea.vmem %s6, 32
    %v3932 = vld [vmem:[%s3931] sm:$0xff]
    %v3933 = vld [vmem:[%s3931 + $0x8] sm:$0xff]
    %v3934 = vld [vmem:[%s3931 + $0x10] sm:$0xff]
    %v3935 = vld [vmem:[%s3931 + $0x18] sm:$0xff]
    %s3936 = scalar_lea.vmem %s7, 1
    %v3937 = vld [vmem:[%s3936] sm:$0x1]
    %v3939 = vlaneseq
    %v3940 = vshrl.u32 %v3939, 7
    %v3941 = vsub.s32 0, %v3940
    %v3942 = vrot.slane %v3937, %v3941
    %v3945 = vsel %vm349, %v3925, 0
    %v3948 = vsel %vm349, %v3926, 0
    %3950 = vmatprep.subr.mxu0 0.0
    %3951 = vmatpush1.msra.mxu0 %v3932
    %3952 = vmatprep.subr.mxu0 0.0
    %3953 = vmatpush1.msra.mxu0 %v3933
    %3954 = vmatprep.subr.mxu0 0.0
    %3955 = vmatpush1.msra.mxu0 %v3934
    %3956 = vmatprep.subr.mxu0 0.0
    %3957 = vmatpush1.msra.mxu0 %v3935
    %3958 = vmatprep.subr.mxu0 0.0
    %3959 = vmatpush1.msra.mxu0 0.0
    %3960 = vmatprep.subr.mxu0 0.0
    %3961 = vmatpush1.msra.mxu0 0.0
    %3962 = vmatprep.subr.mxu0 0.0
    %3963 = vmatpush1.msra.mxu0 0.0
    %3964 = vmatprep.subr.mxu0 0.0
    %3965 = vmatpush1.msra.mxu0 0.0
    %3966 = vmatprep.subr.mxu0 0.0
    %3967 = vmatpush1.msra.mxu0 0.0
    %3968 = vmatprep.subr.mxu0 0.0
    %3969 = vmatpush1.msra.mxu0 0.0
    %3970 = vmatprep.subr.mxu0 0.0
    %3971 = vmatpush1.msra.mxu0 0.0
    %3972 = vmatprep.subr.mxu0 0.0
    %3973 = vmatpush1.msra.mxu0 0.0
    %3974 = vmatprep.subr.mxu0 0.0
    %3975 = vmatpush1.msra.mxu0 0.0
    %3976 = vmatprep.subr.mxu0 0.0
    %3977 = vmatpush1.msra.mxu0 0.0
    %3978 = vmatprep.subr.mxu0 0.0
    %3979 = vmatpush1.msra.mxu0 0.0
    %3980 = vmatprep.subr.mxu0 0.0
    %3981 = vmatpush1.msra.mxu0 0.0
    %3982 = vmatprep.subr.mxu0 0.0
    %3983 = vmatpush1.msra.mxu0 0.0
    %3984 = vmatprep.subr.mxu0 0.0
    %3985 = vmatpush1.msra.mxu0 0.0
    %3986 = vmatprep.subr.mxu0 0.0
    %3987 = vmatpush1.msra.mxu0 0.0
    %3988 = vmatprep.subr.mxu0 0.0
    %3989 = vmatpush1.msra.mxu0 0.0
    %3990 = vmatprep.subr.mxu0 0.0
    %3991 = vmatpush1.msra.mxu0 0.0
    %3992 = vmatprep.subr.mxu0 0.0
    %3993 = vmatpush1.msra.mxu0 0.0
    %3994 = vmatprep.subr.mxu0 0.0
    %3995 = vmatpush1.msra.mxu0 0.0
    %3996 = vmatprep.subr.mxu0 0.0
    %3997 = vmatpush1.msra.mxu0 0.0
    %3998 = vmatprep.subr.mxu0 0.0
    %3999 = vmatpush1.msra.mxu0 0.0
    %4000 = vmatprep.subr.mxu0 0.0
    %4001 = vmatpush1.msra.mxu0 0.0
    %4002 = vmatprep.subr.mxu0 0.0
    %4003 = vmatpush1.msra.mxu0 0.0
    %4004 = vmatprep.subr.mxu0 0.0
    %4005 = vmatpush1.msra.mxu0 0.0
    %4006 = vmatprep.subr.mxu0 0.0
    %4007 = vmatpush1.msra.mxu0 0.0
    %4008 = vmatprep.subr.mxu0 0.0
    %4009 = vmatpush1.msra.mxu0 0.0
    %4010 = vmatprep.subr.mxu0 0.0
    %4011 = vmatpush1.msra.mxu0 0.0
    %4012 = vmatprep.subr.mxu0 0.0
    %4013 = vmatpush1.msra.mxu0 0.0
    %4014 = vmatprep.mubr.f32.mxu0 0.0
    %4015 = vmatmul.mubr.f32.gmra.mrb[0].mxu0 %v3945
    %v4016 = vpop.f32.mrb[0].mxu0
    %v4017 = vadd.f32 %v3942, %v4016
    %v4018 = vpop.f32.mrb[0].mxu0
    %4019 = vmatprep.mubr.f32.mxu0 0.0
    %4020 = vmatmul.mubr.f32.gmra.mrb[0].mxu0 %v3948
    %v4021 = vpop.f32.mrb[0].mxu0
    %v4022 = vadd.f32 %v3942, %v4021
    %v4023 = vpop.f32.mrb[0].mxu0
    %4024 = vdwg.mxu0
    %4026 = vrot.lane.b32.xlu0 %v4017, 96
    %v4027 = vpop.permute.xlu0 %4026
    %v4028 = vsel %vm434, %v4017, 0
    %v4030 = vsel %vm434, %v4027, 0
    %4032 = vmatprep.subr.mxu0 0.0
    %4033 = vmatpush1.xpose.msra.mxu0 %v4030
    %4034 = vmatprep.subr.mxu0 0.0
    %4035 = vmatpush1.xpose.msra.mxu0 0.0
    %4036 = vmatprep.subr.mxu0 0.0
    %4037 = vmatpush1.xpose.msra.mxu0 0.0
    %4038 = vmatprep.subr.mxu0 0.0
    %4039 = vmatpush1.xpose.msra.mxu0 0.0
    %4040 = vmatprep.subr.mxu0 0.0
    %4041 = vmatpush1.xpose.msra.mxu0 0.0
    %4042 = vmatprep.subr.mxu0 0.0
    %4043 = vmatpush1.xpose.msra.mxu0 0.0
    %4044 = vmatprep.subr.mxu0 0.0
    %4045 = vmatpush1.xpose.msra.mxu0 0.0
    %4046 = vmatprep.subr.mxu0 0.0
    %4047 = vmatpush1.xpose.msra.mxu0 0.0
    %4048 = vmatprep.subr.mxu0 0.0
    %4049 = vmatpush1.xpose.msra.mxu0 0.0
    %4050 = vmatprep.subr.mxu0 0.0
    %4051 = vmatpush1.xpose.msra.mxu0 0.0
    %4052 = vmatprep.subr.mxu0 0.0
    %4053 = vmatpush1.xpose.msra.mxu0 0.0
    %4054 = vmatprep.subr.mxu0 0.0
    %4055 = vmatpush1.xpose.msra.mxu0 0.0
    %4056 = vmatprep.subr.mxu0 0.0
    %4057 = vmatpush1.xpose.msra.mxu0 0.0
    %4058 = vmatprep.subr.mxu0 0.0
    %4059 = vmatpush1.xpose.msra.mxu0 0.0
    %4060 = vmatprep.subr.mxu0 0.0
    %4061 = vmatpush1.xpose.msra.mxu0 0.0
    %4062 = vmatprep.subr.mxu0 0.0
    %4063 = vmatpush1.xpose.msra.mxu0 0.0
    %4064 = vmatprep.subr.mxu0 0.0
    %4065 = vmatpush1.xpose.msra.mxu0 0.0
    %4066 = vmatprep.subr.mxu0 0.0
    %4067 = vmatpush1.xpose.msra.mxu0 0.0
    %4068 = vmatprep.subr.mxu0 0.0
    %4069 = vmatpush1.xpose.msra.mxu0 0.0
    %4070 = vmatprep.subr.mxu0 0.0
    %4071 = vmatpush1.xpose.msra.mxu0 0.0
    %4072 = vmatprep.subr.mxu0 0.0
    %4073 = vmatpush1.xpose.msra.mxu0 0.0
    %4074 = vmatprep.subr.mxu0 0.0
    %4075 = vmatpush1.xpose.msra.mxu0 0.0
    %4076 = vmatprep.subr.mxu0 0.0
    %4077 = vmatpush1.xpose.msra.mxu0 0.0
    %4078 = vmatprep.subr.mxu0 0.0
    %4079 = vmatpush1.xpose.msra.mxu0 0.0
    %4080 = vmatprep.subr.mxu0 0.0
    %4081 = vmatpush1.xpose.msra.mxu0 0.0
    %4082 = vmatprep.subr.mxu0 0.0
    %4083 = vmatpush1.xpose.msra.mxu0 0.0
    %4084 = vmatprep.subr.mxu0 0.0
    %4085 = vmatpush1.xpose.msra.mxu0 0.0
    %4086 = vmatprep.subr.mxu0 0.0
    %4087 = vmatpush1.xpose.msra.mxu0 0.0
    %4088 = vmatprep.subr.mxu0 0.0
    %4089 = vmatpush1.xpose.msra.mxu0 0.0
    %4090 = vmatprep.subr.mxu0 0.0
    %4091 = vmatpush1.xpose.msra.mxu0 0.0
    %4092 = vmatprep.subr.mxu0 0.0
    %4093 = vmatpush1.xpose.msra.mxu0 0.0
    %4094 = vmatprep.subr.mxu0 0.0
    %4095 = vmatpush1.xpose.msra.mxu0 0.0
    %4096 = vmatprep.mubr.f32.mxu0 0.0
    %4097 = vmatmul.mubr.f32.gmra.mrb[0].mxu0 %v4028
    %v4098 = vpop.f32.mrb[0].mxu0
    %v4099 = vadd.f32 0.0, %v4098
    %v4100 = vpop.f32.mrb[0].mxu0
    %4101 = vdwg.mxu0
    %v4102 = vmul.f32 %v4099, 0.35355338
    %v4103 = vadd.f32 %v4102, %v328
    %v4104 = vsel %vm434, %v4103, -inf
    %4105 = vmax.xlane.f32.xlu0 %v4104
    %v4106 = vpop.xlane.xlu0 %4105
    %v4107 = vsub.f32 %v4103, %v4106
    %v4108 = vmul.f32 %v4107, 1.442695
    %v4109 = vpow.pop %v4108
    %v4110 = vsel %vm434, %v4109, 0.0
    %4111 = vadd.xlane.f32.xlu0 %v4110
    %v4112 = vpop.xlane.xlu0 %4111
    %v4113 = vrcp.pop %v4112
    %v4114 = vmul.f32 %v4109, %v4113
    %4115 = vrot.lane.b32.xlu0 %v4017, 64
    %v4116 = vpop.permute.xlu0 %4115
    %v4119 = vsel %vm434, %v4114, 0
    %4121 = vmatprep.subr.mxu0 0.0
    %4122 = vmatpush1.msra.mxu0 %v4116
    %4123 = vmatprep.subr.mxu0 0.0
    %4124 = vmatpush1.msra.mxu0 0.0
    %4125 = vmatprep.subr.mxu0 0.0
    %4126 = vmatpush1.msra.mxu0 0.0
    %4127 = vmatprep.subr.mxu0 0.0
    %4128 = vmatpush1.msra.mxu0 0.0
    %4129 = vmatprep.subr.mxu0 0.0
    %4130 = vmatpush1.msra.mxu0 0.0
    %4131 = vmatprep.subr.mxu0 0.0
    %4132 = vmatpush1.msra.mxu0 0.0
    %4133 = vmatprep.subr.mxu0 0.0
    %4134 = vmatpush1.msra.mxu0 0.0
    %4135 = vmatprep.subr.mxu0 0.0
    %4136 = vmatpush1.msra.mxu0 0.0
    %4137 = vmatprep.subr.mxu0 0.0
    %4138 = vmatpush1.msra.mxu0 0.0
    %4139 = vmatprep.subr.mxu0 0.0
    %4140 = vmatpush1.msra.mxu0 0.0
    %4141 = vmatprep.subr.mxu0 0.0
    %4142 = vmatpush1.msra.mxu0 0.0
    %4143 = vmatprep.subr.mxu0 0.0
    %4144 = vmatpush1.msra.mxu0 0.0
    %4145 = vmatprep.subr.mxu0 0.0
    %4146 = vmatpush1.msra.mxu0 0.0
    %4147 = vmatprep.subr.mxu0 0.0
    %4148 = vmatpush1.msra.mxu0 0.0
    %4149 = vmatprep.subr.mxu0 0.0
    %4150 = vmatpush1.msra.mxu0 0.0
    %4151 = vmatprep.subr.mxu0 0.0
    %4152 = vmatpush1.msra.mxu0 0.0
    %4153 = vmatprep.subr.mxu0 0.0
    %4154 = vmatpush1.msra.mxu0 0.0
    %4155 = vmatprep.subr.mxu0 0.0
    %4156 = vmatpush1.msra.mxu0 0.0
    %4157 = vmatprep.subr.mxu0 0.0
    %4158 = vmatpush1.msra.mxu0 0.0
    %4159 = vmatprep.subr.mxu0 0.0
    %4160 = vmatpush1.msra.mxu0 0.0
    %4161 = vmatprep.subr.mxu0 0.0
    %4162 = vmatpush1.msra.mxu0 0.0
    %4163 = vmatprep.subr.mxu0 0.0
    %4164 = vmatpush1.msra.mxu0 0.0
    %4165 = vmatprep.subr.mxu0 0.0
    %4166 = vmatpush1.msra.mxu0 0.0
    %4167 = vmatprep.subr.mxu0 0.0
    %4168 = vmatpush1.msra.mxu0 0.0
    %4169 = vmatprep.subr.mxu0 0.0
    %4170 = vmatpush1.msra.mxu0 0.0
    %4171 = vmatprep.subr.mxu0 0.0
    %4172 = vmatpush1.msra.mxu0 0.0
    %4173 = vmatprep.subr.mxu0 0.0
    %4174 = vmatpush1.msra.mxu0 0.0
    %4175 = vmatprep.subr.mxu0 0.0
    %4176 = vmatpush1.msra.mxu0 0.0
    %4177 = vmatprep.subr.mxu0 0.0
    %4178 = vmatpush1.msra.mxu0 0.0
    %4179 = vmatprep.subr.mxu0 0.0
    %4180 = vmatpush1.msra.mxu0 0.0
    %4181 = vmatprep.subr.mxu0 0.0
    %4182 = vmatpush1.msra.mxu0 0.0
    %4183 = vmatprep.subr.mxu0 0.0
    %4184 = vmatpush1.msra.mxu0 0.0
    %4185 = vmatprep.mubr.f32.mxu0 0.0
    %4186 = vmatmul.mubr.f32.gmra.mrb[0].mxu0 %v4119
    %v4187 = vpop.f32.mrb[0].mxu0
    %v4188 = vadd.f32 0.0, %v4187
    %v4189 = vpop.f32.mrb[0].mxu0
    %4190 = vdwg.mxu0
    %4191 = vrot.lane.b32.xlu0 %v4017, 120
    %v4192 = vpop.permute.xlu0 %4191
    %4193 = vrot.lane.b32.xlu0 %v4017, 88
    %v4194 = vpop.permute.xlu0 %4193
    %v4195 = vsel %vm434, %v4192, 0
    %v4197 = vsel %vm434, %v4194, 0
    %4199 = vmatprep.subr.mxu0 0.0
    %4200 = vmatpush1.xpose.msra.mxu0 %v4197
    %4201 = vmatprep.subr.mxu0 0.0
    %4202 = vmatpush1.xpose.msra.mxu0 0.0
    %4203 = vmatprep.subr.mxu0 0.0
    %4204 = vmatpush1.xpose.msra.mxu0 0.0
    %4205 = vmatprep.subr.mxu0 0.0
    %4206 = vmatpush1.xpose.msra.mxu0 0.0
    %4207 = vmatprep.subr.mxu0 0.0
    %4208 = vmatpush1.xpose.msra.mxu0 0.0
    %4209 = vmatprep.subr.mxu0 0.0
    %4210 = vmatpush1.xpose.msra.mxu0 0.0
    %4211 = vmatprep.subr.mxu0 0.0
    %4212 = vmatpush1.xpose.msra.mxu0 0.0
    %4213 = vmatprep.subr.mxu0 0.0
    %4214 = vmatpush1.xpose.msra.mxu0 0.0
    %4215 = vmatprep.subr.mxu0 0.0
    %4216 = vmatpush1.xpose.msra.mxu0 0.0
    %4217 = vmatprep.subr.mxu0 0.0
    %4218 = vmatpush1.xpose.msra.mxu0 0.0
    %4219 = vmatprep.subr.mxu0 0.0
    %4220 = vmatpush1.xpose.msra.mxu0 0.0
    %4221 = vmatprep.subr.mxu0 0.0
    %4222 = vmatpush1.xpose.msra.mxu0 0.0
    %4223 = vmatprep.subr.mxu0 0.0
    %4224 = vmatpush1.xpose.msra.mxu0 0.0
    %4225 = vmatprep.subr.mxu0 0.0
    %4226 = vmatpush1.xpose.msra.mxu0 0.0
    %4227 = vmatprep.subr.mxu0 0.0
    %4228 = vmatpush1.xpose.msra.mxu0 0.0
    %4229 = vmatprep.subr.mxu0 0.0
    %4230 = vmatpush1.xpose.msra.mxu0 0.0
    %4231 = vmatprep.subr.mxu0 0.0
    %4232 = vmatpush1.xpose.msra.mxu0 0.0
    %4233 = vmatprep.subr.mxu0 0.0
    %4234 = vmatpush1.xpose.msra.mxu0 0.0
    %4235 = vmatprep.subr.mxu0 0.0
    %4236 = vmatpush1.xpose.msra.mxu0 0.0
    %4237 = vmatprep.subr.mxu0 0.0
    %4238 = vmatpush1.xpose.msra.mxu0 0.0
    %4239 = vmatprep.subr.mxu0 0.0
    %4240 = vmatpush1.xpose.msra.mxu0 0.0
    %4241 = vmatprep.subr.mxu0 0.0
    %4242 = vmatpush1.xpose.msra.mxu0 0.0
    %4243 = vmatprep.subr.mxu0 0.0
    %4244 = vmatpush1.xpose.msra.mxu0 0.0
    %4245 = vmatprep.subr.mxu0 0.0
    %4246 = vmatpush1.xpose.msra.mxu0 0.0
    %4247 = vmatprep.subr.mxu0 0.0
    %4248 = vmatpush1.xpose.msra.mxu0 0.0
    %4249 = vmatprep.subr.mxu0 0.0
    %4250 = vmatpush1.xpose.msra.mxu0 0.0
    %4251 = vmatprep.subr.mxu0 0.0
    %4252 = vmatpush1.xpose.msra.mxu0 0.0
    %4253 = vmatprep.subr.mxu0 0.0
    %4254 = vmatpush1.xpose.msra.mxu0 0.0
    %4255 = vmatprep.subr.mxu0 0.0
    %4256 = vmatpush1.xpose.msra.mxu0 0.0
    %4257 = vmatprep.subr.mxu0 0.0
    %4258 = vmatpush1.xpose.msra.mxu0 0.0
    %4259 = vmatprep.subr.mxu0 0.0
    %4260 = vmatpush1.xpose.msra.mxu0 0.0
    %4261 = vmatprep.subr.mxu0 0.0
    %4262 = vmatpush1.xpose.msra.mxu0 0.0
    %4263 = vmatprep.mubr.f32.mxu0 0.0
    %4264 = vmatmul.mubr.f32.gmra.mrb[0].mxu0 %v4195
    %v4265 = vpop.f32.mrb[0].mxu0
    %v4266 = vadd.f32 0.0, %v4265
    %v4267 = vpop.f32.mrb[0].mxu0
    %4268 = vdwg.mxu0
    %v4269 = vmul.f32 %v4266, 0.35355338
    %v4270 = vadd.f32 %v4269, %v328
    %v4271 = vsel %vm434, %v4270, -inf
    %4272 = vmax.xlane.f32.xlu0 %v4271
    %v4273 = vpop.xlane.xlu0 %4272
    %v4274 = vsub.f32 %v4270, %v4273
    %v4275 = vmul.f32 %v4274, 1.442695
    %v4276 = vpow.pop %v4275
    %v4277 = vsel %vm434, %v4276, 0.0
    %4278 = vadd.xlane.f32.xlu0 %v4277
    %v4279 = vpop.xlane.xlu0 %4278
    %v4280 = vrcp.pop %v4279
    %v4281 = vmul.f32 %v4276, %v4280
    %4282 = vrot.lane.b32.xlu0 %v4017, 56
    %v4283 = vpop.permute.xlu0 %4282
    %v4286 = vsel %vm434, %v4281, 0
    %4288 = vmatprep.subr.mxu0 0.0
    %4289 = vmatpush1.msra.mxu0 %v4283
    %4290 = vmatprep.subr.mxu0 0.0
    %4291 = vmatpush1.msra.mxu0 0.0
    %4292 = vmatprep.subr.mxu0 0.0
    %4293 = vmatpush1.msra.mxu0 0.0
    %4294 = vmatprep.subr.mxu0 0.0
    %4295 = vmatpush1.msra.mxu0 0.0
    %4296 = vmatprep.subr.mxu0 0.0
    %4297 = vmatpush1.msra.mxu0 0.0
    %4298 = vmatprep.subr.mxu0 0.0
    %4299 = vmatpush1.msra.mxu0 0.0
    %4300 = vmatprep.subr.mxu0 0.0
    %4301 = vmatpush1.msra.mxu0 0.0
    %4302 = vmatprep.subr.mxu0 0.0
    %4303 = vmatpush1.msra.mxu0 0.0
    %4304 = vmatprep.subr.mxu0 0.0
    %4305 = vmatpush1.msra.mxu0 0.0
    %4306 = vmatprep.subr.mxu0 0.0
    %4307 = vmatpush1.msra.mxu0 0.0
    %4308 = vmatprep.subr.mxu0 0.0
    %4309 = vmatpush1.msra.mxu0 0.0
    %4310 = vmatprep.subr.mxu0 0.0
    %4311 = vmatpush1.msra.mxu0 0.0
    %4312 = vmatprep.subr.mxu0 0.0
    %4313 = vmatpush1.msra.mxu0 0.0
    %4314 = vmatprep.subr.mxu0 0.0
    %4315 = vmatpush1.msra.mxu0 0.0
    %4316 = vmatprep.subr.mxu0 0.0
    %4317 = vmatpush1.msra.mxu0 0.0
    %4318 = vmatprep.subr.mxu0 0.0
    %4319 = vmatpush1.msra.mxu0 0.0
    %4320 = vmatprep.subr.mxu0 0.0
    %4321 = vmatpush1.msra.mxu0 0.0
    %4322 = vmatprep.subr.mxu0 0.0
    %4323 = vmatpush1.msra.mxu0 0.0
    %4324 = vmatprep.subr.mxu0 0.0
    %4325 = vmatpush1.msra.mxu0 0.0
    %4326 = vmatprep.subr.mxu0 0.0
    %4327 = vmatpush1.msra.mxu0 0.0
    %4328 = vmatprep.subr.mxu0 0.0
    %4329 = vmatpush1.msra.mxu0 0.0
    %4330 = vmatprep.subr.mxu0 0.0
    %4331 = vmatpush1.msra.mxu0 0.0
    %4332 = vmatprep.subr.mxu0 0.0
    %4333 = vmatpush1.msra.mxu0 0.0
    %4334 = vmatprep.subr.mxu0 0.0
    %4335 = vmatpush1.msra.mxu0 0.0
    %4336 = vmatprep.subr.mxu0 0.0
    %4337 = vmatpush1.msra.mxu0 0.0
    %4338 = vmatprep.subr.mxu0 0.0
    %4339 = vmatpush1.msra.mxu0 0.0
    %4340 = vmatprep.subr.mxu0 0.0
    %4341 = vmatpush1.msra.mxu0 0.0
    %4342 = vmatprep.subr.mxu0 0.0
    %4343 = vmatpush1.msra.mxu0 0.0
    %4344 = vmatprep.subr.mxu0 0.0
    %4345 = vmatpush1.msra.mxu0 0.0
    %4346 = vmatprep.subr.mxu0 0.0
    %4347 = vmatpush1.msra.mxu0 0.0
    %4348 = vmatprep.subr.mxu0 0.0
    %4349 = vmatpush1.msra.mxu0 0.0
    %4350 = vmatprep.subr.mxu0 0.0
    %4351 = vmatpush1.msra.mxu0 0.0
    %4352 = vmatprep.mubr.f32.mxu0 0.0
    %4353 = vmatmul.mubr.f32.gmra.mrb[0].mxu0 %v4286
    %v4354 = vpop.f32.mrb[0].mxu0
    %v4355 = vadd.f32 0.0, %v4354
    %v4356 = vpop.f32.mrb[0].mxu0
    %4357 = vdwg.mxu0
    %4358 = vrot.lane.b32.xlu0 %v4017, 112
    %v4359 = vpop.permute.xlu0 %4358
    %4360 = vrot.lane.b32.xlu0 %v4017, 80
    %v4361 = vpop.permute.xlu0 %4360
    %v4362 = vsel %vm434, %v4359, 0
    %v4364 = vsel %vm434, %v4361, 0
    %4366 = vmatprep.subr.mxu0 0.0
    %4367 = vmatpush1.xpose.msra.mxu0 %v4364
    %4368 = vmatprep.subr.mxu0 0.0
    %4369 = vmatpush1.xpose.msra.mxu0 0.0
    %4370 = vmatprep.subr.mxu0 0.0
    %4371 = vmatpush1.xpose.msra.mxu0 0.0
    %4372 = vmatprep.subr.mxu0 0.0
    %4373 = vmatpush1.xpose.msra.mxu0 0.0
    %4374 = vmatprep.subr.mxu0 0.0
    %4375 = vmatpush1.xpose.msra.mxu0 0.0
    %4376 = vmatprep.subr.mxu0 0.0
    %4377 = vmatpush1.xpose.msra.mxu0 0.0
    %4378 = vmatprep.subr.mxu0 0.0
    %4379 = vmatpush1.xpose.msra.mxu0 0.0
    %4380 = vmatprep.subr.mxu0 0.0
    %4381 = vmatpush1.xpose.msra.mxu0 0.0
    %4382 = vmatprep.subr.mxu0 0.0
    %4383 = vmatpush1.xpose.msra.mxu0 0.0
    %4384 = vmatprep.subr.mxu0 0.0
    %4385 = vmatpush1.xpose.msra.mxu0 0.0
    %4386 = vmatprep.subr.mxu0 0.0
    %4387 = vmatpush1.xpose.msra.mxu0 0.0
    %4388 = vmatprep.subr.mxu0 0.0
    %4389 = vmatpush1.xpose.msra.mxu0 0.0
    %4390 = vmatprep.subr.mxu0 0.0
    %4391 = vmatpush1.xpose.msra.mxu0 0.0
    %4392 = vmatprep.subr.mxu0 0.0
    %4393 = vmatpush1.xpose.msra.mxu0 0.0
    %4394 = vmatprep.subr.mxu0 0.0
    %4395 = vmatpush1.xpose.msra.mxu0 0.0
    %4396 = vmatprep.subr.mxu0 0.0
    %4397 = vmatpush1.xpose.msra.mxu0 0.0
    %4398 = vmatprep.subr.mxu0 0.0
    %4399 = vmatpush1.xpose.msra.mxu0 0.0
    %4400 = vmatprep.subr.mxu0 0.0
    %4401 = vmatpush1.xpose.msra.mxu0 0.0
    %4402 = vmatprep.subr.mxu0 0.0
    %4403 = vmatpush1.xpose.msra.mxu0 0.0
    %4404 = vmatprep.subr.mxu0 0.0
    %4405 = vmatpush1.xpose.msra.mxu0 0.0
    %4406 = vmatprep.subr.mxu0 0.0
    %4407 = vmatpush1.xpose.msra.mxu0 0.0
    %4408 = vmatprep.subr.mxu0 0.0
    %4409 = vmatpush1.xpose.msra.mxu0 0.0
    %4410 = vmatprep.subr.mxu0 0.0
    %4411 = vmatpush1.xpose.msra.mxu0 0.0
    %4412 = vmatprep.subr.mxu0 0.0
    %4413 = vmatpush1.xpose.msra.mxu0 0.0
    %4414 = vmatprep.subr.mxu0 0.0
    %4415 = vmatpush1.xpose.msra.mxu0 0.0
    %4416 = vmatprep.subr.mxu0 0.0
    %4417 = vmatpush1.xpose.msra.mxu0 0.0
    %4418 = vmatprep.subr.mxu0 0.0
    %4419 = vmatpush1.xpose.msra.mxu0 0.0
    %4420 = vmatprep.subr.mxu0 0.0
    %4421 = vmatpush1.xpose.msra.mxu0 0.0
    %4422 = vmatprep.subr.mxu0 0.0
    %4423 = vmatpush1.xpose.msra.mxu0 0.0
    %4424 = vmatprep.subr.mxu0 0.0
    %4425 = vmatpush1.xpose.msra.mxu0 0.0
    %4426 = vmatprep.subr.mxu0 0.0
    %4427 = vmatpush1.xpose.msra.mxu0 0.0
    %4428 = vmatprep.subr.mxu0 0.0
    %4429 = vmatpush1.xpose.msra.mxu0 0.0
    %4430 = vmatprep.mubr.f32.mxu0 0.0
    %4431 = vmatmul.mubr.f32.gmra.mrb[0].mxu0 %v4362
    %v4432 = vpop.f32.mrb[0].mxu0
    %v4433 = vadd.f32 0.0, %v4432
    %v4434 = vpop.f32.mrb[0].mxu0
    %4435 = vdwg.mxu0
    %v4436 = vmul.f32 %v4433, 0.35355338
    %v4437 = vadd.f32 %v4436, %v328
    %v4438 = vsel %vm434, %v4437, -inf
    %4439 = vmax.xlane.f32.xlu0 %v4438
    %v4440 = vpop.xlane.xlu0 %4439
    %v4441 = vsub.f32 %v4437, %v4440
    %v4442 = vmul.f32 %v4441, 1.442695
    %v4443 = vpow.pop %v4442
    %v4444 = vsel %vm434, %v4443, 0.0
    %4445 = vadd.xlane.f32.xlu0 %v4444
    %v4446 = vpop.xlane.xlu0 %4445
    %v4447 = vrcp.pop %v4446
    %v4448 = vmul.f32 %v4443, %v4447
    %4449 = vrot.lane.b32.xlu0 %v4017, 48
    %v4450 = vpop.permute.xlu0 %4449
    %v4453 = vsel %vm434, %v4448, 0
    %4455 = vmatprep.subr.mxu0 0.0
    %4456 = vmatpush1.msra.mxu0 %v4450
    %4457 = vmatprep.subr.mxu0 0.0
    %4458 = vmatpush1.msra.mxu0 0.0
    %4459 = vmatprep.subr.mxu0 0.0
    %4460 = vmatpush1.msra.mxu0 0.0
    %4461 = vmatprep.subr.mxu0 0.0
    %4462 = vmatpush1.msra.mxu0 0.0
    %4463 = vmatprep.subr.mxu0 0.0
    %4464 = vmatpush1.msra.mxu0 0.0
    %4465 = vmatprep.subr.mxu0 0.0
    %4466 = vmatpush1.msra.mxu0 0.0
    %4467 = vmatprep.subr.mxu0 0.0
    %4468 = vmatpush1.msra.mxu0 0.0
    %4469 = vmatprep.subr.mxu0 0.0
    %4470 = vmatpush1.msra.mxu0 0.0
    %4471 = vmatprep.subr.mxu0 0.0
    %4472 = vmatpush1.msra.mxu0 0.0
    %4473 = vmatprep.subr.mxu0 0.0
    %4474 = vmatpush1.msra.mxu0 0.0
    %4475 = vmatprep.subr.mxu0 0.0
    %4476 = vmatpush1.msra.mxu0 0.0
    %4477 = vmatprep.subr.mxu0 0.0
    %4478 = vmatpush1.msra.mxu0 0.0
    %4479 = vmatprep.subr.mxu0 0.0
    %4480 = vmatpush1.msra.mxu0 0.0
    %4481 = vmatprep.subr.mxu0 0.0
    %4482 = vmatpush1.msra.mxu0 0.0
    %4483 = vmatprep.subr.mxu0 0.0
    %4484 = vmatpush1.msra.mxu0 0.0
    %4485 = vmatprep.subr.mxu0 0.0
    %4486 = vmatpush1.msra.mxu0 0.0
    %4487 = vmatprep.subr.mxu0 0.0
    %4488 = vmatpush1.msra.mxu0 0.0
    %4489 = vmatprep.subr.mxu0 0.0
    %4490 = vmatpush1.msra.mxu0 0.0
    %4491 = vmatprep.subr.mxu0 0.0
    %4492 = vmatpush1.msra.mxu0 0.0
    %4493 = vmatprep.subr.mxu0 0.0
    %4494 = vmatpush1.msra.mxu0 0.0
    %4495 = vmatprep.subr.mxu0 0.0
    %4496 = vmatpush1.msra.mxu0 0.0
    %4497 = vmatprep.subr.mxu0 0.0
    %4498 = vmatpush1.msra.mxu0 0.0
    %4499 = vmatprep.subr.mxu0 0.0
    %4500 = vmatpush1.msra.mxu0 0.0
    %4501 = vmatprep.subr.mxu0 0.0
    %4502 = vmatpush1.msra.mxu0 0.0
    %4503 = vmatprep.subr.mxu0 0.0
    %4504 = vmatpush1.msra.mxu0 0.0
    %4505 = vmatprep.subr.mxu0 0.0
    %4506 = vmatpush1.msra.mxu0 0.0
    %4507 = vmatprep.subr.mxu0 0.0
    %4508 = vmatpush1.msra.mxu0 0.0
    %4509 = vmatprep.subr.mxu0 0.0
    %4510 = vmatpush1.msra.mxu0 0.0
    %4511 = vmatprep.subr.mxu0 0.0
    %4512 = vmatpush1.msra.mxu0 0.0
    %4513 = vmatprep.subr.mxu0 0.0
    %4514 = vmatpush1.msra.mxu0 0.0
    %4515 = vmatprep.subr.mxu0 0.0
    %4516 = vmatpush1.msra.mxu0 0.0
    %4517 = vmatprep.subr.mxu0 0.0
    %4518 = vmatpush1.msra.mxu0 0.0
    %4519 = vmatprep.mubr.f32.mxu0 0.0
    %4520 = vmatmul.mubr.f32.gmra.mrb[0].mxu0 %v4453
    %v4521 = vpop.f32.mrb[0].mxu0
    %v4522 = vadd.f32 0.0, %v4521
    %v4523 = vpop.f32.mrb[0].mxu0
    %4524 = vdwg.mxu0
    %4525 = vrot.lane.b32.xlu0 %v4017, 104
    %v4526 = vpop.permute.xlu0 %4525
    %4527 = vrot.lane.b32.xlu0 %v4017, 72
    %v4528 = vpop.permute.xlu0 %4527
    %v4529 = vsel %vm434, %v4526, 0
    %v4531 = vsel %vm434, %v4528, 0
    %4533 = vmatprep.subr.mxu0 0.0
    %4534 = vmatpush1.xpose.msra.mxu0 %v4531
    %4535 = vmatprep.subr.mxu0 0.0
    %4536 = vmatpush1.xpose.msra.mxu0 0.0
    %4537 = vmatprep.subr.mxu0 0.0
    %4538 = vmatpush1.xpose.msra.mxu0 0.0
    %4539 = vmatprep.subr.mxu0 0.0
    %4540 = vmatpush1.xpose.msra.mxu0 0.0
    %4541 = vmatprep.subr.mxu0 0.0
    %4542 = vmatpush1.xpose.msra.mxu0 0.0
    %4543 = vmatprep.subr.mxu0 0.0
    %4544 = vmatpush1.xpose.msra.mxu0 0.0
    %4545 = vmatprep.subr.mxu0 0.0
    %4546 = vmatpush1.xpose.msra.mxu0 0.0
    %4547 = vmatprep.subr.mxu0 0.0
    %4548 = vmatpush1.xpose.msra.mxu0 0.0
    %4549 = vmatprep.subr.mxu0 0.0
    %4550 = vmatpush1.xpose.msra.mxu0 0.0
    %4551 = vmatprep.subr.mxu0 0.0
    %4552 = vmatpush1.xpose.msra.mxu0 0.0
    %4553 = vmatprep.subr.mxu0 0.0
    %4554 = vmatpush1.xpose.msra.mxu0 0.0
    %4555 = vmatprep.subr.mxu0 0.0
    %4556 = vmatpush1.xpose.msra.mxu0 0.0
    %4557 = vmatprep.subr.mxu0 0.0
    %4558 = vmatpush1.xpose.msra.mxu0 0.0
    %4559 = vmatprep.subr.mxu0 0.0
    %4560 = vmatpush1.xpose.msra.mxu0 0.0
    %4561 = vmatprep.subr.mxu0 0.0
    %4562 = vmatpush1.xpose.msra.mxu0 0.0
    %4563 = vmatprep.subr.mxu0 0.0
    %4564 = vmatpush1.xpose.msra.mxu0 0.0
    %4565 = vmatprep.subr.mxu0 0.0
    %4566 = vmatpush1.xpose.msra.mxu0 0.0
    %4567 = vmatprep.subr.mxu0 0.0
    %4568 = vmatpush1.xpose.msra.mxu0 0.0
    %4569 = vmatprep.subr.mxu0 0.0
    %4570 = vmatpush1.xpose.msra.mxu0 0.0
    %4571 = vmatprep.subr.mxu0 0.0
    %4572 = vmatpush1.xpose.msra.mxu0 0.0
    %4573 = vmatprep.subr.mxu0 0.0
    %4574 = vmatpush1.xpose.msra.mxu0 0.0
    %4575 = vmatprep.subr.mxu0 0.0
    %4576 = vmatpush1.xpose.msra.mxu0 0.0
    %4577 = vmatprep.subr.mxu0 0.0
    %4578 = vmatpush1.xpose.msra.mxu0 0.0
    %4579 = vmatprep.subr.mxu0 0.0
    %4580 = vmatpush1.xpose.msra.mxu0 0.0
    %4581 = vmatprep.subr.mxu0 0.0
    %4582 = vmatpush1.xpose.msra.mxu0 0.0
    %4583 = vmatprep.subr.mxu0 0.0
    %4584 = vmatpush1.xpose.msra.mxu0 0.0
    %4585 = vmatprep.subr.mxu0 0.0
    %4586 = vmatpush1.xpose.msra.mxu0 0.0
    %4587 = vmatprep.subr.mxu0 0.0
    %4588 = vmatpush1.xpose.msra.mxu0 0.0
    %4589 = vmatprep.subr.mxu0 0.0
    %4590 = vmatpush1.xpose.msra.mxu0 0.0
    %4591 = vmatprep.subr.mxu0 0.0
    %4592 = vmatpush1.xpose.msra.mxu0 0.0
    %4593 = vmatprep.subr.mxu0 0.0
    %4594 = vmatpush1.xpose.msra.mxu0 0.0
    %4595 = vmatprep.subr.mxu0 0.0
    %4596 = vmatpush1.xpose.msra.mxu0 0.0
    %4597 = vmatprep.mubr.f32.mxu0 0.0
    %4598 = vmatmul.mubr.f32.gmra.mrb[0].mxu0 %v4529
    %v4599 = vpop.f32.mrb[0].mxu0
    %v4600 = vadd.f32 0.0, %v4599
    %v4601 = vpop.f32.mrb[0].mxu0
    %4602 = vdwg.mxu0
    %v4603 = vmul.f32 %v4600, 0.35355338
    %v4604 = vadd.f32 %v4603, %v328
    %v4605 = vsel %vm434, %v4604, -inf
    %4606 = vmax.xlane.f32.xlu0 %v4605
    %v4607 = vpop.xlane.xlu0 %4606
    %v4608 = vsub.f32 %v4604, %v4607
    %v4609 = vmul.f32 %v4608, 1.442695
    %v4610 = vpow.pop %v4609
    %v4611 = vsel %vm434, %v4610, 0.0
    %4612 = vadd.xlane.f32.xlu0 %v4611
    %v4613 = vpop.xlane.xlu0 %4612
    %v4614 = vrcp.pop %v4613
    %v4615 = vmul.f32 %v4610, %v4614
    %4616 = vrot.lane.b32.xlu0 %v4017, 40
    %v4617 = vpop.permute.xlu0 %4616
    %v4620 = vsel %vm434, %v4615, 0
    %4622 = vmatprep.subr.mxu0 0.0
    %4623 = vmatpush1.msra.mxu0 %v4617
    %4624 = vmatprep.subr.mxu0 0.0
    %4625 = vmatpush1.msra.mxu0 0.0
    %4626 = vmatprep.subr.mxu0 0.0
    %4627 = vmatpush1.msra.mxu0 0.0
    %4628 = vmatprep.subr.mxu0 0.0
    %4629 = vmatpush1.msra.mxu0 0.0
    %4630 = vmatprep.subr.mxu0 0.0
    %4631 = vmatpush1.msra.mxu0 0.0
    %4632 = vmatprep.subr.mxu0 0.0
    %4633 = vmatpush1.msra.mxu0 0.0
    %4634 = vmatprep.subr.mxu0 0.0
    %4635 = vmatpush1.msra.mxu0 0.0
    %4636 = vmatprep.subr.mxu0 0.0
    %4637 = vmatpush1.msra.mxu0 0.0
    %4638 = vmatprep.subr.mxu0 0.0
    %4639 = vmatpush1.msra.mxu0 0.0
    %4640 = vmatprep.subr.mxu0 0.0
    %4641 = vmatpush1.msra.mxu0 0.0
    %4642 = vmatprep.subr.mxu0 0.0
    %4643 = vmatpush1.msra.mxu0 0.0
    %4644 = vmatprep.subr.mxu0 0.0
    %4645 = vmatpush1.msra.mxu0 0.0
    %4646 = vmatprep.subr.mxu0 0.0
    %4647 = vmatpush1.msra.mxu0 0.0
    %4648 = vmatprep.subr.mxu0 0.0
    %4649 = vmatpush1.msra.mxu0 0.0
    %4650 = vmatprep.subr.mxu0 0.0
    %4651 = vmatpush1.msra.mxu0 0.0
    %4652 = vmatprep.subr.mxu0 0.0
    %4653 = vmatpush1.msra.mxu0 0.0
    %4654 = vmatprep.subr.mxu0 0.0
    %4655 = vmatpush1.msra.mxu0 0.0
    %4656 = vmatprep.subr.mxu0 0.0
    %4657 = vmatpush1.msra.mxu0 0.0
    %4658 = vmatprep.subr.mxu0 0.0
    %4659 = vmatpush1.msra.mxu0 0.0
    %4660 = vmatprep.subr.mxu0 0.0
    %4661 = vmatpush1.msra.mxu0 0.0
    %4662 = vmatprep.subr.mxu0 0.0
    %4663 = vmatpush1.msra.mxu0 0.0
    %4664 = vmatprep.subr.mxu0 0.0
    %4665 = vmatpush1.msra.mxu0 0.0
    %4666 = vmatprep.subr.mxu0 0.0
    %4667 = vmatpush1.msra.mxu0 0.0
    %4668 = vmatprep.subr.mxu0 0.0
    %4669 = vmatpush1.msra.mxu0 0.0
    %4670 = vmatprep.subr.mxu0 0.0
    %4671 = vmatpush1.msra.mxu0 0.0
    %4672 = vmatprep.subr.mxu0 0.0
    %4673 = vmatpush1.msra.mxu0 0.0
    %4674 = vmatprep.subr.mxu0 0.0
    %4675 = vmatpush1.msra.mxu0 0.0
    %4676 = vmatprep.subr.mxu0 0.0
    %4677 = vmatpush1.msra.mxu0 0.0
    %4678 = vmatprep.subr.mxu0 0.0
    %4679 = vmatpush1.msra.mxu0 0.0
    %4680 = vmatprep.subr.mxu0 0.0
    %4681 = vmatpush1.msra.mxu0 0.0
    %4682 = vmatprep.subr.mxu0 0.0
    %4683 = vmatpush1.msra.mxu0 0.0
    %4684 = vmatprep.subr.mxu0 0.0
    %4685 = vmatpush1.msra.mxu0 0.0
    %4686 = vmatprep.mubr.f32.mxu0 0.0
    %4687 = vmatmul.mubr.f32.gmra.mrb[0].mxu0 %v4620
    %v4688 = vpop.f32.mrb[0].mxu0
    %v4689 = vadd.f32 0.0, %v4688
    %v4690 = vpop.f32.mrb[0].mxu0
    %4691 = vdwg.mxu0
    %4693 = vrot.lane.b32.xlu0 %v4355, 8
    %v4694 = vpop.permute.xlu0 %4693
    %4697 = vrot.lane.b32.xlu0 %v4522, 16
    %v4698 = vpop.permute.xlu0 %4697
    %4701 = vrot.lane.b32.xlu0 %v4689, 24
    %v4702 = vpop.permute.xlu0 %4701
    %v4704 = vsel %vm434, %v4188, %v4694
    %v4705 = vsel %vm1112, %v4704, %v4698
    %v4706 = vsel %vm1114, %v4705, %v4702
    %4708 = vrot.lane.b32.xlu0 %v4022, 96
    %v4709 = vpop.permute.xlu0 %4708
    %v4710 = vsel %vm434, %v4022, 0
    %v4712 = vsel %vm434, %v4709, 0
    %4714 = vmatprep.subr.mxu0 0.0
    %4715 = vmatpush1.xpose.msra.mxu0 %v4712
    %4716 = vmatprep.subr.mxu0 0.0
    %4717 = vmatpush1.xpose.msra.mxu0 0.0
    %4718 = vmatprep.subr.mxu0 0.0
    %4719 = vmatpush1.xpose.msra.mxu0 0.0
    %4720 = vmatprep.subr.mxu0 0.0
    %4721 = vmatpush1.xpose.msra.mxu0 0.0
    %4722 = vmatprep.subr.mxu0 0.0
    %4723 = vmatpush1.xpose.msra.mxu0 0.0
    %4724 = vmatprep.subr.mxu0 0.0
    %4725 = vmatpush1.xpose.msra.mxu0 0.0
    %4726 = vmatprep.subr.mxu0 0.0
    %4727 = vmatpush1.xpose.msra.mxu0 0.0
    %4728 = vmatprep.subr.mxu0 0.0
    %4729 = vmatpush1.xpose.msra.mxu0 0.0
    %4730 = vmatprep.subr.mxu0 0.0
    %4731 = vmatpush1.xpose.msra.mxu0 0.0
    %4732 = vmatprep.subr.mxu0 0.0
    %4733 = vmatpush1.xpose.msra.mxu0 0.0
    %4734 = vmatprep.subr.mxu0 0.0
    %4735 = vmatpush1.xpose.msra.mxu0 0.0
    %4736 = vmatprep.subr.mxu0 0.0
    %4737 = vmatpush1.xpose.msra.mxu0 0.0
    %4738 = vmatprep.subr.mxu0 0.0
    %4739 = vmatpush1.xpose.msra.mxu0 0.0
    %4740 = vmatprep.subr.mxu0 0.0
    %4741 = vmatpush1.xpose.msra.mxu0 0.0
    %4742 = vmatprep.subr.mxu0 0.0
    %4743 = vmatpush1.xpose.msra.mxu0 0.0
    %4744 = vmatprep.subr.mxu0 0.0
    %4745 = vmatpush1.xpose.msra.mxu0 0.0
    %4746 = vmatprep.subr.mxu0 0.0
    %4747 = vmatpush1.xpose.msra.mxu0 0.0
    %4748 = vmatprep.subr.mxu0 0.0
    %4749 = vmatpush1.xpose.msra.mxu0 0.0
    %4750 = vmatprep.subr.mxu0 0.0
    %4751 = vmatpush1.xpose.msra.mxu0 0.0
    %4752 = vmatprep.subr.mxu0 0.0
    %4753 = vmatpush1.xpose.msra.mxu0 0.0
    %4754 = vmatprep.subr.mxu0 0.0
    %4755 = vmatpush1.xpose.msra.mxu0 0.0
    %4756 = vmatprep.subr.mxu0 0.0
    %4757 = vmatpush1.xpose.msra.mxu0 0.0
    %4758 = vmatprep.subr.mxu0 0.0
    %4759 = vmatpush1.xpose.msra.mxu0 0.0
    %4760 = vmatprep.subr.mxu0 0.0
    %4761 = vmatpush1.xpose.msra.mxu0 0.0
    %4762 = vmatprep.subr.mxu0 0.0
    %4763 = vmatpush1.xpose.msra.mxu0 0.0
    %4764 = vmatprep.subr.mxu0 0.0
    %4765 = vmatpush1.xpose.msra.mxu0 0.0
    %4766 = vmatprep.subr.mxu0 0.0
    %4767 = vmatpush1.xpose.msra.mxu0 0.0
    %4768 = vmatprep.subr.mxu0 0.0
    %4769 = vmatpush1.xpose.msra.mxu0 0.0
    %4770 = vmatprep.subr.mxu0 0.0
    %4771 = vmatpush1.xpose.msra.mxu0 0.0
    %4772 = vmatprep.subr.mxu0 0.0
    %4773 = vmatpush1.xpose.msra.mxu0 0.0
    %4774 = vmatprep.subr.mxu0 0.0
    %4775 = vmatpush1.xpose.msra.mxu0 0.0
    %4776 = vmatprep.subr.mxu0 0.0
    %4777 = vmatpush1.xpose.msra.mxu0 0.0
    %4778 = vmatprep.mubr.f32.mxu0 0.0
    %4779 = vmatmul.mubr.f32.gmra.mrb[0].mxu0 %v4710
    %v4780 = vpop.f32.mrb[0].mxu0
    %v4781 = vadd.f32 0.0, %v4780
    %v4782 = vpop.f32.mrb[0].mxu0
    %4783 = vdwg.mxu0
    %v4784 = vmul.f32 %v4781, 0.35355338
    %v4785 = vadd.f32 %v4784, %v329
    %v4786 = vsel %vm434, %v4785, -inf
    %4787 = vmax.xlane.f32.xlu0 %v4786
    %v4788 = vpop.xlane.xlu0 %4787
    %v4789 = vsub.f32 %v4785, %v4788
    %v4790 = vmul.f32 %v4789, 1.442695
    %v4791 = vpow.pop %v4790
    %v4792 = vsel %vm434, %v4791, 0.0
    %4793 = vadd.xlane.f32.xlu0 %v4792
    %v4794 = vpop.xlane.xlu0 %4793
    %v4795 = vrcp.pop %v4794
    %v4796 = vmul.f32 %v4791, %v4795
    %4797 = vrot.lane.b32.xlu0 %v4022, 64
    %v4798 = vpop.permute.xlu0 %4797
    %v4801 = vsel %vm434, %v4796, 0
    %4803 = vmatprep.subr.mxu0 0.0
    %4804 = vmatpush1.msra.mxu0 %v4798
    %4805 = vmatprep.subr.mxu0 0.0
    %4806 = vmatpush1.msra.mxu0 0.0
    %4807 = vmatprep.subr.mxu0 0.0
    %4808 = vmatpush1.msra.mxu0 0.0
    %4809 = vmatprep.subr.mxu0 0.0
    %4810 = vmatpush1.msra.mxu0 0.0
    %4811 = vmatprep.subr.mxu0 0.0
    %4812 = vmatpush1.msra.mxu0 0.0
    %4813 = vmatprep.subr.mxu0 0.0
    %4814 = vmatpush1.msra.mxu0 0.0
    %4815 = vmatprep.subr.mxu0 0.0
    %4816 = vmatpush1.msra.mxu0 0.0
    %4817 = vmatprep.subr.mxu0 0.0
    %4818 = vmatpush1.msra.mxu0 0.0
    %4819 = vmatprep.subr.mxu0 0.0
    %4820 = vmatpush1.msra.mxu0 0.0
    %4821 = vmatprep.subr.mxu0 0.0
    %4822 = vmatpush1.msra.mxu0 0.0
    %4823 = vmatprep.subr.mxu0 0.0
    %4824 = vmatpush1.msra.mxu0 0.0
    %4825 = vmatprep.subr.mxu0 0.0
    %4826 = vmatpush1.msra.mxu0 0.0
    %4827 = vmatprep.subr.mxu0 0.0
    %4828 = vmatpush1.msra.mxu0 0.0
    %4829 = vmatprep.subr.mxu0 0.0
    %4830 = vmatpush1.msra.mxu0 0.0
    %4831 = vmatprep.subr.mxu0 0.0
    %4832 = vmatpush1.msra.mxu0 0.0
    %4833 = vmatprep.subr.mxu0 0.0
    %4834 = vmatpush1.msra.mxu0 0.0
    %4835 = vmatprep.subr.mxu0 0.0
    %4836 = vmatpush1.msra.mxu0 0.0
    %4837 = vmatprep.subr.mxu0 0.0
    %4838 = vmatpush1.msra.mxu0 0.0
    %4839 = vmatprep.subr.mxu0 0.0
    %4840 = vmatpush1.msra.mxu0 0.0
    %4841 = vmatprep.subr.mxu0 0.0
    %4842 = vmatpush1.msra.mxu0 0.0
    %4843 = vmatprep.subr.mxu0 0.0
    %4844 = vmatpush1.msra.mxu0 0.0
    %4845 = vmatprep.subr.mxu0 0.0
    %4846 = vmatpush1.msra.mxu0 0.0
    %4847 = vmatprep.subr.mxu0 0.0
    %4848 = vmatpush1.msra.mxu0 0.0
    %4849 = vmatprep.subr.mxu0 0.0
    %4850 = vmatpush1.msra.mxu0 0.0
    %4851 = vmatprep.subr.mxu0 0.0
    %4852 = vmatpush1.msra.mxu0 0.0
    %4853 = vmatprep.subr.mxu0 0.0
    %4854 = vmatpush1.msra.mxu0 0.0
    %4855 = vmatprep.subr.mxu0 0.0
    %4856 = vmatpush1.msra.mxu0 0.0
    %4857 = vmatprep.subr.mxu0 0.0
    %4858 = vmatpush1.msra.mxu0 0.0
    %4859 = vmatprep.subr.mxu0 0.0
    %4860 = vmatpush1.msra.mxu0 0.0
    %4861 = vmatprep.subr.mxu0 0.0
    %4862 = vmatpush1.msra.mxu0 0.0
    %4863 = vmatprep.subr.mxu0 0.0
    %4864 = vmatpush1.msra.mxu0 0.0
    %4865 = vmatprep.subr.mxu0 0.0
    %4866 = vmatpush1.msra.mxu0 0.0
    %4867 = vmatprep.mubr.f32.mxu0 0.0
    %4868 = vmatmul.mubr.f32.gmra.mrb[0].mxu0 %v4801
    %v4869 = vpop.f32.mrb[0].mxu0
    %v4870 = vadd.f32 0.0, %v4869
    %v4871 = vpop.f32.mrb[0].mxu0
    %4872 = vdwg.mxu0
    %4873 = vrot.lane.b32.xlu0 %v4022, 120
    %v4874 = vpop.permute.xlu0 %4873
    %4875 = vrot.lane.b32.xlu0 %v4022, 88
    %v4876 = vpop.permute.xlu0 %4875
    %v4877 = vsel %vm434, %v4874, 0
    %v4879 = vsel %vm434, %v4876, 0
    %4881 = vmatprep.subr.mxu0 0.0
    %4882 = vmatpush1.xpose.msra.mxu0 %v4879
    %4883 = vmatprep.subr.mxu0 0.0
    %4884 = vmatpush1.xpose.msra.mxu0 0.0
    %4885 = vmatprep.subr.mxu0 0.0
    %4886 = vmatpush1.xpose.msra.mxu0 0.0
    %4887 = vmatprep.subr.mxu0 0.0
    %4888 = vmatpush1.xpose.msra.mxu0 0.0
    %4889 = vmatprep.subr.mxu0 0.0
    %4890 = vmatpush1.xpose.msra.mxu0 0.0
    %4891 = vmatprep.subr.mxu0 0.0
    %4892 = vmatpush1.xpose.msra.mxu0 0.0
    %4893 = vmatprep.subr.mxu0 0.0
    %4894 = vmatpush1.xpose.msra.mxu0 0.0
    %4895 = vmatprep.subr.mxu0 0.0
    %4896 = vmatpush1.xpose.msra.mxu0 0.0
    %4897 = vmatprep.subr.mxu0 0.0
    %4898 = vmatpush1.xpose.msra.mxu0 0.0
    %4899 = vmatprep.subr.mxu0 0.0
    %4900 = vmatpush1.xpose.msra.mxu0 0.0
    %4901 = vmatprep.subr.mxu0 0.0
    %4902 = vmatpush1.xpose.msra.mxu0 0.0
    %4903 = vmatprep.subr.mxu0 0.0
    %4904 = vmatpush1.xpose.msra.mxu0 0.0
    %4905 = vmatprep.subr.mxu0 0.0
    %4906 = vmatpush1.xpose.msra.mxu0 0.0
    %4907 = vmatprep.subr.mxu0 0.0
    %4908 = vmatpush1.xpose.msra.mxu0 0.0
    %4909 = vmatprep.subr.mxu0 0.0
    %4910 = vmatpush1.xpose.msra.mxu0 0.0
    %4911 = vmatprep.subr.mxu0 0.0
    %4912 = vmatpush1.xpose.msra.mxu0 0.0
    %4913 = vmatprep.subr.mxu0 0.0
    %4914 = vmatpush1.xpose.msra.mxu0 0.0
    %4915 = vmatprep.subr.mxu0 0.0
    %4916 = vmatpush1.xpose.msra.mxu0 0.0
    %4917 = vmatprep.subr.mxu0 0.0
    %4918 = vmatpush1.xpose.msra.mxu0 0.0
    %4919 = vmatprep.subr.mxu0 0.0
    %4920 = vmatpush1.xpose.msra.mxu0 0.0
    %4921 = vmatprep.subr.mxu0 0.0
    %4922 = vmatpush1.xpose.msra.mxu0 0.0
    %4923 = vmatprep.subr.mxu0 0.0
    %4924 = vmatpush1.xpose.msra.mxu0 0.0
    %4925 = vmatprep.subr.mxu0 0.0
    %4926 = vmatpush1.xpose.msra.mxu0 0.0
    %4927 = vmatprep.subr.mxu0 0.0
    %4928 = vmatpush1.xpose.msra.mxu0 0.0
    %4929 = vmatprep.subr.mxu0 0.0
    %4930 = vmatpush1.xpose.msra.mxu0 0.0
    %4931 = vmatprep.subr.mxu0 0.0
    %4932 = vmatpush1.xpose.msra.mxu0 0.0
    %4933 = vmatprep.subr.mxu0 0.0
    %4934 = vmatpush1.xpose.msra.mxu0 0.0
    %4935 = vmatprep.subr.mxu0 0.0
    %4936 = vmatpush1.xpose.msra.mxu0 0.0
    %4937 = vmatprep.subr.mxu0 0.0
    %4938 = vmatpush1.xpose.msra.mxu0 0.0
    %4939 = vmatprep.subr.mxu0 0.0
    %4940 = vmatpush1.xpose.msra.mxu0 0.0
    %4941 = vmatprep.subr.mxu0 0.0
    %4942 = vmatpush1.xpose.msra.mxu0 0.0
    %4943 = vmatprep.subr.mxu0 0.0
    %4944 = vmatpush1.xpose.msra.mxu0 0.0
    %4945 = vmatprep.mubr.f32.mxu0 0.0
    %4946 = vmatmul.mubr.f32.gmra.mrb[0].mxu0 %v4877
    %v4947 = vpop.f32.mrb[0].mxu0
    %v4948 = vadd.f32 0.0, %v4947
    %v4949 = vpop.f32.mrb[0].mxu0
    %4950 = vdwg.mxu0
    %v4951 = vmul.f32 %v4948, 0.35355338
    %v4952 = vadd.f32 %v4951, %v329
    %v4953 = vsel %vm434, %v4952, -inf
    %4954 = vmax.xlane.f32.xlu0 %v4953
    %v4955 = vpop.xlane.xlu0 %4954
    %v4956 = vsub.f32 %v4952, %v4955
    %v4957 = vmul.f32 %v4956, 1.442695
    %v4958 = vpow.pop %v4957
    %v4959 = vsel %vm434, %v4958, 0.0
    %4960 = vadd.xlane.f32.xlu0 %v4959
    %v4961 = vpop.xlane.xlu0 %4960
    %v4962 = vrcp.pop %v4961
    %v4963 = vmul.f32 %v4958, %v4962
    %4964 = vrot.lane.b32.xlu0 %v4022, 56
    %v4965 = vpop.permute.xlu0 %4964
    %v4968 = vsel %vm434, %v4963, 0
    %4970 = vmatprep.subr.mxu0 0.0
    %4971 = vmatpush1.msra.mxu0 %v4965
    %4972 = vmatprep.subr.mxu0 0.0
    %4973 = vmatpush1.msra.mxu0 0.0
    %4974 = vmatprep.subr.mxu0 0.0
    %4975 = vmatpush1.msra.mxu0 0.0
    %4976 = vmatprep.subr.mxu0 0.0
    %4977 = vmatpush1.msra.mxu0 0.0
    %4978 = vmatprep.subr.mxu0 0.0
    %4979 = vmatpush1.msra.mxu0 0.0
    %4980 = vmatprep.subr.mxu0 0.0
    %4981 = vmatpush1.msra.mxu0 0.0
    %4982 = vmatprep.subr.mxu0 0.0
    %4983 = vmatpush1.msra.mxu0 0.0
    %4984 = vmatprep.subr.mxu0 0.0
    %4985 = vmatpush1.msra.mxu0 0.0
    %4986 = vmatprep.subr.mxu0 0.0
    %4987 = vmatpush1.msra.mxu0 0.0
    %4988 = vmatprep.subr.mxu0 0.0
    %4989 = vmatpush1.msra.mxu0 0.0
    %4990 = vmatprep.subr.mxu0 0.0
    %4991 = vmatpush1.msra.mxu0 0.0
    %4992 = vmatprep.subr.mxu0 0.0
    %4993 = vmatpush1.msra.mxu0 0.0
    %4994 = vmatprep.subr.mxu0 0.0
    %4995 = vmatpush1.msra.mxu0 0.0
    %4996 = vmatprep.subr.mxu0 0.0
    %4997 = vmatpush1.msra.mxu0 0.0
    %4998 = vmatprep.subr.mxu0 0.0
    %4999 = vmatpush1.msra.mxu0 0.0
    %5000 = vmatprep.subr.mxu0 0.0
    %5001 = vmatpush1.msra.mxu0 0.0
    %5002 = vmatprep.subr.mxu0 0.0
    %5003 = vmatpush1.msra.mxu0 0.0
    %5004 = vmatprep.subr.mxu0 0.0
    %5005 = vmatpush1.msra.mxu0 0.0
    %5006 = vmatprep.subr.mxu0 0.0
    %5007 = vmatpush1.msra.mxu0 0.0
    %5008 = vmatprep.subr.mxu0 0.0
    %5009 = vmatpush1.msra.mxu0 0.0
    %5010 = vmatprep.subr.mxu0 0.0
    %5011 = vmatpush1.msra.mxu0 0.0
    %5012 = vmatprep.subr.mxu0 0.0
    %5013 = vmatpush1.msra.mxu0 0.0
    %5014 = vmatprep.subr.mxu0 0.0
    %5015 = vmatpush1.msra.mxu0 0.0
    %5016 = vmatprep.subr.mxu0 0.0
    %5017 = vmatpush1.msra.mxu0 0.0
    %5018 = vmatprep.subr.mxu0 0.0
    %5019 = vmatpush1.msra.mxu0 0.0
    %5020 = vmatprep.subr.mxu0 0.0
    %5021 = vmatpush1.msra.mxu0 0.0
    %5022 = vmatprep.subr.mxu0 0.0
    %5023 = vmatpush1.msra.mxu0 0.0
    %5024 = vmatprep.subr.mxu0 0.0
    %5025 = vmatpush1.msra.mxu0 0.0
    %5026 = vmatprep.subr.mxu0 0.0
    %5027 = vmatpush1.msra.mxu0 0.0
    %5028 = vmatprep.subr.mxu0 0.0
    %5029 = vmatpush1.msra.mxu0 0.0
    %5030 = vmatprep.subr.mxu0 0.0
    %5031 = vmatpush1.msra.mxu0 0.0
    %5032 = vmatprep.subr.mxu0 0.0
    %5033 = vmatpush1.msra.mxu0 0.0
    %5034 = vmatprep.mubr.f32.mxu0 0.0
    %5035 = vmatmul.mubr.f32.gmra.mrb[0].mxu0 %v4968
    %v5036 = vpop.f32.mrb[0].mxu0
    %v5037 = vadd.f32 0.0, %v5036
    %v5038 = vpop.f32.mrb[0].mxu0
    %5039 = vdwg.mxu0
    %5040 = vrot.lane.b32.xlu0 %v4022, 112
    %v5041 = vpop.permute.xlu0 %5040
    %5042 = vrot.lane.b32.xlu0 %v4022, 80
    %v5043 = vpop.permute.xlu0 %5042
    %v5044 = vsel %vm434, %v5041, 0
    %v5046 = vsel %vm434, %v5043, 0
    %5048 = vmatprep.subr.mxu0 0.0
    %5049 = vmatpush1.xpose.msra.mxu0 %v5046
    %5050 = vmatprep.subr.mxu0 0.0
    %5051 = vmatpush1.xpose.msra.mxu0 0.0
    %5052 = vmatprep.subr.mxu0 0.0
    %5053 = vmatpush1.xpose.msra.mxu0 0.0
    %5054 = vmatprep.subr.mxu0 0.0
    %5055 = vmatpush1.xpose.msra.mxu0 0.0
    %5056 = vmatprep.subr.mxu0 0.0
    %5057 = vmatpush1.xpose.msra.mxu0 0.0
    %5058 = vmatprep.subr.mxu0 0.0
    %5059 = vmatpush1.xpose.msra.mxu0 0.0
    %5060 = vmatprep.subr.mxu0 0.0
    %5061 = vmatpush1.xpose.msra.mxu0 0.0
    %5062 = vmatprep.subr.mxu0 0.0
    %5063 = vmatpush1.xpose.msra.mxu0 0.0
    %5064 = vmatprep.subr.mxu0 0.0
    %5065 = vmatpush1.xpose.msra.mxu0 0.0
    %5066 = vmatprep.subr.mxu0 0.0
    %5067 = vmatpush1.xpose.msra.mxu0 0.0
    %5068 = vmatprep.subr.mxu0 0.0
    %5069 = vmatpush1.xpose.msra.mxu0 0.0
    %5070 = vmatprep.subr.mxu0 0.0
    %5071 = vmatpush1.xpose.msra.mxu0 0.0
    %5072 = vmatprep.subr.mxu0 0.0
    %5073 = vmatpush1.xpose.msra.mxu0 0.0
    %5074 = vmatprep.subr.mxu0 0.0
    %5075 = vmatpush1.xpose.msra.mxu0 0.0
    %5076 = vmatprep.subr.mxu0 0.0
    %5077 = vmatpush1.xpose.msra.mxu0 0.0
    %5078 = vmatprep.subr.mxu0 0.0
    %5079 = vmatpush1.xpose.msra.mxu0 0.0
    %5080 = vmatprep.subr.mxu0 0.0
    %5081 = vmatpush1.xpose.msra.mxu0 0.0
    %5082 = vmatprep.subr.mxu0 0.0
    %5083 = vmatpush1.xpose.msra.mxu0 0.0
    %5084 = vmatprep.subr.mxu0 0.0
    %5085 = vmatpush1.xpose.msra.mxu0 0.0
    %5086 = vmatprep.subr.mxu0 0.0
    %5087 = vmatpush1.xpose.msra.mxu0 0.0
    %5088 = vmatprep.subr.mxu0 0.0
    %5089 = vmatpush1.xpose.msra.mxu0 0.0
    %5090 = vmatprep.subr.mxu0 0.0
    %5091 = vmatpush1.xpose.msra.mxu0 0.0
    %5092 = vmatprep.subr.mxu0 0.0
    %5093 = vmatpush1.xpose.msra.mxu0 0.0
    %5094 = vmatprep.subr.mxu0 0.0
    %5095 = vmatpush1.xpose.msra.mxu0 0.0
    %5096 = vmatprep.subr.mxu0 0.0
    %5097 = vmatpush1.xpose.msra.mxu0 0.0
    %5098 = vmatprep.subr.mxu0 0.0
    %5099 = vmatpush1.xpose.msra.mxu0 0.0
    %5100 = vmatprep.subr.mxu0 0.0
    %5101 = vmatpush1.xpose.msra.mxu0 0.0
    %5102 = vmatprep.subr.mxu0 0.0
    %5103 = vmatpush1.xpose.msra.mxu0 0.0
    %5104 = vmatprep.subr.mxu0 0.0
    %5105 = vmatpush1.xpose.msra.mxu0 0.0
    %5106 = vmatprep.subr.mxu0 0.0
    %5107 = vmatpush1.xpose.msra.mxu0 0.0
    %5108 = vmatprep.subr.mxu0 0.0
    %5109 = vmatpush1.xpose.msra.mxu0 0.0
    %5110 = vmatprep.subr.mxu0 0.0
    %5111 = vmatpush1.xpose.msra.mxu0 0.0
    %5112 = vmatprep.mubr.f32.mxu0 0.0
    %5113 = vmatmul.mubr.f32.gmra.mrb[0].mxu0 %v5044
    %v5114 = vpop.f32.mrb[0].mxu0
    %v5115 = vadd.f32 0.0, %v5114
    %v5116 = vpop.f32.mrb[0].mxu0
    %5117 = vdwg.mxu0
    %v5118 = vmul.f32 %v5115, 0.35355338
    %v5119 = vadd.f32 %v5118, %v329
    %v5120 = vsel %vm434, %v5119, -inf
    %5121 = vmax.xlane.f32.xlu0 %v5120
    %v5122 = vpop.xlane.xlu0 %5121
    %v5123 = vsub.f32 %v5119, %v5122
    %v5124 = vmul.f32 %v5123, 1.442695
    %v5125 = vpow.pop %v5124
    %v5126 = vsel %vm434, %v5125, 0.0
    %5127 = vadd.xlane.f32.xlu0 %v5126
    %v5128 = vpop.xlane.xlu0 %5127
    %v5129 = vrcp.pop %v5128
    %v5130 = vmul.f32 %v5125, %v5129
    %5131 = vrot.lane.b32.xlu0 %v4022, 48
    %v5132 = vpop.permute.xlu0 %5131
    %v5135 = vsel %vm434, %v5130, 0
    %5137 = vmatprep.subr.mxu0 0.0
    %5138 = vmatpush1.msra.mxu0 %v5132
    %5139 = vmatprep.subr.mxu0 0.0
    %5140 = vmatpush1.msra.mxu0 0.0
    %5141 = vmatprep.subr.mxu0 0.0
    %5142 = vmatpush1.msra.mxu0 0.0
    %5143 = vmatprep.subr.mxu0 0.0
    %5144 = vmatpush1.msra.mxu0 0.0
    %5145 = vmatprep.subr.mxu0 0.0
    %5146 = vmatpush1.msra.mxu0 0.0
    %5147 = vmatprep.subr.mxu0 0.0
    %5148 = vmatpush1.msra.mxu0 0.0
    %5149 = vmatprep.subr.mxu0 0.0
    %5150 = vmatpush1.msra.mxu0 0.0
    %5151 = vmatprep.subr.mxu0 0.0
    %5152 = vmatpush1.msra.mxu0 0.0
    %5153 = vmatprep.subr.mxu0 0.0
    %5154 = vmatpush1.msra.mxu0 0.0
    %5155 = vmatprep.subr.mxu0 0.0
    %5156 = vmatpush1.msra.mxu0 0.0
    %5157 = vmatprep.subr.mxu0 0.0
    %5158 = vmatpush1.msra.mxu0 0.0
    %5159 = vmatprep.subr.mxu0 0.0
    %5160 = vmatpush1.msra.mxu0 0.0
    %5161 = vmatprep.subr.mxu0 0.0
    %5162 = vmatpush1.msra.mxu0 0.0
    %5163 = vmatprep.subr.mxu0 0.0
    %5164 = vmatpush1.msra.mxu0 0.0
    %5165 = vmatprep.subr.mxu0 0.0
    %5166 = vmatpush1.msra.mxu0 0.0
    %5167 = vmatprep.subr.mxu0 0.0
    %5168 = vmatpush1.msra.mxu0 0.0
    %5169 = vmatprep.subr.mxu0 0.0
    %5170 = vmatpush1.msra.mxu0 0.0
    %5171 = vmatprep.subr.mxu0 0.0
    %5172 = vmatpush1.msra.mxu0 0.0
    %5173 = vmatprep.subr.mxu0 0.0
    %5174 = vmatpush1.msra.mxu0 0.0
    %5175 = vmatprep.subr.mxu0 0.0
    %5176 = vmatpush1.msra.mxu0 0.0
    %5177 = vmatprep.subr.mxu0 0.0
    %5178 = vmatpush1.msra.mxu0 0.0
    %5179 = vmatprep.subr.mxu0 0.0
    %5180 = vmatpush1.msra.mxu0 0.0
    %5181 = vmatprep.subr.mxu0 0.0
    %5182 = vmatpush1.msra.mxu0 0.0
    %5183 = vmatprep.subr.mxu0 0.0
    %5184 = vmatpush1.msra.mxu0 0.0
    %5185 = vmatprep.subr.mxu0 0.0
    %5186 = vmatpush1.msra.mxu0 0.0
    %5187 = vmatprep.subr.mxu0 0.0
    %5188 = vmatpush1.msra.mxu0 0.0
    %5189 = vmatprep.subr.mxu0 0.0
    %5190 = vmatpush1.msra.mxu0 0.0
    %5191 = vmatprep.subr.mxu0 0.0
    %5192 = vmatpush1.msra.mxu0 0.0
    %5193 = vmatprep.subr.mxu0 0.0
    %5194 = vmatpush1.msra.mxu0 0.0
    %5195 = vmatprep.subr.mxu0 0.0
    %5196 = vmatpush1.msra.mxu0 0.0
    %5197 = vmatprep.subr.mxu0 0.0
    %5198 = vmatpush1.msra.mxu0 0.0
    %5199 = vmatprep.subr.mxu0 0.0
    %5200 = vmatpush1.msra.mxu0 0.0
    %5201 = vmatprep.mubr.f32.mxu0 0.0
    %5202 = vmatmul.mubr.f32.gmra.mrb[0].mxu0 %v5135
    %v5203 = vpop.f32.mrb[0].mxu0
    %v5204 = vadd.f32 0.0, %v5203
    %v5205 = vpop.f32.mrb[0].mxu0
    %5206 = vdwg.mxu0
    %5207 = vrot.lane.b32.xlu0 %v4022, 104
    %v5208 = vpop.permute.xlu0 %5207
    %5209 = vrot.lane.b32.xlu0 %v4022, 72
    %v5210 = vpop.permute.xlu0 %5209
    %v5211 = vsel %vm434, %v5208, 0
    %v5213 = vsel %vm434, %v5210, 0
    %5215 = vmatprep.subr.mxu0 0.0
    %5216 = vmatpush1.xpose.msra.mxu0 %v5213
    %5217 = vmatprep.subr.mxu0 0.0
    %5218 = vmatpush1.xpose.msra.mxu0 0.0
    %5219 = vmatprep.subr.mxu0 0.0
    %5220 = vmatpush1.xpose.msra.mxu0 0.0
    %5221 = vmatprep.subr.mxu0 0.0
    %5222 = vmatpush1.xpose.msra.mxu0 0.0
    %5223 = vmatprep.subr.mxu0 0.0
    %5224 = vmatpush1.xpose.msra.mxu0 0.0
    %5225 = vmatprep.subr.mxu0 0.0
    %5226 = vmatpush1.xpose.msra.mxu0 0.0
    %5227 = vmatprep.subr.mxu0 0.0
    %5228 = vmatpush1.xpose.msra.mxu0 0.0
    %5229 = vmatprep.subr.mxu0 0.0
    %5230 = vmatpush1.xpose.msra.mxu0 0.0
    %5231 = vmatprep.subr.mxu0 0.0
    %5232 = vmatpush1.xpose.msra.mxu0 0.0
    %5233 = vmatprep.subr.mxu0 0.0
    %5234 = vmatpush1.xpose.msra.mxu0 0.0
    %5235 = vmatprep.subr.mxu0 0.0
    %5236 = vmatpush1.xpose.msra.mxu0 0.0
    %5237 = vmatprep.subr.mxu0 0.0
    %5238 = vmatpush1.xpose.msra.mxu0 0.0
    %5239 = vmatprep.subr.mxu0 0.0
    %5240 = vmatpush1.xpose.msra.mxu0 0.0
    %5241 = vmatprep.subr.mxu0 0.0
    %5242 = vmatpush1.xpose.msra.mxu0 0.0
    %5243 = vmatprep.subr.mxu0 0.0
    %5244 = vmatpush1.xpose.msra.mxu0 0.0
    %5245 = vmatprep.subr.mxu0 0.0
    %5246 = vmatpush1.xpose.msra.mxu0 0.0
    %5247 = vmatprep.subr.mxu0 0.0
    %5248 = vmatpush1.xpose.msra.mxu0 0.0
    %5249 = vmatprep.subr.mxu0 0.0
    %5250 = vmatpush1.xpose.msra.mxu0 0.0
    %5251 = vmatprep.subr.mxu0 0.0
    %5252 = vmatpush1.xpose.msra.mxu0 0.0
    %5253 = vmatprep.subr.mxu0 0.0
    %5254 = vmatpush1.xpose.msra.mxu0 0.0
    %5255 = vmatprep.subr.mxu0 0.0
    %5256 = vmatpush1.xpose.msra.mxu0 0.0
    %5257 = vmatprep.subr.mxu0 0.0
    %5258 = vmatpush1.xpose.msra.mxu0 0.0
    %5259 = vmatprep.subr.mxu0 0.0
    %5260 = vmatpush1.xpose.msra.mxu0 0.0
    %5261 = vmatprep.subr.mxu0 0.0
    %5262 = vmatpush1.xpose.msra.mxu0 0.0
    %5263 = vmatprep.subr.mxu0 0.0
    %5264 = vmatpush1.xpose.msra.mxu0 0.0
    %5265 = vmatprep.subr.mxu0 0.0
    %5266 = vmatpush1.xpose.msra.mxu0 0.0
    %5267 = vmatprep.subr.mxu0 0.0
    %5268 = vmatpush1.xpose.msra.mxu0 0.0
    %5269 = vmatprep.subr.mxu0 0.0
    %5270 = vmatpush1.xpose.msra.mxu0 0.0
    %5271 = vmatprep.subr.mxu0 0.0
    %5272 = vmatpush1.xpose.msra.mxu0 0.0
    %5273 = vmatprep.subr.mxu0 0.0
    %5274 = vmatpush1.xpose.msra.mxu0 0.0
    %5275 = vmatprep.subr.mxu0 0.0
    %5276 = vmatpush1.xpose.msra.mxu0 0.0
    %5277 = vmatprep.subr.mxu0 0.0
    %5278 = vmatpush1.xpose.msra.mxu0 0.0
    %5279 = vmatprep.mubr.f32.mxu0 0.0
    %5280 = vmatmul.mubr.f32.gmra.mrb[0].mxu0 %v5211
    %v5281 = vpop.f32.mrb[0].mxu0
    %v5282 = vadd.f32 0.0, %v5281
    %v5283 = vpop.f32.mrb[0].mxu0
    %5284 = vdwg.mxu0
    %v5285 = vmul.f32 %v5282, 0.35355338
    %v5286 = vadd.f32 %v5285, %v329
    %v5287 = vsel %vm434, %v5286, -inf
    %5288 = vmax.xlane.f32.xlu0 %v5287
    %v5289 = vpop.xlane.xlu0 %5288
    %v5290 = vsub.f32 %v5286, %v5289
    %v5291 = vmul.f32 %v5290, 1.442695
    %v5292 = vpow.pop %v5291
    %v5293 = vsel %vm434, %v5292, 0.0
    %5294 = vadd.xlane.f32.xlu0 %v5293
    %v5295 = vpop.xlane.xlu0 %5294
    %v5296 = vrcp.pop %v5295
    %v5297 = vmul.f32 %v5292, %v5296
    %5298 = vrot.lane.b32.xlu0 %v4022, 40
    %v5299 = vpop.permute.xlu0 %5298
    %v5302 = vsel %vm434, %v5297, 0
    %5304 = vmatprep.subr.mxu0 0.0
    %5305 = vmatpush1.msra.mxu0 %v5299
    %5306 = vmatprep.subr.mxu0 0.0
    %5307 = vmatpush1.msra.mxu0 0.0
    %5308 = vmatprep.subr.mxu0 0.0
    %5309 = vmatpush1.msra.mxu0 0.0
    %5310 = vmatprep.subr.mxu0 0.0
    %5311 = vmatpush1.msra.mxu0 0.0
    %5312 = vmatprep.subr.mxu0 0.0
    %5313 = vmatpush1.msra.mxu0 0.0
    %5314 = vmatprep.subr.mxu0 0.0
    %5315 = vmatpush1.msra.mxu0 0.0
    %5316 = vmatprep.subr.mxu0 0.0
    %5317 = vmatpush1.msra.mxu0 0.0
    %5318 = vmatprep.subr.mxu0 0.0
    %5319 = vmatpush1.msra.mxu0 0.0
    %5320 = vmatprep.subr.mxu0 0.0
    %5321 = vmatpush1.msra.mxu0 0.0
    %5322 = vmatprep.subr.mxu0 0.0
    %5323 = vmatpush1.msra.mxu0 0.0
    %5324 = vmatprep.subr.mxu0 0.0
    %5325 = vmatpush1.msra.mxu0 0.0
    %5326 = vmatprep.subr.mxu0 0.0
    %5327 = vmatpush1.msra.mxu0 0.0
    %5328 = vmatprep.subr.mxu0 0.0
    %5329 = vmatpush1.msra.mxu0 0.0
    %5330 = vmatprep.subr.mxu0 0.0
    %5331 = vmatpush1.msra.mxu0 0.0
    %5332 = vmatprep.subr.mxu0 0.0
    %5333 = vmatpush1.msra.mxu0 0.0
    %5334 = vmatprep.subr.mxu0 0.0
    %5335 = vmatpush1.msra.mxu0 0.0
    %5336 = vmatprep.subr.mxu0 0.0
    %5337 = vmatpush1.msra.mxu0 0.0
    %5338 = vmatprep.subr.mxu0 0.0
    %5339 = vmatpush1.msra.mxu0 0.0
    %5340 = vmatprep.subr.mxu0 0.0
    %5341 = vmatpush1.msra.mxu0 0.0
    %5342 = vmatprep.subr.mxu0 0.0
    %5343 = vmatpush1.msra.mxu0 0.0
    %5344 = vmatprep.subr.mxu0 0.0
    %5345 = vmatpush1.msra.mxu0 0.0
    %5346 = vmatprep.subr.mxu0 0.0
    %5347 = vmatpush1.msra.mxu0 0.0
    %5348 = vmatprep.subr.mxu0 0.0
    %5349 = vmatpush1.msra.mxu0 0.0
    %5350 = vmatprep.subr.mxu0 0.0
    %5351 = vmatpush1.msra.mxu0 0.0
    %5352 = vmatprep.subr.mxu0 0.0
    %5353 = vmatpush1.msra.mxu0 0.0
    %5354 = vmatprep.subr.mxu0 0.0
    %5355 = vmatpush1.msra.mxu0 0.0
    %5356 = vmatprep.subr.mxu0 0.0
    %5357 = vmatpush1.msra.mxu0 0.0
    %5358 = vmatprep.subr.mxu0 0.0
    %5359 = vmatpush1.msra.mxu0 0.0
    %5360 = vmatprep.subr.mxu0 0.0
    %5361 = vmatpush1.msra.mxu0 0.0
    %5362 = vmatprep.subr.mxu0 0.0
    %5363 = vmatpush1.msra.mxu0 0.0
    %5364 = vmatprep.subr.mxu0 0.0
    %5365 = vmatpush1.msra.mxu0 0.0
    %5366 = vmatprep.subr.mxu0 0.0
    %5367 = vmatpush1.msra.mxu0 0.0
    %5368 = vmatprep.mubr.f32.mxu0 0.0
    %5369 = vmatmul.mubr.f32.gmra.mrb[0].mxu0 %v5302
    %v5370 = vpop.f32.mrb[0].mxu0
    %v5371 = vadd.f32 0.0, %v5370
    %v5372 = vpop.f32.mrb[0].mxu0
    %5373 = vdwg.mxu0
    %5375 = vrot.lane.b32.xlu0 %v5037, 8
    %v5376 = vpop.permute.xlu0 %5375
    %5379 = vrot.lane.b32.xlu0 %v5204, 16
    %v5380 = vpop.permute.xlu0 %5379
    %5383 = vrot.lane.b32.xlu0 %v5371, 24
    %v5384 = vpop.permute.xlu0 %5383
    %v5386 = vsel %vm434, %v4870, %v5376
    %v5387 = vsel %vm1112, %v5386, %v5380
    %v5388 = vsel %vm1114, %v5387, %v5384
    %s5389 = scalar_lea.vmem %s8, 32
    %v5390 = vld [vmem:[%s5389] sm:$0xff]
    %v5391 = vld [vmem:[%s5389 + $0x8] sm:$0xff]
    %v5392 = vld [vmem:[%s5389 + $0x10] sm:$0xff]
    %v5393 = vld [vmem:[%s5389 + $0x18] sm:$0xff]
    %s5394 = scalar_lea.vmem %s9, 1
    %v5395 = vld [vmem:[%s5394] sm:$0x1]
    %v5397 = vlaneseq
    %v5398 = vshrl.u32 %v5397, 7
    %v5399 = vsub.s32 0, %v5398
    %v5400 = vrot.slane %v5395, %v5399
    %v5403 = vsel %vm349, %v4706, 0
    %v5406 = vsel %vm349, %v5388, 0
    %5408 = vmatprep.subr.mxu0 0.0
    %5409 = vmatpush1.msra.mxu0 %v5390
    %5410 = vmatprep.subr.mxu0 0.0
    %5411 = vmatpush1.msra.mxu0 %v5391
    %5412 = vmatprep.subr.mxu0 0.0
    %5413 = vmatpush1.msra.mxu0 %v5392
    %5414 = vmatprep.subr.mxu0 0.0
    %5415 = vmatpush1.msra.mxu0 %v5393
    %5416 = vmatprep.subr.mxu0 0.0
    %5417 = vmatpush1.msra.mxu0 0.0
    %5418 = vmatprep.subr.mxu0 0.0
    %5419 = vmatpush1.msra.mxu0 0.0
    %5420 = vmatprep.subr.mxu0 0.0
    %5421 = vmatpush1.msra.mxu0 0.0
    %5422 = vmatprep.subr.mxu0 0.0
    %5423 = vmatpush1.msra.mxu0 0.0
    %5424 = vmatprep.subr.mxu0 0.0
    %5425 = vmatpush1.msra.mxu0 0.0
    %5426 = vmatprep.subr.mxu0 0.0
    %5427 = vmatpush1.msra.mxu0 0.0
    %5428 = vmatprep.subr.mxu0 0.0
    %5429 = vmatpush1.msra.mxu0 0.0
    %5430 = vmatprep.subr.mxu0 0.0
    %5431 = vmatpush1.msra.mxu0 0.0
    %5432 = vmatprep.subr.mxu0 0.0
    %5433 = vmatpush1.msra.mxu0 0.0
    %5434 = vmatprep.subr.mxu0 0.0
    %5435 = vmatpush1.msra.mxu0 0.0
    %5436 = vmatprep.subr.mxu0 0.0
    %5437 = vmatpush1.msra.mxu0 0.0
    %5438 = vmatprep.subr.mxu0 0.0
    %5439 = vmatpush1.msra.mxu0 0.0
    %5440 = vmatprep.subr.mxu0 0.0
    %5441 = vmatpush1.msra.mxu0 0.0
    %5442 = vmatprep.subr.mxu0 0.0
    %5443 = vmatpush1.msra.mxu0 0.0
    %5444 = vmatprep.subr.mxu0 0.0
    %5445 = vmatpush1.msra.mxu0 0.0
    %5446 = vmatprep.subr.mxu0 0.0
    %5447 = vmatpush1.msra.mxu0 0.0
    %5448 = vmatprep.subr.mxu0 0.0
    %5449 = vmatpush1.msra.mxu0 0.0
    %5450 = vmatprep.subr.mxu0 0.0
    %5451 = vmatpush1.msra.mxu0 0.0
    %5452 = vmatprep.subr.mxu0 0.0
    %5453 = vmatpush1.msra.mxu0 0.0
    %5454 = vmatprep.subr.mxu0 0.0
    %5455 = vmatpush1.msra.mxu0 0.0
    %5456 = vmatprep.subr.mxu0 0.0
    %5457 = vmatpush1.msra.mxu0 0.0
    %5458 = vmatprep.subr.mxu0 0.0
    %5459 = vmatpush1.msra.mxu0 0.0
    %5460 = vmatprep.subr.mxu0 0.0
    %5461 = vmatpush1.msra.mxu0 0.0
    %5462 = vmatprep.subr.mxu0 0.0
    %5463 = vmatpush1.msra.mxu0 0.0
    %5464 = vmatprep.subr.mxu0 0.0
    %5465 = vmatpush1.msra.mxu0 0.0
    %5466 = vmatprep.subr.mxu0 0.0
    %5467 = vmatpush1.msra.mxu0 0.0
    %5468 = vmatprep.subr.mxu0 0.0
    %5469 = vmatpush1.msra.mxu0 0.0
    %5470 = vmatprep.subr.mxu0 0.0
    %5471 = vmatpush1.msra.mxu0 0.0
    %5472 = vmatprep.mubr.f32.mxu0 0.0
    %5473 = vmatmul.mubr.f32.gmra.mrb[0].mxu0 %v5403
    %v5474 = vpop.f32.mrb[0].mxu0
    %v5475 = vadd.f32 %v5400, %v5474
    %v5476 = vpop.f32.mrb[0].mxu0
    %5477 = vmatprep.mubr.f32.mxu0 0.0
    %5478 = vmatmul.mubr.f32.gmra.mrb[0].mxu0 %v5406
    %v5479 = vpop.f32.mrb[0].mxu0
    %v5480 = vadd.f32 %v5400, %v5479
    %v5481 = vpop.f32.mrb[0].mxu0
    %5482 = vdwg.mxu0
    %v5483 = vadd.f32 %v3925, %v5475
    %v5484 = vadd.f32 %v3926, %v5480
    %v5485 = vsel %vm349, %v5483, 0.0
    %5486 = vadd.xlane.f32.xlu0 %v5485
    %v5487 = vpop.xlane.xlu0 %5486
    %v5488 = vsel %vm349, %v5484, 0.0
    %5489 = vadd.xlane.f32.xlu0 %v5488
    %v5490 = vpop.xlane.xlu0 %5489
    %v5491 = vmul.f32 %v5487, %v1898
    %v5492 = vmul.f32 %v5490, %v1898
    %v5493 = vsub.f32 %v5483, %v5491
    %v5494 = vsub.f32 %v5484, %v5492
    %v5495 = vmul.f32 %v5493, %v5493
    %v5496 = vmul.f32 %v5494, %v5494
    %v5497 = vsel %vm349, %v5495, 0.0
    %5498 = vadd.xlane.f32.xlu0 %v5497
    %v5499 = vpop.xlane.xlu0 %5498
    %v5500 = vsel %vm349, %v5496, 0.0
    %5501 = vadd.xlane.f32.xlu0 %v5500
    %v5502 = vpop.xlane.xlu0 %5501
    %v5503 = vmul.f32 %v5499, %v1898
    %v5504 = vmul.f32 %v5502, %v1898
    %v5505 = vadd.f32 %v5503, 1e-05
    %v5506 = vadd.f32 %v5504, 1e-05
    %v5507 = vrsqrt.pop %v5505
    %v5508 = vrsqrt.pop %v5506
    %v5509 = vmul.f32 %v5493, %v5507
    %v5510 = vmul.f32 %v5494, %v5508
    %v5511 = vlaneseq
    %v5512 = vshrl.u32 %v5511, 7
    %v5513 = vsub.s32 0, %v5512
    %v5514 = vrot.slane %v3928, %v5513
    %v5515 = vmul.f32 %v5509, %v5514
    %v5516 = vmul.f32 %v5510, %v5514
    %v5517 = vlaneseq
    %v5518 = vshrl.u32 %v5517, 7
    %v5519 = vsub.s32 0, %v5518
    %v5520 = vrot.slane %v3930, %v5519
    %v5521 = vadd.f32 %v5515, %v5520
    %v5522 = vadd.f32 %v5516, %v5520
    %s5523 = scalar_lea.vmem %s10, 32
    %v5524 = vld [vmem:[%s5523] sm:$0xff]
    %v5525 = vld [vmem:[%s5523 + $0x8] sm:$0xff]
    %v5526 = vld [vmem:[%s5523 + $0x10] sm:$0xff]
    %v5527 = vld [vmem:[%s5523 + $0x18] sm:$0xff]
    %s5528 = scalar_lea.vmem [#allocation8], 1
    %v5529 = vld [vmem:[%s5528] sm:$0x1]
    %v5531 = vlaneseq
    %v5532 = vshrl.u32 %v5531, 7
    %v5533 = vsub.s32 0, %v5532
    %v5534 = vrot.slane %v5529, %v5533
    %v5537 = vsel %vm349, %v5521, 0
    %v5540 = vsel %vm349, %v5522, 0
    %5542 = vmatprep.subr.mxu0 0.0
    %5543 = vmatpush1.msra.mxu0 %v5524
    %5544 = vmatprep.subr.mxu0 0.0
    %5545 = vmatpush1.msra.mxu0 %v5525
    %5546 = vmatprep.subr.mxu0 0.0
    %5547 = vmatpush1.msra.mxu0 %v5526
    %5548 = vmatprep.subr.mxu0 0.0
    %5549 = vmatpush1.msra.mxu0 %v5527
    %5550 = vmatprep.subr.mxu0 0.0
    %5551 = vmatpush1.msra.mxu0 0.0
    %5552 = vmatprep.subr.mxu0 0.0
    %5553 = vmatpush1.msra.mxu0 0.0
    %5554 = vmatprep.subr.mxu0 0.0
    %5555 = vmatpush1.msra.mxu0 0.0
    %5556 = vmatprep.subr.mxu0 0.0
    %5557 = vmatpush1.msra.mxu0 0.0
    %5558 = vmatprep.subr.mxu0 0.0
    %5559 = vmatpush1.msra.mxu0 0.0
    %5560 = vmatprep.subr.mxu0 0.0
    %5561 = vmatpush1.msra.mxu0 0.0
    %5562 = vmatprep.subr.mxu0 0.0
    %5563 = vmatpush1.msra.mxu0 0.0
    %5564 = vmatprep.subr.mxu0 0.0
    %5565 = vmatpush1.msra.mxu0 0.0
    %5566 = vmatprep.subr.mxu0 0.0
    %5567 = vmatpush1.msra.mxu0 0.0
    %5568 = vmatprep.subr.mxu0 0.0
    %5569 = vmatpush1.msra.mxu0 0.0
    %5570 = vmatprep.subr.mxu0 0.0
    %5571 = vmatpush1.msra.mxu0 0.0
    %5572 = vmatprep.subr.mxu0 0.0
    %5573 = vmatpush1.msra.mxu0 0.0
    %5574 = vmatprep.subr.mxu0 0.0
    %5575 = vmatpush1.msra.mxu0 0.0
    %5576 = vmatprep.subr.mxu0 0.0
    %5577 = vmatpush1.msra.mxu0 0.0
    %5578 = vmatprep.subr.mxu0 0.0
    %5579 = vmatpush1.msra.mxu0 0.0
    %5580 = vmatprep.subr.mxu0 0.0
    %5581 = vmatpush1.msra.mxu0 0.0
    %5582 = vmatprep.subr.mxu0 0.0
    %5583 = vmatpush1.msra.mxu0 0.0
    %5584 = vmatprep.subr.mxu0 0.0
    %5585 = vmatpush1.msra.mxu0 0.0
    %5586 = vmatprep.subr.mxu0 0.0
    %5587 = vmatpush1.msra.mxu0 0.0
    %5588 = vmatprep.subr.mxu0 0.0
    %5589 = vmatpush1.msra.mxu0 0.0
    %5590 = vmatprep.subr.mxu0 0.0
    %5591 = vmatpush1.msra.mxu0 0.0
    %5592 = vmatprep.subr.mxu0 0.0
    %5593 = vmatpush1.msra.mxu0 0.0
    %5594 = vmatprep.subr.mxu0 0.0
    %5595 = vmatpush1.msra.mxu0 0.0
    %5596 = vmatprep.subr.mxu0 0.0
    %5597 = vmatpush1.msra.mxu0 0.0
    %5598 = vmatprep.subr.mxu0 0.0
    %5599 = vmatpush1.msra.mxu0 0.0
    %5600 = vmatprep.subr.mxu0 0.0
    %5601 = vmatpush1.msra.mxu0 0.0
    %5602 = vmatprep.subr.mxu0 0.0
    %5603 = vmatpush1.msra.mxu0 0.0
    %5604 = vmatprep.subr.mxu0 0.0
    %5605 = vmatpush1.msra.mxu0 0.0
    %5606 = vmatprep.mubr.f32.mxu0 0.0
    %5607 = vmatmul.mubr.f32.gmra.mrb[0].mxu0 %v5537
    %v5608 = vpop.f32.mrb[0].mxu0
    %v5609 = vadd.f32 %v5534, %v5608
    %v5610 = vpop.f32.mrb[0].mxu0
    %5611 = vmatprep.mubr.f32.mxu0 0.0
    %5612 = vmatmul.mubr.f32.gmra.mrb[0].mxu0 %v5540
    %v5613 = vpop.f32.mrb[0].mxu0
    %v5614 = vadd.f32 %v5534, %v5613
    %v5615 = vpop.f32.mrb[0].mxu0
    %5616 = vdwg.mxu0
    %s5617 = scalar_lea.vmem %s12, 32
    %v5618 = vld [vmem:[%s5617] sm:$0xff]
    %v5619 = vld [vmem:[%s5617 + $0x8] sm:$0xff]
    %v5620 = vld [vmem:[%s5617 + $0x10] sm:$0xff]
    %v5621 = vld [vmem:[%s5617 + $0x18] sm:$0xff]
    %s5622 = scalar_lea.vmem [#allocation10], 1
    %v5623 = vld [vmem:[%s5622] sm:$0x1]
    %v5625 = vlaneseq
    %v5626 = vshrl.u32 %v5625, 7
    %v5627 = vsub.s32 0, %v5626
    %v5628 = vrot.slane %v5623, %v5627
    %5630 = vmatprep.subr.mxu0 0.0
    %5631 = vmatpush1.msra.mxu0 %v5618
    %5632 = vmatprep.subr.mxu0 0.0
    %5633 = vmatpush1.msra.mxu0 %v5619
    %5634 = vmatprep.subr.mxu0 0.0
    %5635 = vmatpush1.msra.mxu0 %v5620
    %5636 = vmatprep.subr.mxu0 0.0
    %5637 = vmatpush1.msra.mxu0 %v5621
    %5638 = vmatprep.subr.mxu0 0.0
    %5639 = vmatpush1.msra.mxu0 0.0
    %5640 = vmatprep.subr.mxu0 0.0
    %5641 = vmatpush1.msra.mxu0 0.0
    %5642 = vmatprep.subr.mxu0 0.0
    %5643 = vmatpush1.msra.mxu0 0.0
    %5644 = vmatprep.subr.mxu0 0.0
    %5645 = vmatpush1.msra.mxu0 0.0
    %5646 = vmatprep.subr.mxu0 0.0
    %5647 = vmatpush1.msra.mxu0 0.0
    %5648 = vmatprep.subr.mxu0 0.0
    %5649 = vmatpush1.msra.mxu0 0.0
    %5650 = vmatprep.subr.mxu0 0.0
    %5651 = vmatpush1.msra.mxu0 0.0
    %5652 = vmatprep.subr.mxu0 0.0
    %5653 = vmatpush1.msra.mxu0 0.0
    %5654 = vmatprep.subr.mxu0 0.0
    %5655 = vmatpush1.msra.mxu0 0.0
    %5656 = vmatprep.subr.mxu0 0.0
    %5657 = vmatpush1.msra.mxu0 0.0
    %5658 = vmatprep.subr.mxu0 0.0
    %5659 = vmatpush1.msra.mxu0 0.0
    %5660 = vmatprep.subr.mxu0 0.0
    %5661 = vmatpush1.msra.mxu0 0.0
    %5662 = vmatprep.subr.mxu0 0.0
    %5663 = vmatpush1.msra.mxu0 0.0
    %5664 = vmatprep.subr.mxu0 0.0
    %5665 = vmatpush1.msra.mxu0 0.0
    %5666 = vmatprep.subr.mxu0 0.0
    %5667 = vmatpush1.msra.mxu0 0.0
    %5668 = vmatprep.subr.mxu0 0.0
    %5669 = vmatpush1.msra.mxu0 0.0
    %5670 = vmatprep.subr.mxu0 0.0
    %5671 = vmatpush1.msra.mxu0 0.0
    %5672 = vmatprep.subr.mxu0 0.0
    %5673 = vmatpush1.msra.mxu0 0.0
    %5674 = vmatprep.subr.mxu0 0.0
    %5675 = vmatpush1.msra.mxu0 0.0
    %5676 = vmatprep.subr.mxu0 0.0
    %5677 = vmatpush1.msra.mxu0 0.0
    %5678 = vmatprep.subr.mxu0 0.0
    %5679 = vmatpush1.msra.mxu0 0.0
    %5680 = vmatprep.subr.mxu0 0.0
    %5681 = vmatpush1.msra.mxu0 0.0
    %5682 = vmatprep.subr.mxu0 0.0
    %5683 = vmatpush1.msra.mxu0 0.0
    %5684 = vmatprep.subr.mxu0 0.0
    %5685 = vmatpush1.msra.mxu0 0.0
    %5686 = vmatprep.subr.mxu0 0.0
    %5687 = vmatpush1.msra.mxu0 0.0
    %5688 = vmatprep.subr.mxu0 0.0
    %5689 = vmatpush1.msra.mxu0 0.0
    %5690 = vmatprep.subr.mxu0 0.0
    %5691 = vmatpush1.msra.mxu0 0.0
    %5692 = vmatprep.subr.mxu0 0.0
    %5693 = vmatpush1.msra.mxu0 0.0
    %5694 = vmatprep.mubr.f32.mxu0 0.0
    %5695 = vmatmul.mubr.f32.gmra.mrb[0].mxu0 %v2035
    %v5696 = vpop.f32.mrb[0].mxu0
    %v5697 = vadd.f32 %v5628, %v5696
    %v5698 = vpop.f32.mrb[0].mxu0
    %5699 = vmatprep.mubr.f32.mxu0 0.0
    %5700 = vmatmul.mubr.f32.gmra.mrb[0].mxu0 %v2038
    %v5701 = vpop.f32.mrb[0].mxu0
    %v5702 = vadd.f32 %v5628, %v5701
    %v5703 = vpop.f32.mrb[0].mxu0
    %5704 = vmatprep.mubr.f32.mxu0 0.0
    %5705 = vmatmul.mubr.f32.gmra.mrb[0].mxu0 %v2041
    %v5706 = vpop.f32.mrb[0].mxu0
    %v5707 = vadd.f32 %v5628, %v5706
    %v5708 = vpop.f32.mrb[0].mxu0
    %5709 = vdwg.mxu0
    %v5711 = vsel %vm434, %v5609, 0
    %v5714 = vsel %vm434, %v5697, 0
    %v5717 = vsel %vm434, %v5702, 0
    %5719 = vmatprep.subr.mxu0 0.0
    %5720 = vmatpush1.xpose.msra.mxu0 %v5714
    %5721 = vmatprep.subr.mxu0 0.0
    %5722 = vmatpush1.xpose.msra.mxu0 %v5717
    %5723 = vmatprep.subr.mxu0 0.0
    %5724 = vmatpush1.xpose.msra.mxu0 0.0
    %5725 = vmatprep.subr.mxu0 0.0
    %5726 = vmatpush1.xpose.msra.mxu0 0.0
    %5727 = vmatprep.subr.mxu0 0.0
    %5728 = vmatpush1.xpose.msra.mxu0 0.0
    %5729 = vmatprep.subr.mxu0 0.0
    %5730 = vmatpush1.xpose.msra.mxu0 0.0
    %5731 = vmatprep.subr.mxu0 0.0
    %5732 = vmatpush1.xpose.msra.mxu0 0.0
    %5733 = vmatprep.subr.mxu0 0.0
    %5734 = vmatpush1.xpose.msra.mxu0 0.0
    %5735 = vmatprep.subr.mxu0 0.0
    %5736 = vmatpush1.xpose.msra.mxu0 0.0
    %5737 = vmatprep.subr.mxu0 0.0
    %5738 = vmatpush1.xpose.msra.mxu0 0.0
    %5739 = vmatprep.subr.mxu0 0.0
    %5740 = vmatpush1.xpose.msra.mxu0 0.0
    %5741 = vmatprep.subr.mxu0 0.0
    %5742 = vmatpush1.xpose.msra.mxu0 0.0
    %5743 = vmatprep.subr.mxu0 0.0
    %5744 = vmatpush1.xpose.msra.mxu0 0.0
    %5745 = vmatprep.subr.mxu0 0.0
    %5746 = vmatpush1.xpose.msra.mxu0 0.0
    %5747 = vmatprep.subr.mxu0 0.0
    %5748 = vmatpush1.xpose.msra.mxu0 0.0
    %5749 = vmatprep.subr.mxu0 0.0
    %5750 = vmatpush1.xpose.msra.mxu0 0.0
    %5751 = vmatprep.subr.mxu0 0.0
    %5752 = vmatpush1.xpose.msra.mxu0 0.0
    %5753 = vmatprep.subr.mxu0 0.0
    %5754 = vmatpush1.xpose.msra.mxu0 0.0
    %5755 = vmatprep.subr.mxu0 0.0
    %5756 = vmatpush1.xpose.msra.mxu0 0.0
    %5757 = vmatprep.subr.mxu0 0.0
    %5758 = vmatpush1.xpose.msra.mxu0 0.0
    %5759 = vmatprep.subr.mxu0 0.0
    %5760 = vmatpush1.xpose.msra.mxu0 0.0
    %5761 = vmatprep.subr.mxu0 0.0
    %5762 = vmatpush1.xpose.msra.mxu0 0.0
    %5763 = vmatprep.subr.mxu0 0.0
    %5764 = vmatpush1.xpose.msra.mxu0 0.0
    %5765 = vmatprep.subr.mxu0 0.0
    %5766 = vmatpush1.xpose.msra.mxu0 0.0
    %5767 = vmatprep.subr.mxu0 0.0
    %5768 = vmatpush1.xpose.msra.mxu0 0.0
    %5769 = vmatprep.subr.mxu0 0.0
    %5770 = vmatpush1.xpose.msra.mxu0 0.0
    %5771 = vmatprep.subr.mxu0 0.0
    %5772 = vmatpush1.xpose.msra.mxu0 0.0
    %5773 = vmatprep.subr.mxu0 0.0
    %5774 = vmatpush1.xpose.msra.mxu0 0.0
    %5775 = vmatprep.subr.mxu0 0.0
    %5776 = vmatpush1.xpose.msra.mxu0 0.0
    %5777 = vmatprep.subr.mxu0 0.0
    %5778 = vmatpush1.xpose.msra.mxu0 0.0
    %5779 = vmatprep.subr.mxu0 0.0
    %5780 = vmatpush1.xpose.msra.mxu0 0.0
    %5781 = vmatprep.subr.mxu0 0.0
    %5782 = vmatpush1.xpose.msra.mxu0 0.0
    %5783 = vmatprep.mubr.f32.mxu0 0.0
    %5784 = vmatmul.mubr.f32.gmra.mrb[0].mxu0 %v5711
    %v5785 = vpop.f32.mrb[0].mxu0
    %v5786 = vadd.f32 0.0, %v5785
    %v5787 = vpop.f32.mrb[0].mxu0
    %5788 = vdwg.mxu0
    %v5789 = vmul.f32 %v5786, 0.35355338
    %v5790 = vadd.f32 %v5789, %v2207
    %v5791 = vsel %vm2210, %v5790, -inf
    %5792 = vmax.xlane.f32.xlu0 %v5791
    %v5793 = vpop.xlane.xlu0 %5792
    %v5794 = vsub.f32 %v5790, %v5793
    %v5795 = vmul.f32 %v5794, 1.442695
    %v5796 = vpow.pop %v5795
    %v5797 = vsel %vm2210, %v5796, 0.0
    %5798 = vadd.xlane.f32.xlu0 %v5797
    %v5799 = vpop.xlane.xlu0 %5798
    %v5800 = vrcp.pop %v5799
    %v5801 = vmul.f32 %v5796, %v5800
    %5802 = vst.msk [vmem:[#allocation20] sm:$0xff] %vm2210, %v5801
    %5803 = vrot.lane.b32.xlu0 %v5697, 96
    %v5804 = vpop.permute.xlu0 %5803
    %5805 = vrot.lane.b32.xlu0 %v5702, 96
    %v5806 = vpop.permute.xlu0 %5805
    %v5809 = vsel %vm2210, %v5801, 0
    %v5811 = vsel %vm2230, %v5806, 0
    %5813 = vmatprep.subr.mxu0 0.0
    %5814 = vmatpush1.msra.mxu0 %v5804
    %5815 = vmatprep.subr.mxu0 0.0
    %5816 = vmatpush1.msra.mxu0 %v5811
    %5817 = vmatprep.subr.mxu0 0.0
    %5818 = vmatpush1.msra.mxu0 0.0
    %5819 = vmatprep.subr.mxu0 0.0
    %5820 = vmatpush1.msra.mxu0 0.0
    %5821 = vmatprep.subr.mxu0 0.0
    %5822 = vmatpush1.msra.mxu0 0.0
    %5823 = vmatprep.subr.mxu0 0.0
    %5824 = vmatpush1.msra.mxu0 0.0
    %5825 = vmatprep.subr.mxu0 0.0
    %5826 = vmatpush1.msra.mxu0 0.0
    %5827 = vmatprep.subr.mxu0 0.0
    %5828 = vmatpush1.msra.mxu0 0.0
    %5829 = vmatprep.subr.mxu0 0.0
    %5830 = vmatpush1.msra.mxu0 0.0
    %5831 = vmatprep.subr.mxu0 0.0
    %5832 = vmatpush1.msra.mxu0 0.0
    %5833 = vmatprep.subr.mxu0 0.0
    %5834 = vmatpush1.msra.mxu0 0.0
    %5835 = vmatprep.subr.mxu0 0.0
    %5836 = vmatpush1.msra.mxu0 0.0
    %5837 = vmatprep.subr.mxu0 0.0
    %5838 = vmatpush1.msra.mxu0 0.0
    %5839 = vmatprep.subr.mxu0 0.0
    %5840 = vmatpush1.msra.mxu0 0.0
    %5841 = vmatprep.subr.mxu0 0.0
    %5842 = vmatpush1.msra.mxu0 0.0
    %5843 = vmatprep.subr.mxu0 0.0
    %5844 = vmatpush1.msra.mxu0 0.0
    %5845 = vmatprep.subr.mxu0 0.0
    %5846 = vmatpush1.msra.mxu0 0.0
    %5847 = vmatprep.subr.mxu0 0.0
    %5848 = vmatpush1.msra.mxu0 0.0
    %5849 = vmatprep.subr.mxu0 0.0
    %5850 = vmatpush1.msra.mxu0 0.0
    %5851 = vmatprep.subr.mxu0 0.0
    %5852 = vmatpush1.msra.mxu0 0.0
    %5853 = vmatprep.subr.mxu0 0.0
    %5854 = vmatpush1.msra.mxu0 0.0
    %5855 = vmatprep.subr.mxu0 0.0
    %5856 = vmatpush1.msra.mxu0 0.0
    %5857 = vmatprep.subr.mxu0 0.0
    %5858 = vmatpush1.msra.mxu0 0.0
    %5859 = vmatprep.subr.mxu0 0.0
    %5860 = vmatpush1.msra.mxu0 0.0
    %5861 = vmatprep.subr.mxu0 0.0
    %5862 = vmatpush1.msra.mxu0 0.0
    %5863 = vmatprep.subr.mxu0 0.0
    %5864 = vmatpush1.msra.mxu0 0.0
    %5865 = vmatprep.subr.mxu0 0.0
    %5866 = vmatpush1.msra.mxu0 0.0
    %5867 = vmatprep.subr.mxu0 0.0
    %5868 = vmatpush1.msra.mxu0 0.0
    %5869 = vmatprep.subr.mxu0 0.0
    %5870 = vmatpush1.msra.mxu0 0.0
    %5871 = vmatprep.subr.mxu0 0.0
    %5872 = vmatpush1.msra.mxu0 0.0
    %5873 = vmatprep.subr.mxu0 0.0
    %5874 = vmatpush1.msra.mxu0 0.0
    %5875 = vmatprep.subr.mxu0 0.0
    %5876 = vmatpush1.msra.mxu0 0.0
    %5877 = vmatprep.mubr.f32.mxu0 0.0
    %5878 = vmatmul.mubr.f32.gmra.mrb[0].mxu0 %v5809
    %v5879 = vpop.f32.mrb[0].mxu0
    %v5880 = vadd.f32 0.0, %v5879
    %v5881 = vpop.f32.mrb[0].mxu0
    %5882 = vdwg.mxu0
    %5883 = vrot.lane.b32.xlu0 %v5609, 120
    %v5884 = vpop.permute.xlu0 %5883
    %5885 = vrot.lane.b32.xlu0 %v5697, 120
    %v5886 = vpop.permute.xlu0 %5885
    %5887 = vrot.lane.b32.xlu0 %v5702, 120
    %v5888 = vpop.permute.xlu0 %5887
    %v5889 = vsel %vm434, %v5884, 0
    %v5891 = vsel %vm434, %v5886, 0
    %v5893 = vsel %vm434, %v5888, 0
    %5895 = vmatprep.subr.mxu0 0.0
    %5896 = vmatpush1.xpose.msra.mxu0 %v5891
    %5897 = vmatprep.subr.mxu0 0.0
    %5898 = vmatpush1.xpose.msra.mxu0 %v5893
    %5899 = vmatprep.subr.mxu0 0.0
    %5900 = vmatpush1.xpose.msra.mxu0 0.0
    %5901 = vmatprep.subr.mxu0 0.0
    %5902 = vmatpush1.xpose.msra.mxu0 0.0
    %5903 = vmatprep.subr.mxu0 0.0
    %5904 = vmatpush1.xpose.msra.mxu0 0.0
    %5905 = vmatprep.subr.mxu0 0.0
    %5906 = vmatpush1.xpose.msra.mxu0 0.0
    %5907 = vmatprep.subr.mxu0 0.0
    %5908 = vmatpush1.xpose.msra.mxu0 0.0
    %5909 = vmatprep.subr.mxu0 0.0
    %5910 = vmatpush1.xpose.msra.mxu0 0.0
    %5911 = vmatprep.subr.mxu0 0.0
    %5912 = vmatpush1.xpose.msra.mxu0 0.0
    %5913 = vmatprep.subr.mxu0 0.0
    %5914 = vmatpush1.xpose.msra.mxu0 0.0
    %5915 = vmatprep.subr.mxu0 0.0
    %5916 = vmatpush1.xpose.msra.mxu0 0.0
    %5917 = vmatprep.subr.mxu0 0.0
    %5918 = vmatpush1.xpose.msra.mxu0 0.0
    %5919 = vmatprep.subr.mxu0 0.0
    %5920 = vmatpush1.xpose.msra.mxu0 0.0
    %5921 = vmatprep.subr.mxu0 0.0
    %5922 = vmatpush1.xpose.msra.mxu0 0.0
    %5923 = vmatprep.subr.mxu0 0.0
    %5924 = vmatpush1.xpose.msra.mxu0 0.0
    %5925 = vmatprep.subr.mxu0 0.0
    %5926 = vmatpush1.xpose.msra.mxu0 0.0
    %5927 = vmatprep.subr.mxu0 0.0
    %5928 = vmatpush1.xpose.msra.mxu0 0.0
    %5929 = vmatprep.subr.mxu0 0.0
    %5930 = vmatpush1.xpose.msra.mxu0 0.0
    %5931 = vmatprep.subr.mxu0 0.0
    %5932 = vmatpush1.xpose.msra.mxu0 0.0
    %5933 = vmatprep.subr.mxu0 0.0
    %5934 = vmatpush1.xpose.msra.mxu0 0.0
    %5935 = vmatprep.subr.mxu0 0.0
    %5936 = vmatpush1.xpose.msra.mxu0 0.0
    %5937 = vmatprep.subr.mxu0 0.0
    %5938 = vmatpush1.xpose.msra.mxu0 0.0
    %5939 = vmatprep.subr.mxu0 0.0
    %5940 = vmatpush1.xpose.msra.mxu0 0.0
    %5941 = vmatprep.subr.mxu0 0.0
    %5942 = vmatpush1.xpose.msra.mxu0 0.0
    %5943 = vmatprep.subr.mxu0 0.0
    %5944 = vmatpush1.xpose.msra.mxu0 0.0
    %5945 = vmatprep.subr.mxu0 0.0
    %5946 = vmatpush1.xpose.msra.mxu0 0.0
    %5947 = vmatprep.subr.mxu0 0.0
    %5948 = vmatpush1.xpose.msra.mxu0 0.0
    %5949 = vmatprep.subr.mxu0 0.0
    %5950 = vmatpush1.xpose.msra.mxu0 0.0
    %5951 = vmatprep.subr.mxu0 0.0
    %5952 = vmatpush1.xpose.msra.mxu0 0.0
    %5953 = vmatprep.subr.mxu0 0.0
    %5954 = vmatpush1.xpose.msra.mxu0 0.0
    %5955 = vmatprep.subr.mxu0 0.0
    %5956 = vmatpush1.xpose.msra.mxu0 0.0
    %5957 = vmatprep.subr.mxu0 0.0
    %5958 = vmatpush1.xpose.msra.mxu0 0.0
    %5959 = vmatprep.mubr.f32.mxu0 0.0
    %5960 = vmatmul.mubr.f32.gmra.mrb[0].mxu0 %v5889
    %v5961 = vpop.f32.mrb[0].mxu0
    %v5962 = vadd.f32 0.0, %v5961
    %v5963 = vpop.f32.mrb[0].mxu0
    %5964 = vdwg.mxu0
    %v5965 = vmul.f32 %v5962, 0.35355338
    %v5966 = vadd.f32 %v5965, %v2207
    %v5967 = vsel %vm2210, %v5966, -inf
    %5968 = vmax.xlane.f32.xlu0 %v5967
    %v5969 = vpop.xlane.xlu0 %5968
    %v5970 = vsub.f32 %v5966, %v5969
    %v5971 = vmul.f32 %v5970, 1.442695
    %v5972 = vpow.pop %v5971
    %v5973 = vsel %vm2210, %v5972, 0.0
    %5974 = vadd.xlane.f32.xlu0 %v5973
    %v5975 = vpop.xlane.xlu0 %5974
    %v5976 = vrcp.pop %v5975
    %v5977 = vmul.f32 %v5972, %v5976
    %s5978 = scalar_lea.vmem [#allocation20], 8
    %5979 = vst.msk [vmem:[%s5978] sm:$0xff] %vm2210, %v5977
    %5980 = vrot.lane.b32.xlu0 %v5697, 88
    %v5981 = vpop.permute.xlu0 %5980
    %5982 = vrot.lane.b32.xlu0 %v5702, 88
    %v5983 = vpop.permute.xlu0 %5982
    %v5986 = vsel %vm2210, %v5977, 0
    %v5988 = vsel %vm2230, %v5983, 0
    %5990 = vmatprep.subr.mxu0 0.0
    %5991 = vmatpush1.msra.mxu0 %v5981
    %5992 = vmatprep.subr.mxu0 0.0
    %5993 = vmatpush1.msra.mxu0 %v5988
    %5994 = vmatprep.subr.mxu0 0.0
    %5995 = vmatpush1.msra.mxu0 0.0
    %5996 = vmatprep.subr.mxu0 0.0
    %5997 = vmatpush1.msra.mxu0 0.0
    %5998 = vmatprep.subr.mxu0 0.0
    %5999 = vmatpush1.msra.mxu0 0.0
    %6000 = vmatprep.subr.mxu0 0.0
    %6001 = vmatpush1.msra.mxu0 0.0
    %6002 = vmatprep.subr.mxu0 0.0
    %6003 = vmatpush1.msra.mxu0 0.0
    %6004 = vmatprep.subr.mxu0 0.0
    %6005 = vmatpush1.msra.mxu0 0.0
    %6006 = vmatprep.subr.mxu0 0.0
    %6007 = vmatpush1.msra.mxu0 0.0
    %6008 = vmatprep.subr.mxu0 0.0
    %6009 = vmatpush1.msra.mxu0 0.0
    %6010 = vmatprep.subr.mxu0 0.0
    %6011 = vmatpush1.msra.mxu0 0.0
    %6012 = vmatprep.subr.mxu0 0.0
    %6013 = vmatpush1.msra.mxu0 0.0
    %6014 = vmatprep.subr.mxu0 0.0
    %6015 = vmatpush1.msra.mxu0 0.0
    %6016 = vmatprep.subr.mxu0 0.0
    %6017 = vmatpush1.msra.mxu0 0.0
    %6018 = vmatprep.subr.mxu0 0.0
    %6019 = vmatpush1.msra.mxu0 0.0
    %6020 = vmatprep.subr.mxu0 0.0
    %6021 = vmatpush1.msra.mxu0 0.0
    %6022 = vmatprep.subr.mxu0 0.0
    %6023 = vmatpush1.msra.mxu0 0.0
    %6024 = vmatprep.subr.mxu0 0.0
    %6025 = vmatpush1.msra.mxu0 0.0
    %6026 = vmatprep.subr.mxu0 0.0
    %6027 = vmatpush1.msra.mxu0 0.0
    %6028 = vmatprep.subr.mxu0 0.0
    %6029 = vmatpush1.msra.mxu0 0.0
    %6030 = vmatprep.subr.mxu0 0.0
    %6031 = vmatpush1.msra.mxu0 0.0
    %6032 = vmatprep.subr.mxu0 0.0
    %6033 = vmatpush1.msra.mxu0 0.0
    %6034 = vmatprep.subr.mxu0 0.0
    %6035 = vmatpush1.msra.mxu0 0.0
    %6036 = vmatprep.subr.mxu0 0.0
    %6037 = vmatpush1.msra.mxu0 0.0
    %6038 = vmatprep.subr.mxu0 0.0
    %6039 = vmatpush1.msra.mxu0 0.0
    %6040 = vmatprep.subr.mxu0 0.0
    %6041 = vmatpush1.msra.mxu0 0.0
    %6042 = vmatprep.subr.mxu0 0.0
    %6043 = vmatpush1.msra.mxu0 0.0
    %6044 = vmatprep.subr.mxu0 0.0
    %6045 = vmatpush1.msra.mxu0 0.0
    %6046 = vmatprep.subr.mxu0 0.0
    %6047 = vmatpush1.msra.mxu0 0.0
    %6048 = vmatprep.subr.mxu0 0.0
    %6049 = vmatpush1.msra.mxu0 0.0
    %6050 = vmatprep.subr.mxu0 0.0
    %6051 = vmatpush1.msra.mxu0 0.0
    %6052 = vmatprep.subr.mxu0 0.0
    %6053 = vmatpush1.msra.mxu0 0.0
    %6054 = vmatprep.mubr.f32.mxu0 0.0
    %6055 = vmatmul.mubr.f32.gmra.mrb[0].mxu0 %v5986
    %v6056 = vpop.f32.mrb[0].mxu0
    %v6057 = vadd.f32 0.0, %v6056
    %v6058 = vpop.f32.mrb[0].mxu0
    %6059 = vdwg.mxu0
    %6060 = vrot.lane.b32.xlu0 %v5609, 112
    %v6061 = vpop.permute.xlu0 %6060
    %6062 = vrot.lane.b32.xlu0 %v5697, 112
    %v6063 = vpop.permute.xlu0 %6062
    %6064 = vrot.lane.b32.xlu0 %v5702, 112
    %v6065 = vpop.permute.xlu0 %6064
    %v6066 = vsel %vm434, %v6061, 0
    %v6068 = vsel %vm434, %v6063, 0
    %v6070 = vsel %vm434, %v6065, 0
    %6072 = vmatprep.subr.mxu0 0.0
    %6073 = vmatpush1.xpose.msra.mxu0 %v6068
    %6074 = vmatprep.subr.mxu0 0.0
    %6075 = vmatpush1.xpose.msra.mxu0 %v6070
    %6076 = vmatprep.subr.mxu0 0.0
    %6077 = vmatpush1.xpose.msra.mxu0 0.0
    %6078 = vmatprep.subr.mxu0 0.0
    %6079 = vmatpush1.xpose.msra.mxu0 0.0
    %6080 = vmatprep.subr.mxu0 0.0
    %6081 = vmatpush1.xpose.msra.mxu0 0.0
    %6082 = vmatprep.subr.mxu0 0.0
    %6083 = vmatpush1.xpose.msra.mxu0 0.0
    %6084 = vmatprep.subr.mxu0 0.0
    %6085 = vmatpush1.xpose.msra.mxu0 0.0
    %6086 = vmatprep.subr.mxu0 0.0
    %6087 = vmatpush1.xpose.msra.mxu0 0.0
    %6088 = vmatprep.subr.mxu0 0.0
    %6089 = vmatpush1.xpose.msra.mxu0 0.0
    %6090 = vmatprep.subr.mxu0 0.0
    %6091 = vmatpush1.xpose.msra.mxu0 0.0
    %6092 = vmatprep.subr.mxu0 0.0
    %6093 = vmatpush1.xpose.msra.mxu0 0.0
    %6094 = vmatprep.subr.mxu0 0.0
    %6095 = vmatpush1.xpose.msra.mxu0 0.0
    %6096 = vmatprep.subr.mxu0 0.0
    %6097 = vmatpush1.xpose.msra.mxu0 0.0
    %6098 = vmatprep.subr.mxu0 0.0
    %6099 = vmatpush1.xpose.msra.mxu0 0.0
    %6100 = vmatprep.subr.mxu0 0.0
    %6101 = vmatpush1.xpose.msra.mxu0 0.0
    %6102 = vmatprep.subr.mxu0 0.0
    %6103 = vmatpush1.xpose.msra.mxu0 0.0
    %6104 = vmatprep.subr.mxu0 0.0
    %6105 = vmatpush1.xpose.msra.mxu0 0.0
    %6106 = vmatprep.subr.mxu0 0.0
    %6107 = vmatpush1.xpose.msra.mxu0 0.0
    %6108 = vmatprep.subr.mxu0 0.0
    %6109 = vmatpush1.xpose.msra.mxu0 0.0
    %6110 = vmatprep.subr.mxu0 0.0
    %6111 = vmatpush1.xpose.msra.mxu0 0.0
    %6112 = vmatprep.subr.mxu0 0.0
    %6113 = vmatpush1.xpose.msra.mxu0 0.0
    %6114 = vmatprep.subr.mxu0 0.0
    %6115 = vmatpush1.xpose.msra.mxu0 0.0
    %6116 = vmatprep.subr.mxu0 0.0
    %6117 = vmatpush1.xpose.msra.mxu0 0.0
    %6118 = vmatprep.subr.mxu0 0.0
    %6119 = vmatpush1.xpose.msra.mxu0 0.0
    %6120 = vmatprep.subr.mxu0 0.0
    %6121 = vmatpush1.xpose.msra.mxu0 0.0
    %6122 = vmatprep.subr.mxu0 0.0
    %6123 = vmatpush1.xpose.msra.mxu0 0.0
    %6124 = vmatprep.subr.mxu0 0.0
    %6125 = vmatpush1.xpose.msra.mxu0 0.0
    %6126 = vmatprep.subr.mxu0 0.0
    %6127 = vmatpush1.xpose.msra.mxu0 0.0
    %6128 = vmatprep.subr.mxu0 0.0
    %6129 = vmatpush1.xpose.msra.mxu0 0.0
    %6130 = vmatprep.subr.mxu0 0.0
    %6131 = vmatpush1.xpose.msra.mxu0 0.0
    %6132 = vmatprep.subr.mxu0 0.0
    %6133 = vmatpush1.xpose.msra.mxu0 0.0
    %6134 = vmatprep.subr.mxu0 0.0
    %6135 = vmatpush1.xpose.msra.mxu0 0.0
    %6136 = vmatprep.mubr.f32.mxu0 0.0
    %6137 = vmatmul.mubr.f32.gmra.mrb[0].mxu0 %v6066
    %v6138 = vpop.f32.mrb[0].mxu0
    %v6139 = vadd.f32 0.0, %v6138
    %v6140 = vpop.f32.mrb[0].mxu0
    %6141 = vdwg.mxu0
    %v6142 = vmul.f32 %v6139, 0.35355338
    %v6143 = vadd.f32 %v6142, %v2207
    %v6144 = vsel %vm2210, %v6143, -inf
    %6145 = vmax.xlane.f32.xlu0 %v6144
    %v6146 = vpop.xlane.xlu0 %6145
    %v6147 = vsub.f32 %v6143, %v6146
    %v6148 = vmul.f32 %v6147, 1.442695
    %v6149 = vpow.pop %v6148
    %v6150 = vsel %vm2210, %v6149, 0.0
    %6151 = vadd.xlane.f32.xlu0 %v6150
    %v6152 = vpop.xlane.xlu0 %6151
    %v6153 = vrcp.pop %v6152
    %v6154 = vmul.f32 %v6149, %v6153
    %s6155 = scalar_lea.vmem [#allocation20], 16
    %6156 = vst.msk [vmem:[%s6155] sm:$0xff] %vm2210, %v6154
    %6157 = vrot.lane.b32.xlu0 %v5697, 80
    %v6158 = vpop.permute.xlu0 %6157
    %6159 = vrot.lane.b32.xlu0 %v5702, 80
    %v6160 = vpop.permute.xlu0 %6159
    %v6163 = vsel %vm2210, %v6154, 0
    %v6165 = vsel %vm2230, %v6160, 0
    %6167 = vmatprep.subr.mxu0 0.0
    %6168 = vmatpush1.msra.mxu0 %v6158
    %6169 = vmatprep.subr.mxu0 0.0
    %6170 = vmatpush1.msra.mxu0 %v6165
    %6171 = vmatprep.subr.mxu0 0.0
    %6172 = vmatpush1.msra.mxu0 0.0
    %6173 = vmatprep.subr.mxu0 0.0
    %6174 = vmatpush1.msra.mxu0 0.0
    %6175 = vmatprep.subr.mxu0 0.0
    %6176 = vmatpush1.msra.mxu0 0.0
    %6177 = vmatprep.subr.mxu0 0.0
    %6178 = vmatpush1.msra.mxu0 0.0
    %6179 = vmatprep.subr.mxu0 0.0
    %6180 = vmatpush1.msra.mxu0 0.0
    %6181 = vmatprep.subr.mxu0 0.0
    %6182 = vmatpush1.msra.mxu0 0.0
    %6183 = vmatprep.subr.mxu0 0.0
    %6184 = vmatpush1.msra.mxu0 0.0
    %6185 = vmatprep.subr.mxu0 0.0
    %6186 = vmatpush1.msra.mxu0 0.0
    %6187 = vmatprep.subr.mxu0 0.0
    %6188 = vmatpush1.msra.mxu0 0.0
    %6189 = vmatprep.subr.mxu0 0.0
    %6190 = vmatpush1.msra.mxu0 0.0
    %6191 = vmatprep.subr.mxu0 0.0
    %6192 = vmatpush1.msra.mxu0 0.0
    %6193 = vmatprep.subr.mxu0 0.0
    %6194 = vmatpush1.msra.mxu0 0.0
    %6195 = vmatprep.subr.mxu0 0.0
    %6196 = vmatpush1.msra.mxu0 0.0
    %6197 = vmatprep.subr.mxu0 0.0
    %6198 = vmatpush1.msra.mxu0 0.0
    %6199 = vmatprep.subr.mxu0 0.0
    %6200 = vmatpush1.msra.mxu0 0.0
    %6201 = vmatprep.subr.mxu0 0.0
    %6202 = vmatpush1.msra.mxu0 0.0
    %6203 = vmatprep.subr.mxu0 0.0
    %6204 = vmatpush1.msra.mxu0 0.0
    %6205 = vmatprep.subr.mxu0 0.0
    %6206 = vmatpush1.msra.mxu0 0.0
    %6207 = vmatprep.subr.mxu0 0.0
    %6208 = vmatpush1.msra.mxu0 0.0
    %6209 = vmatprep.subr.mxu0 0.0
    %6210 = vmatpush1.msra.mxu0 0.0
    %6211 = vmatprep.subr.mxu0 0.0
    %6212 = vmatpush1.msra.mxu0 0.0
    %6213 = vmatprep.subr.mxu0 0.0
    %6214 = vmatpush1.msra.mxu0 0.0
    %6215 = vmatprep.subr.mxu0 0.0
    %6216 = vmatpush1.msra.mxu0 0.0
    %6217 = vmatprep.subr.mxu0 0.0
    %6218 = vmatpush1.msra.mxu0 0.0
    %6219 = vmatprep.subr.mxu0 0.0
    %6220 = vmatpush1.msra.mxu0 0.0
    %6221 = vmatprep.subr.mxu0 0.0
    %6222 = vmatpush1.msra.mxu0 0.0
    %6223 = vmatprep.subr.mxu0 0.0
    %6224 = vmatpush1.msra.mxu0 0.0
    %6225 = vmatprep.subr.mxu0 0.0
    %6226 = vmatpush1.msra.mxu0 0.0
    %6227 = vmatprep.subr.mxu0 0.0
    %6228 = vmatpush1.msra.mxu0 0.0
    %6229 = vmatprep.subr.mxu0 0.0
    %6230 = vmatpush1.msra.mxu0 0.0
    %6231 = vmatprep.mubr.f32.mxu0 0.0
    %6232 = vmatmul.mubr.f32.gmra.mrb[0].mxu0 %v6163
    %v6233 = vpop.f32.mrb[0].mxu0
    %v6234 = vadd.f32 0.0, %v6233
    %v6235 = vpop.f32.mrb[0].mxu0
    %6236 = vdwg.mxu0
    %6237 = vrot.lane.b32.xlu0 %v5609, 104
    %v6238 = vpop.permute.xlu0 %6237
    %6239 = vrot.lane.b32.xlu0 %v5697, 104
    %v6240 = vpop.permute.xlu0 %6239
    %6241 = vrot.lane.b32.xlu0 %v5702, 104
    %v6242 = vpop.permute.xlu0 %6241
    %v6243 = vsel %vm434, %v6238, 0
    %v6245 = vsel %vm434, %v6240, 0
    %v6247 = vsel %vm434, %v6242, 0
    %6249 = vmatprep.subr.mxu0 0.0
    %6250 = vmatpush1.xpose.msra.mxu0 %v6245
    %6251 = vmatprep.subr.mxu0 0.0
    %6252 = vmatpush1.xpose.msra.mxu0 %v6247
    %6253 = vmatprep.subr.mxu0 0.0
    %6254 = vmatpush1.xpose.msra.mxu0 0.0
    %6255 = vmatprep.subr.mxu0 0.0
    %6256 = vmatpush1.xpose.msra.mxu0 0.0
    %6257 = vmatprep.subr.mxu0 0.0
    %6258 = vmatpush1.xpose.msra.mxu0 0.0
    %6259 = vmatprep.subr.mxu0 0.0
    %6260 = vmatpush1.xpose.msra.mxu0 0.0
    %6261 = vmatprep.subr.mxu0 0.0
    %6262 = vmatpush1.xpose.msra.mxu0 0.0
    %6263 = vmatprep.subr.mxu0 0.0
    %6264 = vmatpush1.xpose.msra.mxu0 0.0
    %6265 = vmatprep.subr.mxu0 0.0
    %6266 = vmatpush1.xpose.msra.mxu0 0.0
    %6267 = vmatprep.subr.mxu0 0.0
    %6268 = vmatpush1.xpose.msra.mxu0 0.0
    %6269 = vmatprep.subr.mxu0 0.0
    %6270 = vmatpush1.xpose.msra.mxu0 0.0
    %6271 = vmatprep.subr.mxu0 0.0
    %6272 = vmatpush1.xpose.msra.mxu0 0.0
    %6273 = vmatprep.subr.mxu0 0.0
    %6274 = vmatpush1.xpose.msra.mxu0 0.0
    %6275 = vmatprep.subr.mxu0 0.0
    %6276 = vmatpush1.xpose.msra.mxu0 0.0
    %6277 = vmatprep.subr.mxu0 0.0
    %6278 = vmatpush1.xpose.msra.mxu0 0.0
    %6279 = vmatprep.subr.mxu0 0.0
    %6280 = vmatpush1.xpose.msra.mxu0 0.0
    %6281 = vmatprep.subr.mxu0 0.0
    %6282 = vmatpush1.xpose.msra.mxu0 0.0
    %6283 = vmatprep.subr.mxu0 0.0
    %6284 = vmatpush1.xpose.msra.mxu0 0.0
    %6285 = vmatprep.subr.mxu0 0.0
    %6286 = vmatpush1.xpose.msra.mxu0 0.0
    %6287 = vmatprep.subr.mxu0 0.0
    %6288 = vmatpush1.xpose.msra.mxu0 0.0
    %6289 = vmatprep.subr.mxu0 0.0
    %6290 = vmatpush1.xpose.msra.mxu0 0.0
    %6291 = vmatprep.subr.mxu0 0.0
    %6292 = vmatpush1.xpose.msra.mxu0 0.0
    %6293 = vmatprep.subr.mxu0 0.0
    %6294 = vmatpush1.xpose.msra.mxu0 0.0
    %6295 = vmatprep.subr.mxu0 0.0
    %6296 = vmatpush1.xpose.msra.mxu0 0.0
    %6297 = vmatprep.subr.mxu0 0.0
    %6298 = vmatpush1.xpose.msra.mxu0 0.0
    %6299 = vmatprep.subr.mxu0 0.0
    %6300 = vmatpush1.xpose.msra.mxu0 0.0
    %6301 = vmatprep.subr.mxu0 0.0
    %6302 = vmatpush1.xpose.msra.mxu0 0.0
    %6303 = vmatprep.subr.mxu0 0.0
    %6304 = vmatpush1.xpose.msra.mxu0 0.0
    %6305 = vmatprep.subr.mxu0 0.0
    %6306 = vmatpush1.xpose.msra.mxu0 0.0
    %6307 = vmatprep.subr.mxu0 0.0
    %6308 = vmatpush1.xpose.msra.mxu0 0.0
    %6309 = vmatprep.subr.mxu0 0.0
    %6310 = vmatpush1.xpose.msra.mxu0 0.0
    %6311 = vmatprep.subr.mxu0 0.0
    %6312 = vmatpush1.xpose.msra.mxu0 0.0
    %6313 = vmatprep.mubr.f32.mxu0 0.0
    %6314 = vmatmul.mubr.f32.gmra.mrb[0].mxu0 %v6243
    %v6315 = vpop.f32.mrb[0].mxu0
    %v6316 = vadd.f32 0.0, %v6315
    %v6317 = vpop.f32.mrb[0].mxu0
    %6318 = vdwg.mxu0
    %v6319 = vmul.f32 %v6316, 0.35355338
    %v6320 = vadd.f32 %v6319, %v2207
    %v6321 = vsel %vm2210, %v6320, -inf
    %6322 = vmax.xlane.f32.xlu0 %v6321
    %v6323 = vpop.xlane.xlu0 %6322
    %v6324 = vsub.f32 %v6320, %v6323
    %v6325 = vmul.f32 %v6324, 1.442695
    %v6326 = vpow.pop %v6325
    %v6327 = vsel %vm2210, %v6326, 0.0
    %6328 = vadd.xlane.f32.xlu0 %v6327
    %v6329 = vpop.xlane.xlu0 %6328
    %v6330 = vrcp.pop %v6329
    %v6331 = vmul.f32 %v6326, %v6330
    %s6332 = scalar_lea.vmem [#allocation20], 24
    %6333 = vst.msk [vmem:[%s6332] sm:$0xff] %vm2210, %v6331
    %6334 = vrot.lane.b32.xlu0 %v5697, 72
    %v6335 = vpop.permute.xlu0 %6334
    %6336 = vrot.lane.b32.xlu0 %v5702, 72
    %v6337 = vpop.permute.xlu0 %6336
    %v6340 = vsel %vm2210, %v6331, 0
    %v6342 = vsel %vm2230, %v6337, 0
    %6344 = vmatprep.subr.mxu0 0.0
    %6345 = vmatpush1.msra.mxu0 %v6335
    %6346 = vmatprep.subr.mxu0 0.0
    %6347 = vmatpush1.msra.mxu0 %v6342
    %6348 = vmatprep.subr.mxu0 0.0
    %6349 = vmatpush1.msra.mxu0 0.0
    %6350 = vmatprep.subr.mxu0 0.0
    %6351 = vmatpush1.msra.mxu0 0.0
    %6352 = vmatprep.subr.mxu0 0.0
    %6353 = vmatpush1.msra.mxu0 0.0
    %6354 = vmatprep.subr.mxu0 0.0
    %6355 = vmatpush1.msra.mxu0 0.0
    %6356 = vmatprep.subr.mxu0 0.0
    %6357 = vmatpush1.msra.mxu0 0.0
    %6358 = vmatprep.subr.mxu0 0.0
    %6359 = vmatpush1.msra.mxu0 0.0
    %6360 = vmatprep.subr.mxu0 0.0
    %6361 = vmatpush1.msra.mxu0 0.0
    %6362 = vmatprep.subr.mxu0 0.0
    %6363 = vmatpush1.msra.mxu0 0.0
    %6364 = vmatprep.subr.mxu0 0.0
    %6365 = vmatpush1.msra.mxu0 0.0
    %6366 = vmatprep.subr.mxu0 0.0
    %6367 = vmatpush1.msra.mxu0 0.0
    %6368 = vmatprep.subr.mxu0 0.0
    %6369 = vmatpush1.msra.mxu0 0.0
    %6370 = vmatprep.subr.mxu0 0.0
    %6371 = vmatpush1.msra.mxu0 0.0
    %6372 = vmatprep.subr.mxu0 0.0
    %6373 = vmatpush1.msra.mxu0 0.0
    %6374 = vmatprep.subr.mxu0 0.0
    %6375 = vmatpush1.msra.mxu0 0.0
    %6376 = vmatprep.subr.mxu0 0.0
    %6377 = vmatpush1.msra.mxu0 0.0
    %6378 = vmatprep.subr.mxu0 0.0
    %6379 = vmatpush1.msra.mxu0 0.0
    %6380 = vmatprep.subr.mxu0 0.0
    %6381 = vmatpush1.msra.mxu0 0.0
    %6382 = vmatprep.subr.mxu0 0.0
    %6383 = vmatpush1.msra.mxu0 0.0
    %6384 = vmatprep.subr.mxu0 0.0
    %6385 = vmatpush1.msra.mxu0 0.0
    %6386 = vmatprep.subr.mxu0 0.0
    %6387 = vmatpush1.msra.mxu0 0.0
    %6388 = vmatprep.subr.mxu0 0.0
    %6389 = vmatpush1.msra.mxu0 0.0
    %6390 = vmatprep.subr.mxu0 0.0
    %6391 = vmatpush1.msra.mxu0 0.0
    %6392 = vmatprep.subr.mxu0 0.0
    %6393 = vmatpush1.msra.mxu0 0.0
    %6394 = vmatprep.subr.mxu0 0.0
    %6395 = vmatpush1.msra.mxu0 0.0
    %6396 = vmatprep.subr.mxu0 0.0
    %6397 = vmatpush1.msra.mxu0 0.0
    %6398 = vmatprep.subr.mxu0 0.0
    %6399 = vmatpush1.msra.mxu0 0.0
    %6400 = vmatprep.subr.mxu0 0.0
    %6401 = vmatpush1.msra.mxu0 0.0
    %6402 = vmatprep.subr.mxu0 0.0
    %6403 = vmatpush1.msra.mxu0 0.0
    %6404 = vmatprep.subr.mxu0 0.0
    %6405 = vmatpush1.msra.mxu0 0.0
    %6406 = vmatprep.subr.mxu0 0.0
    %6407 = vmatpush1.msra.mxu0 0.0
    %6408 = vmatprep.mubr.f32.mxu0 0.0
    %6409 = vmatmul.mubr.f32.gmra.mrb[0].mxu0 %v6340
    %v6410 = vpop.f32.mrb[0].mxu0
    %v6411 = vadd.f32 0.0, %v6410
    %v6412 = vpop.f32.mrb[0].mxu0
    %6413 = vdwg.mxu0
    %6415 = vrot.lane.b32.xlu0 %v6057, 8
    %v6416 = vpop.permute.xlu0 %6415
    %6419 = vrot.lane.b32.xlu0 %v6234, 16
    %v6420 = vpop.permute.xlu0 %6419
    %6423 = vrot.lane.b32.xlu0 %v6411, 24
    %v6424 = vpop.permute.xlu0 %6423
    %v6426 = vsel %vm434, %v5880, %v6416
    %v6427 = vsel %vm1112, %v6426, %v6420
    %v6428 = vsel %vm1114, %v6427, %v6424
    %v6430 = vrot.slane %v5702, 2
    %v6431 = vrot.slane %v5707, 2
    %v6432 = vsel %vm2844, %v6430, %v6431
    %v6434 = vsel %vm434, %v5614, 0
    %v6436 = vsel %vm434, %v6432, 0
    %v6438 = vsel %vm434, %v6431, 0
    %6440 = vmatprep.subr.mxu0 0.0
    %6441 = vmatpush1.xpose.msra.mxu0 %v6436
    %6442 = vmatprep.subr.mxu0 0.0
    %6443 = vmatpush1.xpose.msra.mxu0 %v6438
    %6444 = vmatprep.subr.mxu0 0.0
    %6445 = vmatpush1.xpose.msra.mxu0 0.0
    %6446 = vmatprep.subr.mxu0 0.0
    %6447 = vmatpush1.xpose.msra.mxu0 0.0
    %6448 = vmatprep.subr.mxu0 0.0
    %6449 = vmatpush1.xpose.msra.mxu0 0.0
    %6450 = vmatprep.subr.mxu0 0.0
    %6451 = vmatpush1.xpose.msra.mxu0 0.0
    %6452 = vmatprep.subr.mxu0 0.0
    %6453 = vmatpush1.xpose.msra.mxu0 0.0
    %6454 = vmatprep.subr.mxu0 0.0
    %6455 = vmatpush1.xpose.msra.mxu0 0.0
    %6456 = vmatprep.subr.mxu0 0.0
    %6457 = vmatpush1.xpose.msra.mxu0 0.0
    %6458 = vmatprep.subr.mxu0 0.0
    %6459 = vmatpush1.xpose.msra.mxu0 0.0
    %6460 = vmatprep.subr.mxu0 0.0
    %6461 = vmatpush1.xpose.msra.mxu0 0.0
    %6462 = vmatprep.subr.mxu0 0.0
    %6463 = vmatpush1.xpose.msra.mxu0 0.0
    %6464 = vmatprep.subr.mxu0 0.0
    %6465 = vmatpush1.xpose.msra.mxu0 0.0
    %6466 = vmatprep.subr.mxu0 0.0
    %6467 = vmatpush1.xpose.msra.mxu0 0.0
    %6468 = vmatprep.subr.mxu0 0.0
    %6469 = vmatpush1.xpose.msra.mxu0 0.0
    %6470 = vmatprep.subr.mxu0 0.0
    %6471 = vmatpush1.xpose.msra.mxu0 0.0
    %6472 = vmatprep.subr.mxu0 0.0
    %6473 = vmatpush1.xpose.msra.mxu0 0.0
    %6474 = vmatprep.subr.mxu0 0.0
    %6475 = vmatpush1.xpose.msra.mxu0 0.0
    %6476 = vmatprep.subr.mxu0 0.0
    %6477 = vmatpush1.xpose.msra.mxu0 0.0
    %6478 = vmatprep.subr.mxu0 0.0
    %6479 = vmatpush1.xpose.msra.mxu0 0.0
    %6480 = vmatprep.subr.mxu0 0.0
    %6481 = vmatpush1.xpose.msra.mxu0 0.0
    %6482 = vmatprep.subr.mxu0 0.0
    %6483 = vmatpush1.xpose.msra.mxu0 0.0
    %6484 = vmatprep.subr.mxu0 0.0
    %6485 = vmatpush1.xpose.msra.mxu0 0.0
    %6486 = vmatprep.subr.mxu0 0.0
    %6487 = vmatpush1.xpose.msra.mxu0 0.0
    %6488 = vmatprep.subr.mxu0 0.0
    %6489 = vmatpush1.xpose.msra.mxu0 0.0
    %6490 = vmatprep.subr.mxu0 0.0
    %6491 = vmatpush1.xpose.msra.mxu0 0.0
    %6492 = vmatprep.subr.mxu0 0.0
    %6493 = vmatpush1.xpose.msra.mxu0 0.0
    %6494 = vmatprep.subr.mxu0 0.0
    %6495 = vmatpush1.xpose.msra.mxu0 0.0
    %6496 = vmatprep.subr.mxu0 0.0
    %6497 = vmatpush1.xpose.msra.mxu0 0.0
    %6498 = vmatprep.subr.mxu0 0.0
    %6499 = vmatpush1.xpose.msra.mxu0 0.0
    %6500 = vmatprep.subr.mxu0 0.0
    %6501 = vmatpush1.xpose.msra.mxu0 0.0
    %6502 = vmatprep.subr.mxu0 0.0
    %6503 = vmatpush1.xpose.msra.mxu0 0.0
    %6504 = vmatprep.mubr.f32.mxu0 0.0
    %6505 = vmatmul.mubr.f32.gmra.mrb[0].mxu0 %v6434
    %v6506 = vpop.f32.mrb[0].mxu0
    %v6507 = vadd.f32 0.0, %v6506
    %v6508 = vpop.f32.mrb[0].mxu0
    %6509 = vdwg.mxu0
    %v6510 = vmul.f32 %v6507, 0.35355338
    %v6511 = vadd.f32 %v6510, %v2930
    %v6512 = vsel %vm2210, %v6511, -inf
    %6513 = vmax.xlane.f32.xlu0 %v6512
    %v6514 = vpop.xlane.xlu0 %6513
    %v6515 = vsub.f32 %v6511, %v6514
    %v6516 = vmul.f32 %v6515, 1.442695
    %v6517 = vpow.pop %v6516
    %v6518 = vsel %vm2210, %v6517, 0.0
    %6519 = vadd.xlane.f32.xlu0 %v6518
    %v6520 = vpop.xlane.xlu0 %6519
    %v6521 = vrcp.pop %v6520
    %v6522 = vmul.f32 %v6517, %v6521
    %s6523 = scalar_lea.vmem [#allocation20], 32
    %6524 = vst.msk [vmem:[%s6523] sm:$0xff] %vm2210, %v6522
    %6525 = vrot.lane.b32.xlu0 %v6432, 96
    %v6526 = vpop.permute.xlu0 %6525
    %6527 = vrot.lane.b32.xlu0 %v6431, 96
    %v6528 = vpop.permute.xlu0 %6527
    %v6531 = vsel %vm2210, %v6522, 0
    %v6533 = vsel %vm2230, %v6528, 0
    %6535 = vmatprep.subr.mxu0 0.0
    %6536 = vmatpush1.msra.mxu0 %v6526
    %6537 = vmatprep.subr.mxu0 0.0
    %6538 = vmatpush1.msra.mxu0 %v6533
    %6539 = vmatprep.subr.mxu0 0.0
    %6540 = vmatpush1.msra.mxu0 0.0
    %6541 = vmatprep.subr.mxu0 0.0
    %6542 = vmatpush1.msra.mxu0 0.0
    %6543 = vmatprep.subr.mxu0 0.0
    %6544 = vmatpush1.msra.mxu0 0.0
    %6545 = vmatprep.subr.mxu0 0.0
    %6546 = vmatpush1.msra.mxu0 0.0
    %6547 = vmatprep.subr.mxu0 0.0
    %6548 = vmatpush1.msra.mxu0 0.0
    %6549 = vmatprep.subr.mxu0 0.0
    %6550 = vmatpush1.msra.mxu0 0.0
    %6551 = vmatprep.subr.mxu0 0.0
    %6552 = vmatpush1.msra.mxu0 0.0
    %6553 = vmatprep.subr.mxu0 0.0
    %6554 = vmatpush1.msra.mxu0 0.0
    %6555 = vmatprep.subr.mxu0 0.0
    %6556 = vmatpush1.msra.mxu0 0.0
    %6557 = vmatprep.subr.mxu0 0.0
    %6558 = vmatpush1.msra.mxu0 0.0
    %6559 = vmatprep.subr.mxu0 0.0
    %6560 = vmatpush1.msra.mxu0 0.0
    %6561 = vmatprep.subr.mxu0 0.0
    %6562 = vmatpush1.msra.mxu0 0.0
    %6563 = vmatprep.subr.mxu0 0.0
    %6564 = vmatpush1.msra.mxu0 0.0
    %6565 = vmatprep.subr.mxu0 0.0
    %6566 = vmatpush1.msra.mxu0 0.0
    %6567 = vmatprep.subr.mxu0 0.0
    %6568 = vmatpush1.msra.mxu0 0.0
    %6569 = vmatprep.subr.mxu0 0.0
    %6570 = vmatpush1.msra.mxu0 0.0
    %6571 = vmatprep.subr.mxu0 0.0
    %6572 = vmatpush1.msra.mxu0 0.0
    %6573 = vmatprep.subr.mxu0 0.0
    %6574 = vmatpush1.msra.mxu0 0.0
    %6575 = vmatprep.subr.mxu0 0.0
    %6576 = vmatpush1.msra.mxu0 0.0
    %6577 = vmatprep.subr.mxu0 0.0
    %6578 = vmatpush1.msra.mxu0 0.0
    %6579 = vmatprep.subr.mxu0 0.0
    %6580 = vmatpush1.msra.mxu0 0.0
    %6581 = vmatprep.subr.mxu0 0.0
    %6582 = vmatpush1.msra.mxu0 0.0
    %6583 = vmatprep.subr.mxu0 0.0
    %6584 = vmatpush1.msra.mxu0 0.0
    %6585 = vmatprep.subr.mxu0 0.0
    %6586 = vmatpush1.msra.mxu0 0.0
    %6587 = vmatprep.subr.mxu0 0.0
    %6588 = vmatpush1.msra.mxu0 0.0
    %6589 = vmatprep.subr.mxu0 0.0
    %6590 = vmatpush1.msra.mxu0 0.0
    %6591 = vmatprep.subr.mxu0 0.0
    %6592 = vmatpush1.msra.mxu0 0.0
    %6593 = vmatprep.subr.mxu0 0.0
    %6594 = vmatpush1.msra.mxu0 0.0
    %6595 = vmatprep.subr.mxu0 0.0
    %6596 = vmatpush1.msra.mxu0 0.0
    %6597 = vmatprep.subr.mxu0 0.0
    %6598 = vmatpush1.msra.mxu0 0.0
    %6599 = vmatprep.mubr.f32.mxu0 0.0
    %6600 = vmatmul.mubr.f32.gmra.mrb[0].mxu0 %v6531
    %v6601 = vpop.f32.mrb[0].mxu0
    %v6602 = vadd.f32 0.0, %v6601
    %v6603 = vpop.f32.mrb[0].mxu0
    %6604 = vdwg.mxu0
    %6605 = vrot.lane.b32.xlu0 %v5614, 120
    %v6606 = vpop.permute.xlu0 %6605
    %6607 = vrot.lane.b32.xlu0 %v6432, 120
    %v6608 = vpop.permute.xlu0 %6607
    %6609 = vrot.lane.b32.xlu0 %v6431, 120
    %v6610 = vpop.permute.xlu0 %6609
    %v6611 = vsel %vm434, %v6606, 0
    %v6613 = vsel %vm434, %v6608, 0
    %v6615 = vsel %vm434, %v6610, 0
    %6617 = vmatprep.subr.mxu0 0.0
    %6618 = vmatpush1.xpose.msra.mxu0 %v6613
    %6619 = vmatprep.subr.mxu0 0.0
    %6620 = vmatpush1.xpose.msra.mxu0 %v6615
    %6621 = vmatprep.subr.mxu0 0.0
    %6622 = vmatpush1.xpose.msra.mxu0 0.0
    %6623 = vmatprep.subr.mxu0 0.0
    %6624 = vmatpush1.xpose.msra.mxu0 0.0
    %6625 = vmatprep.subr.mxu0 0.0
    %6626 = vmatpush1.xpose.msra.mxu0 0.0
    %6627 = vmatprep.subr.mxu0 0.0
    %6628 = vmatpush1.xpose.msra.mxu0 0.0
    %6629 = vmatprep.subr.mxu0 0.0
    %6630 = vmatpush1.xpose.msra.mxu0 0.0
    %6631 = vmatprep.subr.mxu0 0.0
    %6632 = vmatpush1.xpose.msra.mxu0 0.0
    %6633 = vmatprep.subr.mxu0 0.0
    %6634 = vmatpush1.xpose.msra.mxu0 0.0
    %6635 = vmatprep.subr.mxu0 0.0
    %6636 = vmatpush1.xpose.msra.mxu0 0.0
    %6637 = vmatprep.subr.mxu0 0.0
    %6638 = vmatpush1.xpose.msra.mxu0 0.0
    %6639 = vmatprep.subr.mxu0 0.0
    %6640 = vmatpush1.xpose.msra.mxu0 0.0
    %6641 = vmatprep.subr.mxu0 0.0
    %6642 = vmatpush1.xpose.msra.mxu0 0.0
    %6643 = vmatprep.subr.mxu0 0.0
    %6644 = vmatpush1.xpose.msra.mxu0 0.0
    %6645 = vmatprep.subr.mxu0 0.0
    %6646 = vmatpush1.xpose.msra.mxu0 0.0
    %6647 = vmatprep.subr.mxu0 0.0
    %6648 = vmatpush1.xpose.msra.mxu0 0.0
    %6649 = vmatprep.subr.mxu0 0.0
    %6650 = vmatpush1.xpose.msra.mxu0 0.0
    %6651 = vmatprep.subr.mxu0 0.0
    %6652 = vmatpush1.xpose.msra.mxu0 0.0
    %6653 = vmatprep.subr.mxu0 0.0
    %6654 = vmatpush1.xpose.msra.mxu0 0.0
    %6655 = vmatprep.subr.mxu0 0.0
    %6656 = vmatpush1.xpose.msra.mxu0 0.0
    %6657 = vmatprep.subr.mxu0 0.0
    %6658 = vmatpush1.xpose.msra.mxu0 0.0
    %6659 = vmatprep.subr.mxu0 0.0
    %6660 = vmatpush1.xpose.msra.mxu0 0.0
    %6661 = vmatprep.subr.mxu0 0.0
    %6662 = vmatpush1.xpose.msra.mxu0 0.0
    %6663 = vmatprep.subr.mxu0 0.0
    %6664 = vmatpush1.xpose.msra.mxu0 0.0
    %6665 = vmatprep.subr.mxu0 0.0
    %6666 = vmatpush1.xpose.msra.mxu0 0.0
    %6667 = vmatprep.subr.mxu0 0.0
    %6668 = vmatpush1.xpose.msra.mxu0 0.0
    %6669 = vmatprep.subr.mxu0 0.0
    %6670 = vmatpush1.xpose.msra.mxu0 0.0
    %6671 = vmatprep.subr.mxu0 0.0
    %6672 = vmatpush1.xpose.msra.mxu0 0.0
    %6673 = vmatprep.subr.mxu0 0.0
    %6674 = vmatpush1.xpose.msra.mxu0 0.0
    %6675 = vmatprep.subr.mxu0 0.0
    %6676 = vmatpush1.xpose.msra.mxu0 0.0
    %6677 = vmatprep.subr.mxu0 0.0
    %6678 = vmatpush1.xpose.msra.mxu0 0.0
    %6679 = vmatprep.subr.mxu0 0.0
    %6680 = vmatpush1.xpose.msra.mxu0 0.0
    %6681 = vmatprep.mubr.f32.mxu0 0.0
    %6682 = vmatmul.mubr.f32.gmra.mrb[0].mxu0 %v6611
    %v6683 = vpop.f32.mrb[0].mxu0
    %v6684 = vadd.f32 0.0, %v6683
    %v6685 = vpop.f32.mrb[0].mxu0
    %6686 = vdwg.mxu0
    %v6687 = vmul.f32 %v6684, 0.35355338
    %v6688 = vadd.f32 %v6687, %v2930
    %v6689 = vsel %vm2210, %v6688, -inf
    %6690 = vmax.xlane.f32.xlu0 %v6689
    %v6691 = vpop.xlane.xlu0 %6690
    %v6692 = vsub.f32 %v6688, %v6691
    %v6693 = vmul.f32 %v6692, 1.442695
    %v6694 = vpow.pop %v6693
    %v6695 = vsel %vm2210, %v6694, 0.0
    %6696 = vadd.xlane.f32.xlu0 %v6695
    %v6697 = vpop.xlane.xlu0 %6696
    %v6698 = vrcp.pop %v6697
    %v6699 = vmul.f32 %v6694, %v6698
    %s6700 = scalar_lea.vmem [#allocation20], 40
    %6701 = vst.msk [vmem:[%s6700] sm:$0xff] %vm2210, %v6699
    %6702 = vrot.lane.b32.xlu0 %v6432, 88
    %v6703 = vpop.permute.xlu0 %6702
    %6704 = vrot.lane.b32.xlu0 %v6431, 88
    %v6705 = vpop.permute.xlu0 %6704
    %v6708 = vsel %vm2210, %v6699, 0
    %v6710 = vsel %vm2230, %v6705, 0
    %6712 = vmatprep.subr.mxu0 0.0
    %6713 = vmatpush1.msra.mxu0 %v6703
    %6714 = vmatprep.subr.mxu0 0.0
    %6715 = vmatpush1.msra.mxu0 %v6710
    %6716 = vmatprep.subr.mxu0 0.0
    %6717 = vmatpush1.msra.mxu0 0.0
    %6718 = vmatprep.subr.mxu0 0.0
    %6719 = vmatpush1.msra.mxu0 0.0
    %6720 = vmatprep.subr.mxu0 0.0
    %6721 = vmatpush1.msra.mxu0 0.0
    %6722 = vmatprep.subr.mxu0 0.0
    %6723 = vmatpush1.msra.mxu0 0.0
    %6724 = vmatprep.subr.mxu0 0.0
    %6725 = vmatpush1.msra.mxu0 0.0
    %6726 = vmatprep.subr.mxu0 0.0
    %6727 = vmatpush1.msra.mxu0 0.0
    %6728 = vmatprep.subr.mxu0 0.0
    %6729 = vmatpush1.msra.mxu0 0.0
    %6730 = vmatprep.subr.mxu0 0.0
    %6731 = vmatpush1.msra.mxu0 0.0
    %6732 = vmatprep.subr.mxu0 0.0
    %6733 = vmatpush1.msra.mxu0 0.0
    %6734 = vmatprep.subr.mxu0 0.0
    %6735 = vmatpush1.msra.mxu0 0.0
    %6736 = vmatprep.subr.mxu0 0.0
    %6737 = vmatpush1.msra.mxu0 0.0
    %6738 = vmatprep.subr.mxu0 0.0
    %6739 = vmatpush1.msra.mxu0 0.0
    %6740 = vmatprep.subr.mxu0 0.0
    %6741 = vmatpush1.msra.mxu0 0.0
    %6742 = vmatprep.subr.mxu0 0.0
    %6743 = vmatpush1.msra.mxu0 0.0
    %6744 = vmatprep.subr.mxu0 0.0
    %6745 = vmatpush1.msra.mxu0 0.0
    %6746 = vmatprep.subr.mxu0 0.0
    %6747 = vmatpush1.msra.mxu0 0.0
    %6748 = vmatprep.subr.mxu0 0.0
    %6749 = vmatpush1.msra.mxu0 0.0
    %6750 = vmatprep.subr.mxu0 0.0
    %6751 = vmatpush1.msra.mxu0 0.0
    %6752 = vmatprep.subr.mxu0 0.0
    %6753 = vmatpush1.msra.mxu0 0.0
    %6754 = vmatprep.subr.mxu0 0.0
    %6755 = vmatpush1.msra.mxu0 0.0
    %6756 = vmatprep.subr.mxu0 0.0
    %6757 = vmatpush1.msra.mxu0 0.0
    %6758 = vmatprep.subr.mxu0 0.0
    %6759 = vmatpush1.msra.mxu0 0.0
    %6760 = vmatprep.subr.mxu0 0.0
    %6761 = vmatpush1.msra.mxu0 0.0
    %6762 = vmatprep.subr.mxu0 0.0
    %6763 = vmatpush1.msra.mxu0 0.0
    %6764 = vmatprep.subr.mxu0 0.0
    %6765 = vmatpush1.msra.mxu0 0.0
    %6766 = vmatprep.subr.mxu0 0.0
    %6767 = vmatpush1.msra.mxu0 0.0
    %6768 = vmatprep.subr.mxu0 0.0
    %6769 = vmatpush1.msra.mxu0 0.0
    %6770 = vmatprep.subr.mxu0 0.0
    %6771 = vmatpush1.msra.mxu0 0.0
    %6772 = vmatprep.subr.mxu0 0.0
    %6773 = vmatpush1.msra.mxu0 0.0
    %6774 = vmatprep.subr.mxu0 0.0
    %6775 = vmatpush1.msra.mxu0 0.0
    %6776 = vmatprep.mubr.f32.mxu0 0.0
    %6777 = vmatmul.mubr.f32.gmra.mrb[0].mxu0 %v6708
    %v6778 = vpop.f32.mrb[0].mxu0
    %v6779 = vadd.f32 0.0, %v6778
    %v6780 = vpop.f32.mrb[0].mxu0
    %6781 = vdwg.mxu0
    %6782 = vrot.lane.b32.xlu0 %v5614, 112
    %v6783 = vpop.permute.xlu0 %6782
    %6784 = vrot.lane.b32.xlu0 %v6432, 112
    %v6785 = vpop.permute.xlu0 %6784
    %6786 = vrot.lane.b32.xlu0 %v6431, 112
    %v6787 = vpop.permute.xlu0 %6786
    %v6788 = vsel %vm434, %v6783, 0
    %v6790 = vsel %vm434, %v6785, 0
    %v6792 = vsel %vm434, %v6787, 0
    %6794 = vmatprep.subr.mxu0 0.0
    %6795 = vmatpush1.xpose.msra.mxu0 %v6790
    %6796 = vmatprep.subr.mxu0 0.0
    %6797 = vmatpush1.xpose.msra.mxu0 %v6792
    %6798 = vmatprep.subr.mxu0 0.0
    %6799 = vmatpush1.xpose.msra.mxu0 0.0
    %6800 = vmatprep.subr.mxu0 0.0
    %6801 = vmatpush1.xpose.msra.mxu0 0.0
    %6802 = vmatprep.subr.mxu0 0.0
    %6803 = vmatpush1.xpose.msra.mxu0 0.0
    %6804 = vmatprep.subr.mxu0 0.0
    %6805 = vmatpush1.xpose.msra.mxu0 0.0
    %6806 = vmatprep.subr.mxu0 0.0
    %6807 = vmatpush1.xpose.msra.mxu0 0.0
    %6808 = vmatprep.subr.mxu0 0.0
    %6809 = vmatpush1.xpose.msra.mxu0 0.0
    %6810 = vmatprep.subr.mxu0 0.0
    %6811 = vmatpush1.xpose.msra.mxu0 0.0
    %6812 = vmatprep.subr.mxu0 0.0
    %6813 = vmatpush1.xpose.msra.mxu0 0.0
    %6814 = vmatprep.subr.mxu0 0.0
    %6815 = vmatpush1.xpose.msra.mxu0 0.0
    %6816 = vmatprep.subr.mxu0 0.0
    %6817 = vmatpush1.xpose.msra.mxu0 0.0
    %6818 = vmatprep.subr.mxu0 0.0
    %6819 = vmatpush1.xpose.msra.mxu0 0.0
    %6820 = vmatprep.subr.mxu0 0.0
    %6821 = vmatpush1.xpose.msra.mxu0 0.0
    %6822 = vmatprep.subr.mxu0 0.0
    %6823 = vmatpush1.xpose.msra.mxu0 0.0
    %6824 = vmatprep.subr.mxu0 0.0
    %6825 = vmatpush1.xpose.msra.mxu0 0.0
    %6826 = vmatprep.subr.mxu0 0.0
    %6827 = vmatpush1.xpose.msra.mxu0 0.0
    %6828 = vmatprep.subr.mxu0 0.0
    %6829 = vmatpush1.xpose.msra.mxu0 0.0
    %6830 = vmatprep.subr.mxu0 0.0
    %6831 = vmatpush1.xpose.msra.mxu0 0.0
    %6832 = vmatprep.subr.mxu0 0.0
    %6833 = vmatpush1.xpose.msra.mxu0 0.0
    %6834 = vmatprep.subr.mxu0 0.0
    %6835 = vmatpush1.xpose.msra.mxu0 0.0
    %6836 = vmatprep.subr.mxu0 0.0
    %6837 = vmatpush1.xpose.msra.mxu0 0.0
    %6838 = vmatprep.subr.mxu0 0.0
    %6839 = vmatpush1.xpose.msra.mxu0 0.0
    %6840 = vmatprep.subr.mxu0 0.0
    %6841 = vmatpush1.xpose.msra.mxu0 0.0
    %6842 = vmatprep.subr.mxu0 0.0
    %6843 = vmatpush1.xpose.msra.mxu0 0.0
    %6844 = vmatprep.subr.mxu0 0.0
    %6845 = vmatpush1.xpose.msra.mxu0 0.0
    %6846 = vmatprep.subr.mxu0 0.0
    %6847 = vmatpush1.xpose.msra.mxu0 0.0
    %6848 = vmatprep.subr.mxu0 0.0
    %6849 = vmatpush1.xpose.msra.mxu0 0.0
    %6850 = vmatprep.subr.mxu0 0.0
    %6851 = vmatpush1.xpose.msra.mxu0 0.0
    %6852 = vmatprep.subr.mxu0 0.0
    %6853 = vmatpush1.xpose.msra.mxu0 0.0
    %6854 = vmatprep.subr.mxu0 0.0
    %6855 = vmatpush1.xpose.msra.mxu0 0.0
    %6856 = vmatprep.subr.mxu0 0.0
    %6857 = vmatpush1.xpose.msra.mxu0 0.0
    %6858 = vmatprep.mubr.f32.mxu0 0.0
    %6859 = vmatmul.mubr.f32.gmra.mrb[0].mxu0 %v6788
    %v6860 = vpop.f32.mrb[0].mxu0
    %v6861 = vadd.f32 0.0, %v6860
    %v6862 = vpop.f32.mrb[0].mxu0
    %6863 = vdwg.mxu0
    %v6864 = vmul.f32 %v6861, 0.35355338
    %v6865 = vadd.f32 %v6864, %v2930
    %v6866 = vsel %vm2210, %v6865, -inf
    %6867 = vmax.xlane.f32.xlu0 %v6866
    %v6868 = vpop.xlane.xlu0 %6867
    %v6869 = vsub.f32 %v6865, %v6868
    %v6870 = vmul.f32 %v6869, 1.442695
    %v6871 = vpow.pop %v6870
    %v6872 = vsel %vm2210, %v6871, 0.0
    %6873 = vadd.xlane.f32.xlu0 %v6872
    %v6874 = vpop.xlane.xlu0 %6873
    %v6875 = vrcp.pop %v6874
    %v6876 = vmul.f32 %v6871, %v6875
    %s6877 = scalar_lea.vmem [#allocation20], 48
    %6878 = vst.msk [vmem:[%s6877] sm:$0xff] %vm2210, %v6876
    %6879 = vrot.lane.b32.xlu0 %v6432, 80
    %v6880 = vpop.permute.xlu0 %6879
    %6881 = vrot.lane.b32.xlu0 %v6431, 80
    %v6882 = vpop.permute.xlu0 %6881
    %v6885 = vsel %vm2210, %v6876, 0
    %v6887 = vsel %vm2230, %v6882, 0
    %6889 = vmatprep.subr.mxu0 0.0
    %6890 = vmatpush1.msra.mxu0 %v6880
    %6891 = vmatprep.subr.mxu0 0.0
    %6892 = vmatpush1.msra.mxu0 %v6887
    %6893 = vmatprep.subr.mxu0 0.0
    %6894 = vmatpush1.msra.mxu0 0.0
    %6895 = vmatprep.subr.mxu0 0.0
    %6896 = vmatpush1.msra.mxu0 0.0
    %6897 = vmatprep.subr.mxu0 0.0
    %6898 = vmatpush1.msra.mxu0 0.0
    %6899 = vmatprep.subr.mxu0 0.0
    %6900 = vmatpush1.msra.mxu0 0.0
    %6901 = vmatprep.subr.mxu0 0.0
    %6902 = vmatpush1.msra.mxu0 0.0
    %6903 = vmatprep.subr.mxu0 0.0
    %6904 = vmatpush1.msra.mxu0 0.0
    %6905 = vmatprep.subr.mxu0 0.0
    %6906 = vmatpush1.msra.mxu0 0.0
    %6907 = vmatprep.subr.mxu0 0.0
    %6908 = vmatpush1.msra.mxu0 0.0
    %6909 = vmatprep.subr.mxu0 0.0
    %6910 = vmatpush1.msra.mxu0 0.0
    %6911 = vmatprep.subr.mxu0 0.0
    %6912 = vmatpush1.msra.mxu0 0.0
    %6913 = vmatprep.subr.mxu0 0.0
    %6914 = vmatpush1.msra.mxu0 0.0
    %6915 = vmatprep.subr.mxu0 0.0
    %6916 = vmatpush1.msra.mxu0 0.0
    %6917 = vmatprep.subr.mxu0 0.0
    %6918 = vmatpush1.msra.mxu0 0.0
    %6919 = vmatprep.subr.mxu0 0.0
    %6920 = vmatpush1.msra.mxu0 0.0
    %6921 = vmatprep.subr.mxu0 0.0
    %6922 = vmatpush1.msra.mxu0 0.0
    %6923 = vmatprep.subr.mxu0 0.0
    %6924 = vmatpush1.msra.mxu0 0.0
    %6925 = vmatprep.subr.mxu0 0.0
    %6926 = vmatpush1.msra.mxu0 0.0
    %6927 = vmatprep.subr.mxu0 0.0
    %6928 = vmatpush1.msra.mxu0 0.0
    %6929 = vmatprep.subr.mxu0 0.0
    %6930 = vmatpush1.msra.mxu0 0.0
    %6931 = vmatprep.subr.mxu0 0.0
    %6932 = vmatpush1.msra.mxu0 0.0
    %6933 = vmatprep.subr.mxu0 0.0
    %6934 = vmatpush1.msra.mxu0 0.0
    %6935 = vmatprep.subr.mxu0 0.0
    %6936 = vmatpush1.msra.mxu0 0.0
    %6937 = vmatprep.subr.mxu0 0.0
    %6938 = vmatpush1.msra.mxu0 0.0
    %6939 = vmatprep.subr.mxu0 0.0
    %6940 = vmatpush1.msra.mxu0 0.0
    %6941 = vmatprep.subr.mxu0 0.0
    %6942 = vmatpush1.msra.mxu0 0.0
    %6943 = vmatprep.subr.mxu0 0.0
    %6944 = vmatpush1.msra.mxu0 0.0
    %6945 = vmatprep.subr.mxu0 0.0
    %6946 = vmatpush1.msra.mxu0 0.0
    %6947 = vmatprep.subr.mxu0 0.0
    %6948 = vmatpush1.msra.mxu0 0.0
    %6949 = vmatprep.subr.mxu0 0.0
    %6950 = vmatpush1.msra.mxu0 0.0
    %6951 = vmatprep.subr.mxu0 0.0
    %6952 = vmatpush1.msra.mxu0 0.0
    %6953 = vmatprep.mubr.f32.mxu0 0.0
    %6954 = vmatmul.mubr.f32.gmra.mrb[0].mxu0 %v6885
    %v6955 = vpop.f32.mrb[0].mxu0
    %v6956 = vadd.f32 0.0, %v6955
    %v6957 = vpop.f32.mrb[0].mxu0
    %6958 = vdwg.mxu0
    %6959 = vrot.lane.b32.xlu0 %v5614, 104
    %v6960 = vpop.permute.xlu0 %6959
    %6961 = vrot.lane.b32.xlu0 %v6432, 104
    %v6962 = vpop.permute.xlu0 %6961
    %6963 = vrot.lane.b32.xlu0 %v6431, 104
    %v6964 = vpop.permute.xlu0 %6963
    %v6965 = vsel %vm434, %v6960, 0
    %v6967 = vsel %vm434, %v6962, 0
    %v6969 = vsel %vm434, %v6964, 0
    %6971 = vmatprep.subr.mxu0 0.0
    %6972 = vmatpush1.xpose.msra.mxu0 %v6967
    %6973 = vmatprep.subr.mxu0 0.0
    %6974 = vmatpush1.xpose.msra.mxu0 %v6969
    %6975 = vmatprep.subr.mxu0 0.0
    %6976 = vmatpush1.xpose.msra.mxu0 0.0
    %6977 = vmatprep.subr.mxu0 0.0
    %6978 = vmatpush1.xpose.msra.mxu0 0.0
    %6979 = vmatprep.subr.mxu0 0.0
    %6980 = vmatpush1.xpose.msra.mxu0 0.0
    %6981 = vmatprep.subr.mxu0 0.0
    %6982 = vmatpush1.xpose.msra.mxu0 0.0
    %6983 = vmatprep.subr.mxu0 0.0
    %6984 = vmatpush1.xpose.msra.mxu0 0.0
    %6985 = vmatprep.subr.mxu0 0.0
    %6986 = vmatpush1.xpose.msra.mxu0 0.0
    %6987 = vmatprep.subr.mxu0 0.0
    %6988 = vmatpush1.xpose.msra.mxu0 0.0
    %6989 = vmatprep.subr.mxu0 0.0
    %6990 = vmatpush1.xpose.msra.mxu0 0.0
    %6991 = vmatprep.subr.mxu0 0.0
    %6992 = vmatpush1.xpose.msra.mxu0 0.0
    %6993 = vmatprep.subr.mxu0 0.0
    %6994 = vmatpush1.xpose.msra.mxu0 0.0
    %6995 = vmatprep.subr.mxu0 0.0
    %6996 = vmatpush1.xpose.msra.mxu0 0.0
    %6997 = vmatprep.subr.mxu0 0.0
    %6998 = vmatpush1.xpose.msra.mxu0 0.0
    %6999 = vmatprep.subr.mxu0 0.0
    %7000 = vmatpush1.xpose.msra.mxu0 0.0
    %7001 = vmatprep.subr.mxu0 0.0
    %7002 = vmatpush1.xpose.msra.mxu0 0.0
    %7003 = vmatprep.subr.mxu0 0.0
    %7004 = vmatpush1.xpose.msra.mxu0 0.0
    %7005 = vmatprep.subr.mxu0 0.0
    %7006 = vmatpush1.xpose.msra.mxu0 0.0
    %7007 = vmatprep.subr.mxu0 0.0
    %7008 = vmatpush1.xpose.msra.mxu0 0.0
    %7009 = vmatprep.subr.mxu0 0.0
    %7010 = vmatpush1.xpose.msra.mxu0 0.0
    %7011 = vmatprep.subr.mxu0 0.0
    %7012 = vmatpush1.xpose.msra.mxu0 0.0
    %7013 = vmatprep.subr.mxu0 0.0
    %7014 = vmatpush1.xpose.msra.mxu0 0.0
    %7015 = vmatprep.subr.mxu0 0.0
    %7016 = vmatpush1.xpose.msra.mxu0 0.0
    %7017 = vmatprep.subr.mxu0 0.0
    %7018 = vmatpush1.xpose.msra.mxu0 0.0
    %7019 = vmatprep.subr.mxu0 0.0
    %7020 = vmatpush1.xpose.msra.mxu0 0.0
    %7021 = vmatprep.subr.mxu0 0.0
    %7022 = vmatpush1.xpose.msra.mxu0 0.0
    %7023 = vmatprep.subr.mxu0 0.0
    %7024 = vmatpush1.xpose.msra.mxu0 0.0
    %7025 = vmatprep.subr.mxu0 0.0
    %7026 = vmatpush1.xpose.msra.mxu0 0.0
    %7027 = vmatprep.subr.mxu0 0.0
    %7028 = vmatpush1.xpose.msra.mxu0 0.0
    %7029 = vmatprep.subr.mxu0 0.0
    %7030 = vmatpush1.xpose.msra.mxu0 0.0
    %7031 = vmatprep.subr.mxu0 0.0
    %7032 = vmatpush1.xpose.msra.mxu0 0.0
    %7033 = vmatprep.subr.mxu0 0.0
    %7034 = vmatpush1.xpose.msra.mxu0 0.0
    %7035 = vmatprep.mubr.f32.mxu0 0.0
    %7036 = vmatmul.mubr.f32.gmra.mrb[0].mxu0 %v6965
    %v7037 = vpop.f32.mrb[0].mxu0
    %v7038 = vadd.f32 0.0, %v7037
    %v7039 = vpop.f32.mrb[0].mxu0
    %7040 = vdwg.mxu0
    %v7041 = vmul.f32 %v7038, 0.35355338
    %v7042 = vadd.f32 %v7041, %v2930
    %v7043 = vsel %vm2210, %v7042, -inf
    %7044 = vmax.xlane.f32.xlu0 %v7043
    %v7045 = vpop.xlane.xlu0 %7044
    %v7046 = vsub.f32 %v7042, %v7045
    %v7047 = vmul.f32 %v7046, 1.442695
    %v7048 = vpow.pop %v7047
    %v7049 = vsel %vm2210, %v7048, 0.0
    %7050 = vadd.xlane.f32.xlu0 %v7049
    %v7051 = vpop.xlane.xlu0 %7050
    %v7052 = vrcp.pop %v7051
    %v7053 = vmul.f32 %v7048, %v7052
    %s7054 = scalar_lea.vmem [#allocation20], 56
    %7055 = vst.msk [vmem:[%s7054] sm:$0xff] %vm2210, %v7053
    %7056 = vrot.lane.b32.xlu0 %v6432, 72
    %v7057 = vpop.permute.xlu0 %7056
    %7058 = vrot.lane.b32.xlu0 %v6431, 72
    %v7059 = vpop.permute.xlu0 %7058
    %v7062 = vsel %vm2210, %v7053, 0
    %v7064 = vsel %vm2230, %v7059, 0
    %7066 = vmatprep.subr.mxu0 0.0
    %7067 = vmatpush1.msra.mxu0 %v7057
    %7068 = vmatprep.subr.mxu0 0.0
    %7069 = vmatpush1.msra.mxu0 %v7064
    %7070 = vmatprep.subr.mxu0 0.0
    %7071 = vmatpush1.msra.mxu0 0.0
    %7072 = vmatprep.subr.mxu0 0.0
    %7073 = vmatpush1.msra.mxu0 0.0
    %7074 = vmatprep.subr.mxu0 0.0
    %7075 = vmatpush1.msra.mxu0 0.0
    %7076 = vmatprep.subr.mxu0 0.0
    %7077 = vmatpush1.msra.mxu0 0.0
    %7078 = vmatprep.subr.mxu0 0.0
    %7079 = vmatpush1.msra.mxu0 0.0
    %7080 = vmatprep.subr.mxu0 0.0
    %7081 = vmatpush1.msra.mxu0 0.0
    %7082 = vmatprep.subr.mxu0 0.0
    %7083 = vmatpush1.msra.mxu0 0.0
    %7084 = vmatprep.subr.mxu0 0.0
    %7085 = vmatpush1.msra.mxu0 0.0
    %7086 = vmatprep.subr.mxu0 0.0
    %7087 = vmatpush1.msra.mxu0 0.0
    %7088 = vmatprep.subr.mxu0 0.0
    %7089 = vmatpush1.msra.mxu0 0.0
    %7090 = vmatprep.subr.mxu0 0.0
    %7091 = vmatpush1.msra.mxu0 0.0
    %7092 = vmatprep.subr.mxu0 0.0
    %7093 = vmatpush1.msra.mxu0 0.0
    %7094 = vmatprep.subr.mxu0 0.0
    %7095 = vmatpush1.msra.mxu0 0.0
    %7096 = vmatprep.subr.mxu0 0.0
    %7097 = vmatpush1.msra.mxu0 0.0
    %7098 = vmatprep.subr.mxu0 0.0
    %7099 = vmatpush1.msra.mxu0 0.0
    %7100 = vmatprep.subr.mxu0 0.0
    %7101 = vmatpush1.msra.mxu0 0.0
    %7102 = vmatprep.subr.mxu0 0.0
    %7103 = vmatpush1.msra.mxu0 0.0
    %7104 = vmatprep.subr.mxu0 0.0
    %7105 = vmatpush1.msra.mxu0 0.0
    %7106 = vmatprep.subr.mxu0 0.0
    %7107 = vmatpush1.msra.mxu0 0.0
    %7108 = vmatprep.subr.mxu0 0.0
    %7109 = vmatpush1.msra.mxu0 0.0
    %7110 = vmatprep.subr.mxu0 0.0
    %7111 = vmatpush1.msra.mxu0 0.0
    %7112 = vmatprep.subr.mxu0 0.0
    %7113 = vmatpush1.msra.mxu0 0.0
    %7114 = vmatprep.subr.mxu0 0.0
    %7115 = vmatpush1.msra.mxu0 0.0
    %7116 = vmatprep.subr.mxu0 0.0
    %7117 = vmatpush1.msra.mxu0 0.0
    %7118 = vmatprep.subr.mxu0 0.0
    %7119 = vmatpush1.msra.mxu0 0.0
    %7120 = vmatprep.subr.mxu0 0.0
    %7121 = vmatpush1.msra.mxu0 0.0
    %7122 = vmatprep.subr.mxu0 0.0
    %7123 = vmatpush1.msra.mxu0 0.0
    %7124 = vmatprep.subr.mxu0 0.0
    %7125 = vmatpush1.msra.mxu0 0.0
    %7126 = vmatprep.subr.mxu0 0.0
    %7127 = vmatpush1.msra.mxu0 0.0
    %7128 = vmatprep.subr.mxu0 0.0
    %7129 = vmatpush1.msra.mxu0 0.0
    %7130 = vmatprep.mubr.f32.mxu0 0.0
    %7131 = vmatmul.mubr.f32.gmra.mrb[0].mxu0 %v7062
    %v7132 = vpop.f32.mrb[0].mxu0
    %v7133 = vadd.f32 0.0, %v7132
    %v7134 = vpop.f32.mrb[0].mxu0
    %7135 = vdwg.mxu0
    %7137 = vrot.lane.b32.xlu0 %v6779, 8
    %v7138 = vpop.permute.xlu0 %7137
    %7141 = vrot.lane.b32.xlu0 %v6956, 16
    %v7142 = vpop.permute.xlu0 %7141
    %7145 = vrot.lane.b32.xlu0 %v7133, 24
    %v7146 = vpop.permute.xlu0 %7145
    %v7148 = vsel %vm434, %v6602, %v7138
    %v7149 = vsel %vm1112, %v7148, %v7142
    %v7150 = vsel %vm1114, %v7149, %v7146
    %s7151 = scalar_lea.vmem %s14, 32
    %v7152 = vld [vmem:[%s7151] sm:$0xff]
    %v7153 = vld [vmem:[%s7151 + $0x8] sm:$0xff]
    %v7154 = vld [vmem:[%s7151 + $0x10] sm:$0xff]
    %v7155 = vld [vmem:[%s7151 + $0x18] sm:$0xff]
    %s7156 = scalar_lea.vmem [#allocation11], 1
    %v7157 = vld [vmem:[%s7156] sm:$0x1]
    %v7159 = vlaneseq
    %v7160 = vshrl.u32 %v7159, 7
    %v7161 = vsub.s32 0, %v7160
    %v7162 = vrot.slane %v7157, %v7161
    %v7165 = vsel %vm349, %v6428, 0
    %v7168 = vsel %vm349, %v7150, 0
    %7170 = vmatprep.subr.mxu0 0.0
    %7171 = vmatpush1.msra.mxu0 %v7152
    %7172 = vmatprep.subr.mxu0 0.0
    %7173 = vmatpush1.msra.mxu0 %v7153
    %7174 = vmatprep.subr.mxu0 0.0
    %7175 = vmatpush1.msra.mxu0 %v7154
    %7176 = vmatprep.subr.mxu0 0.0
    %7177 = vmatpush1.msra.mxu0 %v7155
    %7178 = vmatprep.subr.mxu0 0.0
    %7179 = vmatpush1.msra.mxu0 0.0
    %7180 = vmatprep.subr.mxu0 0.0
    %7181 = vmatpush1.msra.mxu0 0.0
    %7182 = vmatprep.subr.mxu0 0.0
    %7183 = vmatpush1.msra.mxu0 0.0
    %7184 = vmatprep.subr.mxu0 0.0
    %7185 = vmatpush1.msra.mxu0 0.0
    %7186 = vmatprep.subr.mxu0 0.0
    %7187 = vmatpush1.msra.mxu0 0.0
    %7188 = vmatprep.subr.mxu0 0.0
    %7189 = vmatpush1.msra.mxu0 0.0
    %7190 = vmatprep.subr.mxu0 0.0
    %7191 = vmatpush1.msra.mxu0 0.0
    %7192 = vmatprep.subr.mxu0 0.0
    %7193 = vmatpush1.msra.mxu0 0.0
    %7194 = vmatprep.subr.mxu0 0.0
    %7195 = vmatpush1.msra.mxu0 0.0
    %7196 = vmatprep.subr.mxu0 0.0
    %7197 = vmatpush1.msra.mxu0 0.0
    %7198 = vmatprep.subr.mxu0 0.0
    %7199 = vmatpush1.msra.mxu0 0.0
    %7200 = vmatprep.subr.mxu0 0.0
    %7201 = vmatpush1.msra.mxu0 0.0
    %7202 = vmatprep.subr.mxu0 0.0
    %7203 = vmatpush1.msra.mxu0 0.0
    %7204 = vmatprep.subr.mxu0 0.0
    %7205 = vmatpush1.msra.mxu0 0.0
    %7206 = vmatprep.subr.mxu0 0.0
    %7207 = vmatpush1.msra.mxu0 0.0
    %7208 = vmatprep.subr.mxu0 0.0
    %7209 = vmatpush1.msra.mxu0 0.0
    %7210 = vmatprep.subr.mxu0 0.0
    %7211 = vmatpush1.msra.mxu0 0.0
    %7212 = vmatprep.subr.mxu0 0.0
    %7213 = vmatpush1.msra.mxu0 0.0
    %7214 = vmatprep.subr.mxu0 0.0
    %7215 = vmatpush1.msra.mxu0 0.0
    %7216 = vmatprep.subr.mxu0 0.0
    %7217 = vmatpush1.msra.mxu0 0.0
    %7218 = vmatprep.subr.mxu0 0.0
    %7219 = vmatpush1.msra.mxu0 0.0
    %7220 = vmatprep.subr.mxu0 0.0
    %7221 = vmatpush1.msra.mxu0 0.0
    %7222 = vmatprep.subr.mxu0 0.0
    %7223 = vmatpush1.msra.mxu0 0.0
    %7224 = vmatprep.subr.mxu0 0.0
    %7225 = vmatpush1.msra.mxu0 0.0
    %7226 = vmatprep.subr.mxu0 0.0
    %7227 = vmatpush1.msra.mxu0 0.0
    %7228 = vmatprep.subr.mxu0 0.0
    %7229 = vmatpush1.msra.mxu0 0.0
    %7230 = vmatprep.subr.mxu0 0.0
    %7231 = vmatpush1.msra.mxu0 0.0
    %7232 = vmatprep.subr.mxu0 0.0
    %7233 = vmatpush1.msra.mxu0 0.0
    %7234 = vmatprep.mubr.f32.mxu0 0.0
    %7235 = vmatmul.mubr.f32.gmra.mrb[0].mxu0 %v7165
    %v7236 = vpop.f32.mrb[0].mxu0
    %v7237 = vadd.f32 %v7162, %v7236
    %v7238 = vpop.f32.mrb[0].mxu0
    %7239 = vmatprep.mubr.f32.mxu0 0.0
    %7240 = vmatmul.mubr.f32.gmra.mrb[0].mxu0 %v7168
    %v7241 = vpop.f32.mrb[0].mxu0
    %v7242 = vadd.f32 %v7162, %v7241
    %v7243 = vpop.f32.mrb[0].mxu0
    %7244 = vdwg.mxu0
    %v7245 = vadd.f32 %v5521, %v7237
    %v7246 = vadd.f32 %v5522, %v7242
    %v7247 = vsel %vm349, %v7245, 0.0
    %7248 = vadd.xlane.f32.xlu0 %v7247
    %v7249 = vpop.xlane.xlu0 %7248
    %v7250 = vsel %vm349, %v7246, 0.0
    %7251 = vadd.xlane.f32.xlu0 %v7250
    %v7252 = vpop.xlane.xlu0 %7251
    %v7253 = vmul.f32 %v7249, %v1898
    %v7254 = vmul.f32 %v7252, %v1898
    %v7255 = vsub.f32 %v7245, %v7253
    %v7256 = vsub.f32 %v7246, %v7254
    %v7257 = vmul.f32 %v7255, %v7255
    %v7258 = vmul.f32 %v7256, %v7256
    %v7259 = vsel %vm349, %v7257, 0.0
    %7260 = vadd.xlane.f32.xlu0 %v7259
    %v7261 = vpop.xlane.xlu0 %7260
    %v7262 = vsel %vm349, %v7258, 0.0
    %7263 = vadd.xlane.f32.xlu0 %v7262
    %v7264 = vpop.xlane.xlu0 %7263
    %v7265 = vmul.f32 %v7261, %v1898
    %v7266 = vmul.f32 %v7264, %v1898
    %v7267 = vadd.f32 %v7265, 1e-05
    %v7268 = vadd.f32 %v7266, 1e-05
    %v7269 = vrsqrt.pop %v7267
    %v7270 = vrsqrt.pop %v7268
    %v7271 = vmul.f32 %v7255, %v7269
    %v7272 = vmul.f32 %v7256, %v7270
    %v7273 = vlaneseq
    %v7274 = vshrl.u32 %v7273, 7
    %v7275 = vsub.s32 1, %v7274
    %v7276 = vrot.slane %v3928, %v7275
    %v7277 = vmul.f32 %v7271, %v7276
    %v7278 = vmul.f32 %v7272, %v7276
    %v7279 = vlaneseq
    %v7280 = vshrl.u32 %v7279, 7
    %v7281 = vsub.s32 1, %v7280
    %v7282 = vrot.slane %v3930, %v7281
    %v7283 = vadd.f32 %v7277, %v7282
    %v7284 = vadd.f32 %v7278, %v7282
    %s7285 = scalar_lea.vmem %s18, 32
    %v7286 = vld [vmem:[%s7285] sm:$0xff]
    %v7287 = vld [vmem:[%s7285 + $0x8] sm:$0xff]
    %v7288 = vld [vmem:[%s7285 + $0x10] sm:$0xff]
    %v7289 = vld [vmem:[%s7285 + $0x18] sm:$0xff]
    %s7290 = scalar_lea.vmem [#allocation13], 1
    %v7291 = vld [vmem:[%s7290] sm:$0x1]
    %v7293 = vlaneseq
    %v7294 = vshrl.u32 %v7293, 7
    %v7295 = vsub.s32 0, %v7294
    %v7296 = vrot.slane %v7291, %v7295
    %v7299 = vsel %vm349, %v7283, 0
    %v7302 = vsel %vm349, %v7284, 0
    %7304 = vmatprep.subr.mxu0 0.0
    %7305 = vmatpush1.msra.mxu0 %v7286
    %7306 = vmatprep.subr.mxu0 0.0
    %7307 = vmatpush1.msra.mxu0 %v7287
    %7308 = vmatprep.subr.mxu0 0.0
    %7309 = vmatpush1.msra.mxu0 %v7288
    %7310 = vmatprep.subr.mxu0 0.0
    %7311 = vmatpush1.msra.mxu0 %v7289
    %7312 = vmatprep.subr.mxu0 0.0
    %7313 = vmatpush1.msra.mxu0 0.0
    %7314 = vmatprep.subr.mxu0 0.0
    %7315 = vmatpush1.msra.mxu0 0.0
    %7316 = vmatprep.subr.mxu0 0.0
    %7317 = vmatpush1.msra.mxu0 0.0
    %7318 = vmatprep.subr.mxu0 0.0
    %7319 = vmatpush1.msra.mxu0 0.0
    %7320 = vmatprep.subr.mxu0 0.0
    %7321 = vmatpush1.msra.mxu0 0.0
    %7322 = vmatprep.subr.mxu0 0.0
    %7323 = vmatpush1.msra.mxu0 0.0
    %7324 = vmatprep.subr.mxu0 0.0
    %7325 = vmatpush1.msra.mxu0 0.0
    %7326 = vmatprep.subr.mxu0 0.0
    %7327 = vmatpush1.msra.mxu0 0.0
    %7328 = vmatprep.subr.mxu0 0.0
    %7329 = vmatpush1.msra.mxu0 0.0
    %7330 = vmatprep.subr.mxu0 0.0
    %7331 = vmatpush1.msra.mxu0 0.0
    %7332 = vmatprep.subr.mxu0 0.0
    %7333 = vmatpush1.msra.mxu0 0.0
    %7334 = vmatprep.subr.mxu0 0.0
    %7335 = vmatpush1.msra.mxu0 0.0
    %7336 = vmatprep.subr.mxu0 0.0
    %7337 = vmatpush1.msra.mxu0 0.0
    %7338 = vmatprep.subr.mxu0 0.0
    %7339 = vmatpush1.msra.mxu0 0.0
    %7340 = vmatprep.subr.mxu0 0.0
    %7341 = vmatpush1.msra.mxu0 0.0
    %7342 = vmatprep.subr.mxu0 0.0
    %7343 = vmatpush1.msra.mxu0 0.0
    %7344 = vmatprep.subr.mxu0 0.0
    %7345 = vmatpush1.msra.mxu0 0.0
    %7346 = vmatprep.subr.mxu0 0.0
    %7347 = vmatpush1.msra.mxu0 0.0
    %7348 = vmatprep.subr.mxu0 0.0
    %7349 = vmatpush1.msra.mxu0 0.0
    %7350 = vmatprep.subr.mxu0 0.0
    %7351 = vmatpush1.msra.mxu0 0.0
    %7352 = vmatprep.subr.mxu0 0.0
    %7353 = vmatpush1.msra.mxu0 0.0
    %7354 = vmatprep.subr.mxu0 0.0
    %7355 = vmatpush1.msra.mxu0 0.0
    %7356 = vmatprep.subr.mxu0 0.0
    %7357 = vmatpush1.msra.mxu0 0.0
    %7358 = vmatprep.subr.mxu0 0.0
    %7359 = vmatpush1.msra.mxu0 0.0
    %7360 = vmatprep.subr.mxu0 0.0
    %7361 = vmatpush1.msra.mxu0 0.0
    %7362 = vmatprep.subr.mxu0 0.0
    %7363 = vmatpush1.msra.mxu0 0.0
    %7364 = vmatprep.subr.mxu0 0.0
    %7365 = vmatpush1.msra.mxu0 0.0
    %7366 = vmatprep.subr.mxu0 0.0
    %7367 = vmatpush1.msra.mxu0 0.0
    %7368 = vmatprep.mubr.f32.mxu0 0.0
    %7369 = vmatmul.mubr.f32.gmra.mrb[0].mxu0 %v7299
    %v7370 = vpop.f32.mrb[0].mxu0
    %v7371 = vadd.f32 %v7296, %v7370
    %v7372 = vpop.f32.mrb[0].mxu0
    %7373 = vmatprep.mubr.f32.mxu0 0.0
    %7374 = vmatmul.mubr.f32.gmra.mrb[0].mxu0 %v7302
    %v7375 = vpop.f32.mrb[0].mxu0
    %v7376 = vadd.f32 %v7296, %v7375
    %v7377 = vpop.f32.mrb[0].mxu0
    %7378 = vdwg.mxu0
    %v7379 = vmax.f32 %v7371, 0.0
    %v7380 = vmax.f32 %v7376, 0.0
    %s7381 = scalar_lea.vmem %s20, 64
    %v7382 = vld [vmem:[%s7381] sm:$0xff]
    %v7383 = vld [vmem:[%s7381 + $0x8] sm:$0xff]
    %v7384 = vld [vmem:[%s7381 + $0x10] sm:$0xff]
    %v7385 = vld [vmem:[%s7381 + $0x18] sm:$0xff]
    %v7386 = vld [vmem:[%s7381 + $0x20] sm:$0xff]
    %v7387 = vld [vmem:[%s7381 + $0x28] sm:$0xff]
    %v7388 = vld [vmem:[%s7381 + $0x30] sm:$0xff]
    %v7389 = vld [vmem:[%s7381 + $0x38] sm:$0xff]
    %s7390 = scalar_lea.vmem [#allocation14], 1
    %v7391 = vld [vmem:[%s7390] sm:$0x1]
    %v7393 = vlaneseq
    %v7394 = vshrl.u32 %v7393, 7
    %v7395 = vsub.s32 0, %v7394
    %v7396 = vrot.slane %v7391, %v7395
    %v7399 = vsel %vm3805, %v7379, 0
    %v7402 = vsel %vm3805, %v7380, 0
    %7404 = vmatprep.subr.mxu0 0.0
    %7405 = vmatpush1.msra.mxu0 %v7382
    %7406 = vmatprep.subr.mxu0 0.0
    %7407 = vmatpush1.msra.mxu0 %v7383
    %7408 = vmatprep.subr.mxu0 0.0
    %7409 = vmatpush1.msra.mxu0 %v7384
    %7410 = vmatprep.subr.mxu0 0.0
    %7411 = vmatpush1.msra.mxu0 %v7385
    %7412 = vmatprep.subr.mxu0 0.0
    %7413 = vmatpush1.msra.mxu0 %v7386
    %7414 = vmatprep.subr.mxu0 0.0
    %7415 = vmatpush1.msra.mxu0 %v7387
    %7416 = vmatprep.subr.mxu0 0.0
    %7417 = vmatpush1.msra.mxu0 %v7388
    %7418 = vmatprep.subr.mxu0 0.0
    %7419 = vmatpush1.msra.mxu0 %v7389
    %7420 = vmatprep.subr.mxu0 0.0
    %7421 = vmatpush1.msra.mxu0 0.0
    %7422 = vmatprep.subr.mxu0 0.0
    %7423 = vmatpush1.msra.mxu0 0.0
    %7424 = vmatprep.subr.mxu0 0.0
    %7425 = vmatpush1.msra.mxu0 0.0
    %7426 = vmatprep.subr.mxu0 0.0
    %7427 = vmatpush1.msra.mxu0 0.0
    %7428 = vmatprep.subr.mxu0 0.0
    %7429 = vmatpush1.msra.mxu0 0.0
    %7430 = vmatprep.subr.mxu0 0.0
    %7431 = vmatpush1.msra.mxu0 0.0
    %7432 = vmatprep.subr.mxu0 0.0
    %7433 = vmatpush1.msra.mxu0 0.0
    %7434 = vmatprep.subr.mxu0 0.0
    %7435 = vmatpush1.msra.mxu0 0.0
    %7436 = vmatprep.subr.mxu0 0.0
    %7437 = vmatpush1.msra.mxu0 0.0
    %7438 = vmatprep.subr.mxu0 0.0
    %7439 = vmatpush1.msra.mxu0 0.0
    %7440 = vmatprep.subr.mxu0 0.0
    %7441 = vmatpush1.msra.mxu0 0.0
    %7442 = vmatprep.subr.mxu0 0.0
    %7443 = vmatpush1.msra.mxu0 0.0
    %7444 = vmatprep.subr.mxu0 0.0
    %7445 = vmatpush1.msra.mxu0 0.0
    %7446 = vmatprep.subr.mxu0 0.0
    %7447 = vmatpush1.msra.mxu0 0.0
    %7448 = vmatprep.subr.mxu0 0.0
    %7449 = vmatpush1.msra.mxu0 0.0
    %7450 = vmatprep.subr.mxu0 0.0
    %7451 = vmatpush1.msra.mxu0 0.0
    %7452 = vmatprep.subr.mxu0 0.0
    %7453 = vmatpush1.msra.mxu0 0.0
    %7454 = vmatprep.subr.mxu0 0.0
    %7455 = vmatpush1.msra.mxu0 0.0
    %7456 = vmatprep.subr.mxu0 0.0
    %7457 = vmatpush1.msra.mxu0 0.0
    %7458 = vmatprep.subr.mxu0 0.0
    %7459 = vmatpush1.msra.mxu0 0.0
    %7460 = vmatprep.subr.mxu0 0.0
    %7461 = vmatpush1.msra.mxu0 0.0
    %7462 = vmatprep.subr.mxu0 0.0
    %7463 = vmatpush1.msra.mxu0 0.0
    %7464 = vmatprep.subr.mxu0 0.0
    %7465 = vmatpush1.msra.mxu0 0.0
    %7466 = vmatprep.subr.mxu0 0.0
    %7467 = vmatpush1.msra.mxu0 0.0
    %7468 = vmatprep.mubr.f32.mxu0 0.0
    %7469 = vmatmul.mubr.f32.gmra.mrb[0].mxu0 %v7399
    %v7470 = vpop.f32.mrb[0].mxu0
    %v7471 = vadd.f32 %v7396, %v7470
    %v7472 = vpop.f32.mrb[0].mxu0
    %7473 = vmatprep.mubr.f32.mxu0 0.0
    %7474 = vmatmul.mubr.f32.gmra.mrb[0].mxu0 %v7402
    %v7475 = vpop.f32.mrb[0].mxu0
    %v7476 = vadd.f32 %v7396, %v7475
    %v7477 = vpop.f32.mrb[0].mxu0
    %7478 = vdwg.mxu0
    %v7479 = vadd.f32 %v7283, %v7471
    %v7480 = vadd.f32 %v7284, %v7476
    %v7481 = vsel %vm349, %v7479, 0.0
    %7482 = vadd.xlane.f32.xlu0 %v7481
    %v7483 = vpop.xlane.xlu0 %7482
    %v7484 = vsel %vm349, %v7480, 0.0
    %7485 = vadd.xlane.f32.xlu0 %v7484
    %v7486 = vpop.xlane.xlu0 %7485
    %v7487 = vmul.f32 %v7483, %v1898
    %v7488 = vmul.f32 %v7486, %v1898
    %v7489 = vsub.f32 %v7479, %v7487
    %v7490 = vsub.f32 %v7480, %v7488
    %v7491 = vmul.f32 %v7489, %v7489
    %v7492 = vmul.f32 %v7490, %v7490
    %v7493 = vsel %vm349, %v7491, 0.0
    %7494 = vadd.xlane.f32.xlu0 %v7493
    %v7495 = vpop.xlane.xlu0 %7494
    %v7496 = vsel %vm349, %v7492, 0.0
    %7497 = vadd.xlane.f32.xlu0 %v7496
    %v7498 = vpop.xlane.xlu0 %7497
    %v7499 = vmul.f32 %v7495, %v1898
    %v7500 = vmul.f32 %v7498, %v1898
    %v7501 = vadd.f32 %v7499, 1e-05
    %v7502 = vadd.f32 %v7500, 1e-05
    %v7503 = vrsqrt.pop %v7501
    %v7504 = vrsqrt.pop %v7502
    %v7505 = vmul.f32 %v7489, %v7503
    %v7506 = vmul.f32 %v7490, %v7504
    %v7507 = vlaneseq
    %v7508 = vshrl.u32 %v7507, 7
    %v7509 = vsub.s32 2, %v7508
    %v7510 = vrot.slane %v3928, %v7509
    %v7511 = vmul.f32 %v7505, %v7510
    %v7512 = vmul.f32 %v7506, %v7510
    %v7513 = vlaneseq
    %v7514 = vshrl.u32 %v7513, 7
    %v7515 = vsub.s32 2, %v7514
    %v7516 = vrot.slane %v3930, %v7515
    %v7517 = vadd.f32 %v7511, %v7516
    %v7518 = vadd.f32 %v7512, %v7516
    %v7519 = vld [vmem:[#allocation16] sm:$0xff]
    %v7520 = vld [vmem:[#allocation16 + $0x8] sm:$0xff]
    %v7521 = vld [vmem:[#allocation16 + $0x10] sm:$0xff]
    %v7522 = vld [vmem:[#allocation16 + $0x18] sm:$0xff]
    %v7523 = vld [vmem:[#allocation17] sm:$0x1]
    %v7525 = vlaneseq
    %v7526 = vshrl.u32 %v7525, 7
    %v7527 = vsub.s32 0, %v7526
    %v7528 = vrot.slane %v7523, %v7527
    %v7531 = vsel %vm349, %v7517, 0
    %v7534 = vsel %vm349, %v7518, 0
    %7536 = vmatprep.subr.mxu0 0.0
    %7537 = vmatpush1.msra.mxu0 %v7519
    %7538 = vmatprep.subr.mxu0 0.0
    %7539 = vmatpush1.msra.mxu0 %v7520
    %7540 = vmatprep.subr.mxu0 0.0
    %7541 = vmatpush1.msra.mxu0 %v7521
    %7542 = vmatprep.subr.mxu0 0.0
    %7543 = vmatpush1.msra.mxu0 %v7522
    %7544 = vmatprep.subr.mxu0 0.0
    %7545 = vmatpush1.msra.mxu0 0.0
    %7546 = vmatprep.subr.mxu0 0.0
    %7547 = vmatpush1.msra.mxu0 0.0
    %7548 = vmatprep.subr.mxu0 0.0
    %7549 = vmatpush1.msra.mxu0 0.0
    %7550 = vmatprep.subr.mxu0 0.0
    %7551 = vmatpush1.msra.mxu0 0.0
    %7552 = vmatprep.subr.mxu0 0.0
    %7553 = vmatpush1.msra.mxu0 0.0
    %7554 = vmatprep.subr.mxu0 0.0
    %7555 = vmatpush1.msra.mxu0 0.0
    %7556 = vmatprep.subr.mxu0 0.0
    %7557 = vmatpush1.msra.mxu0 0.0
    %7558 = vmatprep.subr.mxu0 0.0
    %7559 = vmatpush1.msra.mxu0 0.0
    %7560 = vmatprep.subr.mxu0 0.0
    %7561 = vmatpush1.msra.mxu0 0.0
    %7562 = vmatprep.subr.mxu0 0.0
    %7563 = vmatpush1.msra.mxu0 0.0
    %7564 = vmatprep.subr.mxu0 0.0
    %7565 = vmatpush1.msra.mxu0 0.0
    %7566 = vmatprep.subr.mxu0 0.0
    %7567 = vmatpush1.msra.mxu0 0.0
    %7568 = vmatprep.subr.mxu0 0.0
    %7569 = vmatpush1.msra.mxu0 0.0
    %7570 = vmatprep.subr.mxu0 0.0
    %7571 = vmatpush1.msra.mxu0 0.0
    %7572 = vmatprep.subr.mxu0 0.0
    %7573 = vmatpush1.msra.mxu0 0.0
    %7574 = vmatprep.subr.mxu0 0.0
    %7575 = vmatpush1.msra.mxu0 0.0
    %7576 = vmatprep.subr.mxu0 0.0
    %7577 = vmatpush1.msra.mxu0 0.0
    %7578 = vmatprep.subr.mxu0 0.0
    %7579 = vmatpush1.msra.mxu0 0.0
    %7580 = vmatprep.subr.mxu0 0.0
    %7581 = vmatpush1.msra.mxu0 0.0
    %7582 = vmatprep.subr.mxu0 0.0
    %7583 = vmatpush1.msra.mxu0 0.0
    %7584 = vmatprep.subr.mxu0 0.0
    %7585 = vmatpush1.msra.mxu0 0.0
    %7586 = vmatprep.subr.mxu0 0.0
    %7587 = vmatpush1.msra.mxu0 0.0
    %7588 = vmatprep.subr.mxu0 0.0
    %7589 = vmatpush1.msra.mxu0 0.0
    %7590 = vmatprep.subr.mxu0 0.0
    %7591 = vmatpush1.msra.mxu0 0.0
    %7592 = vmatprep.subr.mxu0 0.0
    %7593 = vmatpush1.msra.mxu0 0.0
    %7594 = vmatprep.subr.mxu0 0.0
    %7595 = vmatpush1.msra.mxu0 0.0
    %7596 = vmatprep.subr.mxu0 0.0
    %7597 = vmatpush1.msra.mxu0 0.0
    %7598 = vmatprep.subr.mxu0 0.0
    %7599 = vmatpush1.msra.mxu0 0.0
    %7600 = vmatprep.mubr.f32.mxu0 0.0
    %7601 = vmatmul.mubr.f32.gmra.mrb[0].mxu0 %v7531
    %v7602 = vpop.f32.mrb[0].mxu0
    %v7603 = vadd.f32 %v7528, %v7602
    %v7604 = vpop.f32.mrb[0].mxu0
    %7605 = vmatprep.mubr.f32.mxu0 0.0
    %7606 = vmatmul.mubr.f32.gmra.mrb[0].mxu0 %v7534
    %v7607 = vpop.f32.mrb[0].mxu0
    %v7608 = vadd.f32 %v7528, %v7607
    %v7609 = vpop.f32.mrb[0].mxu0
    %7610 = vdwg.mxu0
    %7611 = vst.msk [vmem:[#allocation19] sm:$0xff] %vm234, %v7603
    %7612 = vst.msk [vmem:[#allocation19 + $0x8] sm:$0xff] %vm234, %v7608
    // Predicated region
    $region138: #{decoder_forward.1} parent=1 // pred_check
      _
    $region139: #{decoder_forward.1} parent=1 // pred_check_branch
      %7614 = sbr.rel (0) target = $region141
    $region140: #{decoder_forward.1} parent=1 // pred_region
      %s7616 = ssub.s32 256, 256
      %7617 = vsyncadd [#allocation4], %s7616
      %s7618 = sshll.u32 [#allocation19], 4
      %s7619 = int_to_ptr.vmem [resolvable:$true] %s7618
      %7624 = dma.vmem_to_hbm [thread:$0]  %s7619, 256, %s24, [#allocation4], 128, 128, 8
    $region141: #{decoder_forward.1} parent=1 // pred_fallthru
      _
    // Predicated region
    $region142: #{decoder_forward.1} parent=1 // pred_check
      _
    $region143: #{decoder_forward.1} parent=1 // pred_check_branch
      %7626 = sbr.rel (0) target = $region145
    $region144: #{decoder_forward.1} parent=1 // pred_region
      %s7628 = ssub.s32 1024, 1024
      %7629 = vsyncadd [#allocation21], %s7628
      %s7630 = sshll.u32 [#allocation20], 4
      %s7631 = int_to_ptr.vmem [resolvable:$true] %s7630
      %7636 = dma.vmem_to_hbm [thread:$0]  %s7631, 1024, %s25, [#allocation21], 128, 128, 8
    $region145: #{decoder_forward.1} parent=1 // pred_fallthru
      _
    // Predicated region
    $region146: #{decoder_forward.1} parent=1 // pred_check
      _
    $region147: #{decoder_forward.1} parent=1 // pred_check_branch
      %7638 = sbr.rel (0) target = $region149
    $region148: #{decoder_forward.1} parent=1 // pred_region
      %7639 = dma.done [#allocation4], 256
    $region149: #{decoder_forward.1} parent=1 // pred_fallthru
      _
    // Predicated region
    $region150: #{decoder_forward.1} parent=1 // pred_check
      _
    $region151: #{decoder_forward.1} parent=1 // pred_check_branch
      %7641 = sbr.rel (0) target = $region153
    $region152: #{decoder_forward.1} parent=1 // pred_region
      %7642 = dma.done [#allocation21], 1024
    $region153: #{decoder_forward.1} parent=1 // pred_fallthru
      _
    %7643 = vsyncpa [#allocation3], 1
    %7644 = vsyncpa [#allocation6], 1
    %7645 = vsyncpa [#allocation9], 1
    %7646 = vsyncpa [#allocation12], 1
    %7647 = vsyncpa [#allocation15], 1
    %7648 = vsyncpa [#allocation18], 1
    %7649 = vsyncpa [#allocation4], 1
    %7650 = vsyncpa [#allocation21], 1

</llo_original>
